<compile_context>
chip_gen: v5e
topology: v5e:2x2
jax: 0.10.0
libtpu: 0.0.40
codegen_flags: <defaults>
</compile_context>

<pallas_src>
import jax
import jax.numpy as jnp
from jax.experimental import pallas as pl
from jax.experimental.pallas import tpu as pltpu

BN_EPS = 1e-3   # nn.BatchNorm2d(eps=0.001) in the reference implementation
LANE = 128


def _round_up(x, m):
    return ((x + m - 1) // m) * m


# ---------------------------------------------------------------------------
# Pallas kernels
# ---------------------------------------------------------------------------
def _make_conv_kernel(prologue, epilogue, has_bias, out_dtype):
    """Fused [BN+ReLU prologue] -> single matmul -> [+bias] -> [BN+ReLU]."""

    def kernel(*refs):
        i = 0
        a_ref = refs[i]; i += 1           # (tm, K)   bf16 activations
        w_ref = refs[i]; i += 1           # (K, Opad) bf16 weights
        if prologue:
            isc_ref = refs[i]; i += 1     # (1, K) f32 BN scale (input side)
            ish_ref = refs[i]; i += 1     # (1, K) f32 BN shift
        if epilogue:
            osc_ref = refs[i]; i += 1     # (1, Opad) f32 BN scale (output side)
            osh_ref = refs[i]; i += 1     # (1, Opad) f32 BN shift
        if has_bias:
            bias_ref = refs[i]; i += 1    # (1, Opad) f32 conv bias
        o_ref = refs[i]                   # (tm, Opad)

        a = a_ref[...]
        if prologue:
            a = jnp.maximum(a.astype(jnp.float32) * isc_ref[...] + ish_ref[...],
                            0.0).astype(jnp.bfloat16)
        out = jnp.dot(a, w_ref[...], preferred_element_type=jnp.float32)
        if has_bias:                       # bias belongs to the conv itself:
            out = out + bias_ref[...]      # add BEFORE any output-side BN+ReLU
        if epilogue:
            out = jnp.maximum(out * osc_ref[...] + osh_ref[...], 0.0)
        o_ref[...] = out.astype(out_dtype)

    return kernel


def _vmem_limit(tm, K, Opad, out_itemsize):
    # Explicit VMEM budget from the actual (double-buffered) block sizes,
    # capped at 48 MiB so it is always safe on v7x's 64 MiB-per-TC VMEM.
    blk = (2 * tm * K * 2 + 2 * K * Opad * 2
           + 2 * tm * Opad * out_itemsize + 6 * (K + Opad) * 4)
    return int(min(max(2 * blk + (8 << 20), 16 << 20), 48 << 20))


def fused_conv_matmul(a2d, w2, *, in_scale=None, in_shift=None,
                      out_scale=None, out_shift=None, bias=None,
                      tm, flops_hint=None, out_dtype=jnp.bfloat16):
    """a2d: (Mpad, K) bf16;  w2: (K, Opad) bf16  ->  (Mpad, Opad)."""
    Mpad, K = a2d.shape
    _, Opad = w2.shape
    prologue = in_scale is not None
    epilogue = out_scale is not None
    has_bias = bias is not None

    in_specs = [
        pl.BlockSpec((tm, K), lambda i: (i, 0)),
        pl.BlockSpec((K, Opad), lambda i: (0, 0)),     # constant -> DMA'd once
    ]
    operands = [a2d, w2]
    if prologue:
        in_specs += [pl.BlockSpec((1, K), lambda i: (0, 0)),
                     pl.BlockSpec((1, K), lambda i: (0, 0))]
        operands += [in_scale, in_shift]
    if epilogue:
        in_specs += [pl.BlockSpec((1, Opad), lambda i: (0, 0)),
                     pl.BlockSpec((1, Opad), lambda i: (0, 0))]
        operands += [out_scale, out_shift]
    if has_bias:
        in_specs += [pl.BlockSpec((1, Opad), lambda i: (0, 0))]
        operands += [bias]

    out_itemsize = jnp.dtype(out_dtype).itemsize
    flops = flops_hint if flops_hint is not None else 2 * Mpad * K * Opad
    bytes_accessed = (a2d.size * a2d.dtype.itemsize
                      + w2.size * w2.dtype.itemsize
                      + Mpad * Opad * out_itemsize)

    return pl.pallas_call(
        _make_conv_kernel(prologue, epilogue, has_bias, out_dtype),
        out_shape=jax.ShapeDtypeStruct((Mpad, Opad), out_dtype),
        grid=(Mpad // tm,),
        in_specs=in_specs,
        out_specs=pl.BlockSpec((tm, Opad), lambda i: (i, 0)),
        compiler_params=pltpu.CompilerParams(
            dimension_semantics=("parallel",),
            vmem_limit_bytes=_vmem_limit(tm, K, Opad, out_itemsize)),
        cost_estimate=pl.CostEstimate(flops=int(flops), transcendentals=0,
                                      bytes_accessed=int(bytes_accessed)),
    )(*operands)


def _head_kernel(x_ref, s_ref, b_ref, w_ref, bias_ref, o_ref):
    # Fused CatBnAct (BN+ReLU) + global average pool + 1x1 classifier conv.
    x = x_ref[...].astype(jnp.float32)                       # (N, HW, C)
    y = jnp.maximum(x * s_ref[...] + b_ref[...], 0.0)
    pooled = jnp.mean(y, axis=1)                             # (N, C)
    o_ref[...] = (jnp.dot(pooled, w_ref[...],
                          preferred_element_type=jnp.float32)
                  + bias_ref[...])


def head_pallas(x3d, scale, shift, w_cls, b_cls):
    N, HW, C = x3d.shape
    Cls = w_cls.shape[1]
    return pl.pallas_call(
        _head_kernel,
        out_shape=jax.ShapeDtypeStruct((N, Cls), jnp.float32),
        grid=(1,),
        in_specs=[pl.BlockSpec((N, HW, C), lambda i: (0, 0, 0)),
                  pl.BlockSpec((1, 1, C), lambda i: (0, 0, 0)),
                  pl.BlockSpec((1, 1, C), lambda i: (0, 0, 0)),
                  pl.BlockSpec((C, Cls), lambda i: (0, 0)),
                  pl.BlockSpec((1, Cls), lambda i: (0, 0))],
        out_specs=pl.BlockSpec((N, Cls), lambda i: (0, 0)),
        compiler_params=pltpu.CompilerParams(
            dimension_semantics=("arbitrary",),
            vmem_limit_bytes=32 * 1024 * 1024),
    )(x3d, scale, shift, w_cls, b_cls)


# ---------------------------------------------------------------------------
# Conv wrapper glue (tiling, im2col for spatial convs)
# ---------------------------------------------------------------------------
def _choose_tiles(M):
    Mp = _round_up(max(M, 8), 8)
    if Mp > 1024:
        tm = 512                           # big-M layers: HBM-roofline tiles
    elif Mp >= 16:
        tm = _round_up((Mp + 1) // 2, 8)   # >=2 tiles so v7x's 2nd TC has work
    else:
        tm = Mp
    return tm, _round_up(Mp, tm)


def _im2col(x, kh, kw, stride, padding, Ho, Wo, Mpad, Kpad):
    # TODO(synk): for large inputs the shifted windows should be produced by
    # in-kernel DMA (pl.ANY HBM ref + per-tap offsets) instead of XLA slices.
    N, H, W, C = x.shape
    if padding > 0:
        x = jnp.pad(x, ((0, 0), (padding, padding), (padding, padding), (0, 0)))
    M = N * Ho * Wo
    cols = []
    for i in range(kh):
        for j in range(kw):
            sl = x[:, i:i + stride * Ho:stride, j:j + stride * Wo:stride, :]
            cols.append(sl.reshape(M, C))
    a = jnp.concatenate(cols, axis=1)                    # (M, kh*kw*C) tap-major
    K = kh * kw * C
    if Mpad > M or Kpad > K:
        a = jnp.pad(a, ((0, Mpad - M), (0, Kpad - K)))
    return a


def conv_layer(x, p, out_dtype=jnp.bfloat16):
    """x: (N,H,W,Cin) bf16; p: prepared conv params. Returns (N,Ho,Wo,O)."""
    N, H, W, Cin = x.shape
    kh, kw, stride, padding = p['kh'], p['kw'], p['stride'], p['padding']
    Ho = (H + 2 * padding - kh) // stride + 1
    Wo = (W + 2 * padding - kw) // stride + 1
    M = N * Ho * Wo
    tm, Mpad = _choose_tiles(M)
    if kh == 1 and kw == 1 and padding == 0:
        # 1x1 conv: feed the activation directly, no tap materialization.
        xs = x if stride == 1 else x[:, ::stride, ::stride, :]
        a2d = xs.reshape(M, Cin)
        if Mpad > M:
            a2d = jnp.pad(a2d, ((0, Mpad - M), (0, 0)))
    else:
        a2d = _im2col(x, kh, kw, stride, padding, Ho, Wo, Mpad, p['Kpad'])
    out = fused_conv_matmul(
        a2d, p['w2'],
        in_scale=p.get('in_scale'), in_shift=p.get('in_shift'),
        out_scale=p.get('out_scale'), out_shift=p.get('out_shift'),
        bias=p.get('bias'), tm=tm,
        flops_hint=2 * M * p['K'] * p['O'], out_dtype=out_dtype)
    return out[:M, :p['O']].reshape(N, Ho, Wo, p['O'])


# ---------------------------------------------------------------------------
# Deterministic parameter construction (mirrors DPN.__init__), with all
# weight transposes / BN folding / padding done once at build time.
# ---------------------------------------------------------------------------
class KeyGen:
    def __init__(self, seed):
        self._key = jax.random.PRNGKey(seed)

    def __call__(self):
        self._key, sub = jax.random.split(self._key)
        return sub

    def normal(self, shape, scale=0.05):
        return scale * jax.random.normal(self(), shape, dtype=jnp.float32)

    def uniform(self, shape, lo=0.5, hi=1.5):
        return jax.random.uniform(self(), shape, jnp.float32, lo, hi)


def _fold_bn(rng, C):
    gamma = rng.uniform((C,))
    beta = rng.normal((C,))
    mean = rng.normal((C,))
    var = rng.uniform((C,))
    scale = gamma / jnp.sqrt(var + BN_EPS)
    shift = beta - mean * scale
    return scale.astype(jnp.float32), shift.astype(jnp.float32)


def _pad_row(v, n):
    v = v.reshape(1, -1).astype(jnp.float32)
    if v.shape[1] < n:
        v = jnp.pad(v, ((0, 0), (0, n - v.shape[1])))
    return v


def _prep_weight(w_oihw, groups=1):
    """OIHW -> (Kpad, Opad) bf16; taps folded into K (tap-major), O padded."""
    O, Cg, kh, kw = w_oihw.shape
    Cin = Cg * groups
    T = kh * kw
    if groups == 1:
        w = jnp.transpose(w_oihw, (2, 3, 1, 0)).reshape(T, Cin, O)
    else:
        # TODO(synk): block-diagonal grouped weight wastes (G-1)/G MXU FLOPs;
        # with groups=2 and O padded 8->128 anyway the waste is negligible
        # here, but realistic group counts need a per-group grid axis.
        Og = O // groups
        w = jnp.zeros((T, Cin, O), jnp.float32)
        for g in range(groups):
            wg = jnp.transpose(w_oihw[g * Og:(g + 1) * Og],
                               (2, 3, 1, 0)).reshape(T, Cg, Og)
            w = w.at[:, g * Cg:(g + 1) * Cg, g * Og:(g + 1) * Og].set(wg)
    K = T * Cin
    w2 = w.reshape(K, O)
    # Pad K to a lane-dense multiple of 128 for im2col'd spatial convs; keep
    # exact K for 1x1 convs (padding would force an activation copy).
    Kpad = _round_up(K, LANE) if T > 1 else K
    Opad = _round_up(O, LANE)
    if Kpad > K or Opad > O:
        w2 = jnp.pad(w2, ((0, Kpad - K), (0, Opad - O)))
    return w2.astype(jnp.bfloat16), K, Kpad, O, Opad


def _make_conv(w_oihw, *, groups=1, stride=1, padding=0,
               in_bn=None, out_bn=None, bias=None):
    kh, kw = int(w_oihw.shape[2]), int(w_oihw.shape[3])
    w2, K, Kpad, O, Opad = _prep_weight(w_oihw, groups)
    p = dict(w2=w2, K=K, Kpad=Kpad, O=O, Opad=Opad, kh=kh, kw=kw,
             stride=stride, padding=padding)
    if in_bn is not None:
        assert kh == 1 and kw == 1, "BN prologue only fused into 1x1 convs"
        p['in_scale'] = in_bn[0].reshape(1, -1)
        p['in_shift'] = in_bn[1].reshape(1, -1)
    if out_bn is not None:
        p['out_scale'] = _pad_row(out_bn[0], Opad)
        p['out_shift'] = _pad_row(out_bn[1], Opad)
    if bias is not None:
        p['bias'] = _pad_row(bias, Opad)
    return p


def _make_dual_block(rng, in_chs, num_1x1_a, num_3x3_b, num_1x1_c, inc, groups,
                     block_type, b):
    # TODO(synk): b=True head (CatBnAct + two 1x1 convs) and test_time_pool
    # logits path are not implemented (defaults are False).
    assert not b
    stride = 2 if block_type == 'down' else 1
    has_proj = block_type in ('proj', 'down')
    blk = dict(num_1x1_c=num_1x1_c, has_proj=has_proj)
    if has_proj:
        bn_w = _fold_bn(rng, in_chs)
        w_w = rng.normal((num_1x1_c + 2 * inc, in_chs, 1, 1))
        blk['c1x1_w'] = _make_conv(w_w, stride=stride, in_bn=bn_w)
    bn_a = _fold_bn(rng, in_chs)
    w_a = rng.normal((num_1x1_a, in_chs, 1, 1))
    bn_b = _fold_bn(rng, num_1x1_a)
    w_b = rng.normal((num_3x3_b, num_1x1_a // groups, 3, 3))
    bn_c = _fold_bn(rng, num_3x3_b)
    w_c = rng.normal((num_1x1_c + inc, num_3x3_b, 1, 1))
    # c3x3_b's BN+ReLU becomes the epilogue of c1x1_a and c1x1_c's BN+ReLU the
    # epilogue of c3x3_b, so the 3x3 conv's zero padding is applied to the
    # already-activated tensor (identical to BnActConv2d semantics).
    blk['c1x1_a'] = _make_conv(w_a, in_bn=bn_a, out_bn=bn_b)
    blk['c3x3_b'] = _make_conv(w_b, groups=groups, stride=stride, padding=1,
                               out_bn=bn_c)
    blk['c1x1_c'] = _make_conv(w_c)
    return blk


def build_dpn(seed=0, small=True, num_init_features=8, k_r=8, groups=2, b=False,
              k_sec=(1, 2, 1, 1), inc_sec=(4, 4, 4, 4), num_classes=10):
    rng = KeyGen(seed)
    bw_factor = 1 if small else 4
    ks, pad = (3, 1) if small else (7, 3)
    # InputBlock: conv(stride 2) with fused BN+ReLU epilogue, then max-pool.
    w_stem = rng.normal((num_init_features, 3, ks, ks))
    bn_stem = _fold_bn(rng, num_init_features)
    input_block = _make_conv(w_stem, stride=2, padding=pad, out_bn=bn_stem)

    dual_blocks = []
    in_chs = num_init_features
    stage_bw = (64, 128, 256, 512)
    for si in range(4):
        bw = stage_bw[si] * bw_factor
        inc = inc_sec[si]
        r = (k_r * bw) // (64 * bw_factor)
        first_type = 'proj' if si == 0 else 'down'
        dual_blocks.append(_make_dual_block(rng, in_chs, r, r, bw, inc, groups,
                                            first_type, b))
        in_chs = bw + 3 * inc
        for _ in range(2, k_sec[si] + 1):
            dual_blocks.append(_make_dual_block(rng, in_chs, r, r, bw, inc,
                                                groups, 'normal', b))
            in_chs += inc

    # Head: CatBnAct + global avg pool + 1x1 classifier conv, fused in one kernel.
    s_f, sh_f = _fold_bn(rng, in_chs)
    w_cls = rng.normal((num_classes, in_chs, 1, 1))
    b_cls = rng.normal((num_classes,))
    head = dict(scale=s_f.reshape(1, 1, -1), shift=sh_f.reshape(1, 1, -1),
                w_cls=jnp.transpose(w_cls[:, :, 0, 0]).astype(jnp.float32),
                b_cls=b_cls.reshape(1, -1).astype(jnp.float32))
    return dict(input_block=input_block, dual_blocks=dual_blocks, head=head)


# ---------------------------------------------------------------------------
# Forward pass (DPN.forward, test_time_pool=False, b=False)
# ---------------------------------------------------------------------------
def _max_pool_3x3_s2_p1(x):
    # TODO(synk): max-pool uses lax.reduce_window glue, not a Pallas kernel.
    return jax.lax.reduce_window(
        x, jnp.array(-jnp.inf, x.dtype), jax.lax.max,
        window_dimensions=(1, 3, 3, 1), window_strides=(1, 2, 2, 1),
        padding=((0, 0), (1, 1), (1, 1), (0, 0)))


def _dual_path_forward(x_cat, split, blk):
    c = blk['num_1x1_c']
    if blk['has_proj']:
        x_s = conv_layer(x_cat, blk['c1x1_w'])        # fused BN_w+ReLU prologue
        x_s1, x_s2 = x_s[..., :c], x_s[..., c:]
    else:
        x_s1, x_s2 = x_cat[..., :split], x_cat[..., split:]
    a = conv_layer(x_cat, blk['c1x1_a'])              # BN_a prologue, BN_b epi
    m = conv_layer(a, blk['c3x3_b'])                  # grouped 3x3, BN_c epi
    y = conv_layer(m, blk['c1x1_c'])                  # plain 1x1
    resid = x_s1 + y[..., :c]
    # TODO(synk): fuse the residual add + concat layout into the c1x1_c kernel
    # (extra addend input + writing the concatenated channel layout directly)
    # to remove these XLA slice/add/concat round trips.
    x_cat = jnp.concatenate([resid, x_s2, y[..., c:]], axis=-1)
    return x_cat, c


def dpn_forward(params, x_nchw):
    x = jnp.transpose(x_nchw, (0, 2, 3, 1)).astype(jnp.bfloat16)  # NCHW -> NHWC
    x = conv_layer(x, params['input_block'])   # stem conv + fused BN + ReLU
    x = _max_pool_3x3_s2_p1(x)
    split = None
    for blk in params['dual_blocks']:
        x, split = _dual_path_forward(x, split, blk)
    # Fused head: CatBnAct + global average pool + classifier (bias) + flatten.
    N, H, W, C = x.shape
    x3d = x.reshape(N, H * W, C)
    h = params['head']
    out = head_pallas(x3d, h['scale'], h['shift'], h['w_cls'], h['b_cls'])
    return out


if __name__ == "__main__":
    params = build_dpn(seed=0)
    x = jax.random.normal(jax.random.PRNGKey(0), (2, 3, 32, 32),
                          dtype=jnp.float32)
    fwd = jax.jit(lambda inp: dpn_forward(params, inp))
    out = jax.block_until_ready(fwd(x))
    assert out.shape == (2, 10), out.shape
    assert bool(jnp.all(jnp.isfinite(out)))
    print("KERNEL_OK")
</pallas_src>

<mosaic_0001>
module attributes {stable_mosaic.version = 11 : i64} {
  func.func @kernel(%arg0: i32, %arg1: memref<256x128xbf16, #tpu.memory_space<vmem>>, %arg2: memref<128x128xbf16, #tpu.memory_space<vmem>>, %arg3: memref<1x128xf32, #tpu.memory_space<vmem>>, %arg4: memref<1x128xf32, #tpu.memory_space<vmem>>, %arg5: memref<256x128xbf16, #tpu.memory_space<vmem>>) attributes {dimension_semantics = [#tpu.dimension_semantics<parallel>], iteration_bounds = array<i64: 2>, scalar_prefetch = 0 : i64, scratch_operands = 0 : i64, tpu.core_type = #tpu.core_type<tc>, window_params = [{transform_indices = @transform_0, window_bounds = array<i64: 256, 128>}, {pipeline_mode = #tpu.pipeline_mode<synchronous>, transform_indices = @transform_1, window_bounds = array<i64: 128, 128>}, {pipeline_mode = #tpu.pipeline_mode<synchronous>, transform_indices = @transform_2, window_bounds = array<i64: 1, 128>}, {pipeline_mode = #tpu.pipeline_mode<synchronous>, transform_indices = @transform_3, window_bounds = array<i64: 1, 128>}, {transform_indices = @transform_4, window_bounds = array<i64: 256, 128>}]} {
    %c0 = arith.constant 0 : index
    %c0_0 = arith.constant 0 : index
    %0 = vector.load %arg1[%c0, %c0_0] : memref<256x128xbf16, #tpu.memory_space<vmem>>, vector<256x128xbf16>
    %c0_1 = arith.constant 0 : index
    %c0_2 = arith.constant 0 : index
    %1 = vector.load %arg2[%c0_1, %c0_2] : memref<128x128xbf16, #tpu.memory_space<vmem>>, vector<128x128xbf16>
    %cst = arith.constant dense<0.000000e+00> : vector<256x128xf32>
    %2 = tpu.matmul %0, %1, %cst {dimension_numbers = #tpu.dot_dimension_numbers<[1], [0], [0], [1], [0, 0, 1, 1], [], []>} : vector<256x128xbf16>, vector<128x128xbf16>, vector<256x128xf32> -> vector<256x128xf32>
    %c0_3 = arith.constant 0 : index
    %c0_4 = arith.constant 0 : index
    %3 = vector.load %arg3[%c0_3, %c0_4] : memref<1x128xf32, #tpu.memory_space<vmem>>, vector<1x128xf32>
    %4 = vector.broadcast %3 : vector<1x128xf32> to vector<256x128xf32>
    %5 = arith.mulf %2, %4 : vector<256x128xf32>
    %c0_5 = arith.constant 0 : index
    %c0_6 = arith.constant 0 : index
    %6 = vector.load %arg4[%c0_5, %c0_6] : memref<1x128xf32, #tpu.memory_space<vmem>>, vector<1x128xf32>
    %7 = vector.broadcast %6 : vector<1x128xf32> to vector<256x128xf32>
    %8 = arith.addf %5, %7 : vector<256x128xf32>
    %cst_7 = arith.constant 0.000000e+00 : f32
    %9 = vector.broadcast %cst_7 : f32 to vector<256x128xf32>
    %10 = arith.maximumf %8, %9 : vector<256x128xf32>
    %11 = arith.truncf %10 : vector<256x128xf32> to vector<256x128xbf16>
    %c0_8 = arith.constant 0 : index
    %c0_9 = arith.constant 0 : index
    %12 = vector.load %arg5[%c0_8, %c0_9] : memref<256x128xbf16, #tpu.memory_space<vmem>>, vector<256x128xbf16>
    tpu.vector_store %arg5[%c0_8, %c0_9], %11 {strides = array<i32>} : memref<256x128xbf16, #tpu.memory_space<vmem>>, vector<256x128xbf16>,
    return
  }
  func.func @transform_0(%arg0: i32) -> (i32, i32) {
    %c0_i32 = arith.constant 0 : i32
    %c0_i32_0 = arith.constant 0 : i32
    return %arg0, %c0_i32 : i32, i32
  }
  func.func @transform_1(%arg0: i32) -> (i32, i32) {
    %c0_i32 = arith.constant 0 : i32
    %c0_i32_0 = arith.constant 0 : i32
    %c0_i32_1 = arith.constant 0 : i32
    return %c0_i32, %c0_i32_0 : i32, i32
  }
  func.func @transform_2(%arg0: i32) -> (i32, i32) {
    %c0_i32 = arith.constant 0 : i32
    %c0_i32_0 = arith.constant 0 : i32
    %c0_i32_1 = arith.constant 0 : i32
    return %c0_i32, %c0_i32_0 : i32, i32
  }
  func.func @transform_3(%arg0: i32) -> (i32, i32) {
    %c0_i32 = arith.constant 0 : i32
    %c0_i32_0 = arith.constant 0 : i32
    %c0_i32_1 = arith.constant 0 : i32
    return %c0_i32, %c0_i32_0 : i32, i32
  }
  func.func @transform_4(%arg0: i32) -> (i32, i32) {
    %c0_i32 = arith.constant 0 : i32
    %c0_i32_0 = arith.constant 0 : i32
    return %arg0, %c0_i32 : i32, i32
  }
}

module attributes {stable_mosaic.version = 11 : i64} {
  func.func @kernel(%arg0: i32, %arg1: memref<64x8xbf16, #tpu.memory_space<vmem>>, %arg2: memref<8x128xbf16, #tpu.memory_space<vmem>>, %arg3: memref<1x8xf32, #tpu.memory_space<vmem>>, %arg4: memref<1x8xf32, #tpu.memory_space<vmem>>, %arg5: memref<1x128xf32, #tpu.memory_space<vmem>>, %arg6: memref<1x128xf32, #tpu.memory_space<vmem>>, %arg7: memref<64x128xbf16, #tpu.memory_space<vmem>>) attributes {dimension_semantics = [#tpu.dimension_semantics<parallel>], iteration_bounds = array<i64: 2>, scalar_prefetch = 0 : i64, scratch_operands = 0 : i64, tpu.core_type = #tpu.core_type<tc>, window_params = [{transform_indices = @transform_0, window_bounds = array<i64: 64, 8>}, {pipeline_mode = #tpu.pipeline_mode<synchronous>, transform_indices = @transform_1, window_bounds = array<i64: 8, 128>}, {pipeline_mode = #tpu.pipeline_mode<synchronous>, transform_indices = @transform_2, window_bounds = array<i64: 1, 8>}, {pipeline_mode = #tpu.pipeline_mode<synchronous>, transform_indices = @transform_3, window_bounds = array<i64: 1, 8>}, {pipeline_mode = #tpu.pipeline_mode<synchronous>, transform_indices = @transform_4, window_bounds = array<i64: 1, 128>}, {pipeline_mode = #tpu.pipeline_mode<synchronous>, transform_indices = @transform_5, window_bounds = array<i64: 1, 128>}, {transform_indices = @transform_6, window_bounds = array<i64: 64, 128>}]} {
    %c0 = arith.constant 0 : index
    %c0_0 = arith.constant 0 : index
    %0 = vector.load %arg1[%c0, %c0_0] : memref<64x8xbf16, #tpu.memory_space<vmem>>, vector<64x8xbf16>
    %1 = arith.extf %0 : vector<64x8xbf16> to vector<64x8xf32>
    %c0_1 = arith.constant 0 : index
    %c0_2 = arith.constant 0 : index
    %2 = vector.load %arg3[%c0_1, %c0_2] : memref<1x8xf32, #tpu.memory_space<vmem>>, vector<1x8xf32>
    %3 = vector.broadcast %2 : vector<1x8xf32> to vector<64x8xf32>
    %4 = arith.mulf %1, %3 : vector<64x8xf32>
    %c0_3 = arith.constant 0 : index
    %c0_4 = arith.constant 0 : index
    %5 = vector.load %arg4[%c0_3, %c0_4] : memref<1x8xf32, #tpu.memory_space<vmem>>, vector<1x8xf32>
    %6 = vector.broadcast %5 : vector<1x8xf32> to vector<64x8xf32>
    %7 = arith.addf %4, %6 : vector<64x8xf32>
    %cst = arith.constant 0.000000e+00 : f32
    %8 = vector.broadcast %cst : f32 to vector<64x8xf32>
    %9 = arith.maximumf %7, %8 : vector<64x8xf32>
    %10 = arith.truncf %9 : vector<64x8xf32> to vector<64x8xbf16>
    %c0_5 = arith.constant 0 : index
    %c0_6 = arith.constant 0 : index
    %11 = vector.load %arg2[%c0_5, %c0_6] : memref<8x128xbf16, #tpu.memory_space<vmem>>, vector<8x128xbf16>
    %cst_7 = arith.constant dense<0.000000e+00> : vector<64x128xf32>
    %12 = tpu.matmul %10, %11, %cst_7 {dimension_numbers = #tpu.dot_dimension_numbers<[1], [0], [0], [1], [0, 0, 1, 1], [], []>} : vector<64x8xbf16>, vector<8x128xbf16>, vector<64x128xf32> -> vector<64x128xf32>
    %c0_8 = arith.constant 0 : index
    %c0_9 = arith.constant 0 : index
    %13 = vector.load %arg5[%c0_8, %c0_9] : memref<1x128xf32, #tpu.memory_space<vmem>>, vector<1x128xf32>
    %14 = vector.broadcast %13 : vector<1x128xf32> to vector<64x128xf32>
    %15 = arith.mulf %12, %14 : vector<64x128xf32>
    %c0_10 = arith.constant 0 : index
    %c0_11 = arith.constant 0 : index
    %16 = vector.load %arg6[%c0_10, %c0_11] : memref<1x128xf32, #tpu.memory_space<vmem>>, vector<1x128xf32>
    %17 = vector.broadcast %16 : vector<1x128xf32> to vector<64x128xf32>
    %18 = arith.addf %15, %17 : vector<64x128xf32>
    %cst_12 = arith.constant 0.000000e+00 : f32
    %19 = vector.broadcast %cst_12 : f32 to vector<64x128xf32>
    %20 = arith.maximumf %18, %19 : vector<64x128xf32>
    %21 = arith.truncf %20 : vector<64x128xf32> to vector<64x128xbf16>
    %c0_13 = arith.constant 0 : index
    %c0_14 = arith.constant 0 : index
    %22 = vector.load %arg7[%c0_13, %c0_14] : memref<64x128xbf16, #tpu.memory_space<vmem>>, vector<64x128xbf16>
    tpu.vector_store %arg7[%c0_13, %c0_14], %21 {strides = array<i32>} : memref<64x128xbf16, #tpu.memory_space<vmem>>, vector<64x128xbf16>,
    return
  }
  func.func @transform_0(%arg0: i32) -> (i32, i32) {
    %c0_i32 = arith.constant 0 : i32
    %c0_i32_0 = arith.constant 0 : i32
    return %arg0, %c0_i32 : i32, i32
  }
  func.func @transform_1(%arg0: i32) -> (i32, i32) {
    %c0_i32 = arith.constant 0 : i32
    %c0_i32_0 = arith.constant 0 : i32
    %c0_i32_1 = arith.constant 0 : i32
    return %c0_i32, %c0_i32_0 : i32, i32
  }
  func.func @transform_2(%arg0: i32) -> (i32, i32) {
    %c0_i32 = arith.constant 0 : i32
    %c0_i32_0 = arith.constant 0 : i32
    %c0_i32_1 = arith.constant 0 : i32
    return %c0_i32, %c0_i32_0 : i32, i32
  }
  func.func @transform_3(%arg0: i32) -> (i32, i32) {
    %c0_i32 = arith.constant 0 : i32
    %c0_i32_0 = arith.constant 0 : i32
    %c0_i32_1 = arith.constant 0 : i32
    return %c0_i32, %c0_i32_0 : i32, i32
  }
  func.func @transform_4(%arg0: i32) -> (i32, i32) {
    %c0_i32 = arith.constant 0 : i32
    %c0_i32_0 = arith.constant 0 : i32
    %c0_i32_1 = arith.constant 0 : i32
    return %c0_i32, %c0_i32_0 : i32, i32
  }
  func.func @transform_5(%arg0: i32) -> (i32, i32) {
    %c0_i32 = arith.constant 0 : i32
    %c0_i32_0 = arith.constant 0 : i32
    %c0_i32_1 = arith.constant 0 : i32
    return %c0_i32, %c0_i32_0 : i32, i32
  }
  func.func @transform_6(%arg0: i32) -> (i32, i32) {
    %c0_i32 = arith.constant 0 : i32
    %c0_i32_0 = arith.constant 0 : i32
    return %arg0, %c0_i32 : i32, i32
  }
}

module attributes {stable_mosaic.version = 11 : i64} {
  func.func @kernel(%arg0: i32, %arg1: memref<64x8xbf16, #tpu.memory_space<vmem>>, %arg2: memref<8x128xbf16, #tpu.memory_space<vmem>>, %arg3: memref<64x128xbf16, #tpu.memory_space<vmem>>) attributes {dimension_semantics = [#tpu.dimension_semantics<parallel>], iteration_bounds = array<i64: 2>, scalar_prefetch = 0 : i64, scratch_operands = 0 : i64, tpu.core_type = #tpu.core_type<tc>, window_params = [{transform_indices = @transform_0, window_bounds = array<i64: 64, 8>}, {pipeline_mode = #tpu.pipeline_mode<synchronous>, transform_indices = @transform_1, window_bounds = array<i64: 8, 128>}, {transform_indices = @transform_2, window_bounds = array<i64: 64, 128>}]} {
    %c0 = arith.constant 0 : index
    %c0_0 = arith.constant 0 : index
    %0 = vector.load %arg1[%c0, %c0_0] : memref<64x8xbf16, #tpu.memory_space<vmem>>, vector<64x8xbf16>
    %c0_1 = arith.constant 0 : index
    %c0_2 = arith.constant 0 : index
    %1 = vector.load %arg2[%c0_1, %c0_2] : memref<8x128xbf16, #tpu.memory_space<vmem>>, vector<8x128xbf16>
    %cst = arith.constant dense<0.000000e+00> : vector<64x128xf32>
    %2 = tpu.matmul %0, %1, %cst {dimension_numbers = #tpu.dot_dimension_numbers<[1], [0], [0], [1], [0, 0, 1, 1], [], []>} : vector<64x8xbf16>, vector<8x128xbf16>, vector<64x128xf32> -> vector<64x128xf32>
    %3 = arith.truncf %2 : vector<64x128xf32> to vector<64x128xbf16>
    %c0_3 = arith.constant 0 : index
    %c0_4 = arith.constant 0 : index
    %4 = vector.load %arg3[%c0_3, %c0_4] : memref<64x128xbf16, #tpu.memory_space<vmem>>, vector<64x128xbf16>
    tpu.vector_store %arg3[%c0_3, %c0_4], %3 {strides = array<i32>} : memref<64x128xbf16, #tpu.memory_space<vmem>>, vector<64x128xbf16>,
    return
  }
  func.func @transform_0(%arg0: i32) -> (i32, i32) {
    %c0_i32 = arith.constant 0 : i32
    %c0_i32_0 = arith.constant 0 : i32
    return %arg0, %c0_i32 : i32, i32
  }
  func.func @transform_1(%arg0: i32) -> (i32, i32) {
    %c0_i32 = arith.constant 0 : i32
    %c0_i32_0 = arith.constant 0 : i32
    %c0_i32_1 = arith.constant 0 : i32
    return %c0_i32, %c0_i32_0 : i32, i32
  }
  func.func @transform_2(%arg0: i32) -> (i32, i32) {
    %c0_i32 = arith.constant 0 : i32
    %c0_i32_0 = arith.constant 0 : i32
    return %arg0, %c0_i32 : i32, i32
  }
}

module attributes {stable_mosaic.version = 11 : i64} {
  func.func @kernel(%arg0: i32, %arg1: memref<64x128xbf16, #tpu.memory_space<vmem>>, %arg2: memref<128x128xbf16, #tpu.memory_space<vmem>>, %arg3: memref<1x128xf32, #tpu.memory_space<vmem>>, %arg4: memref<1x128xf32, #tpu.memory_space<vmem>>, %arg5: memref<64x128xbf16, #tpu.memory_space<vmem>>) attributes {dimension_semantics = [#tpu.dimension_semantics<parallel>], iteration_bounds = array<i64: 2>, scalar_prefetch = 0 : i64, scratch_operands = 0 : i64, tpu.core_type = #tpu.core_type<tc>, window_params = [{transform_indices = @transform_0, window_bounds = array<i64: 64, 128>}, {pipeline_mode = #tpu.pipeline_mode<synchronous>, transform_indices = @transform_1, window_bounds = array<i64: 128, 128>}, {pipeline_mode = #tpu.pipeline_mode<synchronous>, transform_indices = @transform_2, window_bounds = array<i64: 1, 128>}, {pipeline_mode = #tpu.pipeline_mode<synchronous>, transform_indices = @transform_3, window_bounds = array<i64: 1, 128>}, {transform_indices = @transform_4, window_bounds = array<i64: 64, 128>}]} {
    %c0 = arith.constant 0 : index
    %c0_0 = arith.constant 0 : index
    %0 = vector.load %arg1[%c0, %c0_0] : memref<64x128xbf16, #tpu.memory_space<vmem>>, vector<64x128xbf16>
    %c0_1 = arith.constant 0 : index
    %c0_2 = arith.constant 0 : index
    %1 = vector.load %arg2[%c0_1, %c0_2] : memref<128x128xbf16, #tpu.memory_space<vmem>>, vector<128x128xbf16>
    %cst = arith.constant dense<0.000000e+00> : vector<64x128xf32>
    %2 = tpu.matmul %0, %1, %cst {dimension_numbers = #tpu.dot_dimension_numbers<[1], [0], [0], [1], [0, 0, 1, 1], [], []>} : vector<64x128xbf16>, vector<128x128xbf16>, vector<64x128xf32> -> vector<64x128xf32>
    %c0_3 = arith.constant 0 : index
    %c0_4 = arith.constant 0 : index
    %3 = vector.load %arg3[%c0_3, %c0_4] : memref<1x128xf32, #tpu.memory_space<vmem>>, vector<1x128xf32>
    %4 = vector.broadcast %3 : vector<1x128xf32> to vector<64x128xf32>
    %5 = arith.mulf %2, %4 : vector<64x128xf32>
    %c0_5 = arith.constant 0 : index
    %c0_6 = arith.constant 0 : index
    %6 = vector.load %arg4[%c0_5, %c0_6] : memref<1x128xf32, #tpu.memory_space<vmem>>, vector<1x128xf32>
    %7 = vector.broadcast %6 : vector<1x128xf32> to vector<64x128xf32>
    %8 = arith.addf %5, %7 : vector<64x128xf32>
    %cst_7 = arith.constant 0.000000e+00 : f32
    %9 = vector.broadcast %cst_7 : f32 to vector<64x128xf32>
    %10 = arith.maximumf %8, %9 : vector<64x128xf32>
    %11 = arith.truncf %10 : vector<64x128xf32> to vector<64x128xbf16>
    %c0_8 = arith.constant 0 : index
    %c0_9 = arith.constant 0 : index
    %12 = vector.load %arg5[%c0_8, %c0_9] : memref<64x128xbf16, #tpu.memory_space<vmem>>, vector<64x128xbf16>
    tpu.vector_store %arg5[%c0_8, %c0_9], %11 {strides = array<i32>} : memref<64x128xbf16, #tpu.memory_space<vmem>>, vector<64x128xbf16>,
    return
  }
  func.func @transform_0(%arg0: i32) -> (i32, i32) {
    %c0_i32 = arith.constant 0 : i32
    %c0_i32_0 = arith.constant 0 : i32
    return %arg0, %c0_i32 : i32, i32
  }
  func.func @transform_1(%arg0: i32) -> (i32, i32) {
    %c0_i32 = arith.constant 0 : i32
    %c0_i32_0 = arith.constant 0 : i32
    %c0_i32_1 = arith.constant 0 : i32
    return %c0_i32, %c0_i32_0 : i32, i32
  }
  func.func @transform_2(%arg0: i32) -> (i32, i32) {
    %c0_i32 = arith.constant 0 : i32
    %c0_i32_0 = arith.constant 0 : i32
    %c0_i32_1 = arith.constant 0 : i32
    return %c0_i32, %c0_i32_0 : i32, i32
  }
  func.func @transform_3(%arg0: i32) -> (i32, i32) {
    %c0_i32 = arith.constant 0 : i32
    %c0_i32_0 = arith.constant 0 : i32
    %c0_i32_1 = arith.constant 0 : i32
    return %c0_i32, %c0_i32_0 : i32, i32
  }
  func.func @transform_4(%arg0: i32) -> (i32, i32) {
    %c0_i32 = arith.constant 0 : i32
    %c0_i32_0 = arith.constant 0 : i32
    return %arg0, %c0_i32 : i32, i32
  }
}

module attributes {stable_mosaic.version = 11 : i64} {
  func.func @kernel(%arg0: i32, %arg1: memref<64x8xbf16, #tpu.memory_space<vmem>>, %arg2: memref<8x128xbf16, #tpu.memory_space<vmem>>, %arg3: memref<1x8xf32, #tpu.memory_space<vmem>>, %arg4: memref<1x8xf32, #tpu.memory_space<vmem>>, %arg5: memref<64x128xbf16, #tpu.memory_space<vmem>>) attributes {dimension_semantics = [#tpu.dimension_semantics<parallel>], iteration_bounds = array<i64: 2>, scalar_prefetch = 0 : i64, scratch_operands = 0 : i64, tpu.core_type = #tpu.core_type<tc>, window_params = [{transform_indices = @transform_0, window_bounds = array<i64: 64, 8>}, {pipeline_mode = #tpu.pipeline_mode<synchronous>, transform_indices = @transform_1, window_bounds = array<i64: 8, 128>}, {pipeline_mode = #tpu.pipeline_mode<synchronous>, transform_indices = @transform_2, window_bounds = array<i64: 1, 8>}, {pipeline_mode = #tpu.pipeline_mode<synchronous>, transform_indices = @transform_3, window_bounds = array<i64: 1, 8>}, {transform_indices = @transform_4, window_bounds = array<i64: 64, 128>}]} {
    %c0 = arith.constant 0 : index
    %c0_0 = arith.constant 0 : index
    %0 = vector.load %arg1[%c0, %c0_0] : memref<64x8xbf16, #tpu.memory_space<vmem>>, vector<64x8xbf16>
    %1 = arith.extf %0 : vector<64x8xbf16> to vector<64x8xf32>
    %c0_1 = arith.constant 0 : index
    %c0_2 = arith.constant 0 : index
    %2 = vector.load %arg3[%c0_1, %c0_2] : memref<1x8xf32, #tpu.memory_space<vmem>>, vector<1x8xf32>
    %3 = vector.broadcast %2 : vector<1x8xf32> to vector<64x8xf32>
    %4 = arith.mulf %1, %3 : vector<64x8xf32>
    %c0_3 = arith.constant 0 : index
    %c0_4 = arith.constant 0 : index
    %5 = vector.load %arg4[%c0_3, %c0_4] : memref<1x8xf32, #tpu.memory_space<vmem>>, vector<1x8xf32>
    %6 = vector.broadcast %5 : vector<1x8xf32> to vector<64x8xf32>
    %7 = arith.addf %4, %6 : vector<64x8xf32>
    %cst = arith.constant 0.000000e+00 : f32
    %8 = vector.broadcast %cst : f32 to vector<64x8xf32>
    %9 = arith.maximumf %7, %8 : vector<64x8xf32>
    %10 = arith.truncf %9 : vector<64x8xf32> to vector<64x8xbf16>
    %c0_5 = arith.constant 0 : index
    %c0_6 = arith.constant 0 : index
    %11 = vector.load %arg2[%c0_5, %c0_6] : memref<8x128xbf16, #tpu.memory_space<vmem>>, vector<8x128xbf16>
    %cst_7 = arith.constant dense<0.000000e+00> : vector<64x128xf32>
    %12 = tpu.matmul %10, %11, %cst_7 {dimension_numbers = #tpu.dot_dimension_numbers<[1], [0], [0], [1], [0, 0, 1, 1], [], []>} : vector<64x8xbf16>, vector<8x128xbf16>, vector<64x128xf32> -> vector<64x128xf32>
    %13 = arith.truncf %12 : vector<64x128xf32> to vector<64x128xbf16>
    %c0_8 = arith.constant 0 : index
    %c0_9 = arith.constant 0 : index
    %14 = vector.load %arg5[%c0_8, %c0_9] : memref<64x128xbf16, #tpu.memory_space<vmem>>, vector<64x128xbf16>
    tpu.vector_store %arg5[%c0_8, %c0_9], %13 {strides = array<i32>} : memref<64x128xbf16, #tpu.memory_space<vmem>>, vector<64x128xbf16>,
    return
  }
  func.func @transform_0(%arg0: i32) -> (i32, i32) {
    %c0_i32 = arith.constant 0 : i32
    %c0_i32_0 = arith.constant 0 : i32
    return %arg0, %c0_i32 : i32, i32
  }
  func.func @transform_1(%arg0: i32) -> (i32, i32) {
    %c0_i32 = arith.constant 0 : i32
    %c0_i32_0 = arith.constant 0 : i32
    %c0_i32_1 = arith.constant 0 : i32
    return %c0_i32, %c0_i32_0 : i32, i32
  }
  func.func @transform_2(%arg0: i32) -> (i32, i32) {
    %c0_i32 = arith.constant 0 : i32
    %c0_i32_0 = arith.constant 0 : i32
    %c0_i32_1 = arith.constant 0 : i32
    return %c0_i32, %c0_i32_0 : i32, i32
  }
  func.func @transform_3(%arg0: i32) -> (i32, i32) {
    %c0_i32 = arith.constant 0 : i32
    %c0_i32_0 = arith.constant 0 : i32
    %c0_i32_1 = arith.constant 0 : i32
    return %c0_i32, %c0_i32_0 : i32, i32
  }
  func.func @transform_4(%arg0: i32) -> (i32, i32) {
    %c0_i32 = arith.constant 0 : i32
    %c0_i32_0 = arith.constant 0 : i32
    return %arg0, %c0_i32 : i32, i32
  }
}

module attributes {stable_mosaic.version = 11 : i64} {
  func.func @kernel(%arg0: i32, %arg1: memref<64x76xbf16, #tpu.memory_space<vmem>>, %arg2: memref<76x128xbf16, #tpu.memory_space<vmem>>, %arg3: memref<1x76xf32, #tpu.memory_space<vmem>>, %arg4: memref<1x76xf32, #tpu.memory_space<vmem>>, %arg5: memref<1x128xf32, #tpu.memory_space<vmem>>, %arg6: memref<1x128xf32, #tpu.memory_space<vmem>>, %arg7: memref<64x128xbf16, #tpu.memory_space<vmem>>) attributes {dimension_semantics = [#tpu.dimension_semantics<parallel>], iteration_bounds = array<i64: 2>, scalar_prefetch = 0 : i64, scratch_operands = 0 : i64, tpu.core_type = #tpu.core_type<tc>, window_params = [{transform_indices = @transform_0, window_bounds = array<i64: 64, 76>}, {pipeline_mode = #tpu.pipeline_mode<synchronous>, transform_indices = @transform_1, window_bounds = array<i64: 76, 128>}, {pipeline_mode = #tpu.pipeline_mode<synchronous>, transform_indices = @transform_2, window_bounds = array<i64: 1, 76>}, {pipeline_mode = #tpu.pipeline_mode<synchronous>, transform_indices = @transform_3, window_bounds = array<i64: 1, 76>}, {pipeline_mode = #tpu.pipeline_mode<synchronous>, transform_indices = @transform_4, window_bounds = array<i64: 1, 128>}, {pipeline_mode = #tpu.pipeline_mode<synchronous>, transform_indices = @transform_5, window_bounds = array<i64: 1, 128>}, {transform_indices = @transform_6, window_bounds = array<i64: 64, 128>}]} {
    %c0 = arith.constant 0 : index
    %c0_0 = arith.constant 0 : index
    %0 = vector.load %arg1[%c0, %c0_0] : memref<64x76xbf16, #tpu.memory_space<vmem>>, vector<64x76xbf16>
    %1 = arith.extf %0 : vector<64x76xbf16> to vector<64x76xf32>
    %c0_1 = arith.constant 0 : index
    %c0_2 = arith.constant 0 : index
    %2 = vector.load %arg3[%c0_1, %c0_2] : memref<1x76xf32, #tpu.memory_space<vmem>>, vector<1x76xf32>
    %3 = vector.broadcast %2 : vector<1x76xf32> to vector<64x76xf32>
    %4 = arith.mulf %1, %3 : vector<64x76xf32>
    %c0_3 = arith.constant 0 : index
    %c0_4 = arith.constant 0 : index
    %5 = vector.load %arg4[%c0_3, %c0_4] : memref<1x76xf32, #tpu.memory_space<vmem>>, vector<1x76xf32>
    %6 = vector.broadcast %5 : vector<1x76xf32> to vector<64x76xf32>
    %7 = arith.addf %4, %6 : vector<64x76xf32>
    %cst = arith.constant 0.000000e+00 : f32
    %8 = vector.broadcast %cst : f32 to vector<64x76xf32>
    %9 = arith.maximumf %7, %8 : vector<64x76xf32>
    %10 = arith.truncf %9 : vector<64x76xf32> to vector<64x76xbf16>
    %c0_5 = arith.constant 0 : index
    %c0_6 = arith.constant 0 : index
    %11 = vector.load %arg2[%c0_5, %c0_6] : memref<76x128xbf16, #tpu.memory_space<vmem>>, vector<76x128xbf16>
    %cst_7 = arith.constant dense<0.000000e+00> : vector<64x128xf32>
    %12 = tpu.matmul %10, %11, %cst_7 {dimension_numbers = #tpu.dot_dimension_numbers<[1], [0], [0], [1], [0, 0, 1, 1], [], []>} : vector<64x76xbf16>, vector<76x128xbf16>, vector<64x128xf32> -> vector<64x128xf32>
    %c0_8 = arith.constant 0 : index
    %c0_9 = arith.constant 0 : index
    %13 = vector.load %arg5[%c0_8, %c0_9] : memref<1x128xf32, #tpu.memory_space<vmem>>, vector<1x128xf32>
    %14 = vector.broadcast %13 : vector<1x128xf32> to vector<64x128xf32>
    %15 = arith.mulf %12, %14 : vector<64x128xf32>
    %c0_10 = arith.constant 0 : index
    %c0_11 = arith.constant 0 : index
    %16 = vector.load %arg6[%c0_10, %c0_11] : memref<1x128xf32, #tpu.memory_space<vmem>>, vector<1x128xf32>
    %17 = vector.broadcast %16 : vector<1x128xf32> to vector<64x128xf32>
    %18 = arith.addf %15, %17 : vector<64x128xf32>
    %cst_12 = arith.constant 0.000000e+00 : f32
    %19 = vector.broadcast %cst_12 : f32 to vector<64x128xf32>
    %20 = arith.maximumf %18, %19 : vector<64x128xf32>
    %21 = arith.truncf %20 : vector<64x128xf32> to vector<64x128xbf16>
    %c0_13 = arith.constant 0 : index
    %c0_14 = arith.constant 0 : index
    %22 = vector.load %arg7[%c0_13, %c0_14] : memref<64x128xbf16, #tpu.memory_space<vmem>>, vector<64x128xbf16>
    tpu.vector_store %arg7[%c0_13, %c0_14], %21 {strides = array<i32>} : memref<64x128xbf16, #tpu.memory_space<vmem>>, vector<64x128xbf16>,
    return
  }
  func.func @transform_0(%arg0: i32) -> (i32, i32) {
    %c0_i32 = arith.constant 0 : i32
    %c0_i32_0 = arith.constant 0 : i32
    return %arg0, %c0_i32 : i32, i32
  }
  func.func @transform_1(%arg0: i32) -> (i32, i32) {
    %c0_i32 = arith.constant 0 : i32
    %c0_i32_0 = arith.constant 0 : i32
    %c0_i32_1 = arith.constant 0 : i32
    return %c0_i32, %c0_i32_0 : i32, i32
  }
  func.func @transform_2(%arg0: i32) -> (i32, i32) {
    %c0_i32 = arith.constant 0 : i32
    %c0_i32_0 = arith.constant 0 : i32
    %c0_i32_1 = arith.constant 0 : i32
    return %c0_i32, %c0_i32_0 : i32, i32
  }
  func.func @transform_3(%arg0: i32) -> (i32, i32) {
    %c0_i32 = arith.constant 0 : i32
    %c0_i32_0 = arith.constant 0 : i32
    %c0_i32_1 = arith.constant 0 : i32
    return %c0_i32, %c0_i32_0 : i32, i32
  }
  func.func @transform_4(%arg0: i32) -> (i32, i32) {
    %c0_i32 = arith.constant 0 : i32
    %c0_i32_0 = arith.constant 0 : i32
    %c0_i32_1 = arith.constant 0 : i32
    return %c0_i32, %c0_i32_0 : i32, i32
  }
  func.func @transform_5(%arg0: i32) -> (i32, i32) {
    %c0_i32 = arith.constant 0 : i32
    %c0_i32_0 = arith.constant 0 : i32
    %c0_i32_1 = arith.constant 0 : i32
    return %c0_i32, %c0_i32_0 : i32, i32
  }
  func.func @transform_6(%arg0: i32) -> (i32, i32) {
    %c0_i32 = arith.constant 0 : i32
    %c0_i32_0 = arith.constant 0 : i32
    return %arg0, %c0_i32 : i32, i32
  }
}

module attributes {stable_mosaic.version = 11 : i64} {
  func.func @kernel(%arg0: i32, %arg1: memref<16x16xbf16, #tpu.memory_space<vmem>>, %arg2: memref<16x256xbf16, #tpu.memory_space<vmem>>, %arg3: memref<16x256xbf16, #tpu.memory_space<vmem>>) attributes {dimension_semantics = [#tpu.dimension_semantics<parallel>], iteration_bounds = array<i64: 2>, scalar_prefetch = 0 : i64, scratch_operands = 0 : i64, tpu.core_type = #tpu.core_type<tc>, window_params = [{transform_indices = @transform_0, window_bounds = array<i64: 16, 16>}, {pipeline_mode = #tpu.pipeline_mode<synchronous>, transform_indices = @transform_1, window_bounds = array<i64: 16, 256>}, {transform_indices = @transform_2, window_bounds = array<i64: 16, 256>}]} {
    %c0 = arith.constant 0 : index
    %c0_0 = arith.constant 0 : index
    %0 = vector.load %arg1[%c0, %c0_0] : memref<16x16xbf16, #tpu.memory_space<vmem>>, vector<16x16xbf16>
    %c0_1 = arith.constant 0 : index
    %c0_2 = arith.constant 0 : index
    %1 = vector.load %arg2[%c0_1, %c0_2] : memref<16x256xbf16, #tpu.memory_space<vmem>>, vector<16x256xbf16>
    %cst = arith.constant dense<0.000000e+00> : vector<16x256xf32>
    %2 = tpu.matmul %0, %1, %cst {dimension_numbers = #tpu.dot_dimension_numbers<[1], [0], [0], [1], [0, 0, 1, 1], [], []>} : vector<16x16xbf16>, vector<16x256xbf16>, vector<16x256xf32> -> vector<16x256xf32>
    %3 = arith.truncf %2 : vector<16x256xf32> to vector<16x256xbf16>
    %c0_3 = arith.constant 0 : index
    %c0_4 = arith.constant 0 : index
    %4 = vector.load %arg3[%c0_3, %c0_4] : memref<16x256xbf16, #tpu.memory_space<vmem>>, vector<16x256xbf16>
    tpu.vector_store %arg3[%c0_3, %c0_4], %3 {strides = array<i32>} : memref<16x256xbf16, #tpu.memory_space<vmem>>, vector<16x256xbf16>,
    return
  }
  func.func @transform_0(%arg0: i32) -> (i32, i32) {
    %c0_i32 = arith.constant 0 : i32
    %c0_i32_0 = arith.constant 0 : i32
    return %arg0, %c0_i32 : i32, i32
  }
  func.func @transform_1(%arg0: i32) -> (i32, i32) {
    %c0_i32 = arith.constant 0 : i32
    %c0_i32_0 = arith.constant 0 : i32
    %c0_i32_1 = arith.constant 0 : i32
    return %c0_i32, %c0_i32_0 : i32, i32
  }
  func.func @transform_2(%arg0: i32) -> (i32, i32) {
    %c0_i32 = arith.constant 0 : i32
    %c0_i32_0 = arith.constant 0 : i32
    return %arg0, %c0_i32 : i32, i32
  }
}

module attributes {stable_mosaic.version = 11 : i64} {
  func.func @kernel(%arg0: i32, %arg1: memref<16x256xbf16, #tpu.memory_space<vmem>>, %arg2: memref<256x128xbf16, #tpu.memory_space<vmem>>, %arg3: memref<1x128xf32, #tpu.memory_space<vmem>>, %arg4: memref<1x128xf32, #tpu.memory_space<vmem>>, %arg5: memref<16x128xbf16, #tpu.memory_space<vmem>>) attributes {dimension_semantics = [#tpu.dimension_semantics<parallel>], iteration_bounds = array<i64: 2>, scalar_prefetch = 0 : i64, scratch_operands = 0 : i64, tpu.core_type = #tpu.core_type<tc>, window_params = [{transform_indices = @transform_0, window_bounds = array<i64: 16, 256>}, {pipeline_mode = #tpu.pipeline_mode<synchronous>, transform_indices = @transform_1, window_bounds = array<i64: 256, 128>}, {pipeline_mode = #tpu.pipeline_mode<synchronous>, transform_indices = @transform_2, window_bounds = array<i64: 1, 128>}, {pipeline_mode = #tpu.pipeline_mode<synchronous>, transform_indices = @transform_3, window_bounds = array<i64: 1, 128>}, {transform_indices = @transform_4, window_bounds = array<i64: 16, 128>}]} {
    %c0 = arith.constant 0 : index
    %c0_0 = arith.constant 0 : index
    %0 = vector.load %arg1[%c0, %c0_0] : memref<16x256xbf16, #tpu.memory_space<vmem>>, vector<16x256xbf16>
    %c0_1 = arith.constant 0 : index
    %c0_2 = arith.constant 0 : index
    %1 = vector.load %arg2[%c0_1, %c0_2] : memref<256x128xbf16, #tpu.memory_space<vmem>>, vector<256x128xbf16>
    %cst = arith.constant dense<0.000000e+00> : vector<16x128xf32>
    %2 = tpu.matmul %0, %1, %cst {dimension_numbers = #tpu.dot_dimension_numbers<[1], [0], [0], [1], [0, 0, 1, 1], [], []>} : vector<16x256xbf16>, vector<256x128xbf16>, vector<16x128xf32> -> vector<16x128xf32>
    %c0_3 = arith.constant 0 : index
    %c0_4 = arith.constant 0 : index
    %3 = vector.load %arg3[%c0_3, %c0_4] : memref<1x128xf32, #tpu.memory_space<vmem>>, vector<1x128xf32>
    %4 = vector.broadcast %3 : vector<1x128xf32> to vector<16x128xf32>
    %5 = arith.mulf %2, %4 : vector<16x128xf32>
    %c0_5 = arith.constant 0 : index
    %c0_6 = arith.constant 0 : index
    %6 = vector.load %arg4[%c0_5, %c0_6] : memref<1x128xf32, #tpu.memory_space<vmem>>, vector<1x128xf32>
    %7 = vector.broadcast %6 : vector<1x128xf32> to vector<16x128xf32>
    %8 = arith.addf %5, %7 : vector<16x128xf32>
    %cst_7 = arith.constant 0.000000e+00 : f32
    %9 = vector.broadcast %cst_7 : f32 to vector<16x128xf32>
    %10 = arith.maximumf %8, %9 : vector<16x128xf32>
    %11 = arith.truncf %10 : vector<16x128xf32> to vector<16x128xbf16>
    %c0_8 = arith.constant 0 : index
    %c0_9 = arith.constant 0 : index
    %12 = vector.load %arg5[%c0_8, %c0_9] : memref<16x128xbf16, #tpu.memory_space<vmem>>, vector<16x128xbf16>
    tpu.vector_store %arg5[%c0_8, %c0_9], %11 {strides = array<i32>} : memref<16x128xbf16, #tpu.memory_space<vmem>>, vector<16x128xbf16>,
    return
  }
  func.func @transform_0(%arg0: i32) -> (i32, i32) {
    %c0_i32 = arith.constant 0 : i32
    %c0_i32_0 = arith.constant 0 : i32
    return %arg0, %c0_i32 : i32, i32
  }
  func.func @transform_1(%arg0: i32) -> (i32, i32) {
    %c0_i32 = arith.constant 0 : i32
    %c0_i32_0 = arith.constant 0 : i32
    %c0_i32_1 = arith.constant 0 : i32
    return %c0_i32, %c0_i32_0 : i32, i32
  }
  func.func @transform_2(%arg0: i32) -> (i32, i32) {
    %c0_i32 = arith.constant 0 : i32
    %c0_i32_0 = arith.constant 0 : i32
    %c0_i32_1 = arith.constant 0 : i32
    return %c0_i32, %c0_i32_0 : i32, i32
  }
  func.func @transform_3(%arg0: i32) -> (i32, i32) {
    %c0_i32 = arith.constant 0 : i32
    %c0_i32_0 = arith.constant 0 : i32
    %c0_i32_1 = arith.constant 0 : i32
    return %c0_i32, %c0_i32_0 : i32, i32
  }
  func.func @transform_4(%arg0: i32) -> (i32, i32) {
    %c0_i32 = arith.constant 0 : i32
    %c0_i32_0 = arith.constant 0 : i32
    return %arg0, %c0_i32 : i32, i32
  }
}

module attributes {stable_mosaic.version = 11 : i64} {
  func.func @kernel(%arg0: i32, %arg1: memref<16x76xbf16, #tpu.memory_space<vmem>>, %arg2: memref<76x256xbf16, #tpu.memory_space<vmem>>, %arg3: memref<1x76xf32, #tpu.memory_space<vmem>>, %arg4: memref<1x76xf32, #tpu.memory_space<vmem>>, %arg5: memref<16x256xbf16, #tpu.memory_space<vmem>>) attributes {dimension_semantics = [#tpu.dimension_semantics<parallel>], iteration_bounds = array<i64: 2>, scalar_prefetch = 0 : i64, scratch_operands = 0 : i64, tpu.core_type = #tpu.core_type<tc>, window_params = [{transform_indices = @transform_0, window_bounds = array<i64: 16, 76>}, {pipeline_mode = #tpu.pipeline_mode<synchronous>, transform_indices = @transform_1, window_bounds = array<i64: 76, 256>}, {pipeline_mode = #tpu.pipeline_mode<synchronous>, transform_indices = @transform_2, window_bounds = array<i64: 1, 76>}, {pipeline_mode = #tpu.pipeline_mode<synchronous>, transform_indices = @transform_3, window_bounds = array<i64: 1, 76>}, {transform_indices = @transform_4, window_bounds = array<i64: 16, 256>}]} {
    %c0 = arith.constant 0 : index
    %c0_0 = arith.constant 0 : index
    %0 = vector.load %arg1[%c0, %c0_0] : memref<16x76xbf16, #tpu.memory_space<vmem>>, vector<16x76xbf16>
    %1 = arith.extf %0 : vector<16x76xbf16> to vector<16x76xf32>
    %c0_1 = arith.constant 0 : index
    %c0_2 = arith.constant 0 : index
    %2 = vector.load %arg3[%c0_1, %c0_2] : memref<1x76xf32, #tpu.memory_space<vmem>>, vector<1x76xf32>
    %3 = vector.broadcast %2 : vector<1x76xf32> to vector<16x76xf32>
    %4 = arith.mulf %1, %3 : vector<16x76xf32>
    %c0_3 = arith.constant 0 : index
    %c0_4 = arith.constant 0 : index
    %5 = vector.load %arg4[%c0_3, %c0_4] : memref<1x76xf32, #tpu.memory_space<vmem>>, vector<1x76xf32>
    %6 = vector.broadcast %5 : vector<1x76xf32> to vector<16x76xf32>
    %7 = arith.addf %4, %6 : vector<16x76xf32>
    %cst = arith.constant 0.000000e+00 : f32
    %8 = vector.broadcast %cst : f32 to vector<16x76xf32>
    %9 = arith.maximumf %7, %8 : vector<16x76xf32>
    %10 = arith.truncf %9 : vector<16x76xf32> to vector<16x76xbf16>
    %c0_5 = arith.constant 0 : index
    %c0_6 = arith.constant 0 : index
    %11 = vector.load %arg2[%c0_5, %c0_6] : memref<76x256xbf16, #tpu.memory_space<vmem>>, vector<76x256xbf16>
    %cst_7 = arith.constant dense<0.000000e+00> : vector<16x256xf32>
    %12 = tpu.matmul %10, %11, %cst_7 {dimension_numbers = #tpu.dot_dimension_numbers<[1], [0], [0], [1], [0, 0, 1, 1], [], []>} : vector<16x76xbf16>, vector<76x256xbf16>, vector<16x256xf32> -> vector<16x256xf32>
    %13 = arith.truncf %12 : vector<16x256xf32> to vector<16x256xbf16>
    %c0_8 = arith.constant 0 : index
    %c0_9 = arith.constant 0 : index
    %14 = vector.load %arg5[%c0_8, %c0_9] : memref<16x256xbf16, #tpu.memory_space<vmem>>, vector<16x256xbf16>
    tpu.vector_store %arg5[%c0_8, %c0_9], %13 {strides = array<i32>} : memref<16x256xbf16, #tpu.memory_space<vmem>>, vector<16x256xbf16>,
    return
  }
  func.func @transform_0(%arg0: i32) -> (i32, i32) {
    %c0_i32 = arith.constant 0 : i32
    %c0_i32_0 = arith.constant 0 : i32
    return %arg0, %c0_i32 : i32, i32
  }
  func.func @transform_1(%arg0: i32) -> (i32, i32) {
    %c0_i32 = arith.constant 0 : i32
    %c0_i32_0 = arith.constant 0 : i32
    %c0_i32_1 = arith.constant 0 : i32
    return %c0_i32, %c0_i32_0 : i32, i32
  }
  func.func @transform_2(%arg0: i32) -> (i32, i32) {
    %c0_i32 = arith.constant 0 : i32
    %c0_i32_0 = arith.constant 0 : i32
    %c0_i32_1 = arith.constant 0 : i32
    return %c0_i32, %c0_i32_0 : i32, i32
  }
  func.func @transform_3(%arg0: i32) -> (i32, i32) {
    %c0_i32 = arith.constant 0 : i32
    %c0_i32_0 = arith.constant 0 : i32
    %c0_i32_1 = arith.constant 0 : i32
    return %c0_i32, %c0_i32_0 : i32, i32
  }
  func.func @transform_4(%arg0: i32) -> (i32, i32) {
    %c0_i32 = arith.constant 0 : i32
    %c0_i32_0 = arith.constant 0 : i32
    return %arg0, %c0_i32 : i32, i32
  }
}

module attributes {stable_mosaic.version = 11 : i64} {
  func.func @kernel(%arg0: i32, %arg1: memref<16x140xbf16, #tpu.memory_space<vmem>>, %arg2: memref<140x128xbf16, #tpu.memory_space<vmem>>, %arg3: memref<1x140xf32, #tpu.memory_space<vmem>>, %arg4: memref<1x140xf32, #tpu.memory_space<vmem>>, %arg5: memref<1x128xf32, #tpu.memory_space<vmem>>, %arg6: memref<1x128xf32, #tpu.memory_space<vmem>>, %arg7: memref<16x128xbf16, #tpu.memory_space<vmem>>) attributes {dimension_semantics = [#tpu.dimension_semantics<parallel>], iteration_bounds = array<i64: 2>, scalar_prefetch = 0 : i64, scratch_operands = 0 : i64, tpu.core_type = #tpu.core_type<tc>, window_params = [{transform_indices = @transform_0, window_bounds = array<i64: 16, 140>}, {pipeline_mode = #tpu.pipeline_mode<synchronous>, transform_indices = @transform_1, window_bounds = array<i64: 140, 128>}, {pipeline_mode = #tpu.pipeline_mode<synchronous>, transform_indices = @transform_2, window_bounds = array<i64: 1, 140>}, {pipeline_mode = #tpu.pipeline_mode<synchronous>, transform_indices = @transform_3, window_bounds = array<i64: 1, 140>}, {pipeline_mode = #tpu.pipeline_mode<synchronous>, transform_indices = @transform_4, window_bounds = array<i64: 1, 128>}, {pipeline_mode = #tpu.pipeline_mode<synchronous>, transform_indices = @transform_5, window_bounds = array<i64: 1, 128>}, {transform_indices = @transform_6, window_bounds = array<i64: 16, 128>}]} {
    %c0 = arith.constant 0 : index
    %c0_0 = arith.constant 0 : index
    %0 = vector.load %arg1[%c0, %c0_0] : memref<16x140xbf16, #tpu.memory_space<vmem>>, vector<16x140xbf16>
    %1 = arith.extf %0 : vector<16x140xbf16> to vector<16x140xf32>
    %c0_1 = arith.constant 0 : index
    %c0_2 = arith.constant 0 : index
    %2 = vector.load %arg3[%c0_1, %c0_2] : memref<1x140xf32, #tpu.memory_space<vmem>>, vector<1x140xf32>
    %3 = vector.broadcast %2 : vector<1x140xf32> to vector<16x140xf32>
    %4 = arith.mulf %1, %3 : vector<16x140xf32>
    %c0_3 = arith.constant 0 : index
    %c0_4 = arith.constant 0 : index
    %5 = vector.load %arg4[%c0_3, %c0_4] : memref<1x140xf32, #tpu.memory_space<vmem>>, vector<1x140xf32>
    %6 = vector.broadcast %5 : vector<1x140xf32> to vector<16x140xf32>
    %7 = arith.addf %4, %6 : vector<16x140xf32>
    %cst = arith.constant 0.000000e+00 : f32
    %8 = vector.broadcast %cst : f32 to vector<16x140xf32>
    %9 = arith.maximumf %7, %8 : vector<16x140xf32>
    %10 = arith.truncf %9 : vector<16x140xf32> to vector<16x140xbf16>
    %c0_5 = arith.constant 0 : index
    %c0_6 = arith.constant 0 : index
    %11 = vector.load %arg2[%c0_5, %c0_6] : memref<140x128xbf16, #tpu.memory_space<vmem>>, vector<140x128xbf16>
    %cst_7 = arith.constant dense<0.000000e+00> : vector<16x128xf32>
    %12 = tpu.matmul %10, %11, %cst_7 {dimension_numbers = #tpu.dot_dimension_numbers<[1], [0], [0], [1], [0, 0, 1, 1], [], []>} : vector<16x140xbf16>, vector<140x128xbf16>, vector<16x128xf32> -> vector<16x128xf32>
    %c0_8 = arith.constant 0 : index
    %c0_9 = arith.constant 0 : index
    %13 = vector.load %arg5[%c0_8, %c0_9] : memref<1x128xf32, #tpu.memory_space<vmem>>, vector<1x128xf32>
    %14 = vector.broadcast %13 : vector<1x128xf32> to vector<16x128xf32>
    %15 = arith.mulf %12, %14 : vector<16x128xf32>
    %c0_10 = arith.constant 0 : index
    %c0_11 = arith.constant 0 : index
    %16 = vector.load %arg6[%c0_10, %c0_11] : memref<1x128xf32, #tpu.memory_space<vmem>>, vector<1x128xf32>
    %17 = vector.broadcast %16 : vector<1x128xf32> to vector<16x128xf32>
    %18 = arith.addf %15, %17 : vector<16x128xf32>
    %cst_12 = arith.constant 0.000000e+00 : f32
    %19 = vector.broadcast %cst_12 : f32 to vector<16x128xf32>
    %20 = arith.maximumf %18, %19 : vector<16x128xf32>
    %21 = arith.truncf %20 : vector<16x128xf32> to vector<16x128xbf16>
    %c0_13 = arith.constant 0 : index
    %c0_14 = arith.constant 0 : index
    %22 = vector.load %arg7[%c0_13, %c0_14] : memref<16x128xbf16, #tpu.memory_space<vmem>>, vector<16x128xbf16>
    tpu.vector_store %arg7[%c0_13, %c0_14], %21 {strides = array<i32>} : memref<16x128xbf16, #tpu.memory_space<vmem>>, vector<16x128xbf16>,
    return
  }
  func.func @transform_0(%arg0: i32) -> (i32, i32) {
    %c0_i32 = arith.constant 0 : i32
    %c0_i32_0 = arith.constant 0 : i32
    return %arg0, %c0_i32 : i32, i32
  }
  func.func @transform_1(%arg0: i32) -> (i32, i32) {
    %c0_i32 = arith.constant 0 : i32
    %c0_i32_0 = arith.constant 0 : i32
    %c0_i32_1 = arith.constant 0 : i32
    return %c0_i32, %c0_i32_0 : i32, i32
  }
  func.func @transform_2(%arg0: i32) -> (i32, i32) {
    %c0_i32 = arith.constant 0 : i32
    %c0_i32_0 = arith.constant 0 : i32
    %c0_i32_1 = arith.constant 0 : i32
    return %c0_i32, %c0_i32_0 : i32, i32
  }
  func.func @transform_3(%arg0: i32) -> (i32, i32) {
    %c0_i32 = arith.constant 0 : i32
    %c0_i32_0 = arith.constant 0 : i32
    %c0_i32_1 = arith.constant 0 : i32
    return %c0_i32, %c0_i32_0 : i32, i32
  }
  func.func @transform_4(%arg0: i32) -> (i32, i32) {
    %c0_i32 = arith.constant 0 : i32
    %c0_i32_0 = arith.constant 0 : i32
    %c0_i32_1 = arith.constant 0 : i32
    return %c0_i32, %c0_i32_0 : i32, i32
  }
  func.func @transform_5(%arg0: i32) -> (i32, i32) {
    %c0_i32 = arith.constant 0 : i32
    %c0_i32_0 = arith.constant 0 : i32
    %c0_i32_1 = arith.constant 0 : i32
    return %c0_i32, %c0_i32_0 : i32, i32
  }
  func.func @transform_6(%arg0: i32) -> (i32, i32) {
    %c0_i32 = arith.constant 0 : i32
    %c0_i32_0 = arith.constant 0 : i32
    return %arg0, %c0_i32 : i32, i32
  }
}

module attributes {stable_mosaic.version = 11 : i64} {
  func.func @kernel(%arg0: i32, %arg1: memref<16x144xbf16, #tpu.memory_space<vmem>>, %arg2: memref<144x128xbf16, #tpu.memory_space<vmem>>, %arg3: memref<1x144xf32, #tpu.memory_space<vmem>>, %arg4: memref<1x144xf32, #tpu.memory_space<vmem>>, %arg5: memref<1x128xf32, #tpu.memory_space<vmem>>, %arg6: memref<1x128xf32, #tpu.memory_space<vmem>>, %arg7: memref<16x128xbf16, #tpu.memory_space<vmem>>) attributes {dimension_semantics = [#tpu.dimension_semantics<parallel>], iteration_bounds = array<i64: 2>, scalar_prefetch = 0 : i64, scratch_operands = 0 : i64, tpu.core_type = #tpu.core_type<tc>, window_params = [{transform_indices = @transform_0, window_bounds = array<i64: 16, 144>}, {pipeline_mode = #tpu.pipeline_mode<synchronous>, transform_indices = @transform_1, window_bounds = array<i64: 144, 128>}, {pipeline_mode = #tpu.pipeline_mode<synchronous>, transform_indices = @transform_2, window_bounds = array<i64: 1, 144>}, {pipeline_mode = #tpu.pipeline_mode<synchronous>, transform_indices = @transform_3, window_bounds = array<i64: 1, 144>}, {pipeline_mode = #tpu.pipeline_mode<synchronous>, transform_indices = @transform_4, window_bounds = array<i64: 1, 128>}, {pipeline_mode = #tpu.pipeline_mode<synchronous>, transform_indices = @transform_5, window_bounds = array<i64: 1, 128>}, {transform_indices = @transform_6, window_bounds = array<i64: 16, 128>}]} {
    %c0 = arith.constant 0 : index
    %c0_0 = arith.constant 0 : index
    %0 = vector.load %arg1[%c0, %c0_0] : memref<16x144xbf16, #tpu.memory_space<vmem>>, vector<16x144xbf16>
    %1 = arith.extf %0 : vector<16x144xbf16> to vector<16x144xf32>
    %c0_1 = arith.constant 0 : index
    %c0_2 = arith.constant 0 : index
    %2 = vector.load %arg3[%c0_1, %c0_2] : memref<1x144xf32, #tpu.memory_space<vmem>>, vector<1x144xf32>
    %3 = vector.broadcast %2 : vector<1x144xf32> to vector<16x144xf32>
    %4 = arith.mulf %1, %3 : vector<16x144xf32>
    %c0_3 = arith.constant 0 : index
    %c0_4 = arith.constant 0 : index
    %5 = vector.load %arg4[%c0_3, %c0_4] : memref<1x144xf32, #tpu.memory_space<vmem>>, vector<1x144xf32>
    %6 = vector.broadcast %5 : vector<1x144xf32> to vector<16x144xf32>
    %7 = arith.addf %4, %6 : vector<16x144xf32>
    %cst = arith.constant 0.000000e+00 : f32
    %8 = vector.broadcast %cst : f32 to vector<16x144xf32>
    %9 = arith.maximumf %7, %8 : vector<16x144xf32>
    %10 = arith.truncf %9 : vector<16x144xf32> to vector<16x144xbf16>
    %c0_5 = arith.constant 0 : index
    %c0_6 = arith.constant 0 : index
    %11 = vector.load %arg2[%c0_5, %c0_6] : memref<144x128xbf16, #tpu.memory_space<vmem>>, vector<144x128xbf16>
    %cst_7 = arith.constant dense<0.000000e+00> : vector<16x128xf32>
    %12 = tpu.matmul %10, %11, %cst_7 {dimension_numbers = #tpu.dot_dimension_numbers<[1], [0], [0], [1], [0, 0, 1, 1], [], []>} : vector<16x144xbf16>, vector<144x128xbf16>, vector<16x128xf32> -> vector<16x128xf32>
    %c0_8 = arith.constant 0 : index
    %c0_9 = arith.constant 0 : index
    %13 = vector.load %arg5[%c0_8, %c0_9] : memref<1x128xf32, #tpu.memory_space<vmem>>, vector<1x128xf32>
    %14 = vector.broadcast %13 : vector<1x128xf32> to vector<16x128xf32>
    %15 = arith.mulf %12, %14 : vector<16x128xf32>
    %c0_10 = arith.constant 0 : index
    %c0_11 = arith.constant 0 : index
    %16 = vector.load %arg6[%c0_10, %c0_11] : memref<1x128xf32, #tpu.memory_space<vmem>>, vector<1x128xf32>
    %17 = vector.broadcast %16 : vector<1x128xf32> to vector<16x128xf32>
    %18 = arith.addf %15, %17 : vector<16x128xf32>
    %cst_12 = arith.constant 0.000000e+00 : f32
    %19 = vector.broadcast %cst_12 : f32 to vector<16x128xf32>
    %20 = arith.maximumf %18, %19 : vector<16x128xf32>
    %21 = arith.truncf %20 : vector<16x128xf32> to vector<16x128xbf16>
    %c0_13 = arith.constant 0 : index
    %c0_14 = arith.constant 0 : index
    %22 = vector.load %arg7[%c0_13, %c0_14] : memref<16x128xbf16, #tpu.memory_space<vmem>>, vector<16x128xbf16>
    tpu.vector_store %arg7[%c0_13, %c0_14], %21 {strides = array<i32>} : memref<16x128xbf16, #tpu.memory_space<vmem>>, vector<16x128xbf16>,
    return
  }
  func.func @transform_0(%arg0: i32) -> (i32, i32) {
    %c0_i32 = arith.constant 0 : i32
    %c0_i32_0 = arith.constant 0 : i32
    return %arg0, %c0_i32 : i32, i32
  }
  func.func @transform_1(%arg0: i32) -> (i32, i32) {
    %c0_i32 = arith.constant 0 : i32
    %c0_i32_0 = arith.constant 0 : i32
    %c0_i32_1 = arith.constant 0 : i32
    return %c0_i32, %c0_i32_0 : i32, i32
  }
  func.func @transform_2(%arg0: i32) -> (i32, i32) {
    %c0_i32 = arith.constant 0 : i32
    %c0_i32_0 = arith.constant 0 : i32
    %c0_i32_1 = arith.constant 0 : i32
    return %c0_i32, %c0_i32_0 : i32, i32
  }
  func.func @transform_3(%arg0: i32) -> (i32, i32) {
    %c0_i32 = arith.constant 0 : i32
    %c0_i32_0 = arith.constant 0 : i32
    %c0_i32_1 = arith.constant 0 : i32
    return %c0_i32, %c0_i32_0 : i32, i32
  }
  func.func @transform_4(%arg0: i32) -> (i32, i32) {
    %c0_i32 = arith.constant 0 : i32
    %c0_i32_0 = arith.constant 0 : i32
    %c0_i32_1 = arith.constant 0 : i32
    return %c0_i32, %c0_i32_0 : i32, i32
  }
  func.func @transform_5(%arg0: i32) -> (i32, i32) {
    %c0_i32 = arith.constant 0 : i32
    %c0_i32_0 = arith.constant 0 : i32
    %c0_i32_1 = arith.constant 0 : i32
    return %c0_i32, %c0_i32_0 : i32, i32
  }
  func.func @transform_6(%arg0: i32) -> (i32, i32) {
    %c0_i32 = arith.constant 0 : i32
    %c0_i32_0 = arith.constant 0 : i32
    return %arg0, %c0_i32 : i32, i32
  }
}

module attributes {stable_mosaic.version = 11 : i64} {
  func.func @kernel(%arg0: i32, %arg1: memref<8x32xbf16, #tpu.memory_space<vmem>>, %arg2: memref<32x384xbf16, #tpu.memory_space<vmem>>, %arg3: memref<8x384xbf16, #tpu.memory_space<vmem>>) attributes {dimension_semantics = [#tpu.dimension_semantics<parallel>], iteration_bounds = array<i64: 1>, scalar_prefetch = 0 : i64, scratch_operands = 0 : i64, tpu.core_type = #tpu.core_type<tc>, window_params = [{transform_indices = @transform_0, window_bounds = array<i64: 8, 32>}, {pipeline_mode = #tpu.pipeline_mode<synchronous>, transform_indices = @transform_1, window_bounds = array<i64: 32, 384>}, {transform_indices = @transform_2, window_bounds = array<i64: 8, 384>}]} {
    %c0 = arith.constant 0 : index
    %c0_0 = arith.constant 0 : index
    %0 = vector.load %arg1[%c0, %c0_0] : memref<8x32xbf16, #tpu.memory_space<vmem>>, vector<8x32xbf16>
    %c0_1 = arith.constant 0 : index
    %c0_2 = arith.constant 0 : index
    %1 = vector.load %arg2[%c0_1, %c0_2] : memref<32x384xbf16, #tpu.memory_space<vmem>>, vector<32x384xbf16>
    %cst = arith.constant dense<0.000000e+00> : vector<8x384xf32>
    %2 = tpu.matmul %0, %1, %cst {dimension_numbers = #tpu.dot_dimension_numbers<[1], [0], [0], [1], [0, 0, 1, 1], [], []>} : vector<8x32xbf16>, vector<32x384xbf16>, vector<8x384xf32> -> vector<8x384xf32>
    %3 = arith.truncf %2 : vector<8x384xf32> to vector<8x384xbf16>
    %c0_3 = arith.constant 0 : index
    %c0_4 = arith.constant 0 : index
    %4 = vector.load %arg3[%c0_3, %c0_4] : memref<8x384xbf16, #tpu.memory_space<vmem>>, vector<8x384xbf16>
    tpu.vector_store %arg3[%c0_3, %c0_4], %3 {strides = array<i32>} : memref<8x384xbf16, #tpu.memory_space<vmem>>, vector<8x384xbf16>,
    return
  }
  func.func @transform_0(%arg0: i32) -> (i32, i32) {
    %c0_i32 = arith.constant 0 : i32
    %c0_i32_0 = arith.constant 0 : i32
    return %arg0, %c0_i32 : i32, i32
  }
  func.func @transform_1(%arg0: i32) -> (i32, i32) {
    %c0_i32 = arith.constant 0 : i32
    %c0_i32_0 = arith.constant 0 : i32
    %c0_i32_1 = arith.constant 0 : i32
    return %c0_i32, %c0_i32_0 : i32, i32
  }
  func.func @transform_2(%arg0: i32) -> (i32, i32) {
    %c0_i32 = arith.constant 0 : i32
    %c0_i32_0 = arith.constant 0 : i32
    return %arg0, %c0_i32 : i32, i32
  }
}

module attributes {stable_mosaic.version = 11 : i64} {
  func.func @kernel(%arg0: i32, %arg1: memref<8x384xbf16, #tpu.memory_space<vmem>>, %arg2: memref<384x128xbf16, #tpu.memory_space<vmem>>, %arg3: memref<1x128xf32, #tpu.memory_space<vmem>>, %arg4: memref<1x128xf32, #tpu.memory_space<vmem>>, %arg5: memref<8x128xbf16, #tpu.memory_space<vmem>>) attributes {dimension_semantics = [#tpu.dimension_semantics<parallel>], iteration_bounds = array<i64: 1>, scalar_prefetch = 0 : i64, scratch_operands = 0 : i64, tpu.core_type = #tpu.core_type<tc>, window_params = [{transform_indices = @transform_0, window_bounds = array<i64: 8, 384>}, {pipeline_mode = #tpu.pipeline_mode<synchronous>, transform_indices = @transform_1, window_bounds = array<i64: 384, 128>}, {pipeline_mode = #tpu.pipeline_mode<synchronous>, transform_indices = @transform_2, window_bounds = array<i64: 1, 128>}, {pipeline_mode = #tpu.pipeline_mode<synchronous>, transform_indices = @transform_3, window_bounds = array<i64: 1, 128>}, {transform_indices = @transform_4, window_bounds = array<i64: 8, 128>}]} {
    %c0 = arith.constant 0 : index
    %c0_0 = arith.constant 0 : index
    %0 = vector.load %arg1[%c0, %c0_0] : memref<8x384xbf16, #tpu.memory_space<vmem>>, vector<8x384xbf16>
    %c0_1 = arith.constant 0 : index
    %c0_2 = arith.constant 0 : index
    %1 = vector.load %arg2[%c0_1, %c0_2] : memref<384x128xbf16, #tpu.memory_space<vmem>>, vector<384x128xbf16>
    %cst = arith.constant dense<0.000000e+00> : vector<8x128xf32>
    %2 = tpu.matmul %0, %1, %cst {dimension_numbers = #tpu.dot_dimension_numbers<[1], [0], [0], [1], [0, 0, 1, 1], [], []>} : vector<8x384xbf16>, vector<384x128xbf16>, vector<8x128xf32> -> vector<8x128xf32>
    %c0_3 = arith.constant 0 : index
    %c0_4 = arith.constant 0 : index
    %3 = vector.load %arg3[%c0_3, %c0_4] : memref<1x128xf32, #tpu.memory_space<vmem>>, vector<1x128xf32>
    %4 = vector.broadcast %3 : vector<1x128xf32> to vector<8x128xf32>
    %5 = arith.mulf %2, %4 : vector<8x128xf32>
    %c0_5 = arith.constant 0 : index
    %c0_6 = arith.constant 0 : index
    %6 = vector.load %arg4[%c0_5, %c0_6] : memref<1x128xf32, #tpu.memory_space<vmem>>, vector<1x128xf32>
    %7 = vector.broadcast %6 : vector<1x128xf32> to vector<8x128xf32>
    %8 = arith.addf %5, %7 : vector<8x128xf32>
    %cst_7 = arith.constant 0.000000e+00 : f32
    %9 = vector.broadcast %cst_7 : f32 to vector<8x128xf32>
    %10 = arith.maximumf %8, %9 : vector<8x128xf32>
    %11 = arith.truncf %10 : vector<8x128xf32> to vector<8x128xbf16>
    %c0_8 = arith.constant 0 : index
    %c0_9 = arith.constant 0 : index
    %12 = vector.load %arg5[%c0_8, %c0_9] : memref<8x128xbf16, #tpu.memory_space<vmem>>, vector<8x128xbf16>
    tpu.vector_store %arg5[%c0_8, %c0_9], %11 {strides = array<i32>} : memref<8x128xbf16, #tpu.memory_space<vmem>>, vector<8x128xbf16>,
    return
  }
  func.func @transform_0(%arg0: i32) -> (i32, i32) {
    %c0_i32 = arith.constant 0 : i32
    %c0_i32_0 = arith.constant 0 : i32
    return %arg0, %c0_i32 : i32, i32
  }
  func.func @transform_1(%arg0: i32) -> (i32, i32) {
    %c0_i32 = arith.constant 0 : i32
    %c0_i32_0 = arith.constant 0 : i32
    %c0_i32_1 = arith.constant 0 : i32
    return %c0_i32, %c0_i32_0 : i32, i32
  }
  func.func @transform_2(%arg0: i32) -> (i32, i32) {
    %c0_i32 = arith.constant 0 : i32
    %c0_i32_0 = arith.constant 0 : i32
    %c0_i32_1 = arith.constant 0 : i32
    return %c0_i32, %c0_i32_0 : i32, i32
  }
  func.func @transform_3(%arg0: i32) -> (i32, i32) {
    %c0_i32 = arith.constant 0 : i32
    %c0_i32_0 = arith.constant 0 : i32
    %c0_i32_1 = arith.constant 0 : i32
    return %c0_i32, %c0_i32_0 : i32, i32
  }
  func.func @transform_4(%arg0: i32) -> (i32, i32) {
    %c0_i32 = arith.constant 0 : i32
    %c0_i32_0 = arith.constant 0 : i32
    return %arg0, %c0_i32 : i32, i32
  }
}

module attributes {stable_mosaic.version = 11 : i64} {
  func.func @kernel(%arg0: i32, %arg1: memref<8x144xbf16, #tpu.memory_space<vmem>>, %arg2: memref<144x384xbf16, #tpu.memory_space<vmem>>, %arg3: memref<1x144xf32, #tpu.memory_space<vmem>>, %arg4: memref<1x144xf32, #tpu.memory_space<vmem>>, %arg5: memref<8x384xbf16, #tpu.memory_space<vmem>>) attributes {dimension_semantics = [#tpu.dimension_semantics<parallel>], iteration_bounds = array<i64: 1>, scalar_prefetch = 0 : i64, scratch_operands = 0 : i64, tpu.core_type = #tpu.core_type<tc>, window_params = [{transform_indices = @transform_0, window_bounds = array<i64: 8, 144>}, {pipeline_mode = #tpu.pipeline_mode<synchronous>, transform_indices = @transform_1, window_bounds = array<i64: 144, 384>}, {pipeline_mode = #tpu.pipeline_mode<synchronous>, transform_indices = @transform_2, window_bounds = array<i64: 1, 144>}, {pipeline_mode = #tpu.pipeline_mode<synchronous>, transform_indices = @transform_3, window_bounds = array<i64: 1, 144>}, {transform_indices = @transform_4, window_bounds = array<i64: 8, 384>}]} {
    %c0 = arith.constant 0 : index
    %c0_0 = arith.constant 0 : index
    %0 = vector.load %arg1[%c0, %c0_0] : memref<8x144xbf16, #tpu.memory_space<vmem>>, vector<8x144xbf16>
    %1 = arith.extf %0 : vector<8x144xbf16> to vector<8x144xf32>
    %c0_1 = arith.constant 0 : index
    %c0_2 = arith.constant 0 : index
    %2 = vector.load %arg3[%c0_1, %c0_2] : memref<1x144xf32, #tpu.memory_space<vmem>>, vector<1x144xf32>
    %3 = vector.broadcast %2 : vector<1x144xf32> to vector<8x144xf32>
    %4 = arith.mulf %1, %3 : vector<8x144xf32>
    %c0_3 = arith.constant 0 : index
    %c0_4 = arith.constant 0 : index
    %5 = vector.load %arg4[%c0_3, %c0_4] : memref<1x144xf32, #tpu.memory_space<vmem>>, vector<1x144xf32>
    %6 = vector.broadcast %5 : vector<1x144xf32> to vector<8x144xf32>
    %7 = arith.addf %4, %6 : vector<8x144xf32>
    %cst = arith.constant 0.000000e+00 : f32
    %8 = vector.broadcast %cst : f32 to vector<8x144xf32>
    %9 = arith.maximumf %7, %8 : vector<8x144xf32>
    %10 = arith.truncf %9 : vector<8x144xf32> to vector<8x144xbf16>
    %c0_5 = arith.constant 0 : index
    %c0_6 = arith.constant 0 : index
    %11 = vector.load %arg2[%c0_5, %c0_6] : memref<144x384xbf16, #tpu.memory_space<vmem>>, vector<144x384xbf16>
    %cst_7 = arith.constant dense<0.000000e+00> : vector<8x384xf32>
    %12 = tpu.matmul %10, %11, %cst_7 {dimension_numbers = #tpu.dot_dimension_numbers<[1], [0], [0], [1], [0, 0, 1, 1], [], []>} : vector<8x144xbf16>, vector<144x384xbf16>, vector<8x384xf32> -> vector<8x384xf32>
    %13 = arith.truncf %12 : vector<8x384xf32> to vector<8x384xbf16>
    %c0_8 = arith.constant 0 : index
    %c0_9 = arith.constant 0 : index
    %14 = vector.load %arg5[%c0_8, %c0_9] : memref<8x384xbf16, #tpu.memory_space<vmem>>, vector<8x384xbf16>
    tpu.vector_store %arg5[%c0_8, %c0_9], %13 {strides = array<i32>} : memref<8x384xbf16, #tpu.memory_space<vmem>>, vector<8x384xbf16>,
    return
  }
  func.func @transform_0(%arg0: i32) -> (i32, i32) {
    %c0_i32 = arith.constant 0 : i32
    %c0_i32_0 = arith.constant 0 : i32
    return %arg0, %c0_i32 : i32, i32
  }
  func.func @transform_1(%arg0: i32) -> (i32, i32) {
    %c0_i32 = arith.constant 0 : i32
    %c0_i32_0 = arith.constant 0 : i32
    %c0_i32_1 = arith.constant 0 : i32
    return %c0_i32, %c0_i32_0 : i32, i32
  }
  func.func @transform_2(%arg0: i32) -> (i32, i32) {
    %c0_i32 = arith.constant 0 : i32
    %c0_i32_0 = arith.constant 0 : i32
    %c0_i32_1 = arith.constant 0 : i32
    return %c0_i32, %c0_i32_0 : i32, i32
  }
  func.func @transform_3(%arg0: i32) -> (i32, i32) {
    %c0_i32 = arith.constant 0 : i32
    %c0_i32_0 = arith.constant 0 : i32
    %c0_i32_1 = arith.constant 0 : i32
    return %c0_i32, %c0_i32_0 : i32, i32
  }
  func.func @transform_4(%arg0: i32) -> (i32, i32) {
    %c0_i32 = arith.constant 0 : i32
    %c0_i32_0 = arith.constant 0 : i32
    return %arg0, %c0_i32 : i32, i32
  }
}

module attributes {stable_mosaic.version = 11 : i64} {
  func.func @kernel(%arg0: i32, %arg1: memref<8x268xbf16, #tpu.memory_space<vmem>>, %arg2: memref<268x128xbf16, #tpu.memory_space<vmem>>, %arg3: memref<1x268xf32, #tpu.memory_space<vmem>>, %arg4: memref<1x268xf32, #tpu.memory_space<vmem>>, %arg5: memref<1x128xf32, #tpu.memory_space<vmem>>, %arg6: memref<1x128xf32, #tpu.memory_space<vmem>>, %arg7: memref<8x128xbf16, #tpu.memory_space<vmem>>) attributes {dimension_semantics = [#tpu.dimension_semantics<parallel>], iteration_bounds = array<i64: 1>, scalar_prefetch = 0 : i64, scratch_operands = 0 : i64, tpu.core_type = #tpu.core_type<tc>, window_params = [{transform_indices = @transform_0, window_bounds = array<i64: 8, 268>}, {pipeline_mode = #tpu.pipeline_mode<synchronous>, transform_indices = @transform_1, window_bounds = array<i64: 268, 128>}, {pipeline_mode = #tpu.pipeline_mode<synchronous>, transform_indices = @transform_2, window_bounds = array<i64: 1, 268>}, {pipeline_mode = #tpu.pipeline_mode<synchronous>, transform_indices = @transform_3, window_bounds = array<i64: 1, 268>}, {pipeline_mode = #tpu.pipeline_mode<synchronous>, transform_indices = @transform_4, window_bounds = array<i64: 1, 128>}, {pipeline_mode = #tpu.pipeline_mode<synchronous>, transform_indices = @transform_5, window_bounds = array<i64: 1, 128>}, {transform_indices = @transform_6, window_bounds = array<i64: 8, 128>}]} {
    %c0 = arith.constant 0 : index
    %c0_0 = arith.constant 0 : index
    %0 = vector.load %arg1[%c0, %c0_0] : memref<8x268xbf16, #tpu.memory_space<vmem>>, vector<8x268xbf16>
    %1 = arith.extf %0 : vector<8x268xbf16> to vector<8x268xf32>
    %c0_1 = arith.constant 0 : index
    %c0_2 = arith.constant 0 : index
    %2 = vector.load %arg3[%c0_1, %c0_2] : memref<1x268xf32, #tpu.memory_space<vmem>>, vector<1x268xf32>
    %3 = vector.broadcast %2 : vector<1x268xf32> to vector<8x268xf32>
    %4 = arith.mulf %1, %3 : vector<8x268xf32>
    %c0_3 = arith.constant 0 : index
    %c0_4 = arith.constant 0 : index
    %5 = vector.load %arg4[%c0_3, %c0_4] : memref<1x268xf32, #tpu.memory_space<vmem>>, vector<1x268xf32>
    %6 = vector.broadcast %5 : vector<1x268xf32> to vector<8x268xf32>
    %7 = arith.addf %4, %6 : vector<8x268xf32>
    %cst = arith.constant 0.000000e+00 : f32
    %8 = vector.broadcast %cst : f32 to vector<8x268xf32>
    %9 = arith.maximumf %7, %8 : vector<8x268xf32>
    %10 = arith.truncf %9 : vector<8x268xf32> to vector<8x268xbf16>
    %c0_5 = arith.constant 0 : index
    %c0_6 = arith.constant 0 : index
    %11 = vector.load %arg2[%c0_5, %c0_6] : memref<268x128xbf16, #tpu.memory_space<vmem>>, vector<268x128xbf16>
    %cst_7 = arith.constant dense<0.000000e+00> : vector<8x128xf32>
    %12 = tpu.matmul %10, %11, %cst_7 {dimension_numbers = #tpu.dot_dimension_numbers<[1], [0], [0], [1], [0, 0, 1, 1], [], []>} : vector<8x268xbf16>, vector<268x128xbf16>, vector<8x128xf32> -> vector<8x128xf32>
    %c0_8 = arith.constant 0 : index
    %c0_9 = arith.constant 0 : index
    %13 = vector.load %arg5[%c0_8, %c0_9] : memref<1x128xf32, #tpu.memory_space<vmem>>, vector<1x128xf32>
    %14 = vector.broadcast %13 : vector<1x128xf32> to vector<8x128xf32>
    %15 = arith.mulf %12, %14 : vector<8x128xf32>
    %c0_10 = arith.constant 0 : index
    %c0_11 = arith.constant 0 : index
    %16 = vector.load %arg6[%c0_10, %c0_11] : memref<1x128xf32, #tpu.memory_space<vmem>>, vector<1x128xf32>
    %17 = vector.broadcast %16 : vector<1x128xf32> to vector<8x128xf32>
    %18 = arith.addf %15, %17 : vector<8x128xf32>
    %cst_12 = arith.constant 0.000000e+00 : f32
    %19 = vector.broadcast %cst_12 : f32 to vector<8x128xf32>
    %20 = arith.maximumf %18, %19 : vector<8x128xf32>
    %21 = arith.truncf %20 : vector<8x128xf32> to vector<8x128xbf16>
    %c0_13 = arith.constant 0 : index
    %c0_14 = arith.constant 0 : index
    %22 = vector.load %arg7[%c0_13, %c0_14] : memref<8x128xbf16, #tpu.memory_space<vmem>>, vector<8x128xbf16>
    tpu.vector_store %arg7[%c0_13, %c0_14], %21 {strides = array<i32>} : memref<8x128xbf16, #tpu.memory_space<vmem>>, vector<8x128xbf16>,
    return
  }
  func.func @transform_0(%arg0: i32) -> (i32, i32) {
    %c0_i32 = arith.constant 0 : i32
    %c0_i32_0 = arith.constant 0 : i32
    return %arg0, %c0_i32 : i32, i32
  }
  func.func @transform_1(%arg0: i32) -> (i32, i32) {
    %c0_i32 = arith.constant 0 : i32
    %c0_i32_0 = arith.constant 0 : i32
    %c0_i32_1 = arith.constant 0 : i32
    return %c0_i32, %c0_i32_0 : i32, i32
  }
  func.func @transform_2(%arg0: i32) -> (i32, i32) {
    %c0_i32 = arith.constant 0 : i32
    %c0_i32_0 = arith.constant 0 : i32
    %c0_i32_1 = arith.constant 0 : i32
    return %c0_i32, %c0_i32_0 : i32, i32
  }
  func.func @transform_3(%arg0: i32) -> (i32, i32) {
    %c0_i32 = arith.constant 0 : i32
    %c0_i32_0 = arith.constant 0 : i32
    %c0_i32_1 = arith.constant 0 : i32
    return %c0_i32, %c0_i32_0 : i32, i32
  }
  func.func @transform_4(%arg0: i32) -> (i32, i32) {
    %c0_i32 = arith.constant 0 : i32
    %c0_i32_0 = arith.constant 0 : i32
    %c0_i32_1 = arith.constant 0 : i32
    return %c0_i32, %c0_i32_0 : i32, i32
  }
  func.func @transform_5(%arg0: i32) -> (i32, i32) {
    %c0_i32 = arith.constant 0 : i32
    %c0_i32_0 = arith.constant 0 : i32
    %c0_i32_1 = arith.constant 0 : i32
    return %c0_i32, %c0_i32_0 : i32, i32
  }
  func.func @transform_6(%arg0: i32) -> (i32, i32) {
    %c0_i32 = arith.constant 0 : i32
    %c0_i32_0 = arith.constant 0 : i32
    return %arg0, %c0_i32 : i32, i32
  }
}

module attributes {stable_mosaic.version = 11 : i64} {
  func.func @kernel(%arg0: i32, %arg1: memref<8x640xbf16, #tpu.memory_space<vmem>>, %arg2: memref<640x128xbf16, #tpu.memory_space<vmem>>, %arg3: memref<1x128xf32, #tpu.memory_space<vmem>>, %arg4: memref<1x128xf32, #tpu.memory_space<vmem>>, %arg5: memref<8x128xbf16, #tpu.memory_space<vmem>>) attributes {dimension_semantics = [#tpu.dimension_semantics<parallel>], iteration_bounds = array<i64: 1>, scalar_prefetch = 0 : i64, scratch_operands = 0 : i64, tpu.core_type = #tpu.core_type<tc>, window_params = [{transform_indices = @transform_0, window_bounds = array<i64: 8, 640>}, {pipeline_mode = #tpu.pipeline_mode<synchronous>, transform_indices = @transform_1, window_bounds = array<i64: 640, 128>}, {pipeline_mode = #tpu.pipeline_mode<synchronous>, transform_indices = @transform_2, window_bounds = array<i64: 1, 128>}, {pipeline_mode = #tpu.pipeline_mode<synchronous>, transform_indices = @transform_3, window_bounds = array<i64: 1, 128>}, {transform_indices = @transform_4, window_bounds = array<i64: 8, 128>}]} {
    %c0 = arith.constant 0 : index
    %c0_0 = arith.constant 0 : index
    %0 = vector.load %arg1[%c0, %c0_0] : memref<8x640xbf16, #tpu.memory_space<vmem>>, vector<8x640xbf16>
    %c0_1 = arith.constant 0 : index
    %c0_2 = arith.constant 0 : index
    %1 = vector.load %arg2[%c0_1, %c0_2] : memref<640x128xbf16, #tpu.memory_space<vmem>>, vector<640x128xbf16>
    %cst = arith.constant dense<0.000000e+00> : vector<8x128xf32>
    %2 = tpu.matmul %0, %1, %cst {dimension_numbers = #tpu.dot_dimension_numbers<[1], [0], [0], [1], [0, 0, 1, 1], [], []>} : vector<8x640xbf16>, vector<640x128xbf16>, vector<8x128xf32> -> vector<8x128xf32>
    %c0_3 = arith.constant 0 : index
    %c0_4 = arith.constant 0 : index
    %3 = vector.load %arg3[%c0_3, %c0_4] : memref<1x128xf32, #tpu.memory_space<vmem>>, vector<1x128xf32>
    %4 = vector.broadcast %3 : vector<1x128xf32> to vector<8x128xf32>
    %5 = arith.mulf %2, %4 : vector<8x128xf32>
    %c0_5 = arith.constant 0 : index
    %c0_6 = arith.constant 0 : index
    %6 = vector.load %arg4[%c0_5, %c0_6] : memref<1x128xf32, #tpu.memory_space<vmem>>, vector<1x128xf32>
    %7 = vector.broadcast %6 : vector<1x128xf32> to vector<8x128xf32>
    %8 = arith.addf %5, %7 : vector<8x128xf32>
    %cst_7 = arith.constant 0.000000e+00 : f32
    %9 = vector.broadcast %cst_7 : f32 to vector<8x128xf32>
    %10 = arith.maximumf %8, %9 : vector<8x128xf32>
    %11 = arith.truncf %10 : vector<8x128xf32> to vector<8x128xbf16>
    %c0_8 = arith.constant 0 : index
    %c0_9 = arith.constant 0 : index
    %12 = vector.load %arg5[%c0_8, %c0_9] : memref<8x128xbf16, #tpu.memory_space<vmem>>, vector<8x128xbf16>
    tpu.vector_store %arg5[%c0_8, %c0_9], %11 {strides = array<i32>} : memref<8x128xbf16, #tpu.memory_space<vmem>>, vector<8x128xbf16>,
    return
  }
  func.func @transform_0(%arg0: i32) -> (i32, i32) {
    %c0_i32 = arith.constant 0 : i32
    %c0_i32_0 = arith.constant 0 : i32
    return %arg0, %c0_i32 : i32, i32
  }
  func.func @transform_1(%arg0: i32) -> (i32, i32) {
    %c0_i32 = arith.constant 0 : i32
    %c0_i32_0 = arith.constant 0 : i32
    %c0_i32_1 = arith.constant 0 : i32
    return %c0_i32, %c0_i32_0 : i32, i32
  }
  func.func @transform_2(%arg0: i32) -> (i32, i32) {
    %c0_i32 = arith.constant 0 : i32
    %c0_i32_0 = arith.constant 0 : i32
    %c0_i32_1 = arith.constant 0 : i32
    return %c0_i32, %c0_i32_0 : i32, i32
  }
  func.func @transform_3(%arg0: i32) -> (i32, i32) {
    %c0_i32 = arith.constant 0 : i32
    %c0_i32_0 = arith.constant 0 : i32
    %c0_i32_1 = arith.constant 0 : i32
    return %c0_i32, %c0_i32_0 : i32, i32
  }
  func.func @transform_4(%arg0: i32) -> (i32, i32) {
    %c0_i32 = arith.constant 0 : i32
    %c0_i32_0 = arith.constant 0 : i32
    return %arg0, %c0_i32 : i32, i32
  }
}

module attributes {stable_mosaic.version = 11 : i64} {
  func.func @kernel(%arg0: i32, %arg1: memref<8x64xbf16, #tpu.memory_space<vmem>>, %arg2: memref<64x640xbf16, #tpu.memory_space<vmem>>, %arg3: memref<8x640xbf16, #tpu.memory_space<vmem>>) attributes {dimension_semantics = [#tpu.dimension_semantics<parallel>], iteration_bounds = array<i64: 1>, scalar_prefetch = 0 : i64, scratch_operands = 0 : i64, tpu.core_type = #tpu.core_type<tc>, window_params = [{transform_indices = @transform_0, window_bounds = array<i64: 8, 64>}, {pipeline_mode = #tpu.pipeline_mode<synchronous>, transform_indices = @transform_1, window_bounds = array<i64: 64, 640>}, {transform_indices = @transform_2, window_bounds = array<i64: 8, 640>}]} {
    %c0 = arith.constant 0 : index
    %c0_0 = arith.constant 0 : index
    %0 = vector.load %arg1[%c0, %c0_0] : memref<8x64xbf16, #tpu.memory_space<vmem>>, vector<8x64xbf16>
    %c0_1 = arith.constant 0 : index
    %c0_2 = arith.constant 0 : index
    %1 = vector.load %arg2[%c0_1, %c0_2] : memref<64x640xbf16, #tpu.memory_space<vmem>>, vector<64x640xbf16>
    %cst = arith.constant dense<0.000000e+00> : vector<8x640xf32>
    %2 = tpu.matmul %0, %1, %cst {dimension_numbers = #tpu.dot_dimension_numbers<[1], [0], [0], [1], [0, 0, 1, 1], [], []>} : vector<8x64xbf16>, vector<64x640xbf16>, vector<8x640xf32> -> vector<8x640xf32>
    %3 = arith.truncf %2 : vector<8x640xf32> to vector<8x640xbf16>
    %c0_3 = arith.constant 0 : index
    %c0_4 = arith.constant 0 : index
    %4 = vector.load %arg3[%c0_3, %c0_4] : memref<8x640xbf16, #tpu.memory_space<vmem>>, vector<8x640xbf16>
    tpu.vector_store %arg3[%c0_3, %c0_4], %3 {strides = array<i32>} : memref<8x640xbf16, #tpu.memory_space<vmem>>, vector<8x640xbf16>,
    return
  }
  func.func @transform_0(%arg0: i32) -> (i32, i32) {
    %c0_i32 = arith.constant 0 : i32
    %c0_i32_0 = arith.constant 0 : i32
    return %arg0, %c0_i32 : i32, i32
  }
  func.func @transform_1(%arg0: i32) -> (i32, i32) {
    %c0_i32 = arith.constant 0 : i32
    %c0_i32_0 = arith.constant 0 : i32
    %c0_i32_1 = arith.constant 0 : i32
    return %c0_i32, %c0_i32_0 : i32, i32
  }
  func.func @transform_2(%arg0: i32) -> (i32, i32) {
    %c0_i32 = arith.constant 0 : i32
    %c0_i32_0 = arith.constant 0 : i32
    return %arg0, %c0_i32 : i32, i32
  }
}

module attributes {stable_mosaic.version = 11 : i64} {
  func.func @kernel(%arg0: i32, %arg1: memref<8x268xbf16, #tpu.memory_space<vmem>>, %arg2: memref<268x640xbf16, #tpu.memory_space<vmem>>, %arg3: memref<1x268xf32, #tpu.memory_space<vmem>>, %arg4: memref<1x268xf32, #tpu.memory_space<vmem>>, %arg5: memref<8x640xbf16, #tpu.memory_space<vmem>>) attributes {dimension_semantics = [#tpu.dimension_semantics<parallel>], iteration_bounds = array<i64: 1>, scalar_prefetch = 0 : i64, scratch_operands = 0 : i64, tpu.core_type = #tpu.core_type<tc>, window_params = [{transform_indices = @transform_0, window_bounds = array<i64: 8, 268>}, {pipeline_mode = #tpu.pipeline_mode<synchronous>, transform_indices = @transform_1, window_bounds = array<i64: 268, 640>}, {pipeline_mode = #tpu.pipeline_mode<synchronous>, transform_indices = @transform_2, window_bounds = array<i64: 1, 268>}, {pipeline_mode = #tpu.pipeline_mode<synchronous>, transform_indices = @transform_3, window_bounds = array<i64: 1, 268>}, {transform_indices = @transform_4, window_bounds = array<i64: 8, 640>}]} {
    %c0 = arith.constant 0 : index
    %c0_0 = arith.constant 0 : index
    %0 = vector.load %arg1[%c0, %c0_0] : memref<8x268xbf16, #tpu.memory_space<vmem>>, vector<8x268xbf16>
    %1 = arith.extf %0 : vector<8x268xbf16> to vector<8x268xf32>
    %c0_1 = arith.constant 0 : index
    %c0_2 = arith.constant 0 : index
    %2 = vector.load %arg3[%c0_1, %c0_2] : memref<1x268xf32, #tpu.memory_space<vmem>>, vector<1x268xf32>
    %3 = vector.broadcast %2 : vector<1x268xf32> to vector<8x268xf32>
    %4 = arith.mulf %1, %3 : vector<8x268xf32>
    %c0_3 = arith.constant 0 : index
    %c0_4 = arith.constant 0 : index
    %5 = vector.load %arg4[%c0_3, %c0_4] : memref<1x268xf32, #tpu.memory_space<vmem>>, vector<1x268xf32>
    %6 = vector.broadcast %5 : vector<1x268xf32> to vector<8x268xf32>
    %7 = arith.addf %4, %6 : vector<8x268xf32>
    %cst = arith.constant 0.000000e+00 : f32
    %8 = vector.broadcast %cst : f32 to vector<8x268xf32>
    %9 = arith.maximumf %7, %8 : vector<8x268xf32>
    %10 = arith.truncf %9 : vector<8x268xf32> to vector<8x268xbf16>
    %c0_5 = arith.constant 0 : index
    %c0_6 = arith.constant 0 : index
    %11 = vector.load %arg2[%c0_5, %c0_6] : memref<268x640xbf16, #tpu.memory_space<vmem>>, vector<268x640xbf16>
    %cst_7 = arith.constant dense<0.000000e+00> : vector<8x640xf32>
    %12 = tpu.matmul %10, %11, %cst_7 {dimension_numbers = #tpu.dot_dimension_numbers<[1], [0], [0], [1], [0, 0, 1, 1], [], []>} : vector<8x268xbf16>, vector<268x640xbf16>, vector<8x640xf32> -> vector<8x640xf32>
    %13 = arith.truncf %12 : vector<8x640xf32> to vector<8x640xbf16>
    %c0_8 = arith.constant 0 : index
    %c0_9 = arith.constant 0 : index
    %14 = vector.load %arg5[%c0_8, %c0_9] : memref<8x640xbf16, #tpu.memory_space<vmem>>, vector<8x640xbf16>
    tpu.vector_store %arg5[%c0_8, %c0_9], %13 {strides = array<i32>} : memref<8x640xbf16, #tpu.memory_space<vmem>>, vector<8x640xbf16>,
    return
  }
  func.func @transform_0(%arg0: i32) -> (i32, i32) {
    %c0_i32 = arith.constant 0 : i32
    %c0_i32_0 = arith.constant 0 : i32
    return %arg0, %c0_i32 : i32, i32
  }
  func.func @transform_1(%arg0: i32) -> (i32, i32) {
    %c0_i32 = arith.constant 0 : i32
    %c0_i32_0 = arith.constant 0 : i32
    %c0_i32_1 = arith.constant 0 : i32
    return %c0_i32, %c0_i32_0 : i32, i32
  }
  func.func @transform_2(%arg0: i32) -> (i32, i32) {
    %c0_i32 = arith.constant 0 : i32
    %c0_i32_0 = arith.constant 0 : i32
    %c0_i32_1 = arith.constant 0 : i32
    return %c0_i32, %c0_i32_0 : i32, i32
  }
  func.func @transform_3(%arg0: i32) -> (i32, i32) {
    %c0_i32 = arith.constant 0 : i32
    %c0_i32_0 = arith.constant 0 : i32
    %c0_i32_1 = arith.constant 0 : i32
    return %c0_i32, %c0_i32_0 : i32, i32
  }
  func.func @transform_4(%arg0: i32) -> (i32, i32) {
    %c0_i32 = arith.constant 0 : i32
    %c0_i32_0 = arith.constant 0 : i32
    return %arg0, %c0_i32 : i32, i32
  }
}

module attributes {stable_mosaic.version = 11 : i64} {
  func.func @_head_kernel(%arg0: i32, %arg1: memref<2x1x524xbf16, #tpu.memory_space<vmem>>, %arg2: memref<1x1x524xf32, #tpu.memory_space<vmem>>, %arg3: memref<1x1x524xf32, #tpu.memory_space<vmem>>, %arg4: memref<524x10xf32, #tpu.memory_space<vmem>>, %arg5: memref<1x10xf32, #tpu.memory_space<vmem>>, %arg6: memref<2x10xf32, #tpu.memory_space<vmem>>) attributes {dimension_semantics = [#tpu.dimension_semantics<arbitrary>], iteration_bounds = array<i64: 1>, scalar_prefetch = 0 : i64, scratch_operands = 0 : i64, tpu.core_type = #tpu.core_type<tc>, window_params = [{pipeline_mode = #tpu.pipeline_mode<synchronous>, transform_indices = @transform_0, window_bounds = array<i64: 2, 1, 524>}, {pipeline_mode = #tpu.pipeline_mode<synchronous>, transform_indices = @transform_1, window_bounds = array<i64: 1, 1, 524>}, {pipeline_mode = #tpu.pipeline_mode<synchronous>, transform_indices = @transform_2, window_bounds = array<i64: 1, 1, 524>}, {pipeline_mode = #tpu.pipeline_mode<synchronous>, transform_indices = @transform_3, window_bounds = array<i64: 524, 10>}, {pipeline_mode = #tpu.pipeline_mode<synchronous>, transform_indices = @transform_4, window_bounds = array<i64: 1, 10>}, {pipeline_mode = #tpu.pipeline_mode<synchronous>, transform_indices = @transform_5, window_bounds = array<i64: 2, 10>}]} {
    %c0 = arith.constant 0 : index
    %c0_0 = arith.constant 0 : index
    %c0_1 = arith.constant 0 : index
    %0 = vector.load %arg1[%c0, %c0_0, %c0_1] : memref<2x1x524xbf16, #tpu.memory_space<vmem>>, vector<2x1x524xbf16>
    %1 = arith.extf %0 : vector<2x1x524xbf16> to vector<2x1x524xf32>
    %c0_2 = arith.constant 0 : index
    %c0_3 = arith.constant 0 : index
    %c0_4 = arith.constant 0 : index
    %2 = vector.load %arg2[%c0_2, %c0_3, %c0_4] : memref<1x1x524xf32, #tpu.memory_space<vmem>>, vector<1x1x524xf32>
    %3 = vector.broadcast %2 : vector<1x1x524xf32> to vector<2x1x524xf32>
    %4 = arith.mulf %1, %3 : vector<2x1x524xf32>
    %c0_5 = arith.constant 0 : index
    %c0_6 = arith.constant 0 : index
    %c0_7 = arith.constant 0 : index
    %5 = vector.load %arg3[%c0_5, %c0_6, %c0_7] : memref<1x1x524xf32, #tpu.memory_space<vmem>>, vector<1x1x524xf32>
    %6 = vector.broadcast %5 : vector<1x1x524xf32> to vector<2x1x524xf32>
    %7 = arith.addf %4, %6 : vector<2x1x524xf32>
    %cst = arith.constant 0.000000e+00 : f32
    %8 = vector.broadcast %cst : f32 to vector<2x1x524xf32>
    %9 = arith.maximumf %7, %8 : vector<2x1x524xf32>
    %cst_8 = arith.constant dense<0.000000e+00> : vector<2x524xf32>
    %10 = vector.multi_reduction <add>, %9, %cst_8 [1] : vector<2x1x524xf32> to vector<2x524xf32>
    %cst_9 = arith.constant 1.000000e+00 : f32
    %11 = vector.broadcast %cst_9 : f32 to vector<2x524xf32>
    %12 = arith.divf %10, %11 : vector<2x524xf32>
    %c0_10 = arith.constant 0 : index
    %c0_11 = arith.constant 0 : index
    %13 = vector.load %arg4[%c0_10, %c0_11] : memref<524x10xf32, #tpu.memory_space<vmem>>, vector<524x10xf32>
    %cst_12 = arith.constant dense<0.000000e+00> : vector<2x10xf32>
    %14 = tpu.matmul %12, %13, %cst_12 {dimension_numbers = #tpu.dot_dimension_numbers<[1], [0], [0], [1], [0, 0, 1, 1], [], []>} : vector<2x524xf32>, vector<524x10xf32>, vector<2x10xf32> -> vector<2x10xf32>
    %c0_13 = arith.constant 0 : index
    %c0_14 = arith.constant 0 : index
    %15 = vector.load %arg5[%c0_13, %c0_14] : memref<1x10xf32, #tpu.memory_space<vmem>>, vector<1x10xf32>
    %16 = vector.broadcast %15 : vector<1x10xf32> to vector<2x10xf32>
    %17 = arith.addf %14, %16 : vector<2x10xf32>
    %c0_15 = arith.constant 0 : index
    %c0_16 = arith.constant 0 : index
    %18 = vector.load %arg6[%c0_15, %c0_16] : memref<2x10xf32, #tpu.memory_space<vmem>>, vector<2x10xf32>
    tpu.vector_store %arg6[%c0_15, %c0_16], %17 {strides = array<i32>} : memref<2x10xf32, #tpu.memory_space<vmem>>, vector<2x10xf32>,
    return
  }
  func.func @transform_0(%arg0: i32) -> (i32, i32, i32) {
    %c0_i32 = arith.constant 0 : i32
    %c0_i32_0 = arith.constant 0 : i32
    %c0_i32_1 = arith.constant 0 : i32
    %c0_i32_2 = arith.constant 0 : i32
    return %c0_i32, %c0_i32_0, %c0_i32_1 : i32, i32, i32
  }
  func.func @transform_1(%arg0: i32) -> (i32, i32, i32) {
    %c0_i32 = arith.constant 0 : i32
    %c0_i32_0 = arith.constant 0 : i32
    %c0_i32_1 = arith.constant 0 : i32
    %c0_i32_2 = arith.constant 0 : i32
    return %c0_i32, %c0_i32_0, %c0_i32_1 : i32, i32, i32
  }
  func.func @transform_2(%arg0: i32) -> (i32, i32, i32) {
    %c0_i32 = arith.constant 0 : i32
    %c0_i32_0 = arith.constant 0 : i32
    %c0_i32_1 = arith.constant 0 : i32
    %c0_i32_2 = arith.constant 0 : i32
    return %c0_i32, %c0_i32_0, %c0_i32_1 : i32, i32, i32
  }
  func.func @transform_3(%arg0: i32) -> (i32, i32) {
    %c0_i32 = arith.constant 0 : i32
    %c0_i32_0 = arith.constant 0 : i32
    %c0_i32_1 = arith.constant 0 : i32
    return %c0_i32, %c0_i32_0 : i32, i32
  }
  func.func @transform_4(%arg0: i32) -> (i32, i32) {
    %c0_i32 = arith.constant 0 : i32
    %c0_i32_0 = arith.constant 0 : i32
    %c0_i32_1 = arith.constant 0 : i32
    return %c0_i32, %c0_i32_0 : i32, i32
  }
  func.func @transform_5(%arg0: i32) -> (i32, i32) {
    %c0_i32 = arith.constant 0 : i32
    %c0_i32_0 = arith.constant 0 : i32
    %c0_i32_1 = arith.constant 0 : i32
    return %c0_i32, %c0_i32_0 : i32, i32
  }
}

</mosaic_0001>

<llo_original>
// kernel: _lambda_.23
$region0: #{_lambda_.23}
  #allocation0 [shape = 'u32[]', space=smem, size = 0x4, offset = 0x4, fixed_abs, tag = 'smem constant byte address 0x4 - core index']
  #allocation1 [shape = 'u32[72,128]{1,0:T(1,128)}', space=vmem, size = 0x9000, scoped, tag = 'internal scratch']
  %s0 = inlined_call_operand.vmem [shape: bf16[128,8], index: 0, kind: input, shape index: {}]
  %s1 = inlined_call_operand.vmem [shape: bf16[8,128], index: 1, kind: input, shape index: {}]
  %s2 = inlined_call_operand.vmem [shape: f32[1,8], index: 2, kind: input, shape index: {}]
  %s3 = inlined_call_operand.vmem [shape: f32[1,8], index: 3, kind: input, shape index: {}]
  %s4 = inlined_call_operand.vmem [shape: f32[1,128], index: 4, kind: input, shape index: {}]
  %s5 = inlined_call_operand.vmem [shape: f32[1,128], index: 5, kind: input, shape index: {}]
  %s6 = inlined_call_operand.vmem [shape: bf16[128,128], index: 6, kind: output, shape index: {}]
  %s7 = sld [smem:[#allocation0]]
  $region57: #{_lambda_.23} parent=0
    _
  %s9 = ssub.s32 1, %s7
  %s10 = scalar_select 0, %s9, %s7
  loop: start=0, step=1, limit=4
  $region2: #{_lambda_.23} parent=0 // loop_pre_header
    _
  $region3: #{_lambda_.23} parent=0 // loop_header
    %s12 = sphi 0, %s16
    %p13 = scmp.ge.s32.totalorder %s12, 4
    %s22 = sphi 0, %s24
    %s25 = sphi 0, %s22
    %s26 = sphi 0, %s25
    %s42 = sphi 0, %s26
    %s46 = sphi 0, %s46
    %s48 = sphi 0, %s46
    %s49 = sphi 0, %s48
    %s63 = sphi 0, %s49
    %s67 = sphi 0, %s67
    %s69 = sphi 0, %s67
    %s70 = sphi 0, %s69
    %s84 = sphi 0, %s70
    %s88 = sphi 0, %s88
    %s90 = sphi 0, %s88
    %s91 = sphi 0, %s90
    %s105 = sphi 0, %s91
    %s109 = sphi 0, %s109
    %s111 = sphi 0, %s109
    %s112 = sphi 0, %s111
    %s126 = sphi 0, %s112
    %s130 = sphi 0, %s130
    %s132 = sphi 0, %s130
    %s133 = sphi 0, %s132
    %s147 = sphi 0, %s133
    %s153 = sphi 0, %s155
    %s156 = sphi 0, %s153
    %s157 = sphi 0, %s156
    %s173 = sphi 0, %s157
  $region4: #{_lambda_.23} parent=0 // loop_header_branch
    %15 = sbr.rel (%p13) target = $region8
  $region5: #{_lambda_.23} parent=0 // loop_body
    %s17 = ssub.s32 %s12, 1
    %s18 = ssub.s32 %s12, 2
    %s19 = sadd.s32 %s12, 1
    %s20 = ssub.s32 %s12, %s19
    %p21 = scmp.eq.s32.totalorder %s20, 0
    %s23 = sadd.s32 %s22, 1
    %s24 = scalar_select %p21, %s22, %s23
    %p27 = pneg %p21
    %p28 = scmp.eq.s32.totalorder %s12, 1
    %p29 = por %p27, %p28
    %p30 = scmp.ne.s32.totalorder %s22, %s25
    %p31 = scmp.eq.s32.totalorder %s12, 0
    %p32 = por %p30, %p31
    %p33 = scmp.ne.s32.totalorder %s22, %s25
    %p34 = scmp.eq.s32.totalorder %s17, 1
    %p35 = por %p33, %p34
    %p36 = scmp.ne.s32.totalorder %s25, %s26
    %p37 = scmp.eq.s32.totalorder %s17, 0
    %p38 = por %p36, %p37
    %p39 = scmp.ne.s32.totalorder %s25, %s26
    %p40 = scmp.eq.s32.totalorder %s18, 1
    %p41 = por %p39, %p40
    %p43 = scmp.ne.s32.totalorder %s26, %s42
    %p44 = scmp.eq.s32.totalorder %s18, 0
    %p45 = por %p43, %p44
    %s47 = sadd.s32 %s46, 1
    %p50 = scmp.eq.s32.totalorder %s12, 1
    %p51 = scmp.ne.s32.totalorder %s46, %s48
    %p52 = scmp.eq.s32.totalorder %s12, 0
    %p53 = por %p51, %p52
    %p54 = scmp.ne.s32.totalorder %s46, %s48
    %p55 = scmp.eq.s32.totalorder %s17, 1
    %p56 = por %p54, %p55
    %p57 = scmp.ne.s32.totalorder %s48, %s49
    %p58 = scmp.eq.s32.totalorder %s17, 0
    %p59 = por %p57, %p58
    %p60 = scmp.ne.s32.totalorder %s48, %s49
    %p61 = scmp.eq.s32.totalorder %s18, 1
    %p62 = por %p60, %p61
    %p64 = scmp.ne.s32.totalorder %s49, %s63
    %p65 = scmp.eq.s32.totalorder %s18, 0
    %p66 = por %p64, %p65
    %s68 = sadd.s32 %s67, 1
    %p71 = scmp.eq.s32.totalorder %s12, 1
    %p72 = scmp.ne.s32.totalorder %s67, %s69
    %p73 = scmp.eq.s32.totalorder %s12, 0
    %p74 = por %p72, %p73
    %p75 = scmp.ne.s32.totalorder %s67, %s69
    %p76 = scmp.eq.s32.totalorder %s17, 1
    %p77 = por %p75, %p76
    %p78 = scmp.ne.s32.totalorder %s69, %s70
    %p79 = scmp.eq.s32.totalorder %s17, 0
    %p80 = por %p78, %p79
    %p81 = scmp.ne.s32.totalorder %s69, %s70
    %p82 = scmp.eq.s32.totalorder %s18, 1
    %p83 = por %p81, %p82
    %p85 = scmp.ne.s32.totalorder %s70, %s84
    %p86 = scmp.eq.s32.totalorder %s18, 0
    %p87 = por %p85, %p86
    %s89 = sadd.s32 %s88, 1
    %p92 = scmp.eq.s32.totalorder %s12, 1
    %p93 = scmp.ne.s32.totalorder %s88, %s90
    %p94 = scmp.eq.s32.totalorder %s12, 0
    %p95 = por %p93, %p94
    %p96 = scmp.ne.s32.totalorder %s88, %s90
    %p97 = scmp.eq.s32.totalorder %s17, 1
    %p98 = por %p96, %p97
    %p99 = scmp.ne.s32.totalorder %s90, %s91
    %p100 = scmp.eq.s32.totalorder %s17, 0
    %p101 = por %p99, %p100
    %p102 = scmp.ne.s32.totalorder %s90, %s91
    %p103 = scmp.eq.s32.totalorder %s18, 1
    %p104 = por %p102, %p103
    %p106 = scmp.ne.s32.totalorder %s91, %s105
    %p107 = scmp.eq.s32.totalorder %s18, 0
    %p108 = por %p106, %p107
    %s110 = sadd.s32 %s109, 1
    %p113 = scmp.eq.s32.totalorder %s12, 1
    %p114 = scmp.ne.s32.totalorder %s109, %s111
    %p115 = scmp.eq.s32.totalorder %s12, 0
    %p116 = por %p114, %p115
    %p117 = scmp.ne.s32.totalorder %s109, %s111
    %p118 = scmp.eq.s32.totalorder %s17, 1
    %p119 = por %p117, %p118
    %p120 = scmp.ne.s32.totalorder %s111, %s112
    %p121 = scmp.eq.s32.totalorder %s17, 0
    %p122 = por %p120, %p121
    %p123 = scmp.ne.s32.totalorder %s111, %s112
    %p124 = scmp.eq.s32.totalorder %s18, 1
    %p125 = por %p123, %p124
    %p127 = scmp.ne.s32.totalorder %s112, %s126
    %p128 = scmp.eq.s32.totalorder %s18, 0
    %p129 = por %p127, %p128
    %s131 = sadd.s32 %s130, 1
    %p134 = scmp.eq.s32.totalorder %s12, 1
    %p135 = scmp.ne.s32.totalorder %s130, %s132
    %p136 = scmp.eq.s32.totalorder %s12, 0
    %p137 = por %p135, %p136
    %p138 = scmp.ne.s32.totalorder %s130, %s132
    %p139 = scmp.eq.s32.totalorder %s17, 1
    %p140 = por %p138, %p139
    %p141 = scmp.ne.s32.totalorder %s132, %s133
    %p142 = scmp.eq.s32.totalorder %s17, 0
    %p143 = por %p141, %p142
    %p144 = scmp.ne.s32.totalorder %s132, %s133
    %p145 = scmp.eq.s32.totalorder %s18, 1
    %p146 = por %p144, %p145
    %p148 = scmp.ne.s32.totalorder %s133, %s147
    %p149 = scmp.eq.s32.totalorder %s18, 0
    %p150 = por %p148, %p149
    %s151 = ssub.s32 %s12, %s19
    %p152 = scmp.eq.s32.totalorder %s151, 0
    %s154 = sadd.s32 %s153, 1
    %s155 = scalar_select %p152, %s153, %s154
    %p158 = pneg %p152
    %p159 = scmp.eq.s32.totalorder %s12, 1
    %p160 = por %p158, %p159
    %p161 = scmp.ne.s32.totalorder %s153, %s156
    %p162 = scmp.eq.s32.totalorder %s12, 0
    %p163 = por %p161, %p162
    %p164 = scmp.ne.s32.totalorder %s153, %s156
    %p165 = scmp.eq.s32.totalorder %s17, 1
    %p166 = por %p164, %p165
    %p167 = scmp.ne.s32.totalorder %s156, %s157
    %p168 = scmp.eq.s32.totalorder %s17, 0
    %p169 = por %p167, %p168
    %p170 = scmp.ne.s32.totalorder %s156, %s157
    %p171 = scmp.eq.s32.totalorder %s18, 1
    %p172 = por %p170, %p171
    %p174 = scmp.ne.s32.totalorder %s157, %s173
    %p175 = scmp.eq.s32.totalorder %s18, 0
    %p176 = por %p174, %p175
    %p177 = scmp.le.s32.totalorder 1, %s12
    %p178 = scmp.lt.s32.totalorder %s12, 3
    %p179 = pnand %p177, %p178
    %p180 = pneg %p179
    // Predicated region
    $region9: #{_lambda_.23} parent=5 // pred_check
      _
    $region10: #{_lambda_.23} parent=5 // pred_check_branch
      %182 = sbr.rel (%p179) target = $region12
    $region11: #{_lambda_.23} parent=5 // pred_region
      %s183 = ssub.s32 %s12, 1
      // Predicated region
      $region13: #{_lambda_.23} parent=11 // pred_check
        %p184 = pneg %p59
      $region14: #{_lambda_.23} parent=11 // pred_check_branch
        %186 = sbr.rel (%p184) target = $region16
      $region15: #{_lambda_.23} parent=11 // pred_region
        _
      $region16: #{_lambda_.23} parent=11 // pred_fallthru
        _
      // Predicated region
      $region17: #{_lambda_.23} parent=11 // pred_check
        %p187 = pneg %p80
      $region18: #{_lambda_.23} parent=11 // pred_check_branch
        %189 = sbr.rel (%p187) target = $region20
      $region19: #{_lambda_.23} parent=11 // pred_region
        _
      $region20: #{_lambda_.23} parent=11 // pred_fallthru
        _
      // Predicated region
      $region21: #{_lambda_.23} parent=11 // pred_check
        %p190 = pneg %p101
      $region22: #{_lambda_.23} parent=11 // pred_check_branch
        %192 = sbr.rel (%p190) target = $region24
      $region23: #{_lambda_.23} parent=11 // pred_region
        _
      $region24: #{_lambda_.23} parent=11 // pred_fallthru
        _
      // Predicated region
      $region25: #{_lambda_.23} parent=11 // pred_check
        %p193 = pneg %p122
      $region26: #{_lambda_.23} parent=11 // pred_check_branch
        %195 = sbr.rel (%p193) target = $region28
      $region27: #{_lambda_.23} parent=11 // pred_region
        _
      $region28: #{_lambda_.23} parent=11 // pred_fallthru
        _
      // Predicated region
      $region29: #{_lambda_.23} parent=11 // pred_check
        %p196 = pneg %p143
      $region30: #{_lambda_.23} parent=11 // pred_check_branch
        %198 = sbr.rel (%p196) target = $region32
      $region31: #{_lambda_.23} parent=11 // pred_region
        _
      $region32: #{_lambda_.23} parent=11 // pred_fallthru
        _
    $region12: #{_lambda_.23} parent=5 // pred_fallthru
      _
    %p199 = scmp.lt.s32.totalorder %s12, 2
    // Predicated region
    $region33: #{_lambda_.23} parent=5 // pred_check
      %p200 = pneg %p199
    $region34: #{_lambda_.23} parent=5 // pred_check_branch
      %202 = sbr.rel (%p200) target = $region36
    $region35: #{_lambda_.23} parent=5 // pred_region
      // Predicated region
      $region37: #{_lambda_.23} parent=35 // pred_check
        %p203 = pneg %p32
      $region38: #{_lambda_.23} parent=35 // pred_check_branch
        %205 = sbr.rel (%p203) target = $region40
      $region39: #{_lambda_.23} parent=35 // pred_region
        %s206 = smul.u32 8, %s12
        %p207 = scmp.lt.s32.totalorder %s206, 15
        %s208 = scalar_select %p207, %s206, 15
        %s209 = smul.addr %s208, 4
        %s210 = scalar_lea.vmem %s0, %s209
        %s211 = smul.u32 8, %s12
      $region40: #{_lambda_.23} parent=35 // pred_fallthru
        _
    $region36: #{_lambda_.23} parent=5 // pred_fallthru
      _
    %p212 = scmp.le.s32.totalorder 1, %s12
    %p213 = scmp.lt.s32.totalorder %s12, 3
    %p214 = pnand %p212, %p213
    %p215 = pneg %p214
    // Predicated region
    $region41: #{_lambda_.23} parent=5 // pred_check
      _
    $region42: #{_lambda_.23} parent=5 // pred_check_branch
      %217 = sbr.rel (%p214) target = $region44
    $region43: #{_lambda_.23} parent=5 // pred_region
      %s218 = ssub.s32 %s12, 1
      %s219 = smul.u32 8, %s17
      %p220 = scmp.lt.s32.totalorder %s219, 15
      %s221 = scalar_select %p220, %s219, 15
      %s222 = smul.addr %s221, 4
      %s223 = scalar_lea.vmem %s0, %s222
      %p224 = pneg %p38
      %p225 = pneg %p35
      %p226 = pneg %p59
      %p227 = pneg %p56
      %p228 = pneg %p80
      %p229 = pneg %p77
      %p230 = pneg %p101
      %p231 = pneg %p98
      %p232 = pneg %p122
      %p233 = pneg %p119
      %p234 = pneg %p143
      %p235 = pneg %p140
      %p236 = pneg %p169
      %p237 = pneg %p166
      %s238 = smul.u32 8, %s17
      %p239 = scmp.lt.s32.totalorder %s238, 15
      %s240 = scalar_select %p239, %s238, 15
      %s241 = smul.addr %s240, 4
      %s242 = scalar_lea.vmem %s6, %s241
      %s243 = smul.u32 8, %s17
      %p244 = scmp.lt.s32.totalorder %s243, 15
      %s245 = scalar_select %p244, %s243, 15
      %s246 = smul.addr %s245, 4
      %s247 = scalar_lea.vmem %s0, %s246
      %s248 = smul.u32 8, %s17
      %s249 = smul.u32 8, %s17
      %p250 = scmp.lt.s32.totalorder %s249, 15
      %s251 = scalar_select %p250, %s249, 15
      %s252 = smul.addr %s251, 4
      %s253 = scalar_lea.vmem %s6, %s252
      %s254 = smul.u32 8, %s17
      %v256 = vld [vmem:[%s247] sm:$0xf]
      %v257 = vld [vmem:[%s247 + $0x4] sm:$0xf]
      %v258 = vld [vmem:[%s247 + $0x8] sm:$0xf]
      %v259 = vld [vmem:[%s247 + $0xc] sm:$0xf]
      %v260 = vld [vmem:[%s247 + $0x10] sm:$0xf]
      %v261 = vld [vmem:[%s247 + $0x14] sm:$0xf]
      %v262 = vld [vmem:[%s247 + $0x18] sm:$0xf]
      %v263 = vld [vmem:[%s247 + $0x1c] sm:$0xf]
      %v264 = vunpack.c.l.bf16 %v256
      %v265 = vunpack.c.l.bf16 %v257
      %v266 = vunpack.c.l.bf16 %v258
      %v267 = vunpack.c.l.bf16 %v259
      %v268 = vunpack.c.l.bf16 %v260
      %v269 = vunpack.c.l.bf16 %v261
      %v270 = vunpack.c.l.bf16 %v262
      %v271 = vunpack.c.l.bf16 %v263
      %v272 = vld [vmem:[%s2] sm:$0x1]
      %v274 = vperm.slane %v272, 0
      %v276 = vmul.f32 %v264, %v274
      %v277 = vmul.f32 %v265, %v274
      %v278 = vmul.f32 %v266, %v274
      %v279 = vmul.f32 %v267, %v274
      %v280 = vmul.f32 %v268, %v274
      %v281 = vmul.f32 %v269, %v274
      %v282 = vmul.f32 %v270, %v274
      %v283 = vmul.f32 %v271, %v274
      %v284 = vld [vmem:[%s3] sm:$0x1]
      %v286 = vperm.slane %v284, 0
      %v288 = vadd.f32 %v276, %v286
      %v289 = vadd.f32 %v277, %v286
      %v290 = vadd.f32 %v278, %v286
      %v291 = vadd.f32 %v279, %v286
      %v292 = vadd.f32 %v280, %v286
      %v293 = vadd.f32 %v281, %v286
      %v294 = vadd.f32 %v282, %v286
      %v295 = vadd.f32 %v283, %v286
      %v296 = vmax.f32 %v288, 0.0
      %v297 = vmax.f32 %v289, 0.0
      %v298 = vmax.f32 %v290, 0.0
      %v299 = vmax.f32 %v291, 0.0
      %v300 = vmax.f32 %v292, 0.0
      %v301 = vmax.f32 %v293, 0.0
      %v302 = vmax.f32 %v294, 0.0
      %v303 = vmax.f32 %v295, 0.0
      %v304 = vpack.c.bf16 %v297, %v296
      %v305 = vpack.c.bf16 %v299, %v298
      %v306 = vpack.c.bf16 %v301, %v300
      %v307 = vpack.c.bf16 %v303, %v302
      %v308 = vld [vmem:[%s1] sm:$0xf]
      %vm309 = vcmask 64512
      %v311 = vsel %vm309, %v304, 0
      %v314 = vsel %vm309, %v305, 0
      %v317 = vsel %vm309, %v306, 0
      %v320 = vsel %vm309, %v307, 0
      %vm322 = vcmask 1043456
      %v324 = vsel %vm322, %v308, 0
      %326 = vmatpush.bf16.msra.mxu0 0
      %327 = vmatpush.bf16.msra.mxu0 0
      %328 = vmatpush.bf16.msra.mxu0 0
      %329 = vmatpush.bf16.msra.mxu0 0
      %330 = vmatpush.bf16.msra.mxu0 0
      %331 = vmatpush.bf16.msra.mxu0 0
      %332 = vmatpush.bf16.msra.mxu0 0
      %333 = vmatpush.bf16.msra.mxu0 %v324
      %334 = vmatmul.bf16.gmra.mxu0 %v311
      %v335 = vpop.f32.mrf.mxu0
      %v336 = vadd.f32 0.0, %v335
      %v337 = vpop.f32.mrf.mxu0
      %v338 = vadd.f32 0.0, %v337
      %339 = vmatmul.bf16.gmra.mxu0 %v314
      %v340 = vpop.f32.mrf.mxu0
      %v341 = vadd.f32 0.0, %v340
      %v342 = vpop.f32.mrf.mxu0
      %v343 = vadd.f32 0.0, %v342
      %344 = vmatmul.bf16.gmra.mxu0 %v317
      %v345 = vpop.f32.mrf.mxu0
      %v346 = vadd.f32 0.0, %v345
      %v347 = vpop.f32.mrf.mxu0
      %v348 = vadd.f32 0.0, %v347
      %349 = vmatmul.bf16.gmra.mxu0 %v320
      %v350 = vpop.f32.mrf.mxu0
      %v351 = vadd.f32 0.0, %v350
      %v352 = vpop.f32.mrf.mxu0
      %v353 = vadd.f32 0.0, %v352
      %354 = vdwg.mxu0
      %v355 = vld [vmem:[%s4] sm:$0x1]
      %v357 = vperm.slane %v355, 0
      %v359 = vmul.f32 %v336, %v357
      %v360 = vmul.f32 %v338, %v357
      %v361 = vmul.f32 %v341, %v357
      %v362 = vmul.f32 %v343, %v357
      %v363 = vmul.f32 %v346, %v357
      %v364 = vmul.f32 %v348, %v357
      %v365 = vmul.f32 %v351, %v357
      %v366 = vmul.f32 %v353, %v357
      %v367 = vld [vmem:[%s5] sm:$0x1]
      %v369 = vperm.slane %v367, 0
      %v371 = vadd.f32 %v359, %v369
      %v372 = vadd.f32 %v360, %v369
      %v373 = vadd.f32 %v361, %v369
      %v374 = vadd.f32 %v362, %v369
      %v375 = vadd.f32 %v363, %v369
      %v376 = vadd.f32 %v364, %v369
      %v377 = vadd.f32 %v365, %v369
      %v378 = vadd.f32 %v366, %v369
      %v379 = vmax.f32 %v371, 0.0
      %v380 = vmax.f32 %v372, 0.0
      %v381 = vmax.f32 %v373, 0.0
      %v382 = vmax.f32 %v374, 0.0
      %v383 = vmax.f32 %v375, 0.0
      %v384 = vmax.f32 %v376, 0.0
      %v385 = vmax.f32 %v377, 0.0
      %v386 = vmax.f32 %v378, 0.0
      %v387 = vpack.c.bf16 %v379, %v379
      %v388 = vpack.c.bf16 %v380, %v380
      %v389 = vpack.c.bf16 %v381, %v381
      %v390 = vpack.c.bf16 %v382, %v382
      %v391 = vpack.c.bf16 %v383, %v383
      %v392 = vpack.c.bf16 %v384, %v384
      %v393 = vpack.c.bf16 %v385, %v385
      %v394 = vpack.c.bf16 %v386, %v386
      %395 = vst [vmem:[%s253] sm:$0xf] %v387
      %396 = vst [vmem:[%s253 + $0x4] sm:$0xf] %v388
      %397 = vst [vmem:[%s253 + $0x8] sm:$0xf] %v389
      %398 = vst [vmem:[%s253 + $0xc] sm:$0xf] %v390
      %399 = vst [vmem:[%s253 + $0x10] sm:$0xf] %v391
      %400 = vst [vmem:[%s253 + $0x14] sm:$0xf] %v392
      %401 = vst [vmem:[%s253 + $0x18] sm:$0xf] %v393
      %402 = vst [vmem:[%s253 + $0x1c] sm:$0xf] %v394
      %s403 = smul.u32 8, %s17
      %p404 = scmp.lt.s32.totalorder %s403, 15
      %s405 = scalar_select %p404, %s403, 15
      %s406 = smul.addr %s405, 4
      %s407 = scalar_lea.vmem %s6, %s406
      // Predicated region
      $region45: #{_lambda_.23} parent=43 // pred_check
        %p408 = pneg %p166
      $region46: #{_lambda_.23} parent=43 // pred_check_branch
        %410 = sbr.rel (%p408) target = $region48
      $region47: #{_lambda_.23} parent=43 // pred_region
        %s411 = smul.u32 8, %s17
      $region48: #{_lambda_.23} parent=43 // pred_fallthru
        _
    $region44: #{_lambda_.23} parent=5 // pred_fallthru
      _
    %p412 = scmp.le.s32.totalorder 2, %s12
    // Predicated region
    $region49: #{_lambda_.23} parent=5 // pred_check
      %p413 = pneg %p412
    $region50: #{_lambda_.23} parent=5 // pred_check_branch
      %415 = sbr.rel (%p413) target = $region52
    $region51: #{_lambda_.23} parent=5 // pred_region
      %s416 = ssub.s32 %s12, 2
      // Predicated region
      $region53: #{_lambda_.23} parent=51 // pred_check
        %p417 = pneg %p172
      $region54: #{_lambda_.23} parent=51 // pred_check_branch
        %419 = sbr.rel (%p417) target = $region56
      $region55: #{_lambda_.23} parent=51 // pred_region
        %s420 = smul.u32 8, %s18
        %p421 = scmp.lt.s32.totalorder %s420, 15
        %s422 = scalar_select %p421, %s420, 15
        %s423 = smul.addr %s422, 4
        %s424 = scalar_lea.vmem %s6, %s423
      $region56: #{_lambda_.23} parent=51 // pred_fallthru
        _
    $region52: #{_lambda_.23} parent=5 // pred_fallthru
      _
  $region6: #{_lambda_.23} parent=0 // loop_footer
    %s16 = sadd.s32 1, %s12
  $region7: #{_lambda_.23} parent=0 // loop_footer_branch
    %11 = sbr.rel target = $region3
  $region8: #{_lambda_.23} parent=0 // loop_exit
    _

// kernel: _lambda_.21
$region0: #{_lambda_.21}
  #allocation0 [shape = 'u32[]', space=smem, size = 0x4, offset = 0x4, fixed_abs, tag = 'smem constant byte address 0x4 - core index']
  #allocation1 [shape = 'u32[72,128]{1,0:T(1,128)}', space=vmem, size = 0x9000, scoped, tag = 'internal scratch']
  %s0 = inlined_call_operand.vmem [shape: bf16[512,128], index: 0, kind: input, shape index: {}]
  %s1 = inlined_call_operand.vmem [shape: bf16[128,128], index: 1, kind: input, shape index: {}]
  %s2 = inlined_call_operand.vmem [shape: f32[1,128], index: 2, kind: input, shape index: {}]
  %s3 = inlined_call_operand.vmem [shape: f32[1,128], index: 3, kind: input, shape index: {}]
  %s4 = inlined_call_operand.vmem [shape: bf16[512,128], index: 4, kind: output, shape index: {}]
  %s5 = sld [smem:[#allocation0]]
  $region49: #{_lambda_.21} parent=0
    _
  %s7 = ssub.s32 1, %s5
  %s8 = scalar_select 0, %s7, %s5
  loop: start=0, step=1, limit=4
  $region2: #{_lambda_.21} parent=0 // loop_pre_header
    _
  $region3: #{_lambda_.21} parent=0 // loop_header
    %s10 = sphi 0, %s14
    %p11 = scmp.ge.s32.totalorder %s10, 4
    %s20 = sphi 0, %s22
    %s23 = sphi 0, %s20
    %s24 = sphi 0, %s23
    %s40 = sphi 0, %s24
    %s44 = sphi 0, %s44
    %s46 = sphi 0, %s44
    %s47 = sphi 0, %s46
    %s61 = sphi 0, %s47
    %s65 = sphi 0, %s65
    %s67 = sphi 0, %s65
    %s68 = sphi 0, %s67
    %s82 = sphi 0, %s68
    %s86 = sphi 0, %s86
    %s88 = sphi 0, %s86
    %s89 = sphi 0, %s88
    %s103 = sphi 0, %s89
    %s109 = sphi 0, %s111
    %s112 = sphi 0, %s109
    %s113 = sphi 0, %s112
    %s129 = sphi 0, %s113
  $region4: #{_lambda_.21} parent=0 // loop_header_branch
    %13 = sbr.rel (%p11) target = $region8
  $region5: #{_lambda_.21} parent=0 // loop_body
    %s15 = ssub.s32 %s10, 1
    %s16 = ssub.s32 %s10, 2
    %s17 = sadd.s32 %s10, 1
    %s18 = ssub.s32 %s10, %s17
    %p19 = scmp.eq.s32.totalorder %s18, 0
    %s21 = sadd.s32 %s20, 1
    %s22 = scalar_select %p19, %s20, %s21
    %p25 = pneg %p19
    %p26 = scmp.eq.s32.totalorder %s10, 1
    %p27 = por %p25, %p26
    %p28 = scmp.ne.s32.totalorder %s20, %s23
    %p29 = scmp.eq.s32.totalorder %s10, 0
    %p30 = por %p28, %p29
    %p31 = scmp.ne.s32.totalorder %s20, %s23
    %p32 = scmp.eq.s32.totalorder %s15, 1
    %p33 = por %p31, %p32
    %p34 = scmp.ne.s32.totalorder %s23, %s24
    %p35 = scmp.eq.s32.totalorder %s15, 0
    %p36 = por %p34, %p35
    %p37 = scmp.ne.s32.totalorder %s23, %s24
    %p38 = scmp.eq.s32.totalorder %s16, 1
    %p39 = por %p37, %p38
    %p41 = scmp.ne.s32.totalorder %s24, %s40
    %p42 = scmp.eq.s32.totalorder %s16, 0
    %p43 = por %p41, %p42
    %s45 = sadd.s32 %s44, 1
    %p48 = scmp.eq.s32.totalorder %s10, 1
    %p49 = scmp.ne.s32.totalorder %s44, %s46
    %p50 = scmp.eq.s32.totalorder %s10, 0
    %p51 = por %p49, %p50
    %p52 = scmp.ne.s32.totalorder %s44, %s46
    %p53 = scmp.eq.s32.totalorder %s15, 1
    %p54 = por %p52, %p53
    %p55 = scmp.ne.s32.totalorder %s46, %s47
    %p56 = scmp.eq.s32.totalorder %s15, 0
    %p57 = por %p55, %p56
    %p58 = scmp.ne.s32.totalorder %s46, %s47
    %p59 = scmp.eq.s32.totalorder %s16, 1
    %p60 = por %p58, %p59
    %p62 = scmp.ne.s32.totalorder %s47, %s61
    %p63 = scmp.eq.s32.totalorder %s16, 0
    %p64 = por %p62, %p63
    %s66 = sadd.s32 %s65, 1
    %p69 = scmp.eq.s32.totalorder %s10, 1
    %p70 = scmp.ne.s32.totalorder %s65, %s67
    %p71 = scmp.eq.s32.totalorder %s10, 0
    %p72 = por %p70, %p71
    %p73 = scmp.ne.s32.totalorder %s65, %s67
    %p74 = scmp.eq.s32.totalorder %s15, 1
    %p75 = por %p73, %p74
    %p76 = scmp.ne.s32.totalorder %s67, %s68
    %p77 = scmp.eq.s32.totalorder %s15, 0
    %p78 = por %p76, %p77
    %p79 = scmp.ne.s32.totalorder %s67, %s68
    %p80 = scmp.eq.s32.totalorder %s16, 1
    %p81 = por %p79, %p80
    %p83 = scmp.ne.s32.totalorder %s68, %s82
    %p84 = scmp.eq.s32.totalorder %s16, 0
    %p85 = por %p83, %p84
    %s87 = sadd.s32 %s86, 1
    %p90 = scmp.eq.s32.totalorder %s10, 1
    %p91 = scmp.ne.s32.totalorder %s86, %s88
    %p92 = scmp.eq.s32.totalorder %s10, 0
    %p93 = por %p91, %p92
    %p94 = scmp.ne.s32.totalorder %s86, %s88
    %p95 = scmp.eq.s32.totalorder %s15, 1
    %p96 = por %p94, %p95
    %p97 = scmp.ne.s32.totalorder %s88, %s89
    %p98 = scmp.eq.s32.totalorder %s15, 0
    %p99 = por %p97, %p98
    %p100 = scmp.ne.s32.totalorder %s88, %s89
    %p101 = scmp.eq.s32.totalorder %s16, 1
    %p102 = por %p100, %p101
    %p104 = scmp.ne.s32.totalorder %s89, %s103
    %p105 = scmp.eq.s32.totalorder %s16, 0
    %p106 = por %p104, %p105
    %s107 = ssub.s32 %s10, %s17
    %p108 = scmp.eq.s32.totalorder %s107, 0
    %s110 = sadd.s32 %s109, 1
    %s111 = scalar_select %p108, %s109, %s110
    %p114 = pneg %p108
    %p115 = scmp.eq.s32.totalorder %s10, 1
    %p116 = por %p114, %p115
    %p117 = scmp.ne.s32.totalorder %s109, %s112
    %p118 = scmp.eq.s32.totalorder %s10, 0
    %p119 = por %p117, %p118
    %p120 = scmp.ne.s32.totalorder %s109, %s112
    %p121 = scmp.eq.s32.totalorder %s15, 1
    %p122 = por %p120, %p121
    %p123 = scmp.ne.s32.totalorder %s112, %s113
    %p124 = scmp.eq.s32.totalorder %s15, 0
    %p125 = por %p123, %p124
    %p126 = scmp.ne.s32.totalorder %s112, %s113
    %p127 = scmp.eq.s32.totalorder %s16, 1
    %p128 = por %p126, %p127
    %p130 = scmp.ne.s32.totalorder %s113, %s129
    %p131 = scmp.eq.s32.totalorder %s16, 0
    %p132 = por %p130, %p131
    %p133 = scmp.le.s32.totalorder 1, %s10
    %p134 = scmp.lt.s32.totalorder %s10, 3
    %p135 = pnand %p133, %p134
    %p136 = pneg %p135
    // Predicated region
    $region9: #{_lambda_.21} parent=5 // pred_check
      _
    $region10: #{_lambda_.21} parent=5 // pred_check_branch
      %138 = sbr.rel (%p135) target = $region12
    $region11: #{_lambda_.21} parent=5 // pred_region
      %s139 = ssub.s32 %s10, 1
      // Predicated region
      $region13: #{_lambda_.21} parent=11 // pred_check
        %p140 = pneg %p57
      $region14: #{_lambda_.21} parent=11 // pred_check_branch
        %142 = sbr.rel (%p140) target = $region16
      $region15: #{_lambda_.21} parent=11 // pred_region
        _
      $region16: #{_lambda_.21} parent=11 // pred_fallthru
        _
      // Predicated region
      $region17: #{_lambda_.21} parent=11 // pred_check
        %p143 = pneg %p78
      $region18: #{_lambda_.21} parent=11 // pred_check_branch
        %145 = sbr.rel (%p143) target = $region20
      $region19: #{_lambda_.21} parent=11 // pred_region
        _
      $region20: #{_lambda_.21} parent=11 // pred_fallthru
        _
      // Predicated region
      $region21: #{_lambda_.21} parent=11 // pred_check
        %p146 = pneg %p99
      $region22: #{_lambda_.21} parent=11 // pred_check_branch
        %148 = sbr.rel (%p146) target = $region24
      $region23: #{_lambda_.21} parent=11 // pred_region
        _
      $region24: #{_lambda_.21} parent=11 // pred_fallthru
        _
    $region12: #{_lambda_.21} parent=5 // pred_fallthru
      _
    %p149 = scmp.lt.s32.totalorder %s10, 2
    // Predicated region
    $region25: #{_lambda_.21} parent=5 // pred_check
      %p150 = pneg %p149
    $region26: #{_lambda_.21} parent=5 // pred_check_branch
      %152 = sbr.rel (%p150) target = $region28
    $region27: #{_lambda_.21} parent=5 // pred_region
      // Predicated region
      $region29: #{_lambda_.21} parent=27 // pred_check
        %p153 = pneg %p30
      $region30: #{_lambda_.21} parent=27 // pred_check_branch
        %155 = sbr.rel (%p153) target = $region32
      $region31: #{_lambda_.21} parent=27 // pred_region
        %s156 = smul.u32 32, %s10
        %p157 = scmp.lt.s32.totalorder %s156, 63
        %s158 = scalar_select %p157, %s156, 63
        %s159 = smul.addr %s158, 4
        %s160 = scalar_lea.vmem %s0, %s159
        %s161 = smul.u32 32, %s10
      $region32: #{_lambda_.21} parent=27 // pred_fallthru
        _
    $region28: #{_lambda_.21} parent=5 // pred_fallthru
      _
    %p162 = scmp.le.s32.totalorder 1, %s10
    %p163 = scmp.lt.s32.totalorder %s10, 3
    %p164 = pnand %p162, %p163
    %p165 = pneg %p164
    // Predicated region
    $region33: #{_lambda_.21} parent=5 // pred_check
      _
    $region34: #{_lambda_.21} parent=5 // pred_check_branch
      %167 = sbr.rel (%p164) target = $region36
    $region35: #{_lambda_.21} parent=5 // pred_region
      %s168 = ssub.s32 %s10, 1
      %s169 = smul.u32 32, %s15
      %p170 = scmp.lt.s32.totalorder %s169, 63
      %s171 = scalar_select %p170, %s169, 63
      %s172 = smul.addr %s171, 4
      %s173 = scalar_lea.vmem %s0, %s172
      %p174 = pneg %p36
      %p175 = pneg %p33
      %p176 = pneg %p57
      %p177 = pneg %p54
      %p178 = pneg %p78
      %p179 = pneg %p75
      %p180 = pneg %p99
      %p181 = pneg %p96
      %p182 = pneg %p125
      %p183 = pneg %p122
      %s184 = smul.u32 32, %s15
      %p185 = scmp.lt.s32.totalorder %s184, 63
      %s186 = scalar_select %p185, %s184, 63
      %s187 = smul.addr %s186, 4
      %s188 = scalar_lea.vmem %s4, %s187
      %s189 = smul.u32 32, %s15
      %p190 = scmp.lt.s32.totalorder %s189, 63
      %s191 = scalar_select %p190, %s189, 63
      %s192 = smul.addr %s191, 4
      %s193 = scalar_lea.vmem %s0, %s192
      %s194 = smul.u32 32, %s15
      %s195 = smul.u32 32, %s15
      %p196 = scmp.lt.s32.totalorder %s195, 63
      %s197 = scalar_select %p196, %s195, 63
      %s198 = smul.addr %s197, 4
      %s199 = scalar_lea.vmem %s4, %s198
      %s200 = smul.u32 32, %s15
      %v201 = vld [vmem:[%s193] sm:$0xf]
      %v202 = vld [vmem:[%s193 + $0x4] sm:$0xf]
      %v203 = vld [vmem:[%s193 + $0x8] sm:$0xf]
      %v204 = vld [vmem:[%s193 + $0xc] sm:$0xf]
      %v205 = vld [vmem:[%s193 + $0x10] sm:$0xf]
      %v206 = vld [vmem:[%s193 + $0x14] sm:$0xf]
      %v207 = vld [vmem:[%s193 + $0x18] sm:$0xf]
      %v208 = vld [vmem:[%s193 + $0x1c] sm:$0xf]
      %v209 = vld [vmem:[%s193 + $0x20] sm:$0xf]
      %v210 = vld [vmem:[%s193 + $0x24] sm:$0xf]
      %v211 = vld [vmem:[%s193 + $0x28] sm:$0xf]
      %v212 = vld [vmem:[%s193 + $0x2c] sm:$0xf]
      %v213 = vld [vmem:[%s193 + $0x30] sm:$0xf]
      %v214 = vld [vmem:[%s193 + $0x34] sm:$0xf]
      %v215 = vld [vmem:[%s193 + $0x38] sm:$0xf]
      %v216 = vld [vmem:[%s193 + $0x3c] sm:$0xf]
      %v217 = vld [vmem:[%s193 + $0x40] sm:$0xf]
      %v218 = vld [vmem:[%s193 + $0x44] sm:$0xf]
      %v219 = vld [vmem:[%s193 + $0x48] sm:$0xf]
      %v220 = vld [vmem:[%s193 + $0x4c] sm:$0xf]
      %v221 = vld [vmem:[%s193 + $0x50] sm:$0xf]
      %v222 = vld [vmem:[%s193 + $0x54] sm:$0xf]
      %v223 = vld [vmem:[%s193 + $0x58] sm:$0xf]
      %v224 = vld [vmem:[%s193 + $0x5c] sm:$0xf]
      %v225 = vld [vmem:[%s193 + $0x60] sm:$0xf]
      %v226 = vld [vmem:[%s193 + $0x64] sm:$0xf]
      %v227 = vld [vmem:[%s193 + $0x68] sm:$0xf]
      %v228 = vld [vmem:[%s193 + $0x6c] sm:$0xf]
      %v229 = vld [vmem:[%s193 + $0x70] sm:$0xf]
      %v230 = vld [vmem:[%s193 + $0x74] sm:$0xf]
      %v231 = vld [vmem:[%s193 + $0x78] sm:$0xf]
      %v232 = vld [vmem:[%s193 + $0x7c] sm:$0xf]
      %v233 = vld [vmem:[%s1] sm:$0xf]
      %v234 = vld [vmem:[%s1 + $0x4] sm:$0xf]
      %v235 = vld [vmem:[%s1 + $0x8] sm:$0xf]
      %v236 = vld [vmem:[%s1 + $0xc] sm:$0xf]
      %v237 = vld [vmem:[%s1 + $0x10] sm:$0xf]
      %v238 = vld [vmem:[%s1 + $0x14] sm:$0xf]
      %v239 = vld [vmem:[%s1 + $0x18] sm:$0xf]
      %v240 = vld [vmem:[%s1 + $0x1c] sm:$0xf]
      %v241 = vld [vmem:[%s1 + $0x20] sm:$0xf]
      %v242 = vld [vmem:[%s1 + $0x24] sm:$0xf]
      %v243 = vld [vmem:[%s1 + $0x28] sm:$0xf]
      %v244 = vld [vmem:[%s1 + $0x2c] sm:$0xf]
      %v245 = vld [vmem:[%s1 + $0x30] sm:$0xf]
      %v246 = vld [vmem:[%s1 + $0x34] sm:$0xf]
      %v247 = vld [vmem:[%s1 + $0x38] sm:$0xf]
      %v248 = vld [vmem:[%s1 + $0x3c] sm:$0xf]
      %v281 = vunpack.c.l.b16 %v201
      %v282 = vunpack.c.l.b16 %v202
      %v283 = vunpack.c.l.b16 %v203
      %v284 = vunpack.c.l.b16 %v204
      %v285 = vunpack.c.l.b16 %v205
      %v286 = vunpack.c.l.b16 %v206
      %v287 = vunpack.c.l.b16 %v207
      %v288 = vunpack.c.l.b16 %v208
      %v289 = vunpack.c.l.b16 %v209
      %v290 = vunpack.c.l.b16 %v210
      %v291 = vunpack.c.l.b16 %v211
      %v292 = vunpack.c.l.b16 %v212
      %v293 = vunpack.c.l.b16 %v213
      %v294 = vunpack.c.l.b16 %v214
      %v295 = vunpack.c.l.b16 %v215
      %v296 = vunpack.c.l.b16 %v216
      %v297 = vunpack.c.l.b16 %v217
      %v298 = vunpack.c.l.b16 %v218
      %v299 = vunpack.c.l.b16 %v219
      %v300 = vunpack.c.l.b16 %v220
      %v301 = vunpack.c.l.b16 %v221
      %v302 = vunpack.c.l.b16 %v222
      %v303 = vunpack.c.l.b16 %v223
      %v304 = vunpack.c.l.b16 %v224
      %v305 = vunpack.c.l.b16 %v225
      %v306 = vunpack.c.l.b16 %v226
      %v307 = vunpack.c.l.b16 %v227
      %v308 = vunpack.c.l.b16 %v228
      %v309 = vunpack.c.l.b16 %v229
      %v310 = vunpack.c.l.b16 %v230
      %v311 = vunpack.c.l.b16 %v231
      %v312 = vunpack.c.l.b16 %v232
      %v313 = vpack.c.b16 %v282, %v281
      %v314 = vpack.c.b16 %v284, %v283
      %v315 = vpack.c.b16 %v286, %v285
      %v316 = vpack.c.b16 %v288, %v287
      %v317 = vpack.c.b16 %v290, %v289
      %v318 = vpack.c.b16 %v292, %v291
      %v319 = vpack.c.b16 %v294, %v293
      %v320 = vpack.c.b16 %v296, %v295
      %v321 = vpack.c.b16 %v298, %v297
      %v322 = vpack.c.b16 %v300, %v299
      %v323 = vpack.c.b16 %v302, %v301
      %v324 = vpack.c.b16 %v304, %v303
      %v325 = vpack.c.b16 %v306, %v305
      %v326 = vpack.c.b16 %v308, %v307
      %v327 = vpack.c.b16 %v310, %v309
      %v328 = vpack.c.b16 %v312, %v311
      %v361 = vunpack.c.l.b16 %v233
      %v362 = vunpack.c.l.b16 %v234
      %v363 = vunpack.c.l.b16 %v235
      %v364 = vunpack.c.l.b16 %v236
      %v365 = vunpack.c.l.b16 %v237
      %v366 = vunpack.c.l.b16 %v238
      %v367 = vunpack.c.l.b16 %v239
      %v368 = vunpack.c.l.b16 %v240
      %v369 = vunpack.c.l.b16 %v241
      %v370 = vunpack.c.l.b16 %v242
      %v371 = vunpack.c.l.b16 %v243
      %v372 = vunpack.c.l.b16 %v244
      %v373 = vunpack.c.l.b16 %v245
      %v374 = vunpack.c.l.b16 %v246
      %v375 = vunpack.c.l.b16 %v247
      %v376 = vunpack.c.l.b16 %v248
      %v377 = vpack.c.b16 %v362, %v361
      %v378 = vpack.c.b16 %v364, %v363
      %v379 = vpack.c.b16 %v366, %v365
      %v380 = vpack.c.b16 %v368, %v367
      %v381 = vpack.c.b16 %v370, %v369
      %v382 = vpack.c.b16 %v372, %v371
      %v383 = vpack.c.b16 %v374, %v373
      %v384 = vpack.c.b16 %v376, %v375
      %393 = vmatpush.bf16.msra.mxu0 %v384
      %394 = vmatpush.bf16.msra.mxu0 %v383
      %395 = vmatpush.bf16.msra.mxu0 %v382
      %396 = vmatpush.bf16.msra.mxu0 %v381
      %397 = vmatpush.bf16.msra.mxu0 %v380
      %398 = vmatpush.bf16.msra.mxu0 %v379
      %399 = vmatpush.bf16.msra.mxu0 %v378
      %400 = vmatpush.bf16.msra.mxu0 %v377
      %401 = vmatmul.bf16.gmra.mxu0 %v313
      %v402 = vpop.f32.mrf.mxu0
      %v403 = vadd.f32 0.0, %v402
      %v404 = vpop.f32.mrf.mxu0
      %v405 = vadd.f32 0.0, %v404
      %406 = vmatmul.bf16.gmra.mxu0 %v314
      %v407 = vpop.f32.mrf.mxu0
      %v408 = vadd.f32 0.0, %v407
      %v409 = vpop.f32.mrf.mxu0
      %v410 = vadd.f32 0.0, %v409
      %411 = vmatmul.bf16.gmra.mxu0 %v315
      %v412 = vpop.f32.mrf.mxu0
      %v413 = vadd.f32 0.0, %v412
      %v414 = vpop.f32.mrf.mxu0
      %v415 = vadd.f32 0.0, %v414
      %416 = vmatmul.bf16.gmra.mxu0 %v316
      %v417 = vpop.f32.mrf.mxu0
      %v418 = vadd.f32 0.0, %v417
      %v419 = vpop.f32.mrf.mxu0
      %v420 = vadd.f32 0.0, %v419
      %421 = vmatmul.bf16.gmra.mxu0 %v317
      %v422 = vpop.f32.mrf.mxu0
      %v423 = vadd.f32 0.0, %v422
      %v424 = vpop.f32.mrf.mxu0
      %v425 = vadd.f32 0.0, %v424
      %426 = vmatmul.bf16.gmra.mxu0 %v318
      %v427 = vpop.f32.mrf.mxu0
      %v428 = vadd.f32 0.0, %v427
      %v429 = vpop.f32.mrf.mxu0
      %v430 = vadd.f32 0.0, %v429
      %431 = vmatmul.bf16.gmra.mxu0 %v319
      %v432 = vpop.f32.mrf.mxu0
      %v433 = vadd.f32 0.0, %v432
      %v434 = vpop.f32.mrf.mxu0
      %v435 = vadd.f32 0.0, %v434
      %436 = vmatmul.bf16.gmra.mxu0 %v320
      %v437 = vpop.f32.mrf.mxu0
      %v438 = vadd.f32 0.0, %v437
      %v439 = vpop.f32.mrf.mxu0
      %v440 = vadd.f32 0.0, %v439
      %441 = vmatmul.bf16.gmra.mxu0 %v321
      %v442 = vpop.f32.mrf.mxu0
      %v443 = vadd.f32 0.0, %v442
      %v444 = vpop.f32.mrf.mxu0
      %v445 = vadd.f32 0.0, %v444
      %446 = vmatmul.bf16.gmra.mxu0 %v322
      %v447 = vpop.f32.mrf.mxu0
      %v448 = vadd.f32 0.0, %v447
      %v449 = vpop.f32.mrf.mxu0
      %v450 = vadd.f32 0.0, %v449
      %451 = vmatmul.bf16.gmra.mxu0 %v323
      %v452 = vpop.f32.mrf.mxu0
      %v453 = vadd.f32 0.0, %v452
      %v454 = vpop.f32.mrf.mxu0
      %v455 = vadd.f32 0.0, %v454
      %456 = vmatmul.bf16.gmra.mxu0 %v324
      %v457 = vpop.f32.mrf.mxu0
      %v458 = vadd.f32 0.0, %v457
      %v459 = vpop.f32.mrf.mxu0
      %v460 = vadd.f32 0.0, %v459
      %461 = vmatmul.bf16.gmra.mxu0 %v325
      %v462 = vpop.f32.mrf.mxu0
      %v463 = vadd.f32 0.0, %v462
      %v464 = vpop.f32.mrf.mxu0
      %v465 = vadd.f32 0.0, %v464
      %466 = vmatmul.bf16.gmra.mxu0 %v326
      %v467 = vpop.f32.mrf.mxu0
      %v468 = vadd.f32 0.0, %v467
      %v469 = vpop.f32.mrf.mxu0
      %v470 = vadd.f32 0.0, %v469
      %471 = vmatmul.bf16.gmra.mxu0 %v327
      %v472 = vpop.f32.mrf.mxu0
      %v473 = vadd.f32 0.0, %v472
      %v474 = vpop.f32.mrf.mxu0
      %v475 = vadd.f32 0.0, %v474
      %476 = vmatmul.bf16.gmra.mxu0 %v328
      %v477 = vpop.f32.mrf.mxu0
      %v478 = vadd.f32 0.0, %v477
      %v479 = vpop.f32.mrf.mxu0
      %v480 = vadd.f32 0.0, %v479
      %481 = vdwg.mxu0
      %v482 = vld [vmem:[%s2] sm:$0x1]
      %v484 = vperm.slane %v482, 0
      %v486 = vmul.f32 %v403, %v484
      %v487 = vmul.f32 %v405, %v484
      %v488 = vmul.f32 %v408, %v484
      %v489 = vmul.f32 %v410, %v484
      %v490 = vmul.f32 %v413, %v484
      %v491 = vmul.f32 %v415, %v484
      %v492 = vmul.f32 %v418, %v484
      %v493 = vmul.f32 %v420, %v484
      %v494 = vmul.f32 %v423, %v484
      %v495 = vmul.f32 %v425, %v484
      %v496 = vmul.f32 %v428, %v484
      %v497 = vmul.f32 %v430, %v484
      %v498 = vmul.f32 %v433, %v484
      %v499 = vmul.f32 %v435, %v484
      %v500 = vmul.f32 %v438, %v484
      %v501 = vmul.f32 %v440, %v484
      %v502 = vmul.f32 %v443, %v484
      %v503 = vmul.f32 %v445, %v484
      %v504 = vmul.f32 %v448, %v484
      %v505 = vmul.f32 %v450, %v484
      %v506 = vmul.f32 %v453, %v484
      %v507 = vmul.f32 %v455, %v484
      %v508 = vmul.f32 %v458, %v484
      %v509 = vmul.f32 %v460, %v484
      %v510 = vmul.f32 %v463, %v484
      %v511 = vmul.f32 %v465, %v484
      %v512 = vmul.f32 %v468, %v484
      %v513 = vmul.f32 %v470, %v484
      %v514 = vmul.f32 %v473, %v484
      %v515 = vmul.f32 %v475, %v484
      %v516 = vmul.f32 %v478, %v484
      %v517 = vmul.f32 %v480, %v484
      %v518 = vld [vmem:[%s3] sm:$0x1]
      %v520 = vperm.slane %v518, 0
      %v522 = vadd.f32 %v486, %v520
      %v523 = vadd.f32 %v487, %v520
      %v524 = vadd.f32 %v488, %v520
      %v525 = vadd.f32 %v489, %v520
      %v526 = vadd.f32 %v490, %v520
      %v527 = vadd.f32 %v491, %v520
      %v528 = vadd.f32 %v492, %v520
      %v529 = vadd.f32 %v493, %v520
      %v530 = vadd.f32 %v494, %v520
      %v531 = vadd.f32 %v495, %v520
      %v532 = vadd.f32 %v496, %v520
      %v533 = vadd.f32 %v497, %v520
      %v534 = vadd.f32 %v498, %v520
      %v535 = vadd.f32 %v499, %v520
      %v536 = vadd.f32 %v500, %v520
      %v537 = vadd.f32 %v501, %v520
      %v538 = vadd.f32 %v502, %v520
      %v539 = vadd.f32 %v503, %v520
      %v540 = vadd.f32 %v504, %v520
      %v541 = vadd.f32 %v505, %v520
      %v542 = vadd.f32 %v506, %v520
      %v543 = vadd.f32 %v507, %v520
      %v544 = vadd.f32 %v508, %v520
      %v545 = vadd.f32 %v509, %v520
      %v546 = vadd.f32 %v510, %v520
      %v547 = vadd.f32 %v511, %v520
      %v548 = vadd.f32 %v512, %v520
      %v549 = vadd.f32 %v513, %v520
      %v550 = vadd.f32 %v514, %v520
      %v551 = vadd.f32 %v515, %v520
      %v552 = vadd.f32 %v516, %v520
      %v553 = vadd.f32 %v517, %v520
      %v554 = vmax.f32 %v522, 0.0
      %v555 = vmax.f32 %v523, 0.0
      %v556 = vmax.f32 %v524, 0.0
      %v557 = vmax.f32 %v525, 0.0
      %v558 = vmax.f32 %v526, 0.0
      %v559 = vmax.f32 %v527, 0.0
      %v560 = vmax.f32 %v528, 0.0
      %v561 = vmax.f32 %v529, 0.0
      %v562 = vmax.f32 %v530, 0.0
      %v563 = vmax.f32 %v531, 0.0
      %v564 = vmax.f32 %v532, 0.0
      %v565 = vmax.f32 %v533, 0.0
      %v566 = vmax.f32 %v534, 0.0
      %v567 = vmax.f32 %v535, 0.0
      %v568 = vmax.f32 %v536, 0.0
      %v569 = vmax.f32 %v537, 0.0
      %v570 = vmax.f32 %v538, 0.0
      %v571 = vmax.f32 %v539, 0.0
      %v572 = vmax.f32 %v540, 0.0
      %v573 = vmax.f32 %v541, 0.0
      %v574 = vmax.f32 %v542, 0.0
      %v575 = vmax.f32 %v543, 0.0
      %v576 = vmax.f32 %v544, 0.0
      %v577 = vmax.f32 %v545, 0.0
      %v578 = vmax.f32 %v546, 0.0
      %v579 = vmax.f32 %v547, 0.0
      %v580 = vmax.f32 %v548, 0.0
      %v581 = vmax.f32 %v549, 0.0
      %v582 = vmax.f32 %v550, 0.0
      %v583 = vmax.f32 %v551, 0.0
      %v584 = vmax.f32 %v552, 0.0
      %v585 = vmax.f32 %v553, 0.0
      %v586 = vpack.c.bf16 %v554, %v554
      %v587 = vpack.c.bf16 %v555, %v555
      %v588 = vpack.c.bf16 %v556, %v556
      %v589 = vpack.c.bf16 %v557, %v557
      %v590 = vpack.c.bf16 %v558, %v558
      %v591 = vpack.c.bf16 %v559, %v559
      %v592 = vpack.c.bf16 %v560, %v560
      %v593 = vpack.c.bf16 %v561, %v561
      %v594 = vpack.c.bf16 %v562, %v562
      %v595 = vpack.c.bf16 %v563, %v563
      %v596 = vpack.c.bf16 %v564, %v564
      %v597 = vpack.c.bf16 %v565, %v565
      %v598 = vpack.c.bf16 %v566, %v566
      %v599 = vpack.c.bf16 %v567, %v567
      %v600 = vpack.c.bf16 %v568, %v568
      %v601 = vpack.c.bf16 %v569, %v569
      %v602 = vpack.c.bf16 %v570, %v570
      %v603 = vpack.c.bf16 %v571, %v571
      %v604 = vpack.c.bf16 %v572, %v572
      %v605 = vpack.c.bf16 %v573, %v573
      %v606 = vpack.c.bf16 %v574, %v574
      %v607 = vpack.c.bf16 %v575, %v575
      %v608 = vpack.c.bf16 %v576, %v576
      %v609 = vpack.c.bf16 %v577, %v577
      %v610 = vpack.c.bf16 %v578, %v578
      %v611 = vpack.c.bf16 %v579, %v579
      %v612 = vpack.c.bf16 %v580, %v580
      %v613 = vpack.c.bf16 %v581, %v581
      %v614 = vpack.c.bf16 %v582, %v582
      %v615 = vpack.c.bf16 %v583, %v583
      %v616 = vpack.c.bf16 %v584, %v584
      %v617 = vpack.c.bf16 %v585, %v585
      %618 = vst [vmem:[%s199] sm:$0xf] %v586
      %619 = vst [vmem:[%s199 + $0x4] sm:$0xf] %v587
      %620 = vst [vmem:[%s199 + $0x8] sm:$0xf] %v588
      %621 = vst [vmem:[%s199 + $0xc] sm:$0xf] %v589
      %622 = vst [vmem:[%s199 + $0x10] sm:$0xf] %v590
      %623 = vst [vmem:[%s199 + $0x14] sm:$0xf] %v591
      %624 = vst [vmem:[%s199 + $0x18] sm:$0xf] %v592
      %625 = vst [vmem:[%s199 + $0x1c] sm:$0xf] %v593
      %626 = vst [vmem:[%s199 + $0x20] sm:$0xf] %v594
      %627 = vst [vmem:[%s199 + $0x24] sm:$0xf] %v595
      %628 = vst [vmem:[%s199 + $0x28] sm:$0xf] %v596
      %629 = vst [vmem:[%s199 + $0x2c] sm:$0xf] %v597
      %630 = vst [vmem:[%s199 + $0x30] sm:$0xf] %v598
      %631 = vst [vmem:[%s199 + $0x34] sm:$0xf] %v599
      %632 = vst [vmem:[%s199 + $0x38] sm:$0xf] %v600
      %633 = vst [vmem:[%s199 + $0x3c] sm:$0xf] %v601
      %634 = vst [vmem:[%s199 + $0x40] sm:$0xf] %v602
      %635 = vst [vmem:[%s199 + $0x44] sm:$0xf] %v603
      %636 = vst [vmem:[%s199 + $0x48] sm:$0xf] %v604
      %637 = vst [vmem:[%s199 + $0x4c] sm:$0xf] %v605
      %638 = vst [vmem:[%s199 + $0x50] sm:$0xf] %v606
      %639 = vst [vmem:[%s199 + $0x54] sm:$0xf] %v607
      %640 = vst [vmem:[%s199 + $0x58] sm:$0xf] %v608
      %641 = vst [vmem:[%s199 + $0x5c] sm:$0xf] %v609
      %642 = vst [vmem:[%s199 + $0x60] sm:$0xf] %v610
      %643 = vst [vmem:[%s199 + $0x64] sm:$0xf] %v611
      %644 = vst [vmem:[%s199 + $0x68] sm:$0xf] %v612
      %645 = vst [vmem:[%s199 + $0x6c] sm:$0xf] %v613
      %646 = vst [vmem:[%s199 + $0x70] sm:$0xf] %v614
      %647 = vst [vmem:[%s199 + $0x74] sm:$0xf] %v615
      %648 = vst [vmem:[%s199 + $0x78] sm:$0xf] %v616
      %649 = vst [vmem:[%s199 + $0x7c] sm:$0xf] %v617
      %s650 = smul.u32 32, %s15
      %p651 = scmp.lt.s32.totalorder %s650, 63
      %s652 = scalar_select %p651, %s650, 63
      %s653 = smul.addr %s652, 4
      %s654 = scalar_lea.vmem %s4, %s653
      // Predicated region
      $region37: #{_lambda_.21} parent=35 // pred_check
        %p655 = pneg %p122
      $region38: #{_lambda_.21} parent=35 // pred_check_branch
        %657 = sbr.rel (%p655) target = $region40
      $region39: #{_lambda_.21} parent=35 // pred_region
        %s658 = smul.u32 32, %s15
      $region40: #{_lambda_.21} parent=35 // pred_fallthru
        _
    $region36: #{_lambda_.21} parent=5 // pred_fallthru
      _
    %p659 = scmp.le.s32.totalorder 2, %s10
    // Predicated region
    $region41: #{_lambda_.21} parent=5 // pred_check
      %p660 = pneg %p659
    $region42: #{_lambda_.21} parent=5 // pred_check_branch
      %662 = sbr.rel (%p660) target = $region44
    $region43: #{_lambda_.21} parent=5 // pred_region
      %s663 = ssub.s32 %s10, 2
      // Predicated region
      $region45: #{_lambda_.21} parent=43 // pred_check
        %p664 = pneg %p128
      $region46: #{_lambda_.21} parent=43 // pred_check_branch
        %666 = sbr.rel (%p664) target = $region48
      $region47: #{_lambda_.21} parent=43 // pred_region
        %s667 = smul.u32 32, %s16
        %p668 = scmp.lt.s32.totalorder %s667, 63
        %s669 = scalar_select %p668, %s667, 63
        %s670 = smul.addr %s669, 4
        %s671 = scalar_lea.vmem %s4, %s670
      $region48: #{_lambda_.21} parent=43 // pred_fallthru
        _
    $region44: #{_lambda_.21} parent=5 // pred_fallthru
      _
  $region6: #{_lambda_.21} parent=0 // loop_footer
    %s14 = sadd.s32 1, %s10
  $region7: #{_lambda_.21} parent=0 // loop_footer_branch
    %9 = sbr.rel target = $region3
  $region8: #{_lambda_.21} parent=0 // loop_exit
    _

// kernel: _lambda_.24
$region0: #{_lambda_.24}
  #allocation0 [shape = 'u32[]', space=smem, size = 0x4, offset = 0x4, fixed_abs, tag = 'smem constant byte address 0x4 - core index']
  #allocation1 [shape = 'u32[72,128]{1,0:T(1,128)}', space=vmem, size = 0x9000, scoped, tag = 'internal scratch']
  %s0 = inlined_call_operand.vmem [shape: bf16[128,128], index: 0, kind: input, shape index: {}]
  %s1 = inlined_call_operand.vmem [shape: bf16[128,128], index: 1, kind: input, shape index: {}]
  %s2 = inlined_call_operand.vmem [shape: f32[1,128], index: 2, kind: input, shape index: {}]
  %s3 = inlined_call_operand.vmem [shape: f32[1,128], index: 3, kind: input, shape index: {}]
  %s4 = inlined_call_operand.vmem [shape: bf16[128,128], index: 4, kind: output, shape index: {}]
  %s5 = sld [smem:[#allocation0]]
  $region49: #{_lambda_.24} parent=0
    _
  %s7 = ssub.s32 1, %s5
  %s8 = scalar_select 0, %s7, %s5
  loop: start=0, step=1, limit=4
  $region2: #{_lambda_.24} parent=0 // loop_pre_header
    _
  $region3: #{_lambda_.24} parent=0 // loop_header
    %s10 = sphi 0, %s14
    %p11 = scmp.ge.s32.totalorder %s10, 4
    %s20 = sphi 0, %s22
    %s23 = sphi 0, %s20
    %s24 = sphi 0, %s23
    %s40 = sphi 0, %s24
    %s44 = sphi 0, %s44
    %s46 = sphi 0, %s44
    %s47 = sphi 0, %s46
    %s61 = sphi 0, %s47
    %s65 = sphi 0, %s65
    %s67 = sphi 0, %s65
    %s68 = sphi 0, %s67
    %s82 = sphi 0, %s68
    %s86 = sphi 0, %s86
    %s88 = sphi 0, %s86
    %s89 = sphi 0, %s88
    %s103 = sphi 0, %s89
    %s109 = sphi 0, %s111
    %s112 = sphi 0, %s109
    %s113 = sphi 0, %s112
    %s129 = sphi 0, %s113
  $region4: #{_lambda_.24} parent=0 // loop_header_branch
    %13 = sbr.rel (%p11) target = $region8
  $region5: #{_lambda_.24} parent=0 // loop_body
    %s15 = ssub.s32 %s10, 1
    %s16 = ssub.s32 %s10, 2
    %s17 = sadd.s32 %s10, 1
    %s18 = ssub.s32 %s10, %s17
    %p19 = scmp.eq.s32.totalorder %s18, 0
    %s21 = sadd.s32 %s20, 1
    %s22 = scalar_select %p19, %s20, %s21
    %p25 = pneg %p19
    %p26 = scmp.eq.s32.totalorder %s10, 1
    %p27 = por %p25, %p26
    %p28 = scmp.ne.s32.totalorder %s20, %s23
    %p29 = scmp.eq.s32.totalorder %s10, 0
    %p30 = por %p28, %p29
    %p31 = scmp.ne.s32.totalorder %s20, %s23
    %p32 = scmp.eq.s32.totalorder %s15, 1
    %p33 = por %p31, %p32
    %p34 = scmp.ne.s32.totalorder %s23, %s24
    %p35 = scmp.eq.s32.totalorder %s15, 0
    %p36 = por %p34, %p35
    %p37 = scmp.ne.s32.totalorder %s23, %s24
    %p38 = scmp.eq.s32.totalorder %s16, 1
    %p39 = por %p37, %p38
    %p41 = scmp.ne.s32.totalorder %s24, %s40
    %p42 = scmp.eq.s32.totalorder %s16, 0
    %p43 = por %p41, %p42
    %s45 = sadd.s32 %s44, 1
    %p48 = scmp.eq.s32.totalorder %s10, 1
    %p49 = scmp.ne.s32.totalorder %s44, %s46
    %p50 = scmp.eq.s32.totalorder %s10, 0
    %p51 = por %p49, %p50
    %p52 = scmp.ne.s32.totalorder %s44, %s46
    %p53 = scmp.eq.s32.totalorder %s15, 1
    %p54 = por %p52, %p53
    %p55 = scmp.ne.s32.totalorder %s46, %s47
    %p56 = scmp.eq.s32.totalorder %s15, 0
    %p57 = por %p55, %p56
    %p58 = scmp.ne.s32.totalorder %s46, %s47
    %p59 = scmp.eq.s32.totalorder %s16, 1
    %p60 = por %p58, %p59
    %p62 = scmp.ne.s32.totalorder %s47, %s61
    %p63 = scmp.eq.s32.totalorder %s16, 0
    %p64 = por %p62, %p63
    %s66 = sadd.s32 %s65, 1
    %p69 = scmp.eq.s32.totalorder %s10, 1
    %p70 = scmp.ne.s32.totalorder %s65, %s67
    %p71 = scmp.eq.s32.totalorder %s10, 0
    %p72 = por %p70, %p71
    %p73 = scmp.ne.s32.totalorder %s65, %s67
    %p74 = scmp.eq.s32.totalorder %s15, 1
    %p75 = por %p73, %p74
    %p76 = scmp.ne.s32.totalorder %s67, %s68
    %p77 = scmp.eq.s32.totalorder %s15, 0
    %p78 = por %p76, %p77
    %p79 = scmp.ne.s32.totalorder %s67, %s68
    %p80 = scmp.eq.s32.totalorder %s16, 1
    %p81 = por %p79, %p80
    %p83 = scmp.ne.s32.totalorder %s68, %s82
    %p84 = scmp.eq.s32.totalorder %s16, 0
    %p85 = por %p83, %p84
    %s87 = sadd.s32 %s86, 1
    %p90 = scmp.eq.s32.totalorder %s10, 1
    %p91 = scmp.ne.s32.totalorder %s86, %s88
    %p92 = scmp.eq.s32.totalorder %s10, 0
    %p93 = por %p91, %p92
    %p94 = scmp.ne.s32.totalorder %s86, %s88
    %p95 = scmp.eq.s32.totalorder %s15, 1
    %p96 = por %p94, %p95
    %p97 = scmp.ne.s32.totalorder %s88, %s89
    %p98 = scmp.eq.s32.totalorder %s15, 0
    %p99 = por %p97, %p98
    %p100 = scmp.ne.s32.totalorder %s88, %s89
    %p101 = scmp.eq.s32.totalorder %s16, 1
    %p102 = por %p100, %p101
    %p104 = scmp.ne.s32.totalorder %s89, %s103
    %p105 = scmp.eq.s32.totalorder %s16, 0
    %p106 = por %p104, %p105
    %s107 = ssub.s32 %s10, %s17
    %p108 = scmp.eq.s32.totalorder %s107, 0
    %s110 = sadd.s32 %s109, 1
    %s111 = scalar_select %p108, %s109, %s110
    %p114 = pneg %p108
    %p115 = scmp.eq.s32.totalorder %s10, 1
    %p116 = por %p114, %p115
    %p117 = scmp.ne.s32.totalorder %s109, %s112
    %p118 = scmp.eq.s32.totalorder %s10, 0
    %p119 = por %p117, %p118
    %p120 = scmp.ne.s32.totalorder %s109, %s112
    %p121 = scmp.eq.s32.totalorder %s15, 1
    %p122 = por %p120, %p121
    %p123 = scmp.ne.s32.totalorder %s112, %s113
    %p124 = scmp.eq.s32.totalorder %s15, 0
    %p125 = por %p123, %p124
    %p126 = scmp.ne.s32.totalorder %s112, %s113
    %p127 = scmp.eq.s32.totalorder %s16, 1
    %p128 = por %p126, %p127
    %p130 = scmp.ne.s32.totalorder %s113, %s129
    %p131 = scmp.eq.s32.totalorder %s16, 0
    %p132 = por %p130, %p131
    %p133 = scmp.le.s32.totalorder 1, %s10
    %p134 = scmp.lt.s32.totalorder %s10, 3
    %p135 = pnand %p133, %p134
    %p136 = pneg %p135
    // Predicated region
    $region9: #{_lambda_.24} parent=5 // pred_check
      _
    $region10: #{_lambda_.24} parent=5 // pred_check_branch
      %138 = sbr.rel (%p135) target = $region12
    $region11: #{_lambda_.24} parent=5 // pred_region
      %s139 = ssub.s32 %s10, 1
      // Predicated region
      $region13: #{_lambda_.24} parent=11 // pred_check
        %p140 = pneg %p57
      $region14: #{_lambda_.24} parent=11 // pred_check_branch
        %142 = sbr.rel (%p140) target = $region16
      $region15: #{_lambda_.24} parent=11 // pred_region
        _
      $region16: #{_lambda_.24} parent=11 // pred_fallthru
        _
      // Predicated region
      $region17: #{_lambda_.24} parent=11 // pred_check
        %p143 = pneg %p78
      $region18: #{_lambda_.24} parent=11 // pred_check_branch
        %145 = sbr.rel (%p143) target = $region20
      $region19: #{_lambda_.24} parent=11 // pred_region
        _
      $region20: #{_lambda_.24} parent=11 // pred_fallthru
        _
      // Predicated region
      $region21: #{_lambda_.24} parent=11 // pred_check
        %p146 = pneg %p99
      $region22: #{_lambda_.24} parent=11 // pred_check_branch
        %148 = sbr.rel (%p146) target = $region24
      $region23: #{_lambda_.24} parent=11 // pred_region
        _
      $region24: #{_lambda_.24} parent=11 // pred_fallthru
        _
    $region12: #{_lambda_.24} parent=5 // pred_fallthru
      _
    %p149 = scmp.lt.s32.totalorder %s10, 2
    // Predicated region
    $region25: #{_lambda_.24} parent=5 // pred_check
      %p150 = pneg %p149
    $region26: #{_lambda_.24} parent=5 // pred_check_branch
      %152 = sbr.rel (%p150) target = $region28
    $region27: #{_lambda_.24} parent=5 // pred_region
      // Predicated region
      $region29: #{_lambda_.24} parent=27 // pred_check
        %p153 = pneg %p30
      $region30: #{_lambda_.24} parent=27 // pred_check_branch
        %155 = sbr.rel (%p153) target = $region32
      $region31: #{_lambda_.24} parent=27 // pred_region
        %s156 = smul.u32 8, %s10
        %p157 = scmp.lt.s32.totalorder %s156, 15
        %s158 = scalar_select %p157, %s156, 15
        %s159 = smul.addr %s158, 4
        %s160 = scalar_lea.vmem %s0, %s159
        %s161 = smul.u32 8, %s10
      $region32: #{_lambda_.24} parent=27 // pred_fallthru
        _
    $region28: #{_lambda_.24} parent=5 // pred_fallthru
      _
    %p162 = scmp.le.s32.totalorder 1, %s10
    %p163 = scmp.lt.s32.totalorder %s10, 3
    %p164 = pnand %p162, %p163
    %p165 = pneg %p164
    // Predicated region
    $region33: #{_lambda_.24} parent=5 // pred_check
      _
    $region34: #{_lambda_.24} parent=5 // pred_check_branch
      %167 = sbr.rel (%p164) target = $region36
    $region35: #{_lambda_.24} parent=5 // pred_region
      %s168 = ssub.s32 %s10, 1
      %s169 = smul.u32 8, %s15
      %p170 = scmp.lt.s32.totalorder %s169, 15
      %s171 = scalar_select %p170, %s169, 15
      %s172 = smul.addr %s171, 4
      %s173 = scalar_lea.vmem %s0, %s172
      %p174 = pneg %p36
      %p175 = pneg %p33
      %p176 = pneg %p57
      %p177 = pneg %p54
      %p178 = pneg %p78
      %p179 = pneg %p75
      %p180 = pneg %p99
      %p181 = pneg %p96
      %p182 = pneg %p125
      %p183 = pneg %p122
      %s184 = smul.u32 8, %s15
      %p185 = scmp.lt.s32.totalorder %s184, 15
      %s186 = scalar_select %p185, %s184, 15
      %s187 = smul.addr %s186, 4
      %s188 = scalar_lea.vmem %s4, %s187
      %s189 = smul.u32 8, %s15
      %p190 = scmp.lt.s32.totalorder %s189, 15
      %s191 = scalar_select %p190, %s189, 15
      %s192 = smul.addr %s191, 4
      %s193 = scalar_lea.vmem %s0, %s192
      %s194 = smul.u32 8, %s15
      %s195 = smul.u32 8, %s15
      %p196 = scmp.lt.s32.totalorder %s195, 15
      %s197 = scalar_select %p196, %s195, 15
      %s198 = smul.addr %s197, 4
      %s199 = scalar_lea.vmem %s4, %s198
      %s200 = smul.u32 8, %s15
      %v201 = vld [vmem:[%s193] sm:$0xf]
      %v202 = vld [vmem:[%s193 + $0x4] sm:$0xf]
      %v203 = vld [vmem:[%s193 + $0x8] sm:$0xf]
      %v204 = vld [vmem:[%s193 + $0xc] sm:$0xf]
      %v205 = vld [vmem:[%s193 + $0x10] sm:$0xf]
      %v206 = vld [vmem:[%s193 + $0x14] sm:$0xf]
      %v207 = vld [vmem:[%s193 + $0x18] sm:$0xf]
      %v208 = vld [vmem:[%s193 + $0x1c] sm:$0xf]
      %v209 = vld [vmem:[%s1] sm:$0xf]
      %v210 = vld [vmem:[%s1 + $0x4] sm:$0xf]
      %v211 = vld [vmem:[%s1 + $0x8] sm:$0xf]
      %v212 = vld [vmem:[%s1 + $0xc] sm:$0xf]
      %v213 = vld [vmem:[%s1 + $0x10] sm:$0xf]
      %v214 = vld [vmem:[%s1 + $0x14] sm:$0xf]
      %v215 = vld [vmem:[%s1 + $0x18] sm:$0xf]
      %v216 = vld [vmem:[%s1 + $0x1c] sm:$0xf]
      %v217 = vld [vmem:[%s1 + $0x20] sm:$0xf]
      %v218 = vld [vmem:[%s1 + $0x24] sm:$0xf]
      %v219 = vld [vmem:[%s1 + $0x28] sm:$0xf]
      %v220 = vld [vmem:[%s1 + $0x2c] sm:$0xf]
      %v221 = vld [vmem:[%s1 + $0x30] sm:$0xf]
      %v222 = vld [vmem:[%s1 + $0x34] sm:$0xf]
      %v223 = vld [vmem:[%s1 + $0x38] sm:$0xf]
      %v224 = vld [vmem:[%s1 + $0x3c] sm:$0xf]
      %v233 = vunpack.c.l.b16 %v201
      %v234 = vunpack.c.l.b16 %v202
      %v235 = vunpack.c.l.b16 %v203
      %v236 = vunpack.c.l.b16 %v204
      %v237 = vunpack.c.l.b16 %v205
      %v238 = vunpack.c.l.b16 %v206
      %v239 = vunpack.c.l.b16 %v207
      %v240 = vunpack.c.l.b16 %v208
      %v241 = vpack.c.b16 %v234, %v233
      %v242 = vpack.c.b16 %v236, %v235
      %v243 = vpack.c.b16 %v238, %v237
      %v244 = vpack.c.b16 %v240, %v239
      %v265 = vunpack.c.l.b16 %v209
      %v266 = vunpack.c.l.b16 %v210
      %v267 = vunpack.c.l.b16 %v211
      %v268 = vunpack.c.l.b16 %v212
      %v269 = vunpack.c.l.b16 %v213
      %v270 = vunpack.c.l.b16 %v214
      %v271 = vunpack.c.l.b16 %v215
      %v272 = vunpack.c.l.b16 %v216
      %v273 = vunpack.c.l.b16 %v217
      %v274 = vunpack.c.l.b16 %v218
      %v275 = vunpack.c.l.b16 %v219
      %v276 = vunpack.c.l.b16 %v220
      %v277 = vunpack.c.l.b16 %v221
      %v278 = vunpack.c.l.b16 %v222
      %v279 = vunpack.c.l.b16 %v223
      %v280 = vunpack.c.l.b16 %v224
      %v281 = vpack.c.b16 %v266, %v265
      %v282 = vpack.c.b16 %v268, %v267
      %v283 = vpack.c.b16 %v270, %v269
      %v284 = vpack.c.b16 %v272, %v271
      %v285 = vpack.c.b16 %v274, %v273
      %v286 = vpack.c.b16 %v276, %v275
      %v287 = vpack.c.b16 %v278, %v277
      %v288 = vpack.c.b16 %v280, %v279
      %297 = vmatpush.bf16.msra.mxu0 %v288
      %298 = vmatpush.bf16.msra.mxu0 %v287
      %299 = vmatpush.bf16.msra.mxu0 %v286
      %300 = vmatpush.bf16.msra.mxu0 %v285
      %301 = vmatpush.bf16.msra.mxu0 %v284
      %302 = vmatpush.bf16.msra.mxu0 %v283
      %303 = vmatpush.bf16.msra.mxu0 %v282
      %304 = vmatpush.bf16.msra.mxu0 %v281
      %305 = vmatmul.bf16.gmra.mxu0 %v241
      %v306 = vpop.f32.mrf.mxu0
      %v307 = vadd.f32 0.0, %v306
      %v308 = vpop.f32.mrf.mxu0
      %v309 = vadd.f32 0.0, %v308
      %310 = vmatmul.bf16.gmra.mxu0 %v242
      %v311 = vpop.f32.mrf.mxu0
      %v312 = vadd.f32 0.0, %v311
      %v313 = vpop.f32.mrf.mxu0
      %v314 = vadd.f32 0.0, %v313
      %315 = vmatmul.bf16.gmra.mxu0 %v243
      %v316 = vpop.f32.mrf.mxu0
      %v317 = vadd.f32 0.0, %v316
      %v318 = vpop.f32.mrf.mxu0
      %v319 = vadd.f32 0.0, %v318
      %320 = vmatmul.bf16.gmra.mxu0 %v244
      %v321 = vpop.f32.mrf.mxu0
      %v322 = vadd.f32 0.0, %v321
      %v323 = vpop.f32.mrf.mxu0
      %v324 = vadd.f32 0.0, %v323
      %325 = vdwg.mxu0
      %v326 = vld [vmem:[%s2] sm:$0x1]
      %v328 = vperm.slane %v326, 0
      %v330 = vmul.f32 %v307, %v328
      %v331 = vmul.f32 %v309, %v328
      %v332 = vmul.f32 %v312, %v328
      %v333 = vmul.f32 %v314, %v328
      %v334 = vmul.f32 %v317, %v328
      %v335 = vmul.f32 %v319, %v328
      %v336 = vmul.f32 %v322, %v328
      %v337 = vmul.f32 %v324, %v328
      %v338 = vld [vmem:[%s3] sm:$0x1]
      %v340 = vperm.slane %v338, 0
      %v342 = vadd.f32 %v330, %v340
      %v343 = vadd.f32 %v331, %v340
      %v344 = vadd.f32 %v332, %v340
      %v345 = vadd.f32 %v333, %v340
      %v346 = vadd.f32 %v334, %v340
      %v347 = vadd.f32 %v335, %v340
      %v348 = vadd.f32 %v336, %v340
      %v349 = vadd.f32 %v337, %v340
      %v350 = vmax.f32 %v342, 0.0
      %v351 = vmax.f32 %v343, 0.0
      %v352 = vmax.f32 %v344, 0.0
      %v353 = vmax.f32 %v345, 0.0
      %v354 = vmax.f32 %v346, 0.0
      %v355 = vmax.f32 %v347, 0.0
      %v356 = vmax.f32 %v348, 0.0
      %v357 = vmax.f32 %v349, 0.0
      %v358 = vpack.c.bf16 %v350, %v350
      %v359 = vpack.c.bf16 %v351, %v351
      %v360 = vpack.c.bf16 %v352, %v352
      %v361 = vpack.c.bf16 %v353, %v353
      %v362 = vpack.c.bf16 %v354, %v354
      %v363 = vpack.c.bf16 %v355, %v355
      %v364 = vpack.c.bf16 %v356, %v356
      %v365 = vpack.c.bf16 %v357, %v357
      %366 = vst [vmem:[%s199] sm:$0xf] %v358
      %367 = vst [vmem:[%s199 + $0x4] sm:$0xf] %v359
      %368 = vst [vmem:[%s199 + $0x8] sm:$0xf] %v360
      %369 = vst [vmem:[%s199 + $0xc] sm:$0xf] %v361
      %370 = vst [vmem:[%s199 + $0x10] sm:$0xf] %v362
      %371 = vst [vmem:[%s199 + $0x14] sm:$0xf] %v363
      %372 = vst [vmem:[%s199 + $0x18] sm:$0xf] %v364
      %373 = vst [vmem:[%s199 + $0x1c] sm:$0xf] %v365
      %s374 = smul.u32 8, %s15
      %p375 = scmp.lt.s32.totalorder %s374, 15
      %s376 = scalar_select %p375, %s374, 15
      %s377 = smul.addr %s376, 4
      %s378 = scalar_lea.vmem %s4, %s377
      // Predicated region
      $region37: #{_lambda_.24} parent=35 // pred_check
        %p379 = pneg %p122
      $region38: #{_lambda_.24} parent=35 // pred_check_branch
        %381 = sbr.rel (%p379) target = $region40
      $region39: #{_lambda_.24} parent=35 // pred_region
        %s382 = smul.u32 8, %s15
      $region40: #{_lambda_.24} parent=35 // pred_fallthru
        _
    $region36: #{_lambda_.24} parent=5 // pred_fallthru
      _
    %p383 = scmp.le.s32.totalorder 2, %s10
    // Predicated region
    $region41: #{_lambda_.24} parent=5 // pred_check
      %p384 = pneg %p383
    $region42: #{_lambda_.24} parent=5 // pred_check_branch
      %386 = sbr.rel (%p384) target = $region44
    $region43: #{_lambda_.24} parent=5 // pred_region
      %s387 = ssub.s32 %s10, 2
      // Predicated region
      $region45: #{_lambda_.24} parent=43 // pred_check
        %p388 = pneg %p128
      $region46: #{_lambda_.24} parent=43 // pred_check_branch
        %390 = sbr.rel (%p388) target = $region48
      $region47: #{_lambda_.24} parent=43 // pred_region
        %s391 = smul.u32 8, %s16
        %p392 = scmp.lt.s32.totalorder %s391, 15
        %s393 = scalar_select %p392, %s391, 15
        %s394 = smul.addr %s393, 4
        %s395 = scalar_lea.vmem %s4, %s394
      $region48: #{_lambda_.24} parent=43 // pred_fallthru
        _
    $region44: #{_lambda_.24} parent=5 // pred_fallthru
      _
  $region6: #{_lambda_.24} parent=0 // loop_footer
    %s14 = sadd.s32 1, %s10
  $region7: #{_lambda_.24} parent=0 // loop_footer_branch
    %9 = sbr.rel target = $region3
  $region8: #{_lambda_.24} parent=0 // loop_exit
    _

// kernel: _lambda_.25
$region0: #{_lambda_.25}
  #allocation0 [shape = 'u32[]', space=smem, size = 0x4, offset = 0x4, fixed_abs, tag = 'smem constant byte address 0x4 - core index']
  #allocation1 [shape = 'u32[72,128]{1,0:T(1,128)}', space=vmem, size = 0x9000, scoped, tag = 'internal scratch']
  %s0 = inlined_call_operand.vmem [shape: bf16[128,8], index: 0, kind: input, shape index: {}]
  %s1 = inlined_call_operand.vmem [shape: bf16[8,128], index: 1, kind: input, shape index: {}]
  %s2 = inlined_call_operand.vmem [shape: bf16[128,128], index: 2, kind: output, shape index: {}]
  %s3 = sld [smem:[#allocation0]]
  $region41: #{_lambda_.25} parent=0
    _
  %s5 = ssub.s32 1, %s3
  %s6 = scalar_select 0, %s5, %s3
  loop: start=0, step=1, limit=4
  $region2: #{_lambda_.25} parent=0 // loop_pre_header
    _
  $region3: #{_lambda_.25} parent=0 // loop_header
    %s8 = sphi 0, %s12
    %p9 = scmp.ge.s32.totalorder %s8, 4
    %s18 = sphi 0, %s20
    %s21 = sphi 0, %s18
    %s22 = sphi 0, %s21
    %s38 = sphi 0, %s22
    %s42 = sphi 0, %s42
    %s44 = sphi 0, %s42
    %s45 = sphi 0, %s44
    %s59 = sphi 0, %s45
    %s65 = sphi 0, %s67
    %s68 = sphi 0, %s65
    %s69 = sphi 0, %s68
    %s85 = sphi 0, %s69
  $region4: #{_lambda_.25} parent=0 // loop_header_branch
    %11 = sbr.rel (%p9) target = $region8
  $region5: #{_lambda_.25} parent=0 // loop_body
    %s13 = ssub.s32 %s8, 1
    %s14 = ssub.s32 %s8, 2
    %s15 = sadd.s32 %s8, 1
    %s16 = ssub.s32 %s8, %s15
    %p17 = scmp.eq.s32.totalorder %s16, 0
    %s19 = sadd.s32 %s18, 1
    %s20 = scalar_select %p17, %s18, %s19
    %p23 = pneg %p17
    %p24 = scmp.eq.s32.totalorder %s8, 1
    %p25 = por %p23, %p24
    %p26 = scmp.ne.s32.totalorder %s18, %s21
    %p27 = scmp.eq.s32.totalorder %s8, 0
    %p28 = por %p26, %p27
    %p29 = scmp.ne.s32.totalorder %s18, %s21
    %p30 = scmp.eq.s32.totalorder %s13, 1
    %p31 = por %p29, %p30
    %p32 = scmp.ne.s32.totalorder %s21, %s22
    %p33 = scmp.eq.s32.totalorder %s13, 0
    %p34 = por %p32, %p33
    %p35 = scmp.ne.s32.totalorder %s21, %s22
    %p36 = scmp.eq.s32.totalorder %s14, 1
    %p37 = por %p35, %p36
    %p39 = scmp.ne.s32.totalorder %s22, %s38
    %p40 = scmp.eq.s32.totalorder %s14, 0
    %p41 = por %p39, %p40
    %s43 = sadd.s32 %s42, 1
    %p46 = scmp.eq.s32.totalorder %s8, 1
    %p47 = scmp.ne.s32.totalorder %s42, %s44
    %p48 = scmp.eq.s32.totalorder %s8, 0
    %p49 = por %p47, %p48
    %p50 = scmp.ne.s32.totalorder %s42, %s44
    %p51 = scmp.eq.s32.totalorder %s13, 1
    %p52 = por %p50, %p51
    %p53 = scmp.ne.s32.totalorder %s44, %s45
    %p54 = scmp.eq.s32.totalorder %s13, 0
    %p55 = por %p53, %p54
    %p56 = scmp.ne.s32.totalorder %s44, %s45
    %p57 = scmp.eq.s32.totalorder %s14, 1
    %p58 = por %p56, %p57
    %p60 = scmp.ne.s32.totalorder %s45, %s59
    %p61 = scmp.eq.s32.totalorder %s14, 0
    %p62 = por %p60, %p61
    %s63 = ssub.s32 %s8, %s15
    %p64 = scmp.eq.s32.totalorder %s63, 0
    %s66 = sadd.s32 %s65, 1
    %s67 = scalar_select %p64, %s65, %s66
    %p70 = pneg %p64
    %p71 = scmp.eq.s32.totalorder %s8, 1
    %p72 = por %p70, %p71
    %p73 = scmp.ne.s32.totalorder %s65, %s68
    %p74 = scmp.eq.s32.totalorder %s8, 0
    %p75 = por %p73, %p74
    %p76 = scmp.ne.s32.totalorder %s65, %s68
    %p77 = scmp.eq.s32.totalorder %s13, 1
    %p78 = por %p76, %p77
    %p79 = scmp.ne.s32.totalorder %s68, %s69
    %p80 = scmp.eq.s32.totalorder %s13, 0
    %p81 = por %p79, %p80
    %p82 = scmp.ne.s32.totalorder %s68, %s69
    %p83 = scmp.eq.s32.totalorder %s14, 1
    %p84 = por %p82, %p83
    %p86 = scmp.ne.s32.totalorder %s69, %s85
    %p87 = scmp.eq.s32.totalorder %s14, 0
    %p88 = por %p86, %p87
    %p89 = scmp.le.s32.totalorder 1, %s8
    %p90 = scmp.lt.s32.totalorder %s8, 3
    %p91 = pnand %p89, %p90
    %p92 = pneg %p91
    // Predicated region
    $region9: #{_lambda_.25} parent=5 // pred_check
      _
    $region10: #{_lambda_.25} parent=5 // pred_check_branch
      %94 = sbr.rel (%p91) target = $region12
    $region11: #{_lambda_.25} parent=5 // pred_region
      %s95 = ssub.s32 %s8, 1
      // Predicated region
      $region13: #{_lambda_.25} parent=11 // pred_check
        %p96 = pneg %p55
      $region14: #{_lambda_.25} parent=11 // pred_check_branch
        %98 = sbr.rel (%p96) target = $region16
      $region15: #{_lambda_.25} parent=11 // pred_region
        _
      $region16: #{_lambda_.25} parent=11 // pred_fallthru
        _
    $region12: #{_lambda_.25} parent=5 // pred_fallthru
      _
    %p99 = scmp.lt.s32.totalorder %s8, 2
    // Predicated region
    $region17: #{_lambda_.25} parent=5 // pred_check
      %p100 = pneg %p99
    $region18: #{_lambda_.25} parent=5 // pred_check_branch
      %102 = sbr.rel (%p100) target = $region20
    $region19: #{_lambda_.25} parent=5 // pred_region
      // Predicated region
      $region21: #{_lambda_.25} parent=19 // pred_check
        %p103 = pneg %p28
      $region22: #{_lambda_.25} parent=19 // pred_check_branch
        %105 = sbr.rel (%p103) target = $region24
      $region23: #{_lambda_.25} parent=19 // pred_region
        %s106 = smul.u32 8, %s8
        %p107 = scmp.lt.s32.totalorder %s106, 15
        %s108 = scalar_select %p107, %s106, 15
        %s109 = smul.addr %s108, 4
        %s110 = scalar_lea.vmem %s0, %s109
        %s111 = smul.u32 8, %s8
      $region24: #{_lambda_.25} parent=19 // pred_fallthru
        _
    $region20: #{_lambda_.25} parent=5 // pred_fallthru
      _
    %p112 = scmp.le.s32.totalorder 1, %s8
    %p113 = scmp.lt.s32.totalorder %s8, 3
    %p114 = pnand %p112, %p113
    %p115 = pneg %p114
    // Predicated region
    $region25: #{_lambda_.25} parent=5 // pred_check
      _
    $region26: #{_lambda_.25} parent=5 // pred_check_branch
      %117 = sbr.rel (%p114) target = $region28
    $region27: #{_lambda_.25} parent=5 // pred_region
      %s118 = ssub.s32 %s8, 1
      %s119 = smul.u32 8, %s13
      %p120 = scmp.lt.s32.totalorder %s119, 15
      %s121 = scalar_select %p120, %s119, 15
      %s122 = smul.addr %s121, 4
      %s123 = scalar_lea.vmem %s0, %s122
      %p124 = pneg %p34
      %p125 = pneg %p31
      %p126 = pneg %p55
      %p127 = pneg %p52
      %p128 = pneg %p81
      %p129 = pneg %p78
      %s130 = smul.u32 8, %s13
      %p131 = scmp.lt.s32.totalorder %s130, 15
      %s132 = scalar_select %p131, %s130, 15
      %s133 = smul.addr %s132, 4
      %s134 = scalar_lea.vmem %s2, %s133
      %s135 = smul.u32 8, %s13
      %p136 = scmp.lt.s32.totalorder %s135, 15
      %s137 = scalar_select %p136, %s135, 15
      %s138 = smul.addr %s137, 4
      %s139 = scalar_lea.vmem %s0, %s138
      %s140 = smul.u32 8, %s13
      %s141 = smul.u32 8, %s13
      %p142 = scmp.lt.s32.totalorder %s141, 15
      %s143 = scalar_select %p142, %s141, 15
      %s144 = smul.addr %s143, 4
      %s145 = scalar_lea.vmem %s2, %s144
      %s146 = smul.u32 8, %s13
      %v148 = vld [vmem:[%s139] sm:$0xf]
      %v149 = vld [vmem:[%s139 + $0x4] sm:$0xf]
      %v150 = vld [vmem:[%s139 + $0x8] sm:$0xf]
      %v151 = vld [vmem:[%s139 + $0xc] sm:$0xf]
      %v152 = vld [vmem:[%s139 + $0x10] sm:$0xf]
      %v153 = vld [vmem:[%s139 + $0x14] sm:$0xf]
      %v154 = vld [vmem:[%s139 + $0x18] sm:$0xf]
      %v155 = vld [vmem:[%s139 + $0x1c] sm:$0xf]
      %v156 = vld [vmem:[%s1] sm:$0xf]
      %v165 = vunpack.c.l.b16 %v148
      %v166 = vunpack.c.l.b16 %v149
      %v167 = vunpack.c.l.b16 %v150
      %v168 = vunpack.c.l.b16 %v151
      %v169 = vunpack.c.l.b16 %v152
      %v170 = vunpack.c.l.b16 %v153
      %v171 = vunpack.c.l.b16 %v154
      %v172 = vunpack.c.l.b16 %v155
      %v173 = vpack.c.b16 %v166, %v165
      %v174 = vpack.c.b16 %v168, %v167
      %v175 = vpack.c.b16 %v170, %v169
      %v176 = vpack.c.b16 %v172, %v171
      %vm177 = vcmask 64512
      %v179 = vsel %vm177, %v173, 0
      %v182 = vsel %vm177, %v174, 0
      %v185 = vsel %vm177, %v175, 0
      %v188 = vsel %vm177, %v176, 0
      %vm190 = vcmask 1043456
      %v192 = vsel %vm190, %v156, 0
      %194 = vmatpush.bf16.msra.mxu0 0
      %195 = vmatpush.bf16.msra.mxu0 0
      %196 = vmatpush.bf16.msra.mxu0 0
      %197 = vmatpush.bf16.msra.mxu0 0
      %198 = vmatpush.bf16.msra.mxu0 0
      %199 = vmatpush.bf16.msra.mxu0 0
      %200 = vmatpush.bf16.msra.mxu0 0
      %201 = vmatpush.bf16.msra.mxu0 %v192
      %202 = vmatmul.bf16.gmra.mxu0 %v179
      %v203 = vpop.f32.mrf.mxu0
      %v204 = vadd.f32 0.0, %v203
      %v205 = vpop.f32.mrf.mxu0
      %v206 = vadd.f32 0.0, %v205
      %207 = vmatmul.bf16.gmra.mxu0 %v182
      %v208 = vpop.f32.mrf.mxu0
      %v209 = vadd.f32 0.0, %v208
      %v210 = vpop.f32.mrf.mxu0
      %v211 = vadd.f32 0.0, %v210
      %212 = vmatmul.bf16.gmra.mxu0 %v185
      %v213 = vpop.f32.mrf.mxu0
      %v214 = vadd.f32 0.0, %v213
      %v215 = vpop.f32.mrf.mxu0
      %v216 = vadd.f32 0.0, %v215
      %217 = vmatmul.bf16.gmra.mxu0 %v188
      %v218 = vpop.f32.mrf.mxu0
      %v219 = vadd.f32 0.0, %v218
      %v220 = vpop.f32.mrf.mxu0
      %v221 = vadd.f32 0.0, %v220
      %222 = vdwg.mxu0
      %v223 = vpack.c.bf16 %v204, %v204
      %v224 = vpack.c.bf16 %v206, %v206
      %v225 = vpack.c.bf16 %v209, %v209
      %v226 = vpack.c.bf16 %v211, %v211
      %v227 = vpack.c.bf16 %v214, %v214
      %v228 = vpack.c.bf16 %v216, %v216
      %v229 = vpack.c.bf16 %v219, %v219
      %v230 = vpack.c.bf16 %v221, %v221
      %231 = vst [vmem:[%s145] sm:$0xf] %v223
      %232 = vst [vmem:[%s145 + $0x4] sm:$0xf] %v224
      %233 = vst [vmem:[%s145 + $0x8] sm:$0xf] %v225
      %234 = vst [vmem:[%s145 + $0xc] sm:$0xf] %v226
      %235 = vst [vmem:[%s145 + $0x10] sm:$0xf] %v227
      %236 = vst [vmem:[%s145 + $0x14] sm:$0xf] %v228
      %237 = vst [vmem:[%s145 + $0x18] sm:$0xf] %v229
      %238 = vst [vmem:[%s145 + $0x1c] sm:$0xf] %v230
      %s239 = smul.u32 8, %s13
      %p240 = scmp.lt.s32.totalorder %s239, 15
      %s241 = scalar_select %p240, %s239, 15
      %s242 = smul.addr %s241, 4
      %s243 = scalar_lea.vmem %s2, %s242
      // Predicated region
      $region29: #{_lambda_.25} parent=27 // pred_check
        %p244 = pneg %p78
      $region30: #{_lambda_.25} parent=27 // pred_check_branch
        %246 = sbr.rel (%p244) target = $region32
      $region31: #{_lambda_.25} parent=27 // pred_region
        %s247 = smul.u32 8, %s13
      $region32: #{_lambda_.25} parent=27 // pred_fallthru
        _
    $region28: #{_lambda_.25} parent=5 // pred_fallthru
      _
    %p248 = scmp.le.s32.totalorder 2, %s8
    // Predicated region
    $region33: #{_lambda_.25} parent=5 // pred_check
      %p249 = pneg %p248
    $region34: #{_lambda_.25} parent=5 // pred_check_branch
      %251 = sbr.rel (%p249) target = $region36
    $region35: #{_lambda_.25} parent=5 // pred_region
      %s252 = ssub.s32 %s8, 2
      // Predicated region
      $region37: #{_lambda_.25} parent=35 // pred_check
        %p253 = pneg %p84
      $region38: #{_lambda_.25} parent=35 // pred_check_branch
        %255 = sbr.rel (%p253) target = $region40
      $region39: #{_lambda_.25} parent=35 // pred_region
        %s256 = smul.u32 8, %s14
        %p257 = scmp.lt.s32.totalorder %s256, 15
        %s258 = scalar_select %p257, %s256, 15
        %s259 = smul.addr %s258, 4
        %s260 = scalar_lea.vmem %s2, %s259
      $region40: #{_lambda_.25} parent=35 // pred_fallthru
        _
    $region36: #{_lambda_.25} parent=5 // pred_fallthru
      _
  $region6: #{_lambda_.25} parent=0 // loop_footer
    %s12 = sadd.s32 1, %s8
  $region7: #{_lambda_.25} parent=0 // loop_footer_branch
    %7 = sbr.rel target = $region3
  $region8: #{_lambda_.25} parent=0 // loop_exit
    _

// kernel: _lambda_.22
$region0: #{_lambda_.22}
  #allocation0 [shape = 'u32[]', space=smem, size = 0x4, offset = 0x4, fixed_abs, tag = 'smem constant byte address 0x4 - core index']
  #allocation1 [shape = 'u32[72,128]{1,0:T(1,128)}', space=vmem, size = 0x9000, scoped, tag = 'internal scratch']
  %s0 = inlined_call_operand.vmem [shape: bf16[128,8], index: 0, kind: input, shape index: {}]
  %s1 = inlined_call_operand.vmem [shape: bf16[8,128], index: 1, kind: input, shape index: {}]
  %s2 = inlined_call_operand.vmem [shape: f32[1,8], index: 2, kind: input, shape index: {}]
  %s3 = inlined_call_operand.vmem [shape: f32[1,8], index: 3, kind: input, shape index: {}]
  %s4 = inlined_call_operand.vmem [shape: bf16[128,128], index: 4, kind: output, shape index: {}]
  %s5 = sld [smem:[#allocation0]]
  $region49: #{_lambda_.22} parent=0
    _
  %s7 = ssub.s32 1, %s5
  %s8 = scalar_select 0, %s7, %s5
  loop: start=0, step=1, limit=4
  $region2: #{_lambda_.22} parent=0 // loop_pre_header
    _
  $region3: #{_lambda_.22} parent=0 // loop_header
    %s10 = sphi 0, %s14
    %p11 = scmp.ge.s32.totalorder %s10, 4
    %s20 = sphi 0, %s22
    %s23 = sphi 0, %s20
    %s24 = sphi 0, %s23
    %s40 = sphi 0, %s24
    %s44 = sphi 0, %s44
    %s46 = sphi 0, %s44
    %s47 = sphi 0, %s46
    %s61 = sphi 0, %s47
    %s65 = sphi 0, %s65
    %s67 = sphi 0, %s65
    %s68 = sphi 0, %s67
    %s82 = sphi 0, %s68
    %s86 = sphi 0, %s86
    %s88 = sphi 0, %s86
    %s89 = sphi 0, %s88
    %s103 = sphi 0, %s89
    %s109 = sphi 0, %s111
    %s112 = sphi 0, %s109
    %s113 = sphi 0, %s112
    %s129 = sphi 0, %s113
  $region4: #{_lambda_.22} parent=0 // loop_header_branch
    %13 = sbr.rel (%p11) target = $region8
  $region5: #{_lambda_.22} parent=0 // loop_body
    %s15 = ssub.s32 %s10, 1
    %s16 = ssub.s32 %s10, 2
    %s17 = sadd.s32 %s10, 1
    %s18 = ssub.s32 %s10, %s17
    %p19 = scmp.eq.s32.totalorder %s18, 0
    %s21 = sadd.s32 %s20, 1
    %s22 = scalar_select %p19, %s20, %s21
    %p25 = pneg %p19
    %p26 = scmp.eq.s32.totalorder %s10, 1
    %p27 = por %p25, %p26
    %p28 = scmp.ne.s32.totalorder %s20, %s23
    %p29 = scmp.eq.s32.totalorder %s10, 0
    %p30 = por %p28, %p29
    %p31 = scmp.ne.s32.totalorder %s20, %s23
    %p32 = scmp.eq.s32.totalorder %s15, 1
    %p33 = por %p31, %p32
    %p34 = scmp.ne.s32.totalorder %s23, %s24
    %p35 = scmp.eq.s32.totalorder %s15, 0
    %p36 = por %p34, %p35
    %p37 = scmp.ne.s32.totalorder %s23, %s24
    %p38 = scmp.eq.s32.totalorder %s16, 1
    %p39 = por %p37, %p38
    %p41 = scmp.ne.s32.totalorder %s24, %s40
    %p42 = scmp.eq.s32.totalorder %s16, 0
    %p43 = por %p41, %p42
    %s45 = sadd.s32 %s44, 1
    %p48 = scmp.eq.s32.totalorder %s10, 1
    %p49 = scmp.ne.s32.totalorder %s44, %s46
    %p50 = scmp.eq.s32.totalorder %s10, 0
    %p51 = por %p49, %p50
    %p52 = scmp.ne.s32.totalorder %s44, %s46
    %p53 = scmp.eq.s32.totalorder %s15, 1
    %p54 = por %p52, %p53
    %p55 = scmp.ne.s32.totalorder %s46, %s47
    %p56 = scmp.eq.s32.totalorder %s15, 0
    %p57 = por %p55, %p56
    %p58 = scmp.ne.s32.totalorder %s46, %s47
    %p59 = scmp.eq.s32.totalorder %s16, 1
    %p60 = por %p58, %p59
    %p62 = scmp.ne.s32.totalorder %s47, %s61
    %p63 = scmp.eq.s32.totalorder %s16, 0
    %p64 = por %p62, %p63
    %s66 = sadd.s32 %s65, 1
    %p69 = scmp.eq.s32.totalorder %s10, 1
    %p70 = scmp.ne.s32.totalorder %s65, %s67
    %p71 = scmp.eq.s32.totalorder %s10, 0
    %p72 = por %p70, %p71
    %p73 = scmp.ne.s32.totalorder %s65, %s67
    %p74 = scmp.eq.s32.totalorder %s15, 1
    %p75 = por %p73, %p74
    %p76 = scmp.ne.s32.totalorder %s67, %s68
    %p77 = scmp.eq.s32.totalorder %s15, 0
    %p78 = por %p76, %p77
    %p79 = scmp.ne.s32.totalorder %s67, %s68
    %p80 = scmp.eq.s32.totalorder %s16, 1
    %p81 = por %p79, %p80
    %p83 = scmp.ne.s32.totalorder %s68, %s82
    %p84 = scmp.eq.s32.totalorder %s16, 0
    %p85 = por %p83, %p84
    %s87 = sadd.s32 %s86, 1
    %p90 = scmp.eq.s32.totalorder %s10, 1
    %p91 = scmp.ne.s32.totalorder %s86, %s88
    %p92 = scmp.eq.s32.totalorder %s10, 0
    %p93 = por %p91, %p92
    %p94 = scmp.ne.s32.totalorder %s86, %s88
    %p95 = scmp.eq.s32.totalorder %s15, 1
    %p96 = por %p94, %p95
    %p97 = scmp.ne.s32.totalorder %s88, %s89
    %p98 = scmp.eq.s32.totalorder %s15, 0
    %p99 = por %p97, %p98
    %p100 = scmp.ne.s32.totalorder %s88, %s89
    %p101 = scmp.eq.s32.totalorder %s16, 1
    %p102 = por %p100, %p101
    %p104 = scmp.ne.s32.totalorder %s89, %s103
    %p105 = scmp.eq.s32.totalorder %s16, 0
    %p106 = por %p104, %p105
    %s107 = ssub.s32 %s10, %s17
    %p108 = scmp.eq.s32.totalorder %s107, 0
    %s110 = sadd.s32 %s109, 1
    %s111 = scalar_select %p108, %s109, %s110
    %p114 = pneg %p108
    %p115 = scmp.eq.s32.totalorder %s10, 1
    %p116 = por %p114, %p115
    %p117 = scmp.ne.s32.totalorder %s109, %s112
    %p118 = scmp.eq.s32.totalorder %s10, 0
    %p119 = por %p117, %p118
    %p120 = scmp.ne.s32.totalorder %s109, %s112
    %p121 = scmp.eq.s32.totalorder %s15, 1
    %p122 = por %p120, %p121
    %p123 = scmp.ne.s32.totalorder %s112, %s113
    %p124 = scmp.eq.s32.totalorder %s15, 0
    %p125 = por %p123, %p124
    %p126 = scmp.ne.s32.totalorder %s112, %s113
    %p127 = scmp.eq.s32.totalorder %s16, 1
    %p128 = por %p126, %p127
    %p130 = scmp.ne.s32.totalorder %s113, %s129
    %p131 = scmp.eq.s32.totalorder %s16, 0
    %p132 = por %p130, %p131
    %p133 = scmp.le.s32.totalorder 1, %s10
    %p134 = scmp.lt.s32.totalorder %s10, 3
    %p135 = pnand %p133, %p134
    %p136 = pneg %p135
    // Predicated region
    $region9: #{_lambda_.22} parent=5 // pred_check
      _
    $region10: #{_lambda_.22} parent=5 // pred_check_branch
      %138 = sbr.rel (%p135) target = $region12
    $region11: #{_lambda_.22} parent=5 // pred_region
      %s139 = ssub.s32 %s10, 1
      // Predicated region
      $region13: #{_lambda_.22} parent=11 // pred_check
        %p140 = pneg %p57
      $region14: #{_lambda_.22} parent=11 // pred_check_branch
        %142 = sbr.rel (%p140) target = $region16
      $region15: #{_lambda_.22} parent=11 // pred_region
        _
      $region16: #{_lambda_.22} parent=11 // pred_fallthru
        _
      // Predicated region
      $region17: #{_lambda_.22} parent=11 // pred_check
        %p143 = pneg %p78
      $region18: #{_lambda_.22} parent=11 // pred_check_branch
        %145 = sbr.rel (%p143) target = $region20
      $region19: #{_lambda_.22} parent=11 // pred_region
        _
      $region20: #{_lambda_.22} parent=11 // pred_fallthru
        _
      // Predicated region
      $region21: #{_lambda_.22} parent=11 // pred_check
        %p146 = pneg %p99
      $region22: #{_lambda_.22} parent=11 // pred_check_branch
        %148 = sbr.rel (%p146) target = $region24
      $region23: #{_lambda_.22} parent=11 // pred_region
        _
      $region24: #{_lambda_.22} parent=11 // pred_fallthru
        _
    $region12: #{_lambda_.22} parent=5 // pred_fallthru
      _
    %p149 = scmp.lt.s32.totalorder %s10, 2
    // Predicated region
    $region25: #{_lambda_.22} parent=5 // pred_check
      %p150 = pneg %p149
    $region26: #{_lambda_.22} parent=5 // pred_check_branch
      %152 = sbr.rel (%p150) target = $region28
    $region27: #{_lambda_.22} parent=5 // pred_region
      // Predicated region
      $region29: #{_lambda_.22} parent=27 // pred_check
        %p153 = pneg %p30
      $region30: #{_lambda_.22} parent=27 // pred_check_branch
        %155 = sbr.rel (%p153) target = $region32
      $region31: #{_lambda_.22} parent=27 // pred_region
        %s156 = smul.u32 8, %s10
        %p157 = scmp.lt.s32.totalorder %s156, 15
        %s158 = scalar_select %p157, %s156, 15
        %s159 = smul.addr %s158, 4
        %s160 = scalar_lea.vmem %s0, %s159
        %s161 = smul.u32 8, %s10
      $region32: #{_lambda_.22} parent=27 // pred_fallthru
        _
    $region28: #{_lambda_.22} parent=5 // pred_fallthru
      _
    %p162 = scmp.le.s32.totalorder 1, %s10
    %p163 = scmp.lt.s32.totalorder %s10, 3
    %p164 = pnand %p162, %p163
    %p165 = pneg %p164
    // Predicated region
    $region33: #{_lambda_.22} parent=5 // pred_check
      _
    $region34: #{_lambda_.22} parent=5 // pred_check_branch
      %167 = sbr.rel (%p164) target = $region36
    $region35: #{_lambda_.22} parent=5 // pred_region
      %s168 = ssub.s32 %s10, 1
      %s169 = smul.u32 8, %s15
      %p170 = scmp.lt.s32.totalorder %s169, 15
      %s171 = scalar_select %p170, %s169, 15
      %s172 = smul.addr %s171, 4
      %s173 = scalar_lea.vmem %s0, %s172
      %p174 = pneg %p36
      %p175 = pneg %p33
      %p176 = pneg %p57
      %p177 = pneg %p54
      %p178 = pneg %p78
      %p179 = pneg %p75
      %p180 = pneg %p99
      %p181 = pneg %p96
      %p182 = pneg %p125
      %p183 = pneg %p122
      %s184 = smul.u32 8, %s15
      %p185 = scmp.lt.s32.totalorder %s184, 15
      %s186 = scalar_select %p185, %s184, 15
      %s187 = smul.addr %s186, 4
      %s188 = scalar_lea.vmem %s4, %s187
      %s189 = smul.u32 8, %s15
      %p190 = scmp.lt.s32.totalorder %s189, 15
      %s191 = scalar_select %p190, %s189, 15
      %s192 = smul.addr %s191, 4
      %s193 = scalar_lea.vmem %s0, %s192
      %s194 = smul.u32 8, %s15
      %s195 = smul.u32 8, %s15
      %p196 = scmp.lt.s32.totalorder %s195, 15
      %s197 = scalar_select %p196, %s195, 15
      %s198 = smul.addr %s197, 4
      %s199 = scalar_lea.vmem %s4, %s198
      %s200 = smul.u32 8, %s15
      %v202 = vld [vmem:[%s193] sm:$0xf]
      %v203 = vld [vmem:[%s193 + $0x4] sm:$0xf]
      %v204 = vld [vmem:[%s193 + $0x8] sm:$0xf]
      %v205 = vld [vmem:[%s193 + $0xc] sm:$0xf]
      %v206 = vld [vmem:[%s193 + $0x10] sm:$0xf]
      %v207 = vld [vmem:[%s193 + $0x14] sm:$0xf]
      %v208 = vld [vmem:[%s193 + $0x18] sm:$0xf]
      %v209 = vld [vmem:[%s193 + $0x1c] sm:$0xf]
      %v210 = vunpack.c.l.bf16 %v202
      %v211 = vunpack.c.l.bf16 %v203
      %v212 = vunpack.c.l.bf16 %v204
      %v213 = vunpack.c.l.bf16 %v205
      %v214 = vunpack.c.l.bf16 %v206
      %v215 = vunpack.c.l.bf16 %v207
      %v216 = vunpack.c.l.bf16 %v208
      %v217 = vunpack.c.l.bf16 %v209
      %v218 = vld [vmem:[%s2] sm:$0x1]
      %v220 = vperm.slane %v218, 0
      %v222 = vmul.f32 %v210, %v220
      %v223 = vmul.f32 %v211, %v220
      %v224 = vmul.f32 %v212, %v220
      %v225 = vmul.f32 %v213, %v220
      %v226 = vmul.f32 %v214, %v220
      %v227 = vmul.f32 %v215, %v220
      %v228 = vmul.f32 %v216, %v220
      %v229 = vmul.f32 %v217, %v220
      %v230 = vld [vmem:[%s3] sm:$0x1]
      %v232 = vperm.slane %v230, 0
      %v234 = vadd.f32 %v222, %v232
      %v235 = vadd.f32 %v223, %v232
      %v236 = vadd.f32 %v224, %v232
      %v237 = vadd.f32 %v225, %v232
      %v238 = vadd.f32 %v226, %v232
      %v239 = vadd.f32 %v227, %v232
      %v240 = vadd.f32 %v228, %v232
      %v241 = vadd.f32 %v229, %v232
      %v242 = vmax.f32 %v234, 0.0
      %v243 = vmax.f32 %v235, 0.0
      %v244 = vmax.f32 %v236, 0.0
      %v245 = vmax.f32 %v237, 0.0
      %v246 = vmax.f32 %v238, 0.0
      %v247 = vmax.f32 %v239, 0.0
      %v248 = vmax.f32 %v240, 0.0
      %v249 = vmax.f32 %v241, 0.0
      %v250 = vpack.c.bf16 %v243, %v242
      %v251 = vpack.c.bf16 %v245, %v244
      %v252 = vpack.c.bf16 %v247, %v246
      %v253 = vpack.c.bf16 %v249, %v248
      %v254 = vld [vmem:[%s1] sm:$0xf]
      %vm255 = vcmask 64512
      %v257 = vsel %vm255, %v250, 0
      %v260 = vsel %vm255, %v251, 0
      %v263 = vsel %vm255, %v252, 0
      %v266 = vsel %vm255, %v253, 0
      %vm268 = vcmask 1043456
      %v270 = vsel %vm268, %v254, 0
      %272 = vmatpush.bf16.msra.mxu0 0
      %273 = vmatpush.bf16.msra.mxu0 0
      %274 = vmatpush.bf16.msra.mxu0 0
      %275 = vmatpush.bf16.msra.mxu0 0
      %276 = vmatpush.bf16.msra.mxu0 0
      %277 = vmatpush.bf16.msra.mxu0 0
      %278 = vmatpush.bf16.msra.mxu0 0
      %279 = vmatpush.bf16.msra.mxu0 %v270
      %280 = vmatmul.bf16.gmra.mxu0 %v257
      %v281 = vpop.f32.mrf.mxu0
      %v282 = vadd.f32 0.0, %v281
      %v283 = vpop.f32.mrf.mxu0
      %v284 = vadd.f32 0.0, %v283
      %285 = vmatmul.bf16.gmra.mxu0 %v260
      %v286 = vpop.f32.mrf.mxu0
      %v287 = vadd.f32 0.0, %v286
      %v288 = vpop.f32.mrf.mxu0
      %v289 = vadd.f32 0.0, %v288
      %290 = vmatmul.bf16.gmra.mxu0 %v263
      %v291 = vpop.f32.mrf.mxu0
      %v292 = vadd.f32 0.0, %v291
      %v293 = vpop.f32.mrf.mxu0
      %v294 = vadd.f32 0.0, %v293
      %295 = vmatmul.bf16.gmra.mxu0 %v266
      %v296 = vpop.f32.mrf.mxu0
      %v297 = vadd.f32 0.0, %v296
      %v298 = vpop.f32.mrf.mxu0
      %v299 = vadd.f32 0.0, %v298
      %300 = vdwg.mxu0
      %v301 = vpack.c.bf16 %v282, %v282
      %v302 = vpack.c.bf16 %v284, %v284
      %v303 = vpack.c.bf16 %v287, %v287
      %v304 = vpack.c.bf16 %v289, %v289
      %v305 = vpack.c.bf16 %v292, %v292
      %v306 = vpack.c.bf16 %v294, %v294
      %v307 = vpack.c.bf16 %v297, %v297
      %v308 = vpack.c.bf16 %v299, %v299
      %309 = vst [vmem:[%s199] sm:$0xf] %v301
      %310 = vst [vmem:[%s199 + $0x4] sm:$0xf] %v302
      %311 = vst [vmem:[%s199 + $0x8] sm:$0xf] %v303
      %312 = vst [vmem:[%s199 + $0xc] sm:$0xf] %v304
      %313 = vst [vmem:[%s199 + $0x10] sm:$0xf] %v305
      %314 = vst [vmem:[%s199 + $0x14] sm:$0xf] %v306
      %315 = vst [vmem:[%s199 + $0x18] sm:$0xf] %v307
      %316 = vst [vmem:[%s199 + $0x1c] sm:$0xf] %v308
      %s317 = smul.u32 8, %s15
      %p318 = scmp.lt.s32.totalorder %s317, 15
      %s319 = scalar_select %p318, %s317, 15
      %s320 = smul.addr %s319, 4
      %s321 = scalar_lea.vmem %s4, %s320
      // Predicated region
      $region37: #{_lambda_.22} parent=35 // pred_check
        %p322 = pneg %p122
      $region38: #{_lambda_.22} parent=35 // pred_check_branch
        %324 = sbr.rel (%p322) target = $region40
      $region39: #{_lambda_.22} parent=35 // pred_region
        %s325 = smul.u32 8, %s15
      $region40: #{_lambda_.22} parent=35 // pred_fallthru
        _
    $region36: #{_lambda_.22} parent=5 // pred_fallthru
      _
    %p326 = scmp.le.s32.totalorder 2, %s10
    // Predicated region
    $region41: #{_lambda_.22} parent=5 // pred_check
      %p327 = pneg %p326
    $region42: #{_lambda_.22} parent=5 // pred_check_branch
      %329 = sbr.rel (%p327) target = $region44
    $region43: #{_lambda_.22} parent=5 // pred_region
      %s330 = ssub.s32 %s10, 2
      // Predicated region
      $region45: #{_lambda_.22} parent=43 // pred_check
        %p331 = pneg %p128
      $region46: #{_lambda_.22} parent=43 // pred_check_branch
        %333 = sbr.rel (%p331) target = $region48
      $region47: #{_lambda_.22} parent=43 // pred_region
        %s334 = smul.u32 8, %s16
        %p335 = scmp.lt.s32.totalorder %s334, 15
        %s336 = scalar_select %p335, %s334, 15
        %s337 = smul.addr %s336, 4
        %s338 = scalar_lea.vmem %s4, %s337
      $region48: #{_lambda_.22} parent=43 // pred_fallthru
        _
    $region44: #{_lambda_.22} parent=5 // pred_fallthru
      _
  $region6: #{_lambda_.22} parent=0 // loop_footer
    %s14 = sadd.s32 1, %s10
  $region7: #{_lambda_.22} parent=0 // loop_footer_branch
    %9 = sbr.rel target = $region3
  $region8: #{_lambda_.22} parent=0 // loop_exit
    _

// kernel: _lambda_.27
$region0: #{_lambda_.27}
  #allocation0 [shape = 'u32[]', space=smem, size = 0x4, offset = 0x4, fixed_abs, tag = 'smem constant byte address 0x4 - core index']
  #allocation1 [shape = 'u32[72,128]{1,0:T(1,128)}', space=vmem, size = 0x9000, scoped, tag = 'internal scratch']
  %s0 = inlined_call_operand.vmem [shape: bf16[128,76], index: 0, kind: input, shape index: {}]
  %s1 = inlined_call_operand.vmem [shape: bf16[76,128], index: 1, kind: input, shape index: {}]
  %s2 = inlined_call_operand.vmem [shape: f32[1,76], index: 2, kind: input, shape index: {}]
  %s3 = inlined_call_operand.vmem [shape: f32[1,76], index: 3, kind: input, shape index: {}]
  %s4 = inlined_call_operand.vmem [shape: f32[1,128], index: 4, kind: input, shape index: {}]
  %s5 = inlined_call_operand.vmem [shape: f32[1,128], index: 5, kind: input, shape index: {}]
  %s6 = inlined_call_operand.vmem [shape: bf16[128,128], index: 6, kind: output, shape index: {}]
  %s7 = sld [smem:[#allocation0]]
  $region57: #{_lambda_.27} parent=0
    _
  %s9 = ssub.s32 1, %s7
  %s10 = scalar_select 0, %s9, %s7
  loop: start=0, step=1, limit=4
  $region2: #{_lambda_.27} parent=0 // loop_pre_header
    _
  $region3: #{_lambda_.27} parent=0 // loop_header
    %s12 = sphi 0, %s16
    %p13 = scmp.ge.s32.totalorder %s12, 4
    %s22 = sphi 0, %s24
    %s25 = sphi 0, %s22
    %s26 = sphi 0, %s25
    %s42 = sphi 0, %s26
    %s46 = sphi 0, %s46
    %s48 = sphi 0, %s46
    %s49 = sphi 0, %s48
    %s63 = sphi 0, %s49
    %s67 = sphi 0, %s67
    %s69 = sphi 0, %s67
    %s70 = sphi 0, %s69
    %s84 = sphi 0, %s70
    %s88 = sphi 0, %s88
    %s90 = sphi 0, %s88
    %s91 = sphi 0, %s90
    %s105 = sphi 0, %s91
    %s109 = sphi 0, %s109
    %s111 = sphi 0, %s109
    %s112 = sphi 0, %s111
    %s126 = sphi 0, %s112
    %s130 = sphi 0, %s130
    %s132 = sphi 0, %s130
    %s133 = sphi 0, %s132
    %s147 = sphi 0, %s133
    %s153 = sphi 0, %s155
    %s156 = sphi 0, %s153
    %s157 = sphi 0, %s156
    %s173 = sphi 0, %s157
  $region4: #{_lambda_.27} parent=0 // loop_header_branch
    %15 = sbr.rel (%p13) target = $region8
  $region5: #{_lambda_.27} parent=0 // loop_body
    %s17 = ssub.s32 %s12, 1
    %s18 = ssub.s32 %s12, 2
    %s19 = sadd.s32 %s12, 1
    %s20 = ssub.s32 %s12, %s19
    %p21 = scmp.eq.s32.totalorder %s20, 0
    %s23 = sadd.s32 %s22, 1
    %s24 = scalar_select %p21, %s22, %s23
    %p27 = pneg %p21
    %p28 = scmp.eq.s32.totalorder %s12, 1
    %p29 = por %p27, %p28
    %p30 = scmp.ne.s32.totalorder %s22, %s25
    %p31 = scmp.eq.s32.totalorder %s12, 0
    %p32 = por %p30, %p31
    %p33 = scmp.ne.s32.totalorder %s22, %s25
    %p34 = scmp.eq.s32.totalorder %s17, 1
    %p35 = por %p33, %p34
    %p36 = scmp.ne.s32.totalorder %s25, %s26
    %p37 = scmp.eq.s32.totalorder %s17, 0
    %p38 = por %p36, %p37
    %p39 = scmp.ne.s32.totalorder %s25, %s26
    %p40 = scmp.eq.s32.totalorder %s18, 1
    %p41 = por %p39, %p40
    %p43 = scmp.ne.s32.totalorder %s26, %s42
    %p44 = scmp.eq.s32.totalorder %s18, 0
    %p45 = por %p43, %p44
    %s47 = sadd.s32 %s46, 1
    %p50 = scmp.eq.s32.totalorder %s12, 1
    %p51 = scmp.ne.s32.totalorder %s46, %s48
    %p52 = scmp.eq.s32.totalorder %s12, 0
    %p53 = por %p51, %p52
    %p54 = scmp.ne.s32.totalorder %s46, %s48
    %p55 = scmp.eq.s32.totalorder %s17, 1
    %p56 = por %p54, %p55
    %p57 = scmp.ne.s32.totalorder %s48, %s49
    %p58 = scmp.eq.s32.totalorder %s17, 0
    %p59 = por %p57, %p58
    %p60 = scmp.ne.s32.totalorder %s48, %s49
    %p61 = scmp.eq.s32.totalorder %s18, 1
    %p62 = por %p60, %p61
    %p64 = scmp.ne.s32.totalorder %s49, %s63
    %p65 = scmp.eq.s32.totalorder %s18, 0
    %p66 = por %p64, %p65
    %s68 = sadd.s32 %s67, 1
    %p71 = scmp.eq.s32.totalorder %s12, 1
    %p72 = scmp.ne.s32.totalorder %s67, %s69
    %p73 = scmp.eq.s32.totalorder %s12, 0
    %p74 = por %p72, %p73
    %p75 = scmp.ne.s32.totalorder %s67, %s69
    %p76 = scmp.eq.s32.totalorder %s17, 1
    %p77 = por %p75, %p76
    %p78 = scmp.ne.s32.totalorder %s69, %s70
    %p79 = scmp.eq.s32.totalorder %s17, 0
    %p80 = por %p78, %p79
    %p81 = scmp.ne.s32.totalorder %s69, %s70
    %p82 = scmp.eq.s32.totalorder %s18, 1
    %p83 = por %p81, %p82
    %p85 = scmp.ne.s32.totalorder %s70, %s84
    %p86 = scmp.eq.s32.totalorder %s18, 0
    %p87 = por %p85, %p86
    %s89 = sadd.s32 %s88, 1
    %p92 = scmp.eq.s32.totalorder %s12, 1
    %p93 = scmp.ne.s32.totalorder %s88, %s90
    %p94 = scmp.eq.s32.totalorder %s12, 0
    %p95 = por %p93, %p94
    %p96 = scmp.ne.s32.totalorder %s88, %s90
    %p97 = scmp.eq.s32.totalorder %s17, 1
    %p98 = por %p96, %p97
    %p99 = scmp.ne.s32.totalorder %s90, %s91
    %p100 = scmp.eq.s32.totalorder %s17, 0
    %p101 = por %p99, %p100
    %p102 = scmp.ne.s32.totalorder %s90, %s91
    %p103 = scmp.eq.s32.totalorder %s18, 1
    %p104 = por %p102, %p103
    %p106 = scmp.ne.s32.totalorder %s91, %s105
    %p107 = scmp.eq.s32.totalorder %s18, 0
    %p108 = por %p106, %p107
    %s110 = sadd.s32 %s109, 1
    %p113 = scmp.eq.s32.totalorder %s12, 1
    %p114 = scmp.ne.s32.totalorder %s109, %s111
    %p115 = scmp.eq.s32.totalorder %s12, 0
    %p116 = por %p114, %p115
    %p117 = scmp.ne.s32.totalorder %s109, %s111
    %p118 = scmp.eq.s32.totalorder %s17, 1
    %p119 = por %p117, %p118
    %p120 = scmp.ne.s32.totalorder %s111, %s112
    %p121 = scmp.eq.s32.totalorder %s17, 0
    %p122 = por %p120, %p121
    %p123 = scmp.ne.s32.totalorder %s111, %s112
    %p124 = scmp.eq.s32.totalorder %s18, 1
    %p125 = por %p123, %p124
    %p127 = scmp.ne.s32.totalorder %s112, %s126
    %p128 = scmp.eq.s32.totalorder %s18, 0
    %p129 = por %p127, %p128
    %s131 = sadd.s32 %s130, 1
    %p134 = scmp.eq.s32.totalorder %s12, 1
    %p135 = scmp.ne.s32.totalorder %s130, %s132
    %p136 = scmp.eq.s32.totalorder %s12, 0
    %p137 = por %p135, %p136
    %p138 = scmp.ne.s32.totalorder %s130, %s132
    %p139 = scmp.eq.s32.totalorder %s17, 1
    %p140 = por %p138, %p139
    %p141 = scmp.ne.s32.totalorder %s132, %s133
    %p142 = scmp.eq.s32.totalorder %s17, 0
    %p143 = por %p141, %p142
    %p144 = scmp.ne.s32.totalorder %s132, %s133
    %p145 = scmp.eq.s32.totalorder %s18, 1
    %p146 = por %p144, %p145
    %p148 = scmp.ne.s32.totalorder %s133, %s147
    %p149 = scmp.eq.s32.totalorder %s18, 0
    %p150 = por %p148, %p149
    %s151 = ssub.s32 %s12, %s19
    %p152 = scmp.eq.s32.totalorder %s151, 0
    %s154 = sadd.s32 %s153, 1
    %s155 = scalar_select %p152, %s153, %s154
    %p158 = pneg %p152
    %p159 = scmp.eq.s32.totalorder %s12, 1
    %p160 = por %p158, %p159
    %p161 = scmp.ne.s32.totalorder %s153, %s156
    %p162 = scmp.eq.s32.totalorder %s12, 0
    %p163 = por %p161, %p162
    %p164 = scmp.ne.s32.totalorder %s153, %s156
    %p165 = scmp.eq.s32.totalorder %s17, 1
    %p166 = por %p164, %p165
    %p167 = scmp.ne.s32.totalorder %s156, %s157
    %p168 = scmp.eq.s32.totalorder %s17, 0
    %p169 = por %p167, %p168
    %p170 = scmp.ne.s32.totalorder %s156, %s157
    %p171 = scmp.eq.s32.totalorder %s18, 1
    %p172 = por %p170, %p171
    %p174 = scmp.ne.s32.totalorder %s157, %s173
    %p175 = scmp.eq.s32.totalorder %s18, 0
    %p176 = por %p174, %p175
    %p177 = scmp.le.s32.totalorder 1, %s12
    %p178 = scmp.lt.s32.totalorder %s12, 3
    %p179 = pnand %p177, %p178
    %p180 = pneg %p179
    // Predicated region
    $region9: #{_lambda_.27} parent=5 // pred_check
      _
    $region10: #{_lambda_.27} parent=5 // pred_check_branch
      %182 = sbr.rel (%p179) target = $region12
    $region11: #{_lambda_.27} parent=5 // pred_region
      %s183 = ssub.s32 %s12, 1
      // Predicated region
      $region13: #{_lambda_.27} parent=11 // pred_check
        %p184 = pneg %p59
      $region14: #{_lambda_.27} parent=11 // pred_check_branch
        %186 = sbr.rel (%p184) target = $region16
      $region15: #{_lambda_.27} parent=11 // pred_region
        _
      $region16: #{_lambda_.27} parent=11 // pred_fallthru
        _
      // Predicated region
      $region17: #{_lambda_.27} parent=11 // pred_check
        %p187 = pneg %p80
      $region18: #{_lambda_.27} parent=11 // pred_check_branch
        %189 = sbr.rel (%p187) target = $region20
      $region19: #{_lambda_.27} parent=11 // pred_region
        _
      $region20: #{_lambda_.27} parent=11 // pred_fallthru
        _
      // Predicated region
      $region21: #{_lambda_.27} parent=11 // pred_check
        %p190 = pneg %p101
      $region22: #{_lambda_.27} parent=11 // pred_check_branch
        %192 = sbr.rel (%p190) target = $region24
      $region23: #{_lambda_.27} parent=11 // pred_region
        _
      $region24: #{_lambda_.27} parent=11 // pred_fallthru
        _
      // Predicated region
      $region25: #{_lambda_.27} parent=11 // pred_check
        %p193 = pneg %p122
      $region26: #{_lambda_.27} parent=11 // pred_check_branch
        %195 = sbr.rel (%p193) target = $region28
      $region27: #{_lambda_.27} parent=11 // pred_region
        _
      $region28: #{_lambda_.27} parent=11 // pred_fallthru
        _
      // Predicated region
      $region29: #{_lambda_.27} parent=11 // pred_check
        %p196 = pneg %p143
      $region30: #{_lambda_.27} parent=11 // pred_check_branch
        %198 = sbr.rel (%p196) target = $region32
      $region31: #{_lambda_.27} parent=11 // pred_region
        _
      $region32: #{_lambda_.27} parent=11 // pred_fallthru
        _
    $region12: #{_lambda_.27} parent=5 // pred_fallthru
      _
    %p199 = scmp.lt.s32.totalorder %s12, 2
    // Predicated region
    $region33: #{_lambda_.27} parent=5 // pred_check
      %p200 = pneg %p199
    $region34: #{_lambda_.27} parent=5 // pred_check_branch
      %202 = sbr.rel (%p200) target = $region36
    $region35: #{_lambda_.27} parent=5 // pred_region
      // Predicated region
      $region37: #{_lambda_.27} parent=35 // pred_check
        %p203 = pneg %p32
      $region38: #{_lambda_.27} parent=35 // pred_check_branch
        %205 = sbr.rel (%p203) target = $region40
      $region39: #{_lambda_.27} parent=35 // pred_region
        %s206 = smul.u32 8, %s12
        %p207 = scmp.lt.s32.totalorder %s206, 15
        %s208 = scalar_select %p207, %s206, 15
        %s209 = smul.addr %s208, 4
        %s210 = scalar_lea.vmem %s0, %s209
        %s211 = smul.u32 8, %s12
      $region40: #{_lambda_.27} parent=35 // pred_fallthru
        _
    $region36: #{_lambda_.27} parent=5 // pred_fallthru
      _
    %p212 = scmp.le.s32.totalorder 1, %s12
    %p213 = scmp.lt.s32.totalorder %s12, 3
    %p214 = pnand %p212, %p213
    %p215 = pneg %p214
    // Predicated region
    $region41: #{_lambda_.27} parent=5 // pred_check
      _
    $region42: #{_lambda_.27} parent=5 // pred_check_branch
      %217 = sbr.rel (%p214) target = $region44
    $region43: #{_lambda_.27} parent=5 // pred_region
      %s218 = ssub.s32 %s12, 1
      %s219 = smul.u32 8, %s17
      %p220 = scmp.lt.s32.totalorder %s219, 15
      %s221 = scalar_select %p220, %s219, 15
      %s222 = smul.addr %s221, 4
      %s223 = scalar_lea.vmem %s0, %s222
      %p224 = pneg %p38
      %p225 = pneg %p35
      %p226 = pneg %p59
      %p227 = pneg %p56
      %p228 = pneg %p80
      %p229 = pneg %p77
      %p230 = pneg %p101
      %p231 = pneg %p98
      %p232 = pneg %p122
      %p233 = pneg %p119
      %p234 = pneg %p143
      %p235 = pneg %p140
      %p236 = pneg %p169
      %p237 = pneg %p166
      %s238 = smul.u32 8, %s17
      %p239 = scmp.lt.s32.totalorder %s238, 15
      %s240 = scalar_select %p239, %s238, 15
      %s241 = smul.addr %s240, 4
      %s242 = scalar_lea.vmem %s6, %s241
      %s243 = smul.u32 8, %s17
      %p244 = scmp.lt.s32.totalorder %s243, 15
      %s245 = scalar_select %p244, %s243, 15
      %s246 = smul.addr %s245, 4
      %s247 = scalar_lea.vmem %s0, %s246
      %s248 = smul.u32 8, %s17
      %s249 = smul.u32 8, %s17
      %p250 = scmp.lt.s32.totalorder %s249, 15
      %s251 = scalar_select %p250, %s249, 15
      %s252 = smul.addr %s251, 4
      %s253 = scalar_lea.vmem %s6, %s252
      %s254 = smul.u32 8, %s17
      %v256 = vld [vmem:[%s247] sm:$0xf]
      %v257 = vld [vmem:[%s247 + $0x4] sm:$0xf]
      %v258 = vld [vmem:[%s247 + $0x8] sm:$0xf]
      %v259 = vld [vmem:[%s247 + $0xc] sm:$0xf]
      %v260 = vld [vmem:[%s247 + $0x10] sm:$0xf]
      %v261 = vld [vmem:[%s247 + $0x14] sm:$0xf]
      %v262 = vld [vmem:[%s247 + $0x18] sm:$0xf]
      %v263 = vld [vmem:[%s247 + $0x1c] sm:$0xf]
      %v264 = vunpack.c.l.bf16 %v256
      %v265 = vunpack.c.l.bf16 %v257
      %v266 = vunpack.c.l.bf16 %v258
      %v267 = vunpack.c.l.bf16 %v259
      %v268 = vunpack.c.l.bf16 %v260
      %v269 = vunpack.c.l.bf16 %v261
      %v270 = vunpack.c.l.bf16 %v262
      %v271 = vunpack.c.l.bf16 %v263
      %v272 = vld [vmem:[%s2] sm:$0x1]
      %v274 = vperm.slane %v272, 0
      %v276 = vmul.f32 %v264, %v274
      %v277 = vmul.f32 %v265, %v274
      %v278 = vmul.f32 %v266, %v274
      %v279 = vmul.f32 %v267, %v274
      %v280 = vmul.f32 %v268, %v274
      %v281 = vmul.f32 %v269, %v274
      %v282 = vmul.f32 %v270, %v274
      %v283 = vmul.f32 %v271, %v274
      %v284 = vld [vmem:[%s3] sm:$0x1]
      %v286 = vperm.slane %v284, 0
      %v288 = vadd.f32 %v276, %v286
      %v289 = vadd.f32 %v277, %v286
      %v290 = vadd.f32 %v278, %v286
      %v291 = vadd.f32 %v279, %v286
      %v292 = vadd.f32 %v280, %v286
      %v293 = vadd.f32 %v281, %v286
      %v294 = vadd.f32 %v282, %v286
      %v295 = vadd.f32 %v283, %v286
      %v296 = vmax.f32 %v288, 0.0
      %v297 = vmax.f32 %v289, 0.0
      %v298 = vmax.f32 %v290, 0.0
      %v299 = vmax.f32 %v291, 0.0
      %v300 = vmax.f32 %v292, 0.0
      %v301 = vmax.f32 %v293, 0.0
      %v302 = vmax.f32 %v294, 0.0
      %v303 = vmax.f32 %v295, 0.0
      %v304 = vpack.c.bf16 %v297, %v296
      %v305 = vpack.c.bf16 %v299, %v298
      %v306 = vpack.c.bf16 %v301, %v300
      %v307 = vpack.c.bf16 %v303, %v302
      %v308 = vld [vmem:[%s1] sm:$0xf]
      %v309 = vld [vmem:[%s1 + $0x4] sm:$0xf]
      %v310 = vld [vmem:[%s1 + $0x8] sm:$0xf]
      %v311 = vld [vmem:[%s1 + $0xc] sm:$0xf]
      %v312 = vld [vmem:[%s1 + $0x10] sm:$0xf]
      %v313 = vld [vmem:[%s1 + $0x14] sm:$0xf]
      %v314 = vld [vmem:[%s1 + $0x18] sm:$0xf]
      %v315 = vld [vmem:[%s1 + $0x1c] sm:$0xf]
      %v316 = vld [vmem:[%s1 + $0x20] sm:$0xf]
      %v317 = vld [vmem:[%s1 + $0x24] sm:$0x3]
      %v328 = vunpack.c.l.b16 %v308
      %v329 = vunpack.c.l.b16 %v309
      %v330 = vunpack.c.l.b16 %v310
      %v331 = vunpack.c.l.b16 %v311
      %v332 = vunpack.c.l.b16 %v312
      %v333 = vunpack.c.l.b16 %v313
      %v334 = vunpack.c.l.b16 %v314
      %v335 = vunpack.c.l.b16 %v315
      %v336 = vunpack.c.l.b16 %v316
      %v337 = vunpack.c.l.b16 %v317
      %v338 = vpack.c.b16 %v329, %v328
      %v339 = vpack.c.b16 %v331, %v330
      %v340 = vpack.c.b16 %v333, %v332
      %v341 = vpack.c.b16 %v335, %v334
      %v342 = vpack.c.b16 %v337, %v336
      %vm347 = vcmask 621568
      %v349 = vsel %vm347, %v304, 0
      %v352 = vsel %vm347, %v305, 0
      %v355 = vsel %vm347, %v306, 0
      %v358 = vsel %vm347, %v307, 0
      %vm360 = vcmask 1045504
      %v362 = vsel %vm360, %v342, 0
      %364 = vmatpush.bf16.msra.mxu0 0
      %365 = vmatpush.bf16.msra.mxu0 0
      %366 = vmatpush.bf16.msra.mxu0 0
      %367 = vmatpush.bf16.msra.mxu0 %v362
      %368 = vmatpush.bf16.msra.mxu0 %v341
      %369 = vmatpush.bf16.msra.mxu0 %v340
      %370 = vmatpush.bf16.msra.mxu0 %v339
      %371 = vmatpush.bf16.msra.mxu0 %v338
      %372 = vmatmul.bf16.gmra.mxu0 %v349
      %v373 = vpop.f32.mrf.mxu0
      %v374 = vadd.f32 0.0, %v373
      %v375 = vpop.f32.mrf.mxu0
      %v376 = vadd.f32 0.0, %v375
      %377 = vmatmul.bf16.gmra.mxu0 %v352
      %v378 = vpop.f32.mrf.mxu0
      %v379 = vadd.f32 0.0, %v378
      %v380 = vpop.f32.mrf.mxu0
      %v381 = vadd.f32 0.0, %v380
      %382 = vmatmul.bf16.gmra.mxu0 %v355
      %v383 = vpop.f32.mrf.mxu0
      %v384 = vadd.f32 0.0, %v383
      %v385 = vpop.f32.mrf.mxu0
      %v386 = vadd.f32 0.0, %v385
      %387 = vmatmul.bf16.gmra.mxu0 %v358
      %v388 = vpop.f32.mrf.mxu0
      %v389 = vadd.f32 0.0, %v388
      %v390 = vpop.f32.mrf.mxu0
      %v391 = vadd.f32 0.0, %v390
      %392 = vdwg.mxu0
      %v393 = vld [vmem:[%s4] sm:$0x1]
      %v395 = vperm.slane %v393, 0
      %v397 = vmul.f32 %v374, %v395
      %v398 = vmul.f32 %v376, %v395
      %v399 = vmul.f32 %v379, %v395
      %v400 = vmul.f32 %v381, %v395
      %v401 = vmul.f32 %v384, %v395
      %v402 = vmul.f32 %v386, %v395
      %v403 = vmul.f32 %v389, %v395
      %v404 = vmul.f32 %v391, %v395
      %v405 = vld [vmem:[%s5] sm:$0x1]
      %v407 = vperm.slane %v405, 0
      %v409 = vadd.f32 %v397, %v407
      %v410 = vadd.f32 %v398, %v407
      %v411 = vadd.f32 %v399, %v407
      %v412 = vadd.f32 %v400, %v407
      %v413 = vadd.f32 %v401, %v407
      %v414 = vadd.f32 %v402, %v407
      %v415 = vadd.f32 %v403, %v407
      %v416 = vadd.f32 %v404, %v407
      %v417 = vmax.f32 %v409, 0.0
      %v418 = vmax.f32 %v410, 0.0
      %v419 = vmax.f32 %v411, 0.0
      %v420 = vmax.f32 %v412, 0.0
      %v421 = vmax.f32 %v413, 0.0
      %v422 = vmax.f32 %v414, 0.0
      %v423 = vmax.f32 %v415, 0.0
      %v424 = vmax.f32 %v416, 0.0
      %v425 = vpack.c.bf16 %v417, %v417
      %v426 = vpack.c.bf16 %v418, %v418
      %v427 = vpack.c.bf16 %v419, %v419
      %v428 = vpack.c.bf16 %v420, %v420
      %v429 = vpack.c.bf16 %v421, %v421
      %v430 = vpack.c.bf16 %v422, %v422
      %v431 = vpack.c.bf16 %v423, %v423
      %v432 = vpack.c.bf16 %v424, %v424
      %433 = vst [vmem:[%s253] sm:$0xf] %v425
      %434 = vst [vmem:[%s253 + $0x4] sm:$0xf] %v426
      %435 = vst [vmem:[%s253 + $0x8] sm:$0xf] %v427
      %436 = vst [vmem:[%s253 + $0xc] sm:$0xf] %v428
      %437 = vst [vmem:[%s253 + $0x10] sm:$0xf] %v429
      %438 = vst [vmem:[%s253 + $0x14] sm:$0xf] %v430
      %439 = vst [vmem:[%s253 + $0x18] sm:$0xf] %v431
      %440 = vst [vmem:[%s253 + $0x1c] sm:$0xf] %v432
      %s441 = smul.u32 8, %s17
      %p442 = scmp.lt.s32.totalorder %s441, 15
      %s443 = scalar_select %p442, %s441, 15
      %s444 = smul.addr %s443, 4
      %s445 = scalar_lea.vmem %s6, %s444
      // Predicated region
      $region45: #{_lambda_.27} parent=43 // pred_check
        %p446 = pneg %p166
      $region46: #{_lambda_.27} parent=43 // pred_check_branch
        %448 = sbr.rel (%p446) target = $region48
      $region47: #{_lambda_.27} parent=43 // pred_region
        %s449 = smul.u32 8, %s17
      $region48: #{_lambda_.27} parent=43 // pred_fallthru
        _
    $region44: #{_lambda_.27} parent=5 // pred_fallthru
      _
    %p450 = scmp.le.s32.totalorder 2, %s12
    // Predicated region
    $region49: #{_lambda_.27} parent=5 // pred_check
      %p451 = pneg %p450
    $region50: #{_lambda_.27} parent=5 // pred_check_branch
      %453 = sbr.rel (%p451) target = $region52
    $region51: #{_lambda_.27} parent=5 // pred_region
      %s454 = ssub.s32 %s12, 2
      // Predicated region
      $region53: #{_lambda_.27} parent=51 // pred_check
        %p455 = pneg %p172
      $region54: #{_lambda_.27} parent=51 // pred_check_branch
        %457 = sbr.rel (%p455) target = $region56
      $region55: #{_lambda_.27} parent=51 // pred_region
        %s458 = smul.u32 8, %s18
        %p459 = scmp.lt.s32.totalorder %s458, 15
        %s460 = scalar_select %p459, %s458, 15
        %s461 = smul.addr %s460, 4
        %s462 = scalar_lea.vmem %s6, %s461
      $region56: #{_lambda_.27} parent=51 // pred_fallthru
        _
    $region52: #{_lambda_.27} parent=5 // pred_fallthru
      _
  $region6: #{_lambda_.27} parent=0 // loop_footer
    %s16 = sadd.s32 1, %s12
  $region7: #{_lambda_.27} parent=0 // loop_footer_branch
    %11 = sbr.rel target = $region3
  $region8: #{_lambda_.27} parent=0 // loop_exit
    _

// kernel: _lambda_.29
$region0: #{_lambda_.29}
  #allocation0 [shape = 'u32[]', space=smem, size = 0x4, offset = 0x4, fixed_abs, tag = 'smem constant byte address 0x4 - core index']
  #allocation1 [shape = 'u32[72,128]{1,0:T(1,128)}', space=vmem, size = 0x9000, scoped, tag = 'internal scratch']
  %s0 = inlined_call_operand.vmem [shape: bf16[32,16], index: 0, kind: input, shape index: {}]
  %s1 = inlined_call_operand.vmem [shape: bf16[16,256], index: 1, kind: input, shape index: {}]
  %s2 = inlined_call_operand.vmem [shape: bf16[32,256], index: 2, kind: output, shape index: {}]
  %s3 = sld [smem:[#allocation0]]
  $region41: #{_lambda_.29} parent=0
    _
  %s5 = ssub.s32 1, %s3
  %s6 = scalar_select 0, %s5, %s3
  loop: start=0, step=1, limit=4
  $region2: #{_lambda_.29} parent=0 // loop_pre_header
    _
  $region3: #{_lambda_.29} parent=0 // loop_header
    %s8 = sphi 0, %s12
    %p9 = scmp.ge.s32.totalorder %s8, 4
    %s18 = sphi 0, %s20
    %s21 = sphi 0, %s18
    %s22 = sphi 0, %s21
    %s38 = sphi 0, %s22
    %s42 = sphi 0, %s42
    %s44 = sphi 0, %s42
    %s45 = sphi 0, %s44
    %s59 = sphi 0, %s45
    %s65 = sphi 0, %s67
    %s68 = sphi 0, %s65
    %s69 = sphi 0, %s68
    %s85 = sphi 0, %s69
  $region4: #{_lambda_.29} parent=0 // loop_header_branch
    %11 = sbr.rel (%p9) target = $region8
  $region5: #{_lambda_.29} parent=0 // loop_body
    %s13 = ssub.s32 %s8, 1
    %s14 = ssub.s32 %s8, 2
    %s15 = sadd.s32 %s8, 1
    %s16 = ssub.s32 %s8, %s15
    %p17 = scmp.eq.s32.totalorder %s16, 0
    %s19 = sadd.s32 %s18, 1
    %s20 = scalar_select %p17, %s18, %s19
    %p23 = pneg %p17
    %p24 = scmp.eq.s32.totalorder %s8, 1
    %p25 = por %p23, %p24
    %p26 = scmp.ne.s32.totalorder %s18, %s21
    %p27 = scmp.eq.s32.totalorder %s8, 0
    %p28 = por %p26, %p27
    %p29 = scmp.ne.s32.totalorder %s18, %s21
    %p30 = scmp.eq.s32.totalorder %s13, 1
    %p31 = por %p29, %p30
    %p32 = scmp.ne.s32.totalorder %s21, %s22
    %p33 = scmp.eq.s32.totalorder %s13, 0
    %p34 = por %p32, %p33
    %p35 = scmp.ne.s32.totalorder %s21, %s22
    %p36 = scmp.eq.s32.totalorder %s14, 1
    %p37 = por %p35, %p36
    %p39 = scmp.ne.s32.totalorder %s22, %s38
    %p40 = scmp.eq.s32.totalorder %s14, 0
    %p41 = por %p39, %p40
    %s43 = sadd.s32 %s42, 1
    %p46 = scmp.eq.s32.totalorder %s8, 1
    %p47 = scmp.ne.s32.totalorder %s42, %s44
    %p48 = scmp.eq.s32.totalorder %s8, 0
    %p49 = por %p47, %p48
    %p50 = scmp.ne.s32.totalorder %s42, %s44
    %p51 = scmp.eq.s32.totalorder %s13, 1
    %p52 = por %p50, %p51
    %p53 = scmp.ne.s32.totalorder %s44, %s45
    %p54 = scmp.eq.s32.totalorder %s13, 0
    %p55 = por %p53, %p54
    %p56 = scmp.ne.s32.totalorder %s44, %s45
    %p57 = scmp.eq.s32.totalorder %s14, 1
    %p58 = por %p56, %p57
    %p60 = scmp.ne.s32.totalorder %s45, %s59
    %p61 = scmp.eq.s32.totalorder %s14, 0
    %p62 = por %p60, %p61
    %s63 = ssub.s32 %s8, %s15
    %p64 = scmp.eq.s32.totalorder %s63, 0
    %s66 = sadd.s32 %s65, 1
    %s67 = scalar_select %p64, %s65, %s66
    %p70 = pneg %p64
    %p71 = scmp.eq.s32.totalorder %s8, 1
    %p72 = por %p70, %p71
    %p73 = scmp.ne.s32.totalorder %s65, %s68
    %p74 = scmp.eq.s32.totalorder %s8, 0
    %p75 = por %p73, %p74
    %p76 = scmp.ne.s32.totalorder %s65, %s68
    %p77 = scmp.eq.s32.totalorder %s13, 1
    %p78 = por %p76, %p77
    %p79 = scmp.ne.s32.totalorder %s68, %s69
    %p80 = scmp.eq.s32.totalorder %s13, 0
    %p81 = por %p79, %p80
    %p82 = scmp.ne.s32.totalorder %s68, %s69
    %p83 = scmp.eq.s32.totalorder %s14, 1
    %p84 = por %p82, %p83
    %p86 = scmp.ne.s32.totalorder %s69, %s85
    %p87 = scmp.eq.s32.totalorder %s14, 0
    %p88 = por %p86, %p87
    %p89 = scmp.le.s32.totalorder 1, %s8
    %p90 = scmp.lt.s32.totalorder %s8, 3
    %p91 = pnand %p89, %p90
    %p92 = pneg %p91
    // Predicated region
    $region9: #{_lambda_.29} parent=5 // pred_check
      _
    $region10: #{_lambda_.29} parent=5 // pred_check_branch
      %94 = sbr.rel (%p91) target = $region12
    $region11: #{_lambda_.29} parent=5 // pred_region
      %s95 = ssub.s32 %s8, 1
      // Predicated region
      $region13: #{_lambda_.29} parent=11 // pred_check
        %p96 = pneg %p55
      $region14: #{_lambda_.29} parent=11 // pred_check_branch
        %98 = sbr.rel (%p96) target = $region16
      $region15: #{_lambda_.29} parent=11 // pred_region
        _
      $region16: #{_lambda_.29} parent=11 // pred_fallthru
        _
    $region12: #{_lambda_.29} parent=5 // pred_fallthru
      _
    %p99 = scmp.lt.s32.totalorder %s8, 2
    // Predicated region
    $region17: #{_lambda_.29} parent=5 // pred_check
      %p100 = pneg %p99
    $region18: #{_lambda_.29} parent=5 // pred_check_branch
      %102 = sbr.rel (%p100) target = $region20
    $region19: #{_lambda_.29} parent=5 // pred_region
      // Predicated region
      $region21: #{_lambda_.29} parent=19 // pred_check
        %p103 = pneg %p28
      $region22: #{_lambda_.29} parent=19 // pred_check_branch
        %105 = sbr.rel (%p103) target = $region24
      $region23: #{_lambda_.29} parent=19 // pred_region
        %s106 = smul.u32 2, %s8
        %p107 = scmp.lt.s32.totalorder %s106, 3
        %s108 = scalar_select %p107, %s106, 3
        %s109 = smul.addr %s108, 4
        %s110 = scalar_lea.vmem %s0, %s109
        %s111 = smul.u32 2, %s8
      $region24: #{_lambda_.29} parent=19 // pred_fallthru
        _
    $region20: #{_lambda_.29} parent=5 // pred_fallthru
      _
    %p112 = scmp.le.s32.totalorder 1, %s8
    %p113 = scmp.lt.s32.totalorder %s8, 3
    %p114 = pnand %p112, %p113
    %p115 = pneg %p114
    // Predicated region
    $region25: #{_lambda_.29} parent=5 // pred_check
      _
    $region26: #{_lambda_.29} parent=5 // pred_check_branch
      %117 = sbr.rel (%p114) target = $region28
    $region27: #{_lambda_.29} parent=5 // pred_region
      %s118 = ssub.s32 %s8, 1
      %s119 = smul.u32 2, %s13
      %p120 = scmp.lt.s32.totalorder %s119, 3
      %s121 = scalar_select %p120, %s119, 3
      %s122 = smul.addr %s121, 4
      %s123 = scalar_lea.vmem %s0, %s122
      %p124 = pneg %p34
      %p125 = pneg %p31
      %p126 = pneg %p55
      %p127 = pneg %p52
      %p128 = pneg %p81
      %p129 = pneg %p78
      %s130 = smul.u32 2, %s13
      %p131 = scmp.lt.s32.totalorder %s130, 3
      %s132 = scalar_select %p131, %s130, 3
      %s133 = smul.addr %s132, 2
      %s134 = smul.addr %s133, 4
      %s135 = scalar_lea.vmem %s2, %s134
      %s136 = smul.u32 2, %s13
      %p137 = scmp.lt.s32.totalorder %s136, 3
      %s138 = scalar_select %p137, %s136, 3
      %s139 = smul.addr %s138, 4
      %s140 = scalar_lea.vmem %s0, %s139
      %s141 = smul.u32 2, %s13
      %s142 = smul.u32 2, %s13
      %p143 = scmp.lt.s32.totalorder %s142, 3
      %s144 = scalar_select %p143, %s142, 3
      %s145 = smul.addr %s144, 2
      %s146 = smul.addr %s145, 4
      %s147 = scalar_lea.vmem %s2, %s146
      %s148 = smul.u32 2, %s13
      %v150 = vld [vmem:[%s140] sm:$0xf]
      %v151 = vld [vmem:[%s140 + $0x4] sm:$0xf]
      %v152 = vld [vmem:[%s1] sm:$0xff]
      %v153 = vld [vmem:[%s1 + $0x8] sm:$0xff]
      %v156 = vunpack.c.l.b16 %v150
      %v157 = vunpack.c.l.b16 %v151
      %v158 = vpack.c.b16 %v157, %v156
      %v161 = vunpack.c.l.b16 %v152
      %v162 = vunpack.c.h.b16 %v152
      %v163 = vunpack.c.l.b16 %v153
      %v164 = vunpack.c.h.b16 %v153
      %v165 = vpack.c.b16 %v163, %v161
      %v166 = vpack.c.b16 %v164, %v162
      %vm169 = vcmask 130048
      %v171 = vsel %vm169, %v158, 0
      %173 = vmatpush.bf16.msra.mxu0 0
      %174 = vmatpush.bf16.msra.mxu0 0
      %175 = vmatpush.bf16.msra.mxu0 0
      %176 = vmatpush.bf16.msra.mxu0 0
      %177 = vmatpush.bf16.msra.mxu0 0
      %178 = vmatpush.bf16.msra.mxu0 0
      %179 = vmatpush.bf16.msra.mxu0 0
      %180 = vmatpush.bf16.msra.mxu0 %v165
      %181 = vmatmul.bf16.gmra.mxu0 %v171
      %v182 = vpop.f32.mrf.mxu0
      %v183 = vadd.f32 0.0, %v182
      %v184 = vpop.f32.mrf.mxu0
      %v185 = vadd.f32 0.0, %v184
      %186 = vdwg.mxu0
      %187 = vmatpush.bf16.msra.mxu0 0
      %188 = vmatpush.bf16.msra.mxu0 0
      %189 = vmatpush.bf16.msra.mxu0 0
      %190 = vmatpush.bf16.msra.mxu0 0
      %191 = vmatpush.bf16.msra.mxu0 0
      %192 = vmatpush.bf16.msra.mxu0 0
      %193 = vmatpush.bf16.msra.mxu0 0
      %194 = vmatpush.bf16.msra.mxu0 %v166
      %195 = vmatmul.bf16.gmra.mxu0 %v171
      %v196 = vpop.f32.mrf.mxu0
      %v197 = vadd.f32 0.0, %v196
      %v198 = vpop.f32.mrf.mxu0
      %v199 = vadd.f32 0.0, %v198
      %200 = vdwg.mxu0
      %v201 = vpack.c.bf16 %v197, %v183
      %v202 = vpack.c.bf16 %v199, %v185
      %203 = vst [vmem:[%s147] sm:$0xff] %v201
      %204 = vst [vmem:[%s147 + $0x8] sm:$0xff] %v202
      %s205 = smul.u32 2, %s13
      %p206 = scmp.lt.s32.totalorder %s205, 3
      %s207 = scalar_select %p206, %s205, 3
      %s208 = smul.addr %s207, 2
      %s209 = smul.addr %s208, 4
      %s210 = scalar_lea.vmem %s2, %s209
      // Predicated region
      $region29: #{_lambda_.29} parent=27 // pred_check
        %p211 = pneg %p78
      $region30: #{_lambda_.29} parent=27 // pred_check_branch
        %213 = sbr.rel (%p211) target = $region32
      $region31: #{_lambda_.29} parent=27 // pred_region
        %s214 = smul.u32 2, %s13
      $region32: #{_lambda_.29} parent=27 // pred_fallthru
        _
    $region28: #{_lambda_.29} parent=5 // pred_fallthru
      _
    %p215 = scmp.le.s32.totalorder 2, %s8
    // Predicated region
    $region33: #{_lambda_.29} parent=5 // pred_check
      %p216 = pneg %p215
    $region34: #{_lambda_.29} parent=5 // pred_check_branch
      %218 = sbr.rel (%p216) target = $region36
    $region35: #{_lambda_.29} parent=5 // pred_region
      %s219 = ssub.s32 %s8, 2
      // Predicated region
      $region37: #{_lambda_.29} parent=35 // pred_check
        %p220 = pneg %p84
      $region38: #{_lambda_.29} parent=35 // pred_check_branch
        %222 = sbr.rel (%p220) target = $region40
      $region39: #{_lambda_.29} parent=35 // pred_region
        %s223 = smul.u32 2, %s14
        %p224 = scmp.lt.s32.totalorder %s223, 3
        %s225 = scalar_select %p224, %s223, 3
        %s226 = smul.addr %s225, 2
        %s227 = smul.addr %s226, 4
        %s228 = scalar_lea.vmem %s2, %s227
      $region40: #{_lambda_.29} parent=35 // pred_fallthru
        _
    $region36: #{_lambda_.29} parent=5 // pred_fallthru
      _
  $region6: #{_lambda_.29} parent=0 // loop_footer
    %s12 = sadd.s32 1, %s8
  $region7: #{_lambda_.29} parent=0 // loop_footer_branch
    %7 = sbr.rel target = $region3
  $region8: #{_lambda_.29} parent=0 // loop_exit
    _

// kernel: _lambda_.28
$region0: #{_lambda_.28}
  #allocation0 [shape = 'u32[]', space=smem, size = 0x4, offset = 0x4, fixed_abs, tag = 'smem constant byte address 0x4 - core index']
  #allocation1 [shape = 'u32[72,128]{1,0:T(1,128)}', space=vmem, size = 0x9000, scoped, tag = 'internal scratch']
  %s0 = inlined_call_operand.vmem [shape: bf16[32,256], index: 0, kind: input, shape index: {}]
  %s1 = inlined_call_operand.vmem [shape: bf16[256,128], index: 1, kind: input, shape index: {}]
  %s2 = inlined_call_operand.vmem [shape: f32[1,128], index: 2, kind: input, shape index: {}]
  %s3 = inlined_call_operand.vmem [shape: f32[1,128], index: 3, kind: input, shape index: {}]
  %s4 = inlined_call_operand.vmem [shape: bf16[32,128], index: 4, kind: output, shape index: {}]
  %s5 = sld [smem:[#allocation0]]
  $region49: #{_lambda_.28} parent=0
    _
  %s7 = ssub.s32 1, %s5
  %s8 = scalar_select 0, %s7, %s5
  loop: start=0, step=1, limit=4
  $region2: #{_lambda_.28} parent=0 // loop_pre_header
    _
  $region3: #{_lambda_.28} parent=0 // loop_header
    %s10 = sphi 0, %s14
    %p11 = scmp.ge.s32.totalorder %s10, 4
    %s20 = sphi 0, %s22
    %s23 = sphi 0, %s20
    %s24 = sphi 0, %s23
    %s40 = sphi 0, %s24
    %s44 = sphi 0, %s44
    %s46 = sphi 0, %s44
    %s47 = sphi 0, %s46
    %s61 = sphi 0, %s47
    %s65 = sphi 0, %s65
    %s67 = sphi 0, %s65
    %s68 = sphi 0, %s67
    %s82 = sphi 0, %s68
    %s86 = sphi 0, %s86
    %s88 = sphi 0, %s86
    %s89 = sphi 0, %s88
    %s103 = sphi 0, %s89
    %s109 = sphi 0, %s111
    %s112 = sphi 0, %s109
    %s113 = sphi 0, %s112
    %s129 = sphi 0, %s113
  $region4: #{_lambda_.28} parent=0 // loop_header_branch
    %13 = sbr.rel (%p11) target = $region8
  $region5: #{_lambda_.28} parent=0 // loop_body
    %s15 = ssub.s32 %s10, 1
    %s16 = ssub.s32 %s10, 2
    %s17 = sadd.s32 %s10, 1
    %s18 = ssub.s32 %s10, %s17
    %p19 = scmp.eq.s32.totalorder %s18, 0
    %s21 = sadd.s32 %s20, 1
    %s22 = scalar_select %p19, %s20, %s21
    %p25 = pneg %p19
    %p26 = scmp.eq.s32.totalorder %s10, 1
    %p27 = por %p25, %p26
    %p28 = scmp.ne.s32.totalorder %s20, %s23
    %p29 = scmp.eq.s32.totalorder %s10, 0
    %p30 = por %p28, %p29
    %p31 = scmp.ne.s32.totalorder %s20, %s23
    %p32 = scmp.eq.s32.totalorder %s15, 1
    %p33 = por %p31, %p32
    %p34 = scmp.ne.s32.totalorder %s23, %s24
    %p35 = scmp.eq.s32.totalorder %s15, 0
    %p36 = por %p34, %p35
    %p37 = scmp.ne.s32.totalorder %s23, %s24
    %p38 = scmp.eq.s32.totalorder %s16, 1
    %p39 = por %p37, %p38
    %p41 = scmp.ne.s32.totalorder %s24, %s40
    %p42 = scmp.eq.s32.totalorder %s16, 0
    %p43 = por %p41, %p42
    %s45 = sadd.s32 %s44, 1
    %p48 = scmp.eq.s32.totalorder %s10, 1
    %p49 = scmp.ne.s32.totalorder %s44, %s46
    %p50 = scmp.eq.s32.totalorder %s10, 0
    %p51 = por %p49, %p50
    %p52 = scmp.ne.s32.totalorder %s44, %s46
    %p53 = scmp.eq.s32.totalorder %s15, 1
    %p54 = por %p52, %p53
    %p55 = scmp.ne.s32.totalorder %s46, %s47
    %p56 = scmp.eq.s32.totalorder %s15, 0
    %p57 = por %p55, %p56
    %p58 = scmp.ne.s32.totalorder %s46, %s47
    %p59 = scmp.eq.s32.totalorder %s16, 1
    %p60 = por %p58, %p59
    %p62 = scmp.ne.s32.totalorder %s47, %s61
    %p63 = scmp.eq.s32.totalorder %s16, 0
    %p64 = por %p62, %p63
    %s66 = sadd.s32 %s65, 1
    %p69 = scmp.eq.s32.totalorder %s10, 1
    %p70 = scmp.ne.s32.totalorder %s65, %s67
    %p71 = scmp.eq.s32.totalorder %s10, 0
    %p72 = por %p70, %p71
    %p73 = scmp.ne.s32.totalorder %s65, %s67
    %p74 = scmp.eq.s32.totalorder %s15, 1
    %p75 = por %p73, %p74
    %p76 = scmp.ne.s32.totalorder %s67, %s68
    %p77 = scmp.eq.s32.totalorder %s15, 0
    %p78 = por %p76, %p77
    %p79 = scmp.ne.s32.totalorder %s67, %s68
    %p80 = scmp.eq.s32.totalorder %s16, 1
    %p81 = por %p79, %p80
    %p83 = scmp.ne.s32.totalorder %s68, %s82
    %p84 = scmp.eq.s32.totalorder %s16, 0
    %p85 = por %p83, %p84
    %s87 = sadd.s32 %s86, 1
    %p90 = scmp.eq.s32.totalorder %s10, 1
    %p91 = scmp.ne.s32.totalorder %s86, %s88
    %p92 = scmp.eq.s32.totalorder %s10, 0
    %p93 = por %p91, %p92
    %p94 = scmp.ne.s32.totalorder %s86, %s88
    %p95 = scmp.eq.s32.totalorder %s15, 1
    %p96 = por %p94, %p95
    %p97 = scmp.ne.s32.totalorder %s88, %s89
    %p98 = scmp.eq.s32.totalorder %s15, 0
    %p99 = por %p97, %p98
    %p100 = scmp.ne.s32.totalorder %s88, %s89
    %p101 = scmp.eq.s32.totalorder %s16, 1
    %p102 = por %p100, %p101
    %p104 = scmp.ne.s32.totalorder %s89, %s103
    %p105 = scmp.eq.s32.totalorder %s16, 0
    %p106 = por %p104, %p105
    %s107 = ssub.s32 %s10, %s17
    %p108 = scmp.eq.s32.totalorder %s107, 0
    %s110 = sadd.s32 %s109, 1
    %s111 = scalar_select %p108, %s109, %s110
    %p114 = pneg %p108
    %p115 = scmp.eq.s32.totalorder %s10, 1
    %p116 = por %p114, %p115
    %p117 = scmp.ne.s32.totalorder %s109, %s112
    %p118 = scmp.eq.s32.totalorder %s10, 0
    %p119 = por %p117, %p118
    %p120 = scmp.ne.s32.totalorder %s109, %s112
    %p121 = scmp.eq.s32.totalorder %s15, 1
    %p122 = por %p120, %p121
    %p123 = scmp.ne.s32.totalorder %s112, %s113
    %p124 = scmp.eq.s32.totalorder %s15, 0
    %p125 = por %p123, %p124
    %p126 = scmp.ne.s32.totalorder %s112, %s113
    %p127 = scmp.eq.s32.totalorder %s16, 1
    %p128 = por %p126, %p127
    %p130 = scmp.ne.s32.totalorder %s113, %s129
    %p131 = scmp.eq.s32.totalorder %s16, 0
    %p132 = por %p130, %p131
    %p133 = scmp.le.s32.totalorder 1, %s10
    %p134 = scmp.lt.s32.totalorder %s10, 3
    %p135 = pnand %p133, %p134
    %p136 = pneg %p135
    // Predicated region
    $region9: #{_lambda_.28} parent=5 // pred_check
      _
    $region10: #{_lambda_.28} parent=5 // pred_check_branch
      %138 = sbr.rel (%p135) target = $region12
    $region11: #{_lambda_.28} parent=5 // pred_region
      %s139 = ssub.s32 %s10, 1
      // Predicated region
      $region13: #{_lambda_.28} parent=11 // pred_check
        %p140 = pneg %p57
      $region14: #{_lambda_.28} parent=11 // pred_check_branch
        %142 = sbr.rel (%p140) target = $region16
      $region15: #{_lambda_.28} parent=11 // pred_region
        _
      $region16: #{_lambda_.28} parent=11 // pred_fallthru
        _
      // Predicated region
      $region17: #{_lambda_.28} parent=11 // pred_check
        %p143 = pneg %p78
      $region18: #{_lambda_.28} parent=11 // pred_check_branch
        %145 = sbr.rel (%p143) target = $region20
      $region19: #{_lambda_.28} parent=11 // pred_region
        _
      $region20: #{_lambda_.28} parent=11 // pred_fallthru
        _
      // Predicated region
      $region21: #{_lambda_.28} parent=11 // pred_check
        %p146 = pneg %p99
      $region22: #{_lambda_.28} parent=11 // pred_check_branch
        %148 = sbr.rel (%p146) target = $region24
      $region23: #{_lambda_.28} parent=11 // pred_region
        _
      $region24: #{_lambda_.28} parent=11 // pred_fallthru
        _
    $region12: #{_lambda_.28} parent=5 // pred_fallthru
      _
    %p149 = scmp.lt.s32.totalorder %s10, 2
    // Predicated region
    $region25: #{_lambda_.28} parent=5 // pred_check
      %p150 = pneg %p149
    $region26: #{_lambda_.28} parent=5 // pred_check_branch
      %152 = sbr.rel (%p150) target = $region28
    $region27: #{_lambda_.28} parent=5 // pred_region
      // Predicated region
      $region29: #{_lambda_.28} parent=27 // pred_check
        %p153 = pneg %p30
      $region30: #{_lambda_.28} parent=27 // pred_check_branch
        %155 = sbr.rel (%p153) target = $region32
      $region31: #{_lambda_.28} parent=27 // pred_region
        %s156 = smul.u32 2, %s10
        %p157 = scmp.lt.s32.totalorder %s156, 3
        %s158 = scalar_select %p157, %s156, 3
        %s159 = smul.addr %s158, 2
        %s160 = smul.addr %s159, 4
        %s161 = scalar_lea.vmem %s0, %s160
        %s162 = smul.u32 2, %s10
      $region32: #{_lambda_.28} parent=27 // pred_fallthru
        _
    $region28: #{_lambda_.28} parent=5 // pred_fallthru
      _
    %p163 = scmp.le.s32.totalorder 1, %s10
    %p164 = scmp.lt.s32.totalorder %s10, 3
    %p165 = pnand %p163, %p164
    %p166 = pneg %p165
    // Predicated region
    $region33: #{_lambda_.28} parent=5 // pred_check
      _
    $region34: #{_lambda_.28} parent=5 // pred_check_branch
      %168 = sbr.rel (%p165) target = $region36
    $region35: #{_lambda_.28} parent=5 // pred_region
      %s169 = ssub.s32 %s10, 1
      %s170 = smul.u32 2, %s15
      %p171 = scmp.lt.s32.totalorder %s170, 3
      %s172 = scalar_select %p171, %s170, 3
      %s173 = smul.addr %s172, 2
      %s174 = smul.addr %s173, 4
      %s175 = scalar_lea.vmem %s0, %s174
      %p176 = pneg %p36
      %p177 = pneg %p33
      %p178 = pneg %p57
      %p179 = pneg %p54
      %p180 = pneg %p78
      %p181 = pneg %p75
      %p182 = pneg %p99
      %p183 = pneg %p96
      %p184 = pneg %p125
      %p185 = pneg %p122
      %s186 = smul.u32 2, %s15
      %p187 = scmp.lt.s32.totalorder %s186, 3
      %s188 = scalar_select %p187, %s186, 3
      %s189 = smul.addr %s188, 4
      %s190 = scalar_lea.vmem %s4, %s189
      %s191 = smul.u32 2, %s15
      %p192 = scmp.lt.s32.totalorder %s191, 3
      %s193 = scalar_select %p192, %s191, 3
      %s194 = smul.addr %s193, 2
      %s195 = smul.addr %s194, 4
      %s196 = scalar_lea.vmem %s0, %s195
      %s197 = smul.u32 2, %s15
      %s198 = smul.u32 2, %s15
      %p199 = scmp.lt.s32.totalorder %s198, 3
      %s200 = scalar_select %p199, %s198, 3
      %s201 = smul.addr %s200, 4
      %s202 = scalar_lea.vmem %s4, %s201
      %s203 = smul.u32 2, %s15
      %v204 = vld [vmem:[%s196] sm:$0xff]
      %v205 = vld [vmem:[%s196 + $0x8] sm:$0xff]
      %v206 = vld [vmem:[%s1] sm:$0xf]
      %v207 = vld [vmem:[%s1 + $0x4] sm:$0xf]
      %v208 = vld [vmem:[%s1 + $0x8] sm:$0xf]
      %v209 = vld [vmem:[%s1 + $0xc] sm:$0xf]
      %v210 = vld [vmem:[%s1 + $0x10] sm:$0xf]
      %v211 = vld [vmem:[%s1 + $0x14] sm:$0xf]
      %v212 = vld [vmem:[%s1 + $0x18] sm:$0xf]
      %v213 = vld [vmem:[%s1 + $0x1c] sm:$0xf]
      %v214 = vld [vmem:[%s1 + $0x20] sm:$0xf]
      %v215 = vld [vmem:[%s1 + $0x24] sm:$0xf]
      %v216 = vld [vmem:[%s1 + $0x28] sm:$0xf]
      %v217 = vld [vmem:[%s1 + $0x2c] sm:$0xf]
      %v218 = vld [vmem:[%s1 + $0x30] sm:$0xf]
      %v219 = vld [vmem:[%s1 + $0x34] sm:$0xf]
      %v220 = vld [vmem:[%s1 + $0x38] sm:$0xf]
      %v221 = vld [vmem:[%s1 + $0x3c] sm:$0xf]
      %v222 = vld [vmem:[%s1 + $0x40] sm:$0xf]
      %v223 = vld [vmem:[%s1 + $0x44] sm:$0xf]
      %v224 = vld [vmem:[%s1 + $0x48] sm:$0xf]
      %v225 = vld [vmem:[%s1 + $0x4c] sm:$0xf]
      %v226 = vld [vmem:[%s1 + $0x50] sm:$0xf]
      %v227 = vld [vmem:[%s1 + $0x54] sm:$0xf]
      %v228 = vld [vmem:[%s1 + $0x58] sm:$0xf]
      %v229 = vld [vmem:[%s1 + $0x5c] sm:$0xf]
      %v230 = vld [vmem:[%s1 + $0x60] sm:$0xf]
      %v231 = vld [vmem:[%s1 + $0x64] sm:$0xf]
      %v232 = vld [vmem:[%s1 + $0x68] sm:$0xf]
      %v233 = vld [vmem:[%s1 + $0x6c] sm:$0xf]
      %v234 = vld [vmem:[%s1 + $0x70] sm:$0xf]
      %v235 = vld [vmem:[%s1 + $0x74] sm:$0xf]
      %v236 = vld [vmem:[%s1 + $0x78] sm:$0xf]
      %v237 = vld [vmem:[%s1 + $0x7c] sm:$0xf]
      %v240 = vunpack.c.l.b16 %v204
      %v241 = vunpack.c.h.b16 %v204
      %v242 = vunpack.c.l.b16 %v205
      %v243 = vunpack.c.h.b16 %v205
      %v244 = vpack.c.b16 %v242, %v240
      %v245 = vpack.c.b16 %v243, %v241
      %v280 = vunpack.c.l.b16 %v206
      %v281 = vunpack.c.l.b16 %v207
      %v282 = vunpack.c.l.b16 %v208
      %v283 = vunpack.c.l.b16 %v209
      %v284 = vunpack.c.l.b16 %v210
      %v285 = vunpack.c.l.b16 %v211
      %v286 = vunpack.c.l.b16 %v212
      %v287 = vunpack.c.l.b16 %v213
      %v288 = vunpack.c.l.b16 %v214
      %v289 = vunpack.c.l.b16 %v215
      %v290 = vunpack.c.l.b16 %v216
      %v291 = vunpack.c.l.b16 %v217
      %v292 = vunpack.c.l.b16 %v218
      %v293 = vunpack.c.l.b16 %v219
      %v294 = vunpack.c.l.b16 %v220
      %v295 = vunpack.c.l.b16 %v221
      %v296 = vunpack.c.l.b16 %v222
      %v297 = vunpack.c.l.b16 %v223
      %v298 = vunpack.c.l.b16 %v224
      %v299 = vunpack.c.l.b16 %v225
      %v300 = vunpack.c.l.b16 %v226
      %v301 = vunpack.c.l.b16 %v227
      %v302 = vunpack.c.l.b16 %v228
      %v303 = vunpack.c.l.b16 %v229
      %v304 = vunpack.c.l.b16 %v230
      %v305 = vunpack.c.l.b16 %v231
      %v306 = vunpack.c.l.b16 %v232
      %v307 = vunpack.c.l.b16 %v233
      %v308 = vunpack.c.l.b16 %v234
      %v309 = vunpack.c.l.b16 %v235
      %v310 = vunpack.c.l.b16 %v236
      %v311 = vunpack.c.l.b16 %v237
      %v312 = vpack.c.b16 %v281, %v280
      %v313 = vpack.c.b16 %v283, %v282
      %v314 = vpack.c.b16 %v285, %v284
      %v315 = vpack.c.b16 %v287, %v286
      %v316 = vpack.c.b16 %v289, %v288
      %v317 = vpack.c.b16 %v291, %v290
      %v318 = vpack.c.b16 %v293, %v292
      %v319 = vpack.c.b16 %v295, %v294
      %v320 = vpack.c.b16 %v297, %v296
      %v321 = vpack.c.b16 %v299, %v298
      %v322 = vpack.c.b16 %v301, %v300
      %v323 = vpack.c.b16 %v303, %v302
      %v324 = vpack.c.b16 %v305, %v304
      %v325 = vpack.c.b16 %v307, %v306
      %v326 = vpack.c.b16 %v309, %v308
      %v327 = vpack.c.b16 %v311, %v310
      %344 = vmatpush.bf16.msra.mxu0 %v319
      %345 = vmatpush.bf16.msra.mxu0 %v318
      %346 = vmatpush.bf16.msra.mxu0 %v317
      %347 = vmatpush.bf16.msra.mxu0 %v316
      %348 = vmatpush.bf16.msra.mxu0 %v315
      %349 = vmatpush.bf16.msra.mxu0 %v314
      %350 = vmatpush.bf16.msra.mxu0 %v313
      %351 = vmatpush.bf16.msra.mxu0 %v312
      %352 = vmatmul.bf16.gmra.mxu0 %v244
      %v353 = vpop.f32.mrf.mxu0
      %v354 = vadd.f32 0.0, %v353
      %v355 = vpop.f32.mrf.mxu0
      %v356 = vadd.f32 0.0, %v355
      %357 = vdwg.mxu0
      %358 = vmatpush.bf16.msra.mxu0 %v327
      %359 = vmatpush.bf16.msra.mxu0 %v326
      %360 = vmatpush.bf16.msra.mxu0 %v325
      %361 = vmatpush.bf16.msra.mxu0 %v324
      %362 = vmatpush.bf16.msra.mxu0 %v323
      %363 = vmatpush.bf16.msra.mxu0 %v322
      %364 = vmatpush.bf16.msra.mxu0 %v321
      %365 = vmatpush.bf16.msra.mxu0 %v320
      %366 = vmatmul.bf16.gmra.mxu0 %v245
      %v367 = vpop.f32.mrf.mxu0
      %v368 = vadd.f32 %v354, %v367
      %v369 = vpop.f32.mrf.mxu0
      %v370 = vadd.f32 %v356, %v369
      %371 = vdwg.mxu0
      %v372 = vld [vmem:[%s2] sm:$0x1]
      %v374 = vperm.slane %v372, 0
      %v376 = vmul.f32 %v368, %v374
      %v377 = vmul.f32 %v370, %v374
      %v378 = vld [vmem:[%s3] sm:$0x1]
      %v380 = vperm.slane %v378, 0
      %v382 = vadd.f32 %v376, %v380
      %v383 = vadd.f32 %v377, %v380
      %v384 = vmax.f32 %v382, 0.0
      %v385 = vmax.f32 %v383, 0.0
      %v386 = vpack.c.bf16 %v384, %v384
      %v387 = vpack.c.bf16 %v385, %v385
      %388 = vst [vmem:[%s202] sm:$0xf] %v386
      %389 = vst [vmem:[%s202 + $0x4] sm:$0xf] %v387
      %s390 = smul.u32 2, %s15
      %p391 = scmp.lt.s32.totalorder %s390, 3
      %s392 = scalar_select %p391, %s390, 3
      %s393 = smul.addr %s392, 4
      %s394 = scalar_lea.vmem %s4, %s393
      // Predicated region
      $region37: #{_lambda_.28} parent=35 // pred_check
        %p395 = pneg %p122
      $region38: #{_lambda_.28} parent=35 // pred_check_branch
        %397 = sbr.rel (%p395) target = $region40
      $region39: #{_lambda_.28} parent=35 // pred_region
        %s398 = smul.u32 2, %s15
      $region40: #{_lambda_.28} parent=35 // pred_fallthru
        _
    $region36: #{_lambda_.28} parent=5 // pred_fallthru
      _
    %p399 = scmp.le.s32.totalorder 2, %s10
    // Predicated region
    $region41: #{_lambda_.28} parent=5 // pred_check
      %p400 = pneg %p399
    $region42: #{_lambda_.28} parent=5 // pred_check_branch
      %402 = sbr.rel (%p400) target = $region44
    $region43: #{_lambda_.28} parent=5 // pred_region
      %s403 = ssub.s32 %s10, 2
      // Predicated region
      $region45: #{_lambda_.28} parent=43 // pred_check
        %p404 = pneg %p128
      $region46: #{_lambda_.28} parent=43 // pred_check_branch
        %406 = sbr.rel (%p404) target = $region48
      $region47: #{_lambda_.28} parent=43 // pred_region
        %s407 = smul.u32 2, %s16
        %p408 = scmp.lt.s32.totalorder %s407, 3
        %s409 = scalar_select %p408, %s407, 3
        %s410 = smul.addr %s409, 4
        %s411 = scalar_lea.vmem %s4, %s410
      $region48: #{_lambda_.28} parent=43 // pred_fallthru
        _
    $region44: #{_lambda_.28} parent=5 // pred_fallthru
      _
  $region6: #{_lambda_.28} parent=0 // loop_footer
    %s14 = sadd.s32 1, %s10
  $region7: #{_lambda_.28} parent=0 // loop_footer_branch
    %9 = sbr.rel target = $region3
  $region8: #{_lambda_.28} parent=0 // loop_exit
    _

// kernel: _lambda_.26
$region0: #{_lambda_.26}
  #allocation0 [shape = 'u32[]', space=smem, size = 0x4, offset = 0x4, fixed_abs, tag = 'smem constant byte address 0x4 - core index']
  #allocation1 [shape = 'u32[72,128]{1,0:T(1,128)}', space=vmem, size = 0x9000, scoped, tag = 'internal scratch']
  %s0 = inlined_call_operand.vmem [shape: bf16[32,76], index: 0, kind: input, shape index: {}]
  %s1 = inlined_call_operand.vmem [shape: bf16[76,256], index: 1, kind: input, shape index: {}]
  %s2 = inlined_call_operand.vmem [shape: f32[1,76], index: 2, kind: input, shape index: {}]
  %s3 = inlined_call_operand.vmem [shape: f32[1,76], index: 3, kind: input, shape index: {}]
  %s4 = inlined_call_operand.vmem [shape: bf16[32,256], index: 4, kind: output, shape index: {}]
  %s5 = sld [smem:[#allocation0]]
  $region49: #{_lambda_.26} parent=0
    _
  %s7 = ssub.s32 1, %s5
  %s8 = scalar_select 0, %s7, %s5
  loop: start=0, step=1, limit=4
  $region2: #{_lambda_.26} parent=0 // loop_pre_header
    _
  $region3: #{_lambda_.26} parent=0 // loop_header
    %s10 = sphi 0, %s14
    %p11 = scmp.ge.s32.totalorder %s10, 4
    %s20 = sphi 0, %s22
    %s23 = sphi 0, %s20
    %s24 = sphi 0, %s23
    %s40 = sphi 0, %s24
    %s44 = sphi 0, %s44
    %s46 = sphi 0, %s44
    %s47 = sphi 0, %s46
    %s61 = sphi 0, %s47
    %s65 = sphi 0, %s65
    %s67 = sphi 0, %s65
    %s68 = sphi 0, %s67
    %s82 = sphi 0, %s68
    %s86 = sphi 0, %s86
    %s88 = sphi 0, %s86
    %s89 = sphi 0, %s88
    %s103 = sphi 0, %s89
    %s109 = sphi 0, %s111
    %s112 = sphi 0, %s109
    %s113 = sphi 0, %s112
    %s129 = sphi 0, %s113
  $region4: #{_lambda_.26} parent=0 // loop_header_branch
    %13 = sbr.rel (%p11) target = $region8
  $region5: #{_lambda_.26} parent=0 // loop_body
    %s15 = ssub.s32 %s10, 1
    %s16 = ssub.s32 %s10, 2
    %s17 = sadd.s32 %s10, 1
    %s18 = ssub.s32 %s10, %s17
    %p19 = scmp.eq.s32.totalorder %s18, 0
    %s21 = sadd.s32 %s20, 1
    %s22 = scalar_select %p19, %s20, %s21
    %p25 = pneg %p19
    %p26 = scmp.eq.s32.totalorder %s10, 1
    %p27 = por %p25, %p26
    %p28 = scmp.ne.s32.totalorder %s20, %s23
    %p29 = scmp.eq.s32.totalorder %s10, 0
    %p30 = por %p28, %p29
    %p31 = scmp.ne.s32.totalorder %s20, %s23
    %p32 = scmp.eq.s32.totalorder %s15, 1
    %p33 = por %p31, %p32
    %p34 = scmp.ne.s32.totalorder %s23, %s24
    %p35 = scmp.eq.s32.totalorder %s15, 0
    %p36 = por %p34, %p35
    %p37 = scmp.ne.s32.totalorder %s23, %s24
    %p38 = scmp.eq.s32.totalorder %s16, 1
    %p39 = por %p37, %p38
    %p41 = scmp.ne.s32.totalorder %s24, %s40
    %p42 = scmp.eq.s32.totalorder %s16, 0
    %p43 = por %p41, %p42
    %s45 = sadd.s32 %s44, 1
    %p48 = scmp.eq.s32.totalorder %s10, 1
    %p49 = scmp.ne.s32.totalorder %s44, %s46
    %p50 = scmp.eq.s32.totalorder %s10, 0
    %p51 = por %p49, %p50
    %p52 = scmp.ne.s32.totalorder %s44, %s46
    %p53 = scmp.eq.s32.totalorder %s15, 1
    %p54 = por %p52, %p53
    %p55 = scmp.ne.s32.totalorder %s46, %s47
    %p56 = scmp.eq.s32.totalorder %s15, 0
    %p57 = por %p55, %p56
    %p58 = scmp.ne.s32.totalorder %s46, %s47
    %p59 = scmp.eq.s32.totalorder %s16, 1
    %p60 = por %p58, %p59
    %p62 = scmp.ne.s32.totalorder %s47, %s61
    %p63 = scmp.eq.s32.totalorder %s16, 0
    %p64 = por %p62, %p63
    %s66 = sadd.s32 %s65, 1
    %p69 = scmp.eq.s32.totalorder %s10, 1
    %p70 = scmp.ne.s32.totalorder %s65, %s67
    %p71 = scmp.eq.s32.totalorder %s10, 0
    %p72 = por %p70, %p71
    %p73 = scmp.ne.s32.totalorder %s65, %s67
    %p74 = scmp.eq.s32.totalorder %s15, 1
    %p75 = por %p73, %p74
    %p76 = scmp.ne.s32.totalorder %s67, %s68
    %p77 = scmp.eq.s32.totalorder %s15, 0
    %p78 = por %p76, %p77
    %p79 = scmp.ne.s32.totalorder %s67, %s68
    %p80 = scmp.eq.s32.totalorder %s16, 1
    %p81 = por %p79, %p80
    %p83 = scmp.ne.s32.totalorder %s68, %s82
    %p84 = scmp.eq.s32.totalorder %s16, 0
    %p85 = por %p83, %p84
    %s87 = sadd.s32 %s86, 1
    %p90 = scmp.eq.s32.totalorder %s10, 1
    %p91 = scmp.ne.s32.totalorder %s86, %s88
    %p92 = scmp.eq.s32.totalorder %s10, 0
    %p93 = por %p91, %p92
    %p94 = scmp.ne.s32.totalorder %s86, %s88
    %p95 = scmp.eq.s32.totalorder %s15, 1
    %p96 = por %p94, %p95
    %p97 = scmp.ne.s32.totalorder %s88, %s89
    %p98 = scmp.eq.s32.totalorder %s15, 0
    %p99 = por %p97, %p98
    %p100 = scmp.ne.s32.totalorder %s88, %s89
    %p101 = scmp.eq.s32.totalorder %s16, 1
    %p102 = por %p100, %p101
    %p104 = scmp.ne.s32.totalorder %s89, %s103
    %p105 = scmp.eq.s32.totalorder %s16, 0
    %p106 = por %p104, %p105
    %s107 = ssub.s32 %s10, %s17
    %p108 = scmp.eq.s32.totalorder %s107, 0
    %s110 = sadd.s32 %s109, 1
    %s111 = scalar_select %p108, %s109, %s110
    %p114 = pneg %p108
    %p115 = scmp.eq.s32.totalorder %s10, 1
    %p116 = por %p114, %p115
    %p117 = scmp.ne.s32.totalorder %s109, %s112
    %p118 = scmp.eq.s32.totalorder %s10, 0
    %p119 = por %p117, %p118
    %p120 = scmp.ne.s32.totalorder %s109, %s112
    %p121 = scmp.eq.s32.totalorder %s15, 1
    %p122 = por %p120, %p121
    %p123 = scmp.ne.s32.totalorder %s112, %s113
    %p124 = scmp.eq.s32.totalorder %s15, 0
    %p125 = por %p123, %p124
    %p126 = scmp.ne.s32.totalorder %s112, %s113
    %p127 = scmp.eq.s32.totalorder %s16, 1
    %p128 = por %p126, %p127
    %p130 = scmp.ne.s32.totalorder %s113, %s129
    %p131 = scmp.eq.s32.totalorder %s16, 0
    %p132 = por %p130, %p131
    %p133 = scmp.le.s32.totalorder 1, %s10
    %p134 = scmp.lt.s32.totalorder %s10, 3
    %p135 = pnand %p133, %p134
    %p136 = pneg %p135
    // Predicated region
    $region9: #{_lambda_.26} parent=5 // pred_check
      _
    $region10: #{_lambda_.26} parent=5 // pred_check_branch
      %138 = sbr.rel (%p135) target = $region12
    $region11: #{_lambda_.26} parent=5 // pred_region
      %s139 = ssub.s32 %s10, 1
      // Predicated region
      $region13: #{_lambda_.26} parent=11 // pred_check
        %p140 = pneg %p57
      $region14: #{_lambda_.26} parent=11 // pred_check_branch
        %142 = sbr.rel (%p140) target = $region16
      $region15: #{_lambda_.26} parent=11 // pred_region
        _
      $region16: #{_lambda_.26} parent=11 // pred_fallthru
        _
      // Predicated region
      $region17: #{_lambda_.26} parent=11 // pred_check
        %p143 = pneg %p78
      $region18: #{_lambda_.26} parent=11 // pred_check_branch
        %145 = sbr.rel (%p143) target = $region20
      $region19: #{_lambda_.26} parent=11 // pred_region
        _
      $region20: #{_lambda_.26} parent=11 // pred_fallthru
        _
      // Predicated region
      $region21: #{_lambda_.26} parent=11 // pred_check
        %p146 = pneg %p99
      $region22: #{_lambda_.26} parent=11 // pred_check_branch
        %148 = sbr.rel (%p146) target = $region24
      $region23: #{_lambda_.26} parent=11 // pred_region
        _
      $region24: #{_lambda_.26} parent=11 // pred_fallthru
        _
    $region12: #{_lambda_.26} parent=5 // pred_fallthru
      _
    %p149 = scmp.lt.s32.totalorder %s10, 2
    // Predicated region
    $region25: #{_lambda_.26} parent=5 // pred_check
      %p150 = pneg %p149
    $region26: #{_lambda_.26} parent=5 // pred_check_branch
      %152 = sbr.rel (%p150) target = $region28
    $region27: #{_lambda_.26} parent=5 // pred_region
      // Predicated region
      $region29: #{_lambda_.26} parent=27 // pred_check
        %p153 = pneg %p30
      $region30: #{_lambda_.26} parent=27 // pred_check_branch
        %155 = sbr.rel (%p153) target = $region32
      $region31: #{_lambda_.26} parent=27 // pred_region
        %s156 = smul.u32 2, %s10
        %p157 = scmp.lt.s32.totalorder %s156, 3
        %s158 = scalar_select %p157, %s156, 3
        %s159 = smul.addr %s158, 4
        %s160 = scalar_lea.vmem %s0, %s159
        %s161 = smul.u32 2, %s10
      $region32: #{_lambda_.26} parent=27 // pred_fallthru
        _
    $region28: #{_lambda_.26} parent=5 // pred_fallthru
      _
    %p162 = scmp.le.s32.totalorder 1, %s10
    %p163 = scmp.lt.s32.totalorder %s10, 3
    %p164 = pnand %p162, %p163
    %p165 = pneg %p164
    // Predicated region
    $region33: #{_lambda_.26} parent=5 // pred_check
      _
    $region34: #{_lambda_.26} parent=5 // pred_check_branch
      %167 = sbr.rel (%p164) target = $region36
    $region35: #{_lambda_.26} parent=5 // pred_region
      %s168 = ssub.s32 %s10, 1
      %s169 = smul.u32 2, %s15
      %p170 = scmp.lt.s32.totalorder %s169, 3
      %s171 = scalar_select %p170, %s169, 3
      %s172 = smul.addr %s171, 4
      %s173 = scalar_lea.vmem %s0, %s172
      %p174 = pneg %p36
      %p175 = pneg %p33
      %p176 = pneg %p57
      %p177 = pneg %p54
      %p178 = pneg %p78
      %p179 = pneg %p75
      %p180 = pneg %p99
      %p181 = pneg %p96
      %p182 = pneg %p125
      %p183 = pneg %p122
      %s184 = smul.u32 2, %s15
      %p185 = scmp.lt.s32.totalorder %s184, 3
      %s186 = scalar_select %p185, %s184, 3
      %s187 = smul.addr %s186, 2
      %s188 = smul.addr %s187, 4
      %s189 = scalar_lea.vmem %s4, %s188
      %s190 = smul.u32 2, %s15
      %p191 = scmp.lt.s32.totalorder %s190, 3
      %s192 = scalar_select %p191, %s190, 3
      %s193 = smul.addr %s192, 4
      %s194 = scalar_lea.vmem %s0, %s193
      %s195 = smul.u32 2, %s15
      %s196 = smul.u32 2, %s15
      %p197 = scmp.lt.s32.totalorder %s196, 3
      %s198 = scalar_select %p197, %s196, 3
      %s199 = smul.addr %s198, 2
      %s200 = smul.addr %s199, 4
      %s201 = scalar_lea.vmem %s4, %s200
      %s202 = smul.u32 2, %s15
      %v204 = vld [vmem:[%s194] sm:$0xf]
      %v205 = vld [vmem:[%s194 + $0x4] sm:$0xf]
      %v206 = vunpack.c.l.bf16 %v204
      %v207 = vunpack.c.l.bf16 %v205
      %v208 = vld [vmem:[%s2] sm:$0x1]
      %v210 = vperm.slane %v208, 0
      %v212 = vmul.f32 %v206, %v210
      %v213 = vmul.f32 %v207, %v210
      %v214 = vld [vmem:[%s3] sm:$0x1]
      %v216 = vperm.slane %v214, 0
      %v218 = vadd.f32 %v212, %v216
      %v219 = vadd.f32 %v213, %v216
      %v220 = vmax.f32 %v218, 0.0
      %v221 = vmax.f32 %v219, 0.0
      %v222 = vpack.c.bf16 %v221, %v220
      %v223 = vld [vmem:[%s1] sm:$0xff]
      %v224 = vld [vmem:[%s1 + $0x8] sm:$0xff]
      %v225 = vld [vmem:[%s1 + $0x10] sm:$0xff]
      %v226 = vld [vmem:[%s1 + $0x18] sm:$0xff]
      %v227 = vld [vmem:[%s1 + $0x20] sm:$0xff]
      %v228 = vld [vmem:[%s1 + $0x28] sm:$0xff]
      %v229 = vld [vmem:[%s1 + $0x30] sm:$0xff]
      %v230 = vld [vmem:[%s1 + $0x38] sm:$0xff]
      %v231 = vld [vmem:[%s1 + $0x40] sm:$0xff]
      %v232 = vld [vmem:[%s1 + $0x48] sm:$0x33]
      %v243 = vunpack.c.l.b16 %v223
      %v244 = vunpack.c.h.b16 %v223
      %v245 = vunpack.c.l.b16 %v224
      %v246 = vunpack.c.h.b16 %v224
      %v247 = vunpack.c.l.b16 %v225
      %v248 = vunpack.c.h.b16 %v225
      %v249 = vunpack.c.l.b16 %v226
      %v250 = vunpack.c.h.b16 %v226
      %v251 = vunpack.c.l.b16 %v227
      %v252 = vunpack.c.h.b16 %v227
      %v253 = vunpack.c.l.b16 %v228
      %v254 = vunpack.c.h.b16 %v228
      %v255 = vunpack.c.l.b16 %v229
      %v256 = vunpack.c.h.b16 %v229
      %v257 = vunpack.c.l.b16 %v230
      %v258 = vunpack.c.h.b16 %v230
      %v259 = vunpack.c.l.b16 %v231
      %v260 = vunpack.c.h.b16 %v231
      %v261 = vunpack.c.l.b16 %v232
      %v262 = vunpack.c.h.b16 %v232
      %v263 = vpack.c.b16 %v245, %v243
      %v264 = vpack.c.b16 %v246, %v244
      %v265 = vpack.c.b16 %v249, %v247
      %v266 = vpack.c.b16 %v250, %v248
      %v267 = vpack.c.b16 %v253, %v251
      %v268 = vpack.c.b16 %v254, %v252
      %v269 = vpack.c.b16 %v257, %v255
      %v270 = vpack.c.b16 %v258, %v256
      %v271 = vpack.c.b16 %v261, %v259
      %v272 = vpack.c.b16 %v262, %v260
      %vm281 = vcmask 621568
      %v283 = vsel %vm281, %v222, 0
      %vm285 = vcmask 1045504
      %v287 = vsel %vm285, %v271, 0
      %v290 = vsel %vm285, %v272, 0
      %292 = vmatpush.bf16.msra.mxu0 0
      %293 = vmatpush.bf16.msra.mxu0 0
      %294 = vmatpush.bf16.msra.mxu0 0
      %295 = vmatpush.bf16.msra.mxu0 %v287
      %296 = vmatpush.bf16.msra.mxu0 %v269
      %297 = vmatpush.bf16.msra.mxu0 %v267
      %298 = vmatpush.bf16.msra.mxu0 %v265
      %299 = vmatpush.bf16.msra.mxu0 %v263
      %300 = vmatmul.bf16.gmra.mxu0 %v283
      %v301 = vpop.f32.mrf.mxu0
      %v302 = vadd.f32 0.0, %v301
      %v303 = vpop.f32.mrf.mxu0
      %v304 = vadd.f32 0.0, %v303
      %305 = vdwg.mxu0
      %306 = vmatpush.bf16.msra.mxu0 0
      %307 = vmatpush.bf16.msra.mxu0 0
      %308 = vmatpush.bf16.msra.mxu0 0
      %309 = vmatpush.bf16.msra.mxu0 %v290
      %310 = vmatpush.bf16.msra.mxu0 %v270
      %311 = vmatpush.bf16.msra.mxu0 %v268
      %312 = vmatpush.bf16.msra.mxu0 %v266
      %313 = vmatpush.bf16.msra.mxu0 %v264
      %314 = vmatmul.bf16.gmra.mxu0 %v283
      %v315 = vpop.f32.mrf.mxu0
      %v316 = vadd.f32 0.0, %v315
      %v317 = vpop.f32.mrf.mxu0
      %v318 = vadd.f32 0.0, %v317
      %319 = vdwg.mxu0
      %v320 = vpack.c.bf16 %v316, %v302
      %v321 = vpack.c.bf16 %v318, %v304
      %322 = vst [vmem:[%s201] sm:$0xff] %v320
      %323 = vst [vmem:[%s201 + $0x8] sm:$0xff] %v321
      %s324 = smul.u32 2, %s15
      %p325 = scmp.lt.s32.totalorder %s324, 3
      %s326 = scalar_select %p325, %s324, 3
      %s327 = smul.addr %s326, 2
      %s328 = smul.addr %s327, 4
      %s329 = scalar_lea.vmem %s4, %s328
      // Predicated region
      $region37: #{_lambda_.26} parent=35 // pred_check
        %p330 = pneg %p122
      $region38: #{_lambda_.26} parent=35 // pred_check_branch
        %332 = sbr.rel (%p330) target = $region40
      $region39: #{_lambda_.26} parent=35 // pred_region
        %s333 = smul.u32 2, %s15
      $region40: #{_lambda_.26} parent=35 // pred_fallthru
        _
    $region36: #{_lambda_.26} parent=5 // pred_fallthru
      _
    %p334 = scmp.le.s32.totalorder 2, %s10
    // Predicated region
    $region41: #{_lambda_.26} parent=5 // pred_check
      %p335 = pneg %p334
    $region42: #{_lambda_.26} parent=5 // pred_check_branch
      %337 = sbr.rel (%p335) target = $region44
    $region43: #{_lambda_.26} parent=5 // pred_region
      %s338 = ssub.s32 %s10, 2
      // Predicated region
      $region45: #{_lambda_.26} parent=43 // pred_check
        %p339 = pneg %p128
      $region46: #{_lambda_.26} parent=43 // pred_check_branch
        %341 = sbr.rel (%p339) target = $region48
      $region47: #{_lambda_.26} parent=43 // pred_region
        %s342 = smul.u32 2, %s16
        %p343 = scmp.lt.s32.totalorder %s342, 3
        %s344 = scalar_select %p343, %s342, 3
        %s345 = smul.addr %s344, 2
        %s346 = smul.addr %s345, 4
        %s347 = scalar_lea.vmem %s4, %s346
      $region48: #{_lambda_.26} parent=43 // pred_fallthru
        _
    $region44: #{_lambda_.26} parent=5 // pred_fallthru
      _
  $region6: #{_lambda_.26} parent=0 // loop_footer
    %s14 = sadd.s32 1, %s10
  $region7: #{_lambda_.26} parent=0 // loop_footer_branch
    %9 = sbr.rel target = $region3
  $region8: #{_lambda_.26} parent=0 // loop_exit
    _

// kernel: _lambda_.30
$region0: #{_lambda_.30}
  #allocation0 [shape = 'u32[]', space=smem, size = 0x4, offset = 0x4, fixed_abs, tag = 'smem constant byte address 0x4 - core index']
  #allocation1 [shape = 'u32[72,128]{1,0:T(1,128)}', space=vmem, size = 0x9000, scoped, tag = 'internal scratch']
  %s0 = inlined_call_operand.vmem [shape: bf16[32,140], index: 0, kind: input, shape index: {}]
  %s1 = inlined_call_operand.vmem [shape: bf16[140,128], index: 1, kind: input, shape index: {}]
  %s2 = inlined_call_operand.vmem [shape: f32[1,140], index: 2, kind: input, shape index: {}]
  %s3 = inlined_call_operand.vmem [shape: f32[1,140], index: 3, kind: input, shape index: {}]
  %s4 = inlined_call_operand.vmem [shape: f32[1,128], index: 4, kind: input, shape index: {}]
  %s5 = inlined_call_operand.vmem [shape: f32[1,128], index: 5, kind: input, shape index: {}]
  %s6 = inlined_call_operand.vmem [shape: bf16[32,128], index: 6, kind: output, shape index: {}]
  %s7 = sld [smem:[#allocation0]]
  $region57: #{_lambda_.30} parent=0
    _
  %s9 = ssub.s32 1, %s7
  %s10 = scalar_select 0, %s9, %s7
  loop: start=0, step=1, limit=4
  $region2: #{_lambda_.30} parent=0 // loop_pre_header
    _
  $region3: #{_lambda_.30} parent=0 // loop_header
    %s12 = sphi 0, %s16
    %p13 = scmp.ge.s32.totalorder %s12, 4
    %s22 = sphi 0, %s24
    %s25 = sphi 0, %s22
    %s26 = sphi 0, %s25
    %s42 = sphi 0, %s26
    %s46 = sphi 0, %s46
    %s48 = sphi 0, %s46
    %s49 = sphi 0, %s48
    %s63 = sphi 0, %s49
    %s67 = sphi 0, %s67
    %s69 = sphi 0, %s67
    %s70 = sphi 0, %s69
    %s84 = sphi 0, %s70
    %s88 = sphi 0, %s88
    %s90 = sphi 0, %s88
    %s91 = sphi 0, %s90
    %s105 = sphi 0, %s91
    %s109 = sphi 0, %s109
    %s111 = sphi 0, %s109
    %s112 = sphi 0, %s111
    %s126 = sphi 0, %s112
    %s130 = sphi 0, %s130
    %s132 = sphi 0, %s130
    %s133 = sphi 0, %s132
    %s147 = sphi 0, %s133
    %s153 = sphi 0, %s155
    %s156 = sphi 0, %s153
    %s157 = sphi 0, %s156
    %s173 = sphi 0, %s157
  $region4: #{_lambda_.30} parent=0 // loop_header_branch
    %15 = sbr.rel (%p13) target = $region8
  $region5: #{_lambda_.30} parent=0 // loop_body
    %s17 = ssub.s32 %s12, 1
    %s18 = ssub.s32 %s12, 2
    %s19 = sadd.s32 %s12, 1
    %s20 = ssub.s32 %s12, %s19
    %p21 = scmp.eq.s32.totalorder %s20, 0
    %s23 = sadd.s32 %s22, 1
    %s24 = scalar_select %p21, %s22, %s23
    %p27 = pneg %p21
    %p28 = scmp.eq.s32.totalorder %s12, 1
    %p29 = por %p27, %p28
    %p30 = scmp.ne.s32.totalorder %s22, %s25
    %p31 = scmp.eq.s32.totalorder %s12, 0
    %p32 = por %p30, %p31
    %p33 = scmp.ne.s32.totalorder %s22, %s25
    %p34 = scmp.eq.s32.totalorder %s17, 1
    %p35 = por %p33, %p34
    %p36 = scmp.ne.s32.totalorder %s25, %s26
    %p37 = scmp.eq.s32.totalorder %s17, 0
    %p38 = por %p36, %p37
    %p39 = scmp.ne.s32.totalorder %s25, %s26
    %p40 = scmp.eq.s32.totalorder %s18, 1
    %p41 = por %p39, %p40
    %p43 = scmp.ne.s32.totalorder %s26, %s42
    %p44 = scmp.eq.s32.totalorder %s18, 0
    %p45 = por %p43, %p44
    %s47 = sadd.s32 %s46, 1
    %p50 = scmp.eq.s32.totalorder %s12, 1
    %p51 = scmp.ne.s32.totalorder %s46, %s48
    %p52 = scmp.eq.s32.totalorder %s12, 0
    %p53 = por %p51, %p52
    %p54 = scmp.ne.s32.totalorder %s46, %s48
    %p55 = scmp.eq.s32.totalorder %s17, 1
    %p56 = por %p54, %p55
    %p57 = scmp.ne.s32.totalorder %s48, %s49
    %p58 = scmp.eq.s32.totalorder %s17, 0
    %p59 = por %p57, %p58
    %p60 = scmp.ne.s32.totalorder %s48, %s49
    %p61 = scmp.eq.s32.totalorder %s18, 1
    %p62 = por %p60, %p61
    %p64 = scmp.ne.s32.totalorder %s49, %s63
    %p65 = scmp.eq.s32.totalorder %s18, 0
    %p66 = por %p64, %p65
    %s68 = sadd.s32 %s67, 1
    %p71 = scmp.eq.s32.totalorder %s12, 1
    %p72 = scmp.ne.s32.totalorder %s67, %s69
    %p73 = scmp.eq.s32.totalorder %s12, 0
    %p74 = por %p72, %p73
    %p75 = scmp.ne.s32.totalorder %s67, %s69
    %p76 = scmp.eq.s32.totalorder %s17, 1
    %p77 = por %p75, %p76
    %p78 = scmp.ne.s32.totalorder %s69, %s70
    %p79 = scmp.eq.s32.totalorder %s17, 0
    %p80 = por %p78, %p79
    %p81 = scmp.ne.s32.totalorder %s69, %s70
    %p82 = scmp.eq.s32.totalorder %s18, 1
    %p83 = por %p81, %p82
    %p85 = scmp.ne.s32.totalorder %s70, %s84
    %p86 = scmp.eq.s32.totalorder %s18, 0
    %p87 = por %p85, %p86
    %s89 = sadd.s32 %s88, 1
    %p92 = scmp.eq.s32.totalorder %s12, 1
    %p93 = scmp.ne.s32.totalorder %s88, %s90
    %p94 = scmp.eq.s32.totalorder %s12, 0
    %p95 = por %p93, %p94
    %p96 = scmp.ne.s32.totalorder %s88, %s90
    %p97 = scmp.eq.s32.totalorder %s17, 1
    %p98 = por %p96, %p97
    %p99 = scmp.ne.s32.totalorder %s90, %s91
    %p100 = scmp.eq.s32.totalorder %s17, 0
    %p101 = por %p99, %p100
    %p102 = scmp.ne.s32.totalorder %s90, %s91
    %p103 = scmp.eq.s32.totalorder %s18, 1
    %p104 = por %p102, %p103
    %p106 = scmp.ne.s32.totalorder %s91, %s105
    %p107 = scmp.eq.s32.totalorder %s18, 0
    %p108 = por %p106, %p107
    %s110 = sadd.s32 %s109, 1
    %p113 = scmp.eq.s32.totalorder %s12, 1
    %p114 = scmp.ne.s32.totalorder %s109, %s111
    %p115 = scmp.eq.s32.totalorder %s12, 0
    %p116 = por %p114, %p115
    %p117 = scmp.ne.s32.totalorder %s109, %s111
    %p118 = scmp.eq.s32.totalorder %s17, 1
    %p119 = por %p117, %p118
    %p120 = scmp.ne.s32.totalorder %s111, %s112
    %p121 = scmp.eq.s32.totalorder %s17, 0
    %p122 = por %p120, %p121
    %p123 = scmp.ne.s32.totalorder %s111, %s112
    %p124 = scmp.eq.s32.totalorder %s18, 1
    %p125 = por %p123, %p124
    %p127 = scmp.ne.s32.totalorder %s112, %s126
    %p128 = scmp.eq.s32.totalorder %s18, 0
    %p129 = por %p127, %p128
    %s131 = sadd.s32 %s130, 1
    %p134 = scmp.eq.s32.totalorder %s12, 1
    %p135 = scmp.ne.s32.totalorder %s130, %s132
    %p136 = scmp.eq.s32.totalorder %s12, 0
    %p137 = por %p135, %p136
    %p138 = scmp.ne.s32.totalorder %s130, %s132
    %p139 = scmp.eq.s32.totalorder %s17, 1
    %p140 = por %p138, %p139
    %p141 = scmp.ne.s32.totalorder %s132, %s133
    %p142 = scmp.eq.s32.totalorder %s17, 0
    %p143 = por %p141, %p142
    %p144 = scmp.ne.s32.totalorder %s132, %s133
    %p145 = scmp.eq.s32.totalorder %s18, 1
    %p146 = por %p144, %p145
    %p148 = scmp.ne.s32.totalorder %s133, %s147
    %p149 = scmp.eq.s32.totalorder %s18, 0
    %p150 = por %p148, %p149
    %s151 = ssub.s32 %s12, %s19
    %p152 = scmp.eq.s32.totalorder %s151, 0
    %s154 = sadd.s32 %s153, 1
    %s155 = scalar_select %p152, %s153, %s154
    %p158 = pneg %p152
    %p159 = scmp.eq.s32.totalorder %s12, 1
    %p160 = por %p158, %p159
    %p161 = scmp.ne.s32.totalorder %s153, %s156
    %p162 = scmp.eq.s32.totalorder %s12, 0
    %p163 = por %p161, %p162
    %p164 = scmp.ne.s32.totalorder %s153, %s156
    %p165 = scmp.eq.s32.totalorder %s17, 1
    %p166 = por %p164, %p165
    %p167 = scmp.ne.s32.totalorder %s156, %s157
    %p168 = scmp.eq.s32.totalorder %s17, 0
    %p169 = por %p167, %p168
    %p170 = scmp.ne.s32.totalorder %s156, %s157
    %p171 = scmp.eq.s32.totalorder %s18, 1
    %p172 = por %p170, %p171
    %p174 = scmp.ne.s32.totalorder %s157, %s173
    %p175 = scmp.eq.s32.totalorder %s18, 0
    %p176 = por %p174, %p175
    %p177 = scmp.le.s32.totalorder 1, %s12
    %p178 = scmp.lt.s32.totalorder %s12, 3
    %p179 = pnand %p177, %p178
    %p180 = pneg %p179
    // Predicated region
    $region9: #{_lambda_.30} parent=5 // pred_check
      _
    $region10: #{_lambda_.30} parent=5 // pred_check_branch
      %182 = sbr.rel (%p179) target = $region12
    $region11: #{_lambda_.30} parent=5 // pred_region
      %s183 = ssub.s32 %s12, 1
      // Predicated region
      $region13: #{_lambda_.30} parent=11 // pred_check
        %p184 = pneg %p59
      $region14: #{_lambda_.30} parent=11 // pred_check_branch
        %186 = sbr.rel (%p184) target = $region16
      $region15: #{_lambda_.30} parent=11 // pred_region
        _
      $region16: #{_lambda_.30} parent=11 // pred_fallthru
        _
      // Predicated region
      $region17: #{_lambda_.30} parent=11 // pred_check
        %p187 = pneg %p80
      $region18: #{_lambda_.30} parent=11 // pred_check_branch
        %189 = sbr.rel (%p187) target = $region20
      $region19: #{_lambda_.30} parent=11 // pred_region
        _
      $region20: #{_lambda_.30} parent=11 // pred_fallthru
        _
      // Predicated region
      $region21: #{_lambda_.30} parent=11 // pred_check
        %p190 = pneg %p101
      $region22: #{_lambda_.30} parent=11 // pred_check_branch
        %192 = sbr.rel (%p190) target = $region24
      $region23: #{_lambda_.30} parent=11 // pred_region
        _
      $region24: #{_lambda_.30} parent=11 // pred_fallthru
        _
      // Predicated region
      $region25: #{_lambda_.30} parent=11 // pred_check
        %p193 = pneg %p122
      $region26: #{_lambda_.30} parent=11 // pred_check_branch
        %195 = sbr.rel (%p193) target = $region28
      $region27: #{_lambda_.30} parent=11 // pred_region
        _
      $region28: #{_lambda_.30} parent=11 // pred_fallthru
        _
      // Predicated region
      $region29: #{_lambda_.30} parent=11 // pred_check
        %p196 = pneg %p143
      $region30: #{_lambda_.30} parent=11 // pred_check_branch
        %198 = sbr.rel (%p196) target = $region32
      $region31: #{_lambda_.30} parent=11 // pred_region
        _
      $region32: #{_lambda_.30} parent=11 // pred_fallthru
        _
    $region12: #{_lambda_.30} parent=5 // pred_fallthru
      _
    %p199 = scmp.lt.s32.totalorder %s12, 2
    // Predicated region
    $region33: #{_lambda_.30} parent=5 // pred_check
      %p200 = pneg %p199
    $region34: #{_lambda_.30} parent=5 // pred_check_branch
      %202 = sbr.rel (%p200) target = $region36
    $region35: #{_lambda_.30} parent=5 // pred_region
      // Predicated region
      $region37: #{_lambda_.30} parent=35 // pred_check
        %p203 = pneg %p32
      $region38: #{_lambda_.30} parent=35 // pred_check_branch
        %205 = sbr.rel (%p203) target = $region40
      $region39: #{_lambda_.30} parent=35 // pred_region
        %s206 = smul.u32 2, %s12
        %p207 = scmp.lt.s32.totalorder %s206, 3
        %s208 = scalar_select %p207, %s206, 3
        %s209 = smul.addr %s208, 2
        %s210 = smul.addr %s209, 4
        %s211 = scalar_lea.vmem %s0, %s210
        %s212 = smul.u32 2, %s12
      $region40: #{_lambda_.30} parent=35 // pred_fallthru
        _
    $region36: #{_lambda_.30} parent=5 // pred_fallthru
      _
    %p213 = scmp.le.s32.totalorder 1, %s12
    %p214 = scmp.lt.s32.totalorder %s12, 3
    %p215 = pnand %p213, %p214
    %p216 = pneg %p215
    // Predicated region
    $region41: #{_lambda_.30} parent=5 // pred_check
      _
    $region42: #{_lambda_.30} parent=5 // pred_check_branch
      %218 = sbr.rel (%p215) target = $region44
    $region43: #{_lambda_.30} parent=5 // pred_region
      %s219 = ssub.s32 %s12, 1
      %s220 = smul.u32 2, %s17
      %p221 = scmp.lt.s32.totalorder %s220, 3
      %s222 = scalar_select %p221, %s220, 3
      %s223 = smul.addr %s222, 2
      %s224 = smul.addr %s223, 4
      %s225 = scalar_lea.vmem %s0, %s224
      %p226 = pneg %p38
      %p227 = pneg %p35
      %p228 = pneg %p59
      %p229 = pneg %p56
      %p230 = pneg %p80
      %p231 = pneg %p77
      %p232 = pneg %p101
      %p233 = pneg %p98
      %p234 = pneg %p122
      %p235 = pneg %p119
      %p236 = pneg %p143
      %p237 = pneg %p140
      %p238 = pneg %p169
      %p239 = pneg %p166
      %s240 = smul.u32 2, %s17
      %p241 = scmp.lt.s32.totalorder %s240, 3
      %s242 = scalar_select %p241, %s240, 3
      %s243 = smul.addr %s242, 4
      %s244 = scalar_lea.vmem %s6, %s243
      %s245 = smul.u32 2, %s17
      %p246 = scmp.lt.s32.totalorder %s245, 3
      %s247 = scalar_select %p246, %s245, 3
      %s248 = smul.addr %s247, 2
      %s249 = smul.addr %s248, 4
      %s250 = scalar_lea.vmem %s0, %s249
      %s251 = smul.u32 2, %s17
      %s252 = smul.u32 2, %s17
      %p253 = scmp.lt.s32.totalorder %s252, 3
      %s254 = scalar_select %p253, %s252, 3
      %s255 = smul.addr %s254, 4
      %s256 = scalar_lea.vmem %s6, %s255
      %s257 = smul.u32 2, %s17
      %v259 = vld [vmem:[%s250] sm:$0xff]
      %v260 = vld [vmem:[%s250 + $0x8] sm:$0xff]
      %v261 = vunpack.c.l.bf16 %v259
      %v262 = vunpack.c.h.bf16 %v259
      %v263 = vunpack.c.l.bf16 %v260
      %v264 = vunpack.c.h.bf16 %v260
      %v265 = vld [vmem:[%s2] sm:$0x3]
      %v267 = vperm.slane %v265, 0
      %v268 = vperm.slane %v265, 1
      %v271 = vmul.f32 %v261, %v267
      %v272 = vmul.f32 %v262, %v268
      %v273 = vmul.f32 %v263, %v267
      %v274 = vmul.f32 %v264, %v268
      %v275 = vld [vmem:[%s3] sm:$0x3]
      %v277 = vperm.slane %v275, 0
      %v278 = vperm.slane %v275, 1
      %v281 = vadd.f32 %v271, %v277
      %v282 = vadd.f32 %v272, %v278
      %v283 = vadd.f32 %v273, %v277
      %v284 = vadd.f32 %v274, %v278
      %v285 = vmax.f32 %v281, 0.0
      %v286 = vmax.f32 %v282, 0.0
      %v287 = vmax.f32 %v283, 0.0
      %v288 = vmax.f32 %v284, 0.0
      %v289 = vpack.c.bf16 %v287, %v285
      %v290 = vpack.c.bf16 %v288, %v286
      %v291 = vld [vmem:[%s1] sm:$0xf]
      %v292 = vld [vmem:[%s1 + $0x4] sm:$0xf]
      %v293 = vld [vmem:[%s1 + $0x8] sm:$0xf]
      %v294 = vld [vmem:[%s1 + $0xc] sm:$0xf]
      %v295 = vld [vmem:[%s1 + $0x10] sm:$0xf]
      %v296 = vld [vmem:[%s1 + $0x14] sm:$0xf]
      %v297 = vld [vmem:[%s1 + $0x18] sm:$0xf]
      %v298 = vld [vmem:[%s1 + $0x1c] sm:$0xf]
      %v299 = vld [vmem:[%s1 + $0x20] sm:$0xf]
      %v300 = vld [vmem:[%s1 + $0x24] sm:$0xf]
      %v301 = vld [vmem:[%s1 + $0x28] sm:$0xf]
      %v302 = vld [vmem:[%s1 + $0x2c] sm:$0xf]
      %v303 = vld [vmem:[%s1 + $0x30] sm:$0xf]
      %v304 = vld [vmem:[%s1 + $0x34] sm:$0xf]
      %v305 = vld [vmem:[%s1 + $0x38] sm:$0xf]
      %v306 = vld [vmem:[%s1 + $0x3c] sm:$0xf]
      %v307 = vld [vmem:[%s1 + $0x40] sm:$0xf]
      %v308 = vld [vmem:[%s1 + $0x44] sm:$0x3]
      %v327 = vunpack.c.l.b16 %v291
      %v328 = vunpack.c.l.b16 %v292
      %v329 = vunpack.c.l.b16 %v293
      %v330 = vunpack.c.l.b16 %v294
      %v331 = vunpack.c.l.b16 %v295
      %v332 = vunpack.c.l.b16 %v296
      %v333 = vunpack.c.l.b16 %v297
      %v334 = vunpack.c.l.b16 %v298
      %v335 = vunpack.c.l.b16 %v299
      %v336 = vunpack.c.l.b16 %v300
      %v337 = vunpack.c.l.b16 %v301
      %v338 = vunpack.c.l.b16 %v302
      %v339 = vunpack.c.l.b16 %v303
      %v340 = vunpack.c.l.b16 %v304
      %v341 = vunpack.c.l.b16 %v305
      %v342 = vunpack.c.l.b16 %v306
      %v343 = vunpack.c.l.b16 %v307
      %v344 = vunpack.c.l.b16 %v308
      %v345 = vpack.c.b16 %v328, %v327
      %v346 = vpack.c.b16 %v330, %v329
      %v347 = vpack.c.b16 %v332, %v331
      %v348 = vpack.c.b16 %v334, %v333
      %v349 = vpack.c.b16 %v336, %v335
      %v350 = vpack.c.b16 %v338, %v337
      %v351 = vpack.c.b16 %v340, %v339
      %v352 = vpack.c.b16 %v342, %v341
      %v353 = vpack.c.b16 %v344, %v343
      %vm362 = vcmask 97280
      %v364 = vsel %vm362, %v290, 0
      %vm366 = vcmask 1045504
      %v368 = vsel %vm366, %v353, 0
      %370 = vmatpush.bf16.msra.mxu0 %v352
      %371 = vmatpush.bf16.msra.mxu0 %v351
      %372 = vmatpush.bf16.msra.mxu0 %v350
      %373 = vmatpush.bf16.msra.mxu0 %v349
      %374 = vmatpush.bf16.msra.mxu0 %v348
      %375 = vmatpush.bf16.msra.mxu0 %v347
      %376 = vmatpush.bf16.msra.mxu0 %v346
      %377 = vmatpush.bf16.msra.mxu0 %v345
      %378 = vmatmul.bf16.gmra.mxu0 %v289
      %v379 = vpop.f32.mrf.mxu0
      %v380 = vadd.f32 0.0, %v379
      %v381 = vpop.f32.mrf.mxu0
      %v382 = vadd.f32 0.0, %v381
      %383 = vdwg.mxu0
      %384 = vmatpush.bf16.msra.mxu0 0
      %385 = vmatpush.bf16.msra.mxu0 0
      %386 = vmatpush.bf16.msra.mxu0 0
      %387 = vmatpush.bf16.msra.mxu0 0
      %388 = vmatpush.bf16.msra.mxu0 0
      %389 = vmatpush.bf16.msra.mxu0 0
      %390 = vmatpush.bf16.msra.mxu0 0
      %391 = vmatpush.bf16.msra.mxu0 %v368
      %392 = vmatmul.bf16.gmra.mxu0 %v364
      %v393 = vpop.f32.mrf.mxu0
      %v394 = vadd.f32 %v380, %v393
      %v395 = vpop.f32.mrf.mxu0
      %v396 = vadd.f32 %v382, %v395
      %397 = vdwg.mxu0
      %v398 = vld [vmem:[%s4] sm:$0x1]
      %v400 = vperm.slane %v398, 0
      %v402 = vmul.f32 %v394, %v400
      %v403 = vmul.f32 %v396, %v400
      %v404 = vld [vmem:[%s5] sm:$0x1]
      %v406 = vperm.slane %v404, 0
      %v408 = vadd.f32 %v402, %v406
      %v409 = vadd.f32 %v403, %v406
      %v410 = vmax.f32 %v408, 0.0
      %v411 = vmax.f32 %v409, 0.0
      %v412 = vpack.c.bf16 %v410, %v410
      %v413 = vpack.c.bf16 %v411, %v411
      %414 = vst [vmem:[%s256] sm:$0xf] %v412
      %415 = vst [vmem:[%s256 + $0x4] sm:$0xf] %v413
      %s416 = smul.u32 2, %s17
      %p417 = scmp.lt.s32.totalorder %s416, 3
      %s418 = scalar_select %p417, %s416, 3
      %s419 = smul.addr %s418, 4
      %s420 = scalar_lea.vmem %s6, %s419
      // Predicated region
      $region45: #{_lambda_.30} parent=43 // pred_check
        %p421 = pneg %p166
      $region46: #{_lambda_.30} parent=43 // pred_check_branch
        %423 = sbr.rel (%p421) target = $region48
      $region47: #{_lambda_.30} parent=43 // pred_region
        %s424 = smul.u32 2, %s17
      $region48: #{_lambda_.30} parent=43 // pred_fallthru
        _
    $region44: #{_lambda_.30} parent=5 // pred_fallthru
      _
    %p425 = scmp.le.s32.totalorder 2, %s12
    // Predicated region
    $region49: #{_lambda_.30} parent=5 // pred_check
      %p426 = pneg %p425
    $region50: #{_lambda_.30} parent=5 // pred_check_branch
      %428 = sbr.rel (%p426) target = $region52
    $region51: #{_lambda_.30} parent=5 // pred_region
      %s429 = ssub.s32 %s12, 2
      // Predicated region
      $region53: #{_lambda_.30} parent=51 // pred_check
        %p430 = pneg %p172
      $region54: #{_lambda_.30} parent=51 // pred_check_branch
        %432 = sbr.rel (%p430) target = $region56
      $region55: #{_lambda_.30} parent=51 // pred_region
        %s433 = smul.u32 2, %s18
        %p434 = scmp.lt.s32.totalorder %s433, 3
        %s435 = scalar_select %p434, %s433, 3
        %s436 = smul.addr %s435, 4
        %s437 = scalar_lea.vmem %s6, %s436
      $region56: #{_lambda_.30} parent=51 // pred_fallthru
        _
    $region52: #{_lambda_.30} parent=5 // pred_fallthru
      _
  $region6: #{_lambda_.30} parent=0 // loop_footer
    %s16 = sadd.s32 1, %s12
  $region7: #{_lambda_.30} parent=0 // loop_footer_branch
    %11 = sbr.rel target = $region3
  $region8: #{_lambda_.30} parent=0 // loop_exit
    _

// kernel: _lambda_.34
$region0: #{_lambda_.34}
  #allocation0 [shape = 'u32[]', space=smem, size = 0x4, offset = 0x4, fixed_abs, tag = 'smem constant byte address 0x4 - core index']
  #allocation1 [shape = 'u32[72,128]{1,0:T(1,128)}', space=vmem, size = 0x9000, scoped, tag = 'internal scratch']
  %s0 = inlined_call_operand.vmem [shape: bf16[32,144], index: 0, kind: input, shape index: {}]
  %s1 = inlined_call_operand.vmem [shape: bf16[144,128], index: 1, kind: input, shape index: {}]
  %s2 = inlined_call_operand.vmem [shape: f32[1,144], index: 2, kind: input, shape index: {}]
  %s3 = inlined_call_operand.vmem [shape: f32[1,144], index: 3, kind: input, shape index: {}]
  %s4 = inlined_call_operand.vmem [shape: f32[1,128], index: 4, kind: input, shape index: {}]
  %s5 = inlined_call_operand.vmem [shape: f32[1,128], index: 5, kind: input, shape index: {}]
  %s6 = inlined_call_operand.vmem [shape: bf16[32,128], index: 6, kind: output, shape index: {}]
  %s7 = sld [smem:[#allocation0]]
  $region57: #{_lambda_.34} parent=0
    _
  %s9 = ssub.s32 1, %s7
  %s10 = scalar_select 0, %s9, %s7
  loop: start=0, step=1, limit=4
  $region2: #{_lambda_.34} parent=0 // loop_pre_header
    _
  $region3: #{_lambda_.34} parent=0 // loop_header
    %s12 = sphi 0, %s16
    %p13 = scmp.ge.s32.totalorder %s12, 4
    %s22 = sphi 0, %s24
    %s25 = sphi 0, %s22
    %s26 = sphi 0, %s25
    %s42 = sphi 0, %s26
    %s46 = sphi 0, %s46
    %s48 = sphi 0, %s46
    %s49 = sphi 0, %s48
    %s63 = sphi 0, %s49
    %s67 = sphi 0, %s67
    %s69 = sphi 0, %s67
    %s70 = sphi 0, %s69
    %s84 = sphi 0, %s70
    %s88 = sphi 0, %s88
    %s90 = sphi 0, %s88
    %s91 = sphi 0, %s90
    %s105 = sphi 0, %s91
    %s109 = sphi 0, %s109
    %s111 = sphi 0, %s109
    %s112 = sphi 0, %s111
    %s126 = sphi 0, %s112
    %s130 = sphi 0, %s130
    %s132 = sphi 0, %s130
    %s133 = sphi 0, %s132
    %s147 = sphi 0, %s133
    %s153 = sphi 0, %s155
    %s156 = sphi 0, %s153
    %s157 = sphi 0, %s156
    %s173 = sphi 0, %s157
  $region4: #{_lambda_.34} parent=0 // loop_header_branch
    %15 = sbr.rel (%p13) target = $region8
  $region5: #{_lambda_.34} parent=0 // loop_body
    %s17 = ssub.s32 %s12, 1
    %s18 = ssub.s32 %s12, 2
    %s19 = sadd.s32 %s12, 1
    %s20 = ssub.s32 %s12, %s19
    %p21 = scmp.eq.s32.totalorder %s20, 0
    %s23 = sadd.s32 %s22, 1
    %s24 = scalar_select %p21, %s22, %s23
    %p27 = pneg %p21
    %p28 = scmp.eq.s32.totalorder %s12, 1
    %p29 = por %p27, %p28
    %p30 = scmp.ne.s32.totalorder %s22, %s25
    %p31 = scmp.eq.s32.totalorder %s12, 0
    %p32 = por %p30, %p31
    %p33 = scmp.ne.s32.totalorder %s22, %s25
    %p34 = scmp.eq.s32.totalorder %s17, 1
    %p35 = por %p33, %p34
    %p36 = scmp.ne.s32.totalorder %s25, %s26
    %p37 = scmp.eq.s32.totalorder %s17, 0
    %p38 = por %p36, %p37
    %p39 = scmp.ne.s32.totalorder %s25, %s26
    %p40 = scmp.eq.s32.totalorder %s18, 1
    %p41 = por %p39, %p40
    %p43 = scmp.ne.s32.totalorder %s26, %s42
    %p44 = scmp.eq.s32.totalorder %s18, 0
    %p45 = por %p43, %p44
    %s47 = sadd.s32 %s46, 1
    %p50 = scmp.eq.s32.totalorder %s12, 1
    %p51 = scmp.ne.s32.totalorder %s46, %s48
    %p52 = scmp.eq.s32.totalorder %s12, 0
    %p53 = por %p51, %p52
    %p54 = scmp.ne.s32.totalorder %s46, %s48
    %p55 = scmp.eq.s32.totalorder %s17, 1
    %p56 = por %p54, %p55
    %p57 = scmp.ne.s32.totalorder %s48, %s49
    %p58 = scmp.eq.s32.totalorder %s17, 0
    %p59 = por %p57, %p58
    %p60 = scmp.ne.s32.totalorder %s48, %s49
    %p61 = scmp.eq.s32.totalorder %s18, 1
    %p62 = por %p60, %p61
    %p64 = scmp.ne.s32.totalorder %s49, %s63
    %p65 = scmp.eq.s32.totalorder %s18, 0
    %p66 = por %p64, %p65
    %s68 = sadd.s32 %s67, 1
    %p71 = scmp.eq.s32.totalorder %s12, 1
    %p72 = scmp.ne.s32.totalorder %s67, %s69
    %p73 = scmp.eq.s32.totalorder %s12, 0
    %p74 = por %p72, %p73
    %p75 = scmp.ne.s32.totalorder %s67, %s69
    %p76 = scmp.eq.s32.totalorder %s17, 1
    %p77 = por %p75, %p76
    %p78 = scmp.ne.s32.totalorder %s69, %s70
    %p79 = scmp.eq.s32.totalorder %s17, 0
    %p80 = por %p78, %p79
    %p81 = scmp.ne.s32.totalorder %s69, %s70
    %p82 = scmp.eq.s32.totalorder %s18, 1
    %p83 = por %p81, %p82
    %p85 = scmp.ne.s32.totalorder %s70, %s84
    %p86 = scmp.eq.s32.totalorder %s18, 0
    %p87 = por %p85, %p86
    %s89 = sadd.s32 %s88, 1
    %p92 = scmp.eq.s32.totalorder %s12, 1
    %p93 = scmp.ne.s32.totalorder %s88, %s90
    %p94 = scmp.eq.s32.totalorder %s12, 0
    %p95 = por %p93, %p94
    %p96 = scmp.ne.s32.totalorder %s88, %s90
    %p97 = scmp.eq.s32.totalorder %s17, 1
    %p98 = por %p96, %p97
    %p99 = scmp.ne.s32.totalorder %s90, %s91
    %p100 = scmp.eq.s32.totalorder %s17, 0
    %p101 = por %p99, %p100
    %p102 = scmp.ne.s32.totalorder %s90, %s91
    %p103 = scmp.eq.s32.totalorder %s18, 1
    %p104 = por %p102, %p103
    %p106 = scmp.ne.s32.totalorder %s91, %s105
    %p107 = scmp.eq.s32.totalorder %s18, 0
    %p108 = por %p106, %p107
    %s110 = sadd.s32 %s109, 1
    %p113 = scmp.eq.s32.totalorder %s12, 1
    %p114 = scmp.ne.s32.totalorder %s109, %s111
    %p115 = scmp.eq.s32.totalorder %s12, 0
    %p116 = por %p114, %p115
    %p117 = scmp.ne.s32.totalorder %s109, %s111
    %p118 = scmp.eq.s32.totalorder %s17, 1
    %p119 = por %p117, %p118
    %p120 = scmp.ne.s32.totalorder %s111, %s112
    %p121 = scmp.eq.s32.totalorder %s17, 0
    %p122 = por %p120, %p121
    %p123 = scmp.ne.s32.totalorder %s111, %s112
    %p124 = scmp.eq.s32.totalorder %s18, 1
    %p125 = por %p123, %p124
    %p127 = scmp.ne.s32.totalorder %s112, %s126
    %p128 = scmp.eq.s32.totalorder %s18, 0
    %p129 = por %p127, %p128
    %s131 = sadd.s32 %s130, 1
    %p134 = scmp.eq.s32.totalorder %s12, 1
    %p135 = scmp.ne.s32.totalorder %s130, %s132
    %p136 = scmp.eq.s32.totalorder %s12, 0
    %p137 = por %p135, %p136
    %p138 = scmp.ne.s32.totalorder %s130, %s132
    %p139 = scmp.eq.s32.totalorder %s17, 1
    %p140 = por %p138, %p139
    %p141 = scmp.ne.s32.totalorder %s132, %s133
    %p142 = scmp.eq.s32.totalorder %s17, 0
    %p143 = por %p141, %p142
    %p144 = scmp.ne.s32.totalorder %s132, %s133
    %p145 = scmp.eq.s32.totalorder %s18, 1
    %p146 = por %p144, %p145
    %p148 = scmp.ne.s32.totalorder %s133, %s147
    %p149 = scmp.eq.s32.totalorder %s18, 0
    %p150 = por %p148, %p149
    %s151 = ssub.s32 %s12, %s19
    %p152 = scmp.eq.s32.totalorder %s151, 0
    %s154 = sadd.s32 %s153, 1
    %s155 = scalar_select %p152, %s153, %s154
    %p158 = pneg %p152
    %p159 = scmp.eq.s32.totalorder %s12, 1
    %p160 = por %p158, %p159
    %p161 = scmp.ne.s32.totalorder %s153, %s156
    %p162 = scmp.eq.s32.totalorder %s12, 0
    %p163 = por %p161, %p162
    %p164 = scmp.ne.s32.totalorder %s153, %s156
    %p165 = scmp.eq.s32.totalorder %s17, 1
    %p166 = por %p164, %p165
    %p167 = scmp.ne.s32.totalorder %s156, %s157
    %p168 = scmp.eq.s32.totalorder %s17, 0
    %p169 = por %p167, %p168
    %p170 = scmp.ne.s32.totalorder %s156, %s157
    %p171 = scmp.eq.s32.totalorder %s18, 1
    %p172 = por %p170, %p171
    %p174 = scmp.ne.s32.totalorder %s157, %s173
    %p175 = scmp.eq.s32.totalorder %s18, 0
    %p176 = por %p174, %p175
    %p177 = scmp.le.s32.totalorder 1, %s12
    %p178 = scmp.lt.s32.totalorder %s12, 3
    %p179 = pnand %p177, %p178
    %p180 = pneg %p179
    // Predicated region
    $region9: #{_lambda_.34} parent=5 // pred_check
      _
    $region10: #{_lambda_.34} parent=5 // pred_check_branch
      %182 = sbr.rel (%p179) target = $region12
    $region11: #{_lambda_.34} parent=5 // pred_region
      %s183 = ssub.s32 %s12, 1
      // Predicated region
      $region13: #{_lambda_.34} parent=11 // pred_check
        %p184 = pneg %p59
      $region14: #{_lambda_.34} parent=11 // pred_check_branch
        %186 = sbr.rel (%p184) target = $region16
      $region15: #{_lambda_.34} parent=11 // pred_region
        _
      $region16: #{_lambda_.34} parent=11 // pred_fallthru
        _
      // Predicated region
      $region17: #{_lambda_.34} parent=11 // pred_check
        %p187 = pneg %p80
      $region18: #{_lambda_.34} parent=11 // pred_check_branch
        %189 = sbr.rel (%p187) target = $region20
      $region19: #{_lambda_.34} parent=11 // pred_region
        _
      $region20: #{_lambda_.34} parent=11 // pred_fallthru
        _
      // Predicated region
      $region21: #{_lambda_.34} parent=11 // pred_check
        %p190 = pneg %p101
      $region22: #{_lambda_.34} parent=11 // pred_check_branch
        %192 = sbr.rel (%p190) target = $region24
      $region23: #{_lambda_.34} parent=11 // pred_region
        _
      $region24: #{_lambda_.34} parent=11 // pred_fallthru
        _
      // Predicated region
      $region25: #{_lambda_.34} parent=11 // pred_check
        %p193 = pneg %p122
      $region26: #{_lambda_.34} parent=11 // pred_check_branch
        %195 = sbr.rel (%p193) target = $region28
      $region27: #{_lambda_.34} parent=11 // pred_region
        _
      $region28: #{_lambda_.34} parent=11 // pred_fallthru
        _
      // Predicated region
      $region29: #{_lambda_.34} parent=11 // pred_check
        %p196 = pneg %p143
      $region30: #{_lambda_.34} parent=11 // pred_check_branch
        %198 = sbr.rel (%p196) target = $region32
      $region31: #{_lambda_.34} parent=11 // pred_region
        _
      $region32: #{_lambda_.34} parent=11 // pred_fallthru
        _
    $region12: #{_lambda_.34} parent=5 // pred_fallthru
      _
    %p199 = scmp.lt.s32.totalorder %s12, 2
    // Predicated region
    $region33: #{_lambda_.34} parent=5 // pred_check
      %p200 = pneg %p199
    $region34: #{_lambda_.34} parent=5 // pred_check_branch
      %202 = sbr.rel (%p200) target = $region36
    $region35: #{_lambda_.34} parent=5 // pred_region
      // Predicated region
      $region37: #{_lambda_.34} parent=35 // pred_check
        %p203 = pneg %p32
      $region38: #{_lambda_.34} parent=35 // pred_check_branch
        %205 = sbr.rel (%p203) target = $region40
      $region39: #{_lambda_.34} parent=35 // pred_region
        %s206 = smul.u32 2, %s12
        %p207 = scmp.lt.s32.totalorder %s206, 3
        %s208 = scalar_select %p207, %s206, 3
        %s209 = smul.addr %s208, 2
        %s210 = smul.addr %s209, 4
        %s211 = scalar_lea.vmem %s0, %s210
        %s212 = smul.u32 2, %s12
      $region40: #{_lambda_.34} parent=35 // pred_fallthru
        _
    $region36: #{_lambda_.34} parent=5 // pred_fallthru
      _
    %p213 = scmp.le.s32.totalorder 1, %s12
    %p214 = scmp.lt.s32.totalorder %s12, 3
    %p215 = pnand %p213, %p214
    %p216 = pneg %p215
    // Predicated region
    $region41: #{_lambda_.34} parent=5 // pred_check
      _
    $region42: #{_lambda_.34} parent=5 // pred_check_branch
      %218 = sbr.rel (%p215) target = $region44
    $region43: #{_lambda_.34} parent=5 // pred_region
      %s219 = ssub.s32 %s12, 1
      %s220 = smul.u32 2, %s17
      %p221 = scmp.lt.s32.totalorder %s220, 3
      %s222 = scalar_select %p221, %s220, 3
      %s223 = smul.addr %s222, 2
      %s224 = smul.addr %s223, 4
      %s225 = scalar_lea.vmem %s0, %s224
      %p226 = pneg %p38
      %p227 = pneg %p35
      %p228 = pneg %p59
      %p229 = pneg %p56
      %p230 = pneg %p80
      %p231 = pneg %p77
      %p232 = pneg %p101
      %p233 = pneg %p98
      %p234 = pneg %p122
      %p235 = pneg %p119
      %p236 = pneg %p143
      %p237 = pneg %p140
      %p238 = pneg %p169
      %p239 = pneg %p166
      %s240 = smul.u32 2, %s17
      %p241 = scmp.lt.s32.totalorder %s240, 3
      %s242 = scalar_select %p241, %s240, 3
      %s243 = smul.addr %s242, 4
      %s244 = scalar_lea.vmem %s6, %s243
      %s245 = smul.u32 2, %s17
      %p246 = scmp.lt.s32.totalorder %s245, 3
      %s247 = scalar_select %p246, %s245, 3
      %s248 = smul.addr %s247, 2
      %s249 = smul.addr %s248, 4
      %s250 = scalar_lea.vmem %s0, %s249
      %s251 = smul.u32 2, %s17
      %s252 = smul.u32 2, %s17
      %p253 = scmp.lt.s32.totalorder %s252, 3
      %s254 = scalar_select %p253, %s252, 3
      %s255 = smul.addr %s254, 4
      %s256 = scalar_lea.vmem %s6, %s255
      %s257 = smul.u32 2, %s17
      %v259 = vld [vmem:[%s250] sm:$0xff]
      %v260 = vld [vmem:[%s250 + $0x8] sm:$0xff]
      %v261 = vunpack.c.l.bf16 %v259
      %v262 = vunpack.c.h.bf16 %v259
      %v263 = vunpack.c.l.bf16 %v260
      %v264 = vunpack.c.h.bf16 %v260
      %v265 = vld [vmem:[%s2] sm:$0x3]
      %v267 = vperm.slane %v265, 0
      %v268 = vperm.slane %v265, 1
      %v271 = vmul.f32 %v261, %v267
      %v272 = vmul.f32 %v262, %v268
      %v273 = vmul.f32 %v263, %v267
      %v274 = vmul.f32 %v264, %v268
      %v275 = vld [vmem:[%s3] sm:$0x3]
      %v277 = vperm.slane %v275, 0
      %v278 = vperm.slane %v275, 1
      %v281 = vadd.f32 %v271, %v277
      %v282 = vadd.f32 %v272, %v278
      %v283 = vadd.f32 %v273, %v277
      %v284 = vadd.f32 %v274, %v278
      %v285 = vmax.f32 %v281, 0.0
      %v286 = vmax.f32 %v282, 0.0
      %v287 = vmax.f32 %v283, 0.0
      %v288 = vmax.f32 %v284, 0.0
      %v289 = vpack.c.bf16 %v287, %v285
      %v290 = vpack.c.bf16 %v288, %v286
      %v291 = vld [vmem:[%s1] sm:$0xf]
      %v292 = vld [vmem:[%s1 + $0x4] sm:$0xf]
      %v293 = vld [vmem:[%s1 + $0x8] sm:$0xf]
      %v294 = vld [vmem:[%s1 + $0xc] sm:$0xf]
      %v295 = vld [vmem:[%s1 + $0x10] sm:$0xf]
      %v296 = vld [vmem:[%s1 + $0x14] sm:$0xf]
      %v297 = vld [vmem:[%s1 + $0x18] sm:$0xf]
      %v298 = vld [vmem:[%s1 + $0x1c] sm:$0xf]
      %v299 = vld [vmem:[%s1 + $0x20] sm:$0xf]
      %v300 = vld [vmem:[%s1 + $0x24] sm:$0xf]
      %v301 = vld [vmem:[%s1 + $0x28] sm:$0xf]
      %v302 = vld [vmem:[%s1 + $0x2c] sm:$0xf]
      %v303 = vld [vmem:[%s1 + $0x30] sm:$0xf]
      %v304 = vld [vmem:[%s1 + $0x34] sm:$0xf]
      %v305 = vld [vmem:[%s1 + $0x38] sm:$0xf]
      %v306 = vld [vmem:[%s1 + $0x3c] sm:$0xf]
      %v307 = vld [vmem:[%s1 + $0x40] sm:$0xf]
      %v308 = vld [vmem:[%s1 + $0x44] sm:$0xf]
      %v327 = vunpack.c.l.b16 %v291
      %v328 = vunpack.c.l.b16 %v292
      %v329 = vunpack.c.l.b16 %v293
      %v330 = vunpack.c.l.b16 %v294
      %v331 = vunpack.c.l.b16 %v295
      %v332 = vunpack.c.l.b16 %v296
      %v333 = vunpack.c.l.b16 %v297
      %v334 = vunpack.c.l.b16 %v298
      %v335 = vunpack.c.l.b16 %v299
      %v336 = vunpack.c.l.b16 %v300
      %v337 = vunpack.c.l.b16 %v301
      %v338 = vunpack.c.l.b16 %v302
      %v339 = vunpack.c.l.b16 %v303
      %v340 = vunpack.c.l.b16 %v304
      %v341 = vunpack.c.l.b16 %v305
      %v342 = vunpack.c.l.b16 %v306
      %v343 = vunpack.c.l.b16 %v307
      %v344 = vunpack.c.l.b16 %v308
      %v345 = vpack.c.b16 %v328, %v327
      %v346 = vpack.c.b16 %v330, %v329
      %v347 = vpack.c.b16 %v332, %v331
      %v348 = vpack.c.b16 %v334, %v333
      %v349 = vpack.c.b16 %v336, %v335
      %v350 = vpack.c.b16 %v338, %v337
      %v351 = vpack.c.b16 %v340, %v339
      %v352 = vpack.c.b16 %v342, %v341
      %v353 = vpack.c.b16 %v344, %v343
      %vm363 = vcmask 130048
      %v365 = vsel %vm363, %v290, 0
      %367 = vmatpush.bf16.msra.mxu0 %v352
      %368 = vmatpush.bf16.msra.mxu0 %v351
      %369 = vmatpush.bf16.msra.mxu0 %v350
      %370 = vmatpush.bf16.msra.mxu0 %v349
      %371 = vmatpush.bf16.msra.mxu0 %v348
      %372 = vmatpush.bf16.msra.mxu0 %v347
      %373 = vmatpush.bf16.msra.mxu0 %v346
      %374 = vmatpush.bf16.msra.mxu0 %v345
      %375 = vmatmul.bf16.gmra.mxu0 %v289
      %v376 = vpop.f32.mrf.mxu0
      %v377 = vadd.f32 0.0, %v376
      %v378 = vpop.f32.mrf.mxu0
      %v379 = vadd.f32 0.0, %v378
      %380 = vdwg.mxu0
      %381 = vmatpush.bf16.msra.mxu0 0
      %382 = vmatpush.bf16.msra.mxu0 0
      %383 = vmatpush.bf16.msra.mxu0 0
      %384 = vmatpush.bf16.msra.mxu0 0
      %385 = vmatpush.bf16.msra.mxu0 0
      %386 = vmatpush.bf16.msra.mxu0 0
      %387 = vmatpush.bf16.msra.mxu0 0
      %388 = vmatpush.bf16.msra.mxu0 %v353
      %389 = vmatmul.bf16.gmra.mxu0 %v365
      %v390 = vpop.f32.mrf.mxu0
      %v391 = vadd.f32 %v377, %v390
      %v392 = vpop.f32.mrf.mxu0
      %v393 = vadd.f32 %v379, %v392
      %394 = vdwg.mxu0
      %v395 = vld [vmem:[%s4] sm:$0x1]
      %v397 = vperm.slane %v395, 0
      %v399 = vmul.f32 %v391, %v397
      %v400 = vmul.f32 %v393, %v397
      %v401 = vld [vmem:[%s5] sm:$0x1]
      %v403 = vperm.slane %v401, 0
      %v405 = vadd.f32 %v399, %v403
      %v406 = vadd.f32 %v400, %v403
      %v407 = vmax.f32 %v405, 0.0
      %v408 = vmax.f32 %v406, 0.0
      %v409 = vpack.c.bf16 %v407, %v407
      %v410 = vpack.c.bf16 %v408, %v408
      %411 = vst [vmem:[%s256] sm:$0xf] %v409
      %412 = vst [vmem:[%s256 + $0x4] sm:$0xf] %v410
      %s413 = smul.u32 2, %s17
      %p414 = scmp.lt.s32.totalorder %s413, 3
      %s415 = scalar_select %p414, %s413, 3
      %s416 = smul.addr %s415, 4
      %s417 = scalar_lea.vmem %s6, %s416
      // Predicated region
      $region45: #{_lambda_.34} parent=43 // pred_check
        %p418 = pneg %p166
      $region46: #{_lambda_.34} parent=43 // pred_check_branch
        %420 = sbr.rel (%p418) target = $region48
      $region47: #{_lambda_.34} parent=43 // pred_region
        %s421 = smul.u32 2, %s17
      $region48: #{_lambda_.34} parent=43 // pred_fallthru
        _
    $region44: #{_lambda_.34} parent=5 // pred_fallthru
      _
    %p422 = scmp.le.s32.totalorder 2, %s12
    // Predicated region
    $region49: #{_lambda_.34} parent=5 // pred_check
      %p423 = pneg %p422
    $region50: #{_lambda_.34} parent=5 // pred_check_branch
      %425 = sbr.rel (%p423) target = $region52
    $region51: #{_lambda_.34} parent=5 // pred_region
      %s426 = ssub.s32 %s12, 2
      // Predicated region
      $region53: #{_lambda_.34} parent=51 // pred_check
        %p427 = pneg %p172
      $region54: #{_lambda_.34} parent=51 // pred_check_branch
        %429 = sbr.rel (%p427) target = $region56
      $region55: #{_lambda_.34} parent=51 // pred_region
        %s430 = smul.u32 2, %s18
        %p431 = scmp.lt.s32.totalorder %s430, 3
        %s432 = scalar_select %p431, %s430, 3
        %s433 = smul.addr %s432, 4
        %s434 = scalar_lea.vmem %s6, %s433
      $region56: #{_lambda_.34} parent=51 // pred_fallthru
        _
    $region52: #{_lambda_.34} parent=5 // pred_fallthru
      _
  $region6: #{_lambda_.34} parent=0 // loop_footer
    %s16 = sadd.s32 1, %s12
  $region7: #{_lambda_.34} parent=0 // loop_footer_branch
    %11 = sbr.rel target = $region3
  $region8: #{_lambda_.34} parent=0 // loop_exit
    _

// kernel: _lambda_.36
$region0: #{_lambda_.36}
  #allocation0 [shape = 'u32[]', space=smem, size = 0x4, offset = 0x4, fixed_abs, tag = 'smem constant byte address 0x4 - core index']
  #allocation1 [shape = 'u32[72,128]{1,0:T(1,128)}', space=vmem, size = 0x9000, scoped, tag = 'internal scratch']
  %s0 = inlined_call_operand.vmem [shape: bf16[8,32], index: 0, kind: input, shape index: {}]
  %s1 = inlined_call_operand.vmem [shape: bf16[32,384], index: 1, kind: input, shape index: {}]
  %s2 = inlined_call_operand.vmem [shape: bf16[8,384], index: 2, kind: output, shape index: {}]
  %s3 = sld [smem:[#allocation0]]
  $region18: #{_lambda_.36} parent=0
    _
  %s5 = ssub.s32 1, %s3
  %s6 = scalar_select 0, %s5, %s3
  // Predicated region
  $region2: #{_lambda_.36} parent=0 // pred_check
    _
  $region3: #{_lambda_.36} parent=0 // pred_check_branch
    %8 = sbr.rel (0) target = $region5
  $region4: #{_lambda_.36} parent=0 // pred_region
    _
  $region5: #{_lambda_.36} parent=0 // pred_fallthru
    _
  // Predicated region
  $region6: #{_lambda_.36} parent=0 // pred_check
    _
  $region7: #{_lambda_.36} parent=0 // pred_check_branch
    %10 = sbr.rel (0) target = $region9
  $region8: #{_lambda_.36} parent=0 // pred_region
    _
  $region9: #{_lambda_.36} parent=0 // pred_fallthru
    _
  %v12 = vld [vmem:[%s0] sm:$0xf]
  %v13 = vld [vmem:[%s1] sm:$0xff]
  %v14 = vld [vmem:[%s1 + $0x8] sm:$0xf]
  %v15 = vld [vmem:[%s1 + $0xc] sm:$0xff]
  %v16 = vld [vmem:[%s1 + $0x14] sm:$0xf]
  %v17 = vld [vmem:[%s1 + $0x18] sm:$0xff]
  %v18 = vld [vmem:[%s1 + $0x20] sm:$0xf]
  %v19 = vld [vmem:[%s1 + $0x24] sm:$0xff]
  %v20 = vld [vmem:[%s1 + $0x2c] sm:$0xf]
  %v29 = vunpack.c.l.b16 %v13
  %v30 = vunpack.c.h.b16 %v13
  %v31 = vunpack.c.l.b16 %v14
  %v32 = vunpack.c.l.b16 %v15
  %v33 = vunpack.c.h.b16 %v15
  %v34 = vunpack.c.l.b16 %v16
  %v35 = vunpack.c.l.b16 %v17
  %v36 = vunpack.c.h.b16 %v17
  %v37 = vunpack.c.l.b16 %v18
  %v38 = vunpack.c.l.b16 %v19
  %v39 = vunpack.c.h.b16 %v19
  %v40 = vunpack.c.l.b16 %v20
  %v41 = vpack.c.b16 %v32, %v29
  %v42 = vpack.c.b16 %v33, %v30
  %v43 = vpack.c.b16 %v34, %v31
  %v44 = vpack.c.b16 %v38, %v35
  %v45 = vpack.c.b16 %v39, %v36
  %v46 = vpack.c.b16 %v40, %v37
  %vm53 = vcmask 261120
  %v55 = vsel %vm53, %v12, 0
  %57 = vmatpush.bf16.msra.mxu0 0
  %58 = vmatpush.bf16.msra.mxu0 0
  %59 = vmatpush.bf16.msra.mxu0 0
  %60 = vmatpush.bf16.msra.mxu0 0
  %61 = vmatpush.bf16.msra.mxu0 0
  %62 = vmatpush.bf16.msra.mxu0 0
  %63 = vmatpush.bf16.msra.mxu0 %v44
  %64 = vmatpush.bf16.msra.mxu0 %v41
  %65 = vmatmul.bf16.gmra.mxu0 %v55
  %v66 = vpop.f32.mrf.mxu0
  %v67 = vadd.f32 0.0, %v66
  %v68 = vpop.f32.mrf.mxu0
  %69 = vdwg.mxu0
  %70 = vmatpush.bf16.msra.mxu0 0
  %71 = vmatpush.bf16.msra.mxu0 0
  %72 = vmatpush.bf16.msra.mxu0 0
  %73 = vmatpush.bf16.msra.mxu0 0
  %74 = vmatpush.bf16.msra.mxu0 0
  %75 = vmatpush.bf16.msra.mxu0 0
  %76 = vmatpush.bf16.msra.mxu0 %v45
  %77 = vmatpush.bf16.msra.mxu0 %v42
  %78 = vmatmul.bf16.gmra.mxu0 %v55
  %v79 = vpop.f32.mrf.mxu0
  %v80 = vadd.f32 0.0, %v79
  %v81 = vpop.f32.mrf.mxu0
  %82 = vdwg.mxu0
  %83 = vmatpush.bf16.msra.mxu0 0
  %84 = vmatpush.bf16.msra.mxu0 0
  %85 = vmatpush.bf16.msra.mxu0 0
  %86 = vmatpush.bf16.msra.mxu0 0
  %87 = vmatpush.bf16.msra.mxu0 0
  %88 = vmatpush.bf16.msra.mxu0 0
  %89 = vmatpush.bf16.msra.mxu0 %v46
  %90 = vmatpush.bf16.msra.mxu0 %v43
  %91 = vmatmul.bf16.gmra.mxu0 %v55
  %v92 = vpop.f32.mrf.mxu0
  %v93 = vadd.f32 0.0, %v92
  %v94 = vpop.f32.mrf.mxu0
  %95 = vdwg.mxu0
  %v96 = vpack.c.bf16 %v80, %v67
  %v97 = vpack.c.bf16 %v93, %v93
  %98 = vst [vmem:[%s2] sm:$0xff] %v96
  %99 = vst [vmem:[%s2 + $0x8] sm:$0xf] %v97
  // Predicated region
  $region10: #{_lambda_.36} parent=0 // pred_check
    _
  $region11: #{_lambda_.36} parent=0 // pred_check_branch
    %101 = sbr.rel (0) target = $region13
  $region12: #{_lambda_.36} parent=0 // pred_region
    _
  $region13: #{_lambda_.36} parent=0 // pred_fallthru
    _
  // Predicated region
  $region14: #{_lambda_.36} parent=0 // pred_check
    _
  $region15: #{_lambda_.36} parent=0 // pred_check_branch
    %103 = sbr.rel (0) target = $region17
  $region16: #{_lambda_.36} parent=0 // pred_region
    _
  $region17: #{_lambda_.36} parent=0 // pred_fallthru
    _

// kernel: _lambda_.35
$region0: #{_lambda_.35}
  #allocation0 [shape = 'u32[]', space=smem, size = 0x4, offset = 0x4, fixed_abs, tag = 'smem constant byte address 0x4 - core index']
  #allocation1 [shape = 'u32[72,128]{1,0:T(1,128)}', space=vmem, size = 0x9000, scoped, tag = 'internal scratch']
  %s0 = inlined_call_operand.vmem [shape: bf16[8,384], index: 0, kind: input, shape index: {}]
  %s1 = inlined_call_operand.vmem [shape: bf16[384,128], index: 1, kind: input, shape index: {}]
  %s2 = inlined_call_operand.vmem [shape: f32[1,128], index: 2, kind: input, shape index: {}]
  %s3 = inlined_call_operand.vmem [shape: f32[1,128], index: 3, kind: input, shape index: {}]
  %s4 = inlined_call_operand.vmem [shape: bf16[8,128], index: 4, kind: output, shape index: {}]
  %s5 = sld [smem:[#allocation0]]
  $region26: #{_lambda_.35} parent=0
    _
  %s7 = ssub.s32 1, %s5
  %s8 = scalar_select 0, %s7, %s5
  // Predicated region
  $region2: #{_lambda_.35} parent=0 // pred_check
    _
  $region3: #{_lambda_.35} parent=0 // pred_check_branch
    %10 = sbr.rel (0) target = $region5
  $region4: #{_lambda_.35} parent=0 // pred_region
    _
  $region5: #{_lambda_.35} parent=0 // pred_fallthru
    _
  // Predicated region
  $region6: #{_lambda_.35} parent=0 // pred_check
    _
  $region7: #{_lambda_.35} parent=0 // pred_check_branch
    %12 = sbr.rel (0) target = $region9
  $region8: #{_lambda_.35} parent=0 // pred_region
    _
  $region9: #{_lambda_.35} parent=0 // pred_fallthru
    _
  // Predicated region
  $region10: #{_lambda_.35} parent=0 // pred_check
    _
  $region11: #{_lambda_.35} parent=0 // pred_check_branch
    %14 = sbr.rel (0) target = $region13
  $region12: #{_lambda_.35} parent=0 // pred_region
    _
  $region13: #{_lambda_.35} parent=0 // pred_fallthru
    _
  // Predicated region
  $region14: #{_lambda_.35} parent=0 // pred_check
    _
  $region15: #{_lambda_.35} parent=0 // pred_check_branch
    %16 = sbr.rel (0) target = $region17
  $region16: #{_lambda_.35} parent=0 // pred_region
    _
  $region17: #{_lambda_.35} parent=0 // pred_fallthru
    _
  %v17 = vld [vmem:[%s0] sm:$0xff]
  %v18 = vld [vmem:[%s0 + $0x8] sm:$0xf]
  %v19 = vld [vmem:[%s1] sm:$0xf]
  %v20 = vld [vmem:[%s1 + $0x4] sm:$0xf]
  %v21 = vld [vmem:[%s1 + $0x8] sm:$0xf]
  %v22 = vld [vmem:[%s1 + $0xc] sm:$0xf]
  %v23 = vld [vmem:[%s1 + $0x10] sm:$0xf]
  %v24 = vld [vmem:[%s1 + $0x14] sm:$0xf]
  %v25 = vld [vmem:[%s1 + $0x18] sm:$0xf]
  %v26 = vld [vmem:[%s1 + $0x1c] sm:$0xf]
  %v27 = vld [vmem:[%s1 + $0x20] sm:$0xf]
  %v28 = vld [vmem:[%s1 + $0x24] sm:$0xf]
  %v29 = vld [vmem:[%s1 + $0x28] sm:$0xf]
  %v30 = vld [vmem:[%s1 + $0x2c] sm:$0xf]
  %v31 = vld [vmem:[%s1 + $0x30] sm:$0xf]
  %v32 = vld [vmem:[%s1 + $0x34] sm:$0xf]
  %v33 = vld [vmem:[%s1 + $0x38] sm:$0xf]
  %v34 = vld [vmem:[%s1 + $0x3c] sm:$0xf]
  %v35 = vld [vmem:[%s1 + $0x40] sm:$0xf]
  %v36 = vld [vmem:[%s1 + $0x44] sm:$0xf]
  %v37 = vld [vmem:[%s1 + $0x48] sm:$0xf]
  %v38 = vld [vmem:[%s1 + $0x4c] sm:$0xf]
  %v39 = vld [vmem:[%s1 + $0x50] sm:$0xf]
  %v40 = vld [vmem:[%s1 + $0x54] sm:$0xf]
  %v41 = vld [vmem:[%s1 + $0x58] sm:$0xf]
  %v42 = vld [vmem:[%s1 + $0x5c] sm:$0xf]
  %v43 = vld [vmem:[%s1 + $0x60] sm:$0xf]
  %v44 = vld [vmem:[%s1 + $0x64] sm:$0xf]
  %v45 = vld [vmem:[%s1 + $0x68] sm:$0xf]
  %v46 = vld [vmem:[%s1 + $0x6c] sm:$0xf]
  %v47 = vld [vmem:[%s1 + $0x70] sm:$0xf]
  %v48 = vld [vmem:[%s1 + $0x74] sm:$0xf]
  %v49 = vld [vmem:[%s1 + $0x78] sm:$0xf]
  %v50 = vld [vmem:[%s1 + $0x7c] sm:$0xf]
  %v51 = vld [vmem:[%s1 + $0x80] sm:$0xf]
  %v52 = vld [vmem:[%s1 + $0x84] sm:$0xf]
  %v53 = vld [vmem:[%s1 + $0x88] sm:$0xf]
  %v54 = vld [vmem:[%s1 + $0x8c] sm:$0xf]
  %v55 = vld [vmem:[%s1 + $0x90] sm:$0xf]
  %v56 = vld [vmem:[%s1 + $0x94] sm:$0xf]
  %v57 = vld [vmem:[%s1 + $0x98] sm:$0xf]
  %v58 = vld [vmem:[%s1 + $0x9c] sm:$0xf]
  %v59 = vld [vmem:[%s1 + $0xa0] sm:$0xf]
  %v60 = vld [vmem:[%s1 + $0xa4] sm:$0xf]
  %v61 = vld [vmem:[%s1 + $0xa8] sm:$0xf]
  %v62 = vld [vmem:[%s1 + $0xac] sm:$0xf]
  %v63 = vld [vmem:[%s1 + $0xb0] sm:$0xf]
  %v64 = vld [vmem:[%s1 + $0xb4] sm:$0xf]
  %v65 = vld [vmem:[%s1 + $0xb8] sm:$0xf]
  %v66 = vld [vmem:[%s1 + $0xbc] sm:$0xf]
  %v69 = vunpack.c.l.b16 %v17
  %v70 = vunpack.c.h.b16 %v17
  %v71 = vunpack.c.l.b16 %v18
  %v72 = vpack.c.b16 %v69, %v69
  %v73 = vpack.c.b16 %v70, %v70
  %v74 = vpack.c.b16 %v71, %v71
  %v126 = vunpack.c.l.b16 %v19
  %v127 = vunpack.c.l.b16 %v20
  %v128 = vunpack.c.l.b16 %v21
  %v129 = vunpack.c.l.b16 %v22
  %v130 = vunpack.c.l.b16 %v23
  %v131 = vunpack.c.l.b16 %v24
  %v132 = vunpack.c.l.b16 %v25
  %v133 = vunpack.c.l.b16 %v26
  %v134 = vunpack.c.l.b16 %v27
  %v135 = vunpack.c.l.b16 %v28
  %v136 = vunpack.c.l.b16 %v29
  %v137 = vunpack.c.l.b16 %v30
  %v138 = vunpack.c.l.b16 %v31
  %v139 = vunpack.c.l.b16 %v32
  %v140 = vunpack.c.l.b16 %v33
  %v141 = vunpack.c.l.b16 %v34
  %v142 = vunpack.c.l.b16 %v35
  %v143 = vunpack.c.l.b16 %v36
  %v144 = vunpack.c.l.b16 %v37
  %v145 = vunpack.c.l.b16 %v38
  %v146 = vunpack.c.l.b16 %v39
  %v147 = vunpack.c.l.b16 %v40
  %v148 = vunpack.c.l.b16 %v41
  %v149 = vunpack.c.l.b16 %v42
  %v150 = vunpack.c.l.b16 %v43
  %v151 = vunpack.c.l.b16 %v44
  %v152 = vunpack.c.l.b16 %v45
  %v153 = vunpack.c.l.b16 %v46
  %v154 = vunpack.c.l.b16 %v47
  %v155 = vunpack.c.l.b16 %v48
  %v156 = vunpack.c.l.b16 %v49
  %v157 = vunpack.c.l.b16 %v50
  %v158 = vunpack.c.l.b16 %v51
  %v159 = vunpack.c.l.b16 %v52
  %v160 = vunpack.c.l.b16 %v53
  %v161 = vunpack.c.l.b16 %v54
  %v162 = vunpack.c.l.b16 %v55
  %v163 = vunpack.c.l.b16 %v56
  %v164 = vunpack.c.l.b16 %v57
  %v165 = vunpack.c.l.b16 %v58
  %v166 = vunpack.c.l.b16 %v59
  %v167 = vunpack.c.l.b16 %v60
  %v168 = vunpack.c.l.b16 %v61
  %v169 = vunpack.c.l.b16 %v62
  %v170 = vunpack.c.l.b16 %v63
  %v171 = vunpack.c.l.b16 %v64
  %v172 = vunpack.c.l.b16 %v65
  %v173 = vunpack.c.l.b16 %v66
  %v174 = vpack.c.b16 %v127, %v126
  %v175 = vpack.c.b16 %v129, %v128
  %v176 = vpack.c.b16 %v131, %v130
  %v177 = vpack.c.b16 %v133, %v132
  %v178 = vpack.c.b16 %v135, %v134
  %v179 = vpack.c.b16 %v137, %v136
  %v180 = vpack.c.b16 %v139, %v138
  %v181 = vpack.c.b16 %v141, %v140
  %v182 = vpack.c.b16 %v143, %v142
  %v183 = vpack.c.b16 %v145, %v144
  %v184 = vpack.c.b16 %v147, %v146
  %v185 = vpack.c.b16 %v149, %v148
  %v186 = vpack.c.b16 %v151, %v150
  %v187 = vpack.c.b16 %v153, %v152
  %v188 = vpack.c.b16 %v155, %v154
  %v189 = vpack.c.b16 %v157, %v156
  %v190 = vpack.c.b16 %v159, %v158
  %v191 = vpack.c.b16 %v161, %v160
  %v192 = vpack.c.b16 %v163, %v162
  %v193 = vpack.c.b16 %v165, %v164
  %v194 = vpack.c.b16 %v167, %v166
  %v195 = vpack.c.b16 %v169, %v168
  %v196 = vpack.c.b16 %v171, %v170
  %v197 = vpack.c.b16 %v173, %v172
  %222 = vmatpush.bf16.msra.mxu0 %v181
  %223 = vmatpush.bf16.msra.mxu0 %v180
  %224 = vmatpush.bf16.msra.mxu0 %v179
  %225 = vmatpush.bf16.msra.mxu0 %v178
  %226 = vmatpush.bf16.msra.mxu0 %v177
  %227 = vmatpush.bf16.msra.mxu0 %v176
  %228 = vmatpush.bf16.msra.mxu0 %v175
  %229 = vmatpush.bf16.msra.mxu0 %v174
  %230 = vmatmul.bf16.gmra.mxu0 %v72
  %v231 = vpop.f32.mrf.mxu0
  %v232 = vadd.f32 0.0, %v231
  %v233 = vpop.f32.mrf.mxu0
  %234 = vdwg.mxu0
  %235 = vmatpush.bf16.msra.mxu0 %v189
  %236 = vmatpush.bf16.msra.mxu0 %v188
  %237 = vmatpush.bf16.msra.mxu0 %v187
  %238 = vmatpush.bf16.msra.mxu0 %v186
  %239 = vmatpush.bf16.msra.mxu0 %v185
  %240 = vmatpush.bf16.msra.mxu0 %v184
  %241 = vmatpush.bf16.msra.mxu0 %v183
  %242 = vmatpush.bf16.msra.mxu0 %v182
  %243 = vmatmul.bf16.gmra.mxu0 %v73
  %v244 = vpop.f32.mrf.mxu0
  %v245 = vadd.f32 %v232, %v244
  %v246 = vpop.f32.mrf.mxu0
  %247 = vdwg.mxu0
  %248 = vmatpush.bf16.msra.mxu0 %v197
  %249 = vmatpush.bf16.msra.mxu0 %v196
  %250 = vmatpush.bf16.msra.mxu0 %v195
  %251 = vmatpush.bf16.msra.mxu0 %v194
  %252 = vmatpush.bf16.msra.mxu0 %v193
  %253 = vmatpush.bf16.msra.mxu0 %v192
  %254 = vmatpush.bf16.msra.mxu0 %v191
  %255 = vmatpush.bf16.msra.mxu0 %v190
  %256 = vmatmul.bf16.gmra.mxu0 %v74
  %v257 = vpop.f32.mrf.mxu0
  %v258 = vadd.f32 %v245, %v257
  %v259 = vpop.f32.mrf.mxu0
  %260 = vdwg.mxu0
  %v261 = vld [vmem:[%s2] sm:$0x1]
  %v263 = vperm.slane %v261, 0
  %v265 = vmul.f32 %v258, %v263
  %v266 = vld [vmem:[%s3] sm:$0x1]
  %v268 = vperm.slane %v266, 0
  %v270 = vadd.f32 %v265, %v268
  %v271 = vmax.f32 %v270, 0.0
  %v272 = vpack.c.bf16 %v271, %v271
  %273 = vst [vmem:[%s4] sm:$0xf] %v272
  // Predicated region
  $region18: #{_lambda_.35} parent=0 // pred_check
    _
  $region19: #{_lambda_.35} parent=0 // pred_check_branch
    %275 = sbr.rel (0) target = $region21
  $region20: #{_lambda_.35} parent=0 // pred_region
    _
  $region21: #{_lambda_.35} parent=0 // pred_fallthru
    _
  // Predicated region
  $region22: #{_lambda_.35} parent=0 // pred_check
    _
  $region23: #{_lambda_.35} parent=0 // pred_check_branch
    %277 = sbr.rel (0) target = $region25
  $region24: #{_lambda_.35} parent=0 // pred_region
    _
  $region25: #{_lambda_.35} parent=0 // pred_fallthru
    _

// kernel: _lambda_.33
$region0: #{_lambda_.33}
  #allocation0 [shape = 'u32[]', space=smem, size = 0x4, offset = 0x4, fixed_abs, tag = 'smem constant byte address 0x4 - core index']
  #allocation1 [shape = 'u32[72,128]{1,0:T(1,128)}', space=vmem, size = 0x9000, scoped, tag = 'internal scratch']
  %s0 = inlined_call_operand.vmem [shape: bf16[8,144], index: 0, kind: input, shape index: {}]
  %s1 = inlined_call_operand.vmem [shape: bf16[144,384], index: 1, kind: input, shape index: {}]
  %s2 = inlined_call_operand.vmem [shape: f32[1,144], index: 2, kind: input, shape index: {}]
  %s3 = inlined_call_operand.vmem [shape: f32[1,144], index: 3, kind: input, shape index: {}]
  %s4 = inlined_call_operand.vmem [shape: bf16[8,384], index: 4, kind: output, shape index: {}]
  %s5 = sld [smem:[#allocation0]]
  $region26: #{_lambda_.33} parent=0
    _
  %s7 = ssub.s32 1, %s5
  %s8 = scalar_select 0, %s7, %s5
  // Predicated region
  $region2: #{_lambda_.33} parent=0 // pred_check
    _
  $region3: #{_lambda_.33} parent=0 // pred_check_branch
    %10 = sbr.rel (0) target = $region5
  $region4: #{_lambda_.33} parent=0 // pred_region
    _
  $region5: #{_lambda_.33} parent=0 // pred_fallthru
    _
  // Predicated region
  $region6: #{_lambda_.33} parent=0 // pred_check
    _
  $region7: #{_lambda_.33} parent=0 // pred_check_branch
    %12 = sbr.rel (0) target = $region9
  $region8: #{_lambda_.33} parent=0 // pred_region
    _
  $region9: #{_lambda_.33} parent=0 // pred_fallthru
    _
  // Predicated region
  $region10: #{_lambda_.33} parent=0 // pred_check
    _
  $region11: #{_lambda_.33} parent=0 // pred_check_branch
    %14 = sbr.rel (0) target = $region13
  $region12: #{_lambda_.33} parent=0 // pred_region
    _
  $region13: #{_lambda_.33} parent=0 // pred_fallthru
    _
  // Predicated region
  $region14: #{_lambda_.33} parent=0 // pred_check
    _
  $region15: #{_lambda_.33} parent=0 // pred_check_branch
    %16 = sbr.rel (0) target = $region17
  $region16: #{_lambda_.33} parent=0 // pred_region
    _
  $region17: #{_lambda_.33} parent=0 // pred_fallthru
    _
  %v18 = vld [vmem:[%s0] sm:$0xff]
  %v19 = vunpack.c.l.bf16 %v18
  %v20 = vunpack.c.h.bf16 %v18
  %v21 = vld [vmem:[%s2] sm:$0x3]
  %v23 = vperm.slane %v21, 0
  %v24 = vperm.slane %v21, 1
  %v27 = vmul.f32 %v19, %v23
  %v28 = vmul.f32 %v20, %v24
  %v29 = vld [vmem:[%s3] sm:$0x3]
  %v31 = vperm.slane %v29, 0
  %v32 = vperm.slane %v29, 1
  %v35 = vadd.f32 %v27, %v31
  %v36 = vadd.f32 %v28, %v32
  %v37 = vmax.f32 %v35, 0.0
  %v38 = vmax.f32 %v36, 0.0
  %v39 = vpack.c.bf16 %v37, %v37
  %v40 = vpack.c.bf16 %v38, %v38
  %v41 = vld [vmem:[%s1] sm:$0xff]
  %v42 = vld [vmem:[%s1 + $0x8] sm:$0xf]
  %v43 = vld [vmem:[%s1 + $0xc] sm:$0xff]
  %v44 = vld [vmem:[%s1 + $0x14] sm:$0xf]
  %v45 = vld [vmem:[%s1 + $0x18] sm:$0xff]
  %v46 = vld [vmem:[%s1 + $0x20] sm:$0xf]
  %v47 = vld [vmem:[%s1 + $0x24] sm:$0xff]
  %v48 = vld [vmem:[%s1 + $0x2c] sm:$0xf]
  %v49 = vld [vmem:[%s1 + $0x30] sm:$0xff]
  %v50 = vld [vmem:[%s1 + $0x38] sm:$0xf]
  %v51 = vld [vmem:[%s1 + $0x3c] sm:$0xff]
  %v52 = vld [vmem:[%s1 + $0x44] sm:$0xf]
  %v53 = vld [vmem:[%s1 + $0x48] sm:$0xff]
  %v54 = vld [vmem:[%s1 + $0x50] sm:$0xf]
  %v55 = vld [vmem:[%s1 + $0x54] sm:$0xff]
  %v56 = vld [vmem:[%s1 + $0x5c] sm:$0xf]
  %v57 = vld [vmem:[%s1 + $0x60] sm:$0xff]
  %v58 = vld [vmem:[%s1 + $0x68] sm:$0xf]
  %v59 = vld [vmem:[%s1 + $0x6c] sm:$0xff]
  %v60 = vld [vmem:[%s1 + $0x74] sm:$0xf]
  %v61 = vld [vmem:[%s1 + $0x78] sm:$0xff]
  %v62 = vld [vmem:[%s1 + $0x80] sm:$0xf]
  %v63 = vld [vmem:[%s1 + $0x84] sm:$0xff]
  %v64 = vld [vmem:[%s1 + $0x8c] sm:$0xf]
  %v65 = vld [vmem:[%s1 + $0x90] sm:$0xff]
  %v66 = vld [vmem:[%s1 + $0x98] sm:$0xf]
  %v67 = vld [vmem:[%s1 + $0x9c] sm:$0xff]
  %v68 = vld [vmem:[%s1 + $0xa4] sm:$0xf]
  %v69 = vld [vmem:[%s1 + $0xa8] sm:$0xff]
  %v70 = vld [vmem:[%s1 + $0xb0] sm:$0xf]
  %v71 = vld [vmem:[%s1 + $0xb4] sm:$0xff]
  %v72 = vld [vmem:[%s1 + $0xbc] sm:$0xf]
  %v73 = vld [vmem:[%s1 + $0xc0] sm:$0xff]
  %v74 = vld [vmem:[%s1 + $0xc8] sm:$0xf]
  %v75 = vld [vmem:[%s1 + $0xcc] sm:$0xff]
  %v76 = vld [vmem:[%s1 + $0xd4] sm:$0xf]
  %v113 = vunpack.c.l.b16 %v41
  %v114 = vunpack.c.h.b16 %v41
  %v115 = vunpack.c.l.b16 %v42
  %v116 = vunpack.c.l.b16 %v43
  %v117 = vunpack.c.h.b16 %v43
  %v118 = vunpack.c.l.b16 %v44
  %v119 = vunpack.c.l.b16 %v45
  %v120 = vunpack.c.h.b16 %v45
  %v121 = vunpack.c.l.b16 %v46
  %v122 = vunpack.c.l.b16 %v47
  %v123 = vunpack.c.h.b16 %v47
  %v124 = vunpack.c.l.b16 %v48
  %v125 = vunpack.c.l.b16 %v49
  %v126 = vunpack.c.h.b16 %v49
  %v127 = vunpack.c.l.b16 %v50
  %v128 = vunpack.c.l.b16 %v51
  %v129 = vunpack.c.h.b16 %v51
  %v130 = vunpack.c.l.b16 %v52
  %v131 = vunpack.c.l.b16 %v53
  %v132 = vunpack.c.h.b16 %v53
  %v133 = vunpack.c.l.b16 %v54
  %v134 = vunpack.c.l.b16 %v55
  %v135 = vunpack.c.h.b16 %v55
  %v136 = vunpack.c.l.b16 %v56
  %v137 = vunpack.c.l.b16 %v57
  %v138 = vunpack.c.h.b16 %v57
  %v139 = vunpack.c.l.b16 %v58
  %v140 = vunpack.c.l.b16 %v59
  %v141 = vunpack.c.h.b16 %v59
  %v142 = vunpack.c.l.b16 %v60
  %v143 = vunpack.c.l.b16 %v61
  %v144 = vunpack.c.h.b16 %v61
  %v145 = vunpack.c.l.b16 %v62
  %v146 = vunpack.c.l.b16 %v63
  %v147 = vunpack.c.h.b16 %v63
  %v148 = vunpack.c.l.b16 %v64
  %v149 = vunpack.c.l.b16 %v65
  %v150 = vunpack.c.h.b16 %v65
  %v151 = vunpack.c.l.b16 %v66
  %v152 = vunpack.c.l.b16 %v67
  %v153 = vunpack.c.h.b16 %v67
  %v154 = vunpack.c.l.b16 %v68
  %v155 = vunpack.c.l.b16 %v69
  %v156 = vunpack.c.h.b16 %v69
  %v157 = vunpack.c.l.b16 %v70
  %v158 = vunpack.c.l.b16 %v71
  %v159 = vunpack.c.h.b16 %v71
  %v160 = vunpack.c.l.b16 %v72
  %v161 = vunpack.c.l.b16 %v73
  %v162 = vunpack.c.h.b16 %v73
  %v163 = vunpack.c.l.b16 %v74
  %v164 = vunpack.c.l.b16 %v75
  %v165 = vunpack.c.h.b16 %v75
  %v166 = vunpack.c.l.b16 %v76
  %v167 = vpack.c.b16 %v116, %v113
  %v168 = vpack.c.b16 %v117, %v114
  %v169 = vpack.c.b16 %v118, %v115
  %v170 = vpack.c.b16 %v122, %v119
  %v171 = vpack.c.b16 %v123, %v120
  %v172 = vpack.c.b16 %v124, %v121
  %v173 = vpack.c.b16 %v128, %v125
  %v174 = vpack.c.b16 %v129, %v126
  %v175 = vpack.c.b16 %v130, %v127
  %v176 = vpack.c.b16 %v134, %v131
  %v177 = vpack.c.b16 %v135, %v132
  %v178 = vpack.c.b16 %v136, %v133
  %v179 = vpack.c.b16 %v140, %v137
  %v180 = vpack.c.b16 %v141, %v138
  %v181 = vpack.c.b16 %v142, %v139
  %v182 = vpack.c.b16 %v146, %v143
  %v183 = vpack.c.b16 %v147, %v144
  %v184 = vpack.c.b16 %v148, %v145
  %v185 = vpack.c.b16 %v152, %v149
  %v186 = vpack.c.b16 %v153, %v150
  %v187 = vpack.c.b16 %v154, %v151
  %v188 = vpack.c.b16 %v158, %v155
  %v189 = vpack.c.b16 %v159, %v156
  %v190 = vpack.c.b16 %v160, %v157
  %v191 = vpack.c.b16 %v164, %v161
  %v192 = vpack.c.b16 %v165, %v162
  %v193 = vpack.c.b16 %v166, %v163
  %vm221 = vcmask 130048
  %v223 = vsel %vm221, %v40, 0
  %225 = vmatpush.bf16.msra.mxu0 %v188
  %226 = vmatpush.bf16.msra.mxu0 %v185
  %227 = vmatpush.bf16.msra.mxu0 %v182
  %228 = vmatpush.bf16.msra.mxu0 %v179
  %229 = vmatpush.bf16.msra.mxu0 %v176
  %230 = vmatpush.bf16.msra.mxu0 %v173
  %231 = vmatpush.bf16.msra.mxu0 %v170
  %232 = vmatpush.bf16.msra.mxu0 %v167
  %233 = vmatmul.bf16.gmra.mxu0 %v39
  %v234 = vpop.f32.mrf.mxu0
  %v235 = vadd.f32 0.0, %v234
  %v236 = vpop.f32.mrf.mxu0
  %237 = vdwg.mxu0
  %238 = vmatpush.bf16.msra.mxu0 0
  %239 = vmatpush.bf16.msra.mxu0 0
  %240 = vmatpush.bf16.msra.mxu0 0
  %241 = vmatpush.bf16.msra.mxu0 0
  %242 = vmatpush.bf16.msra.mxu0 0
  %243 = vmatpush.bf16.msra.mxu0 0
  %244 = vmatpush.bf16.msra.mxu0 0
  %245 = vmatpush.bf16.msra.mxu0 %v191
  %246 = vmatmul.bf16.gmra.mxu0 %v223
  %v247 = vpop.f32.mrf.mxu0
  %v248 = vadd.f32 %v235, %v247
  %v249 = vpop.f32.mrf.mxu0
  %250 = vdwg.mxu0
  %251 = vmatpush.bf16.msra.mxu0 %v189
  %252 = vmatpush.bf16.msra.mxu0 %v186
  %253 = vmatpush.bf16.msra.mxu0 %v183
  %254 = vmatpush.bf16.msra.mxu0 %v180
  %255 = vmatpush.bf16.msra.mxu0 %v177
  %256 = vmatpush.bf16.msra.mxu0 %v174
  %257 = vmatpush.bf16.msra.mxu0 %v171
  %258 = vmatpush.bf16.msra.mxu0 %v168
  %259 = vmatmul.bf16.gmra.mxu0 %v39
  %v260 = vpop.f32.mrf.mxu0
  %v261 = vadd.f32 0.0, %v260
  %v262 = vpop.f32.mrf.mxu0
  %263 = vdwg.mxu0
  %264 = vmatpush.bf16.msra.mxu0 0
  %265 = vmatpush.bf16.msra.mxu0 0
  %266 = vmatpush.bf16.msra.mxu0 0
  %267 = vmatpush.bf16.msra.mxu0 0
  %268 = vmatpush.bf16.msra.mxu0 0
  %269 = vmatpush.bf16.msra.mxu0 0
  %270 = vmatpush.bf16.msra.mxu0 0
  %271 = vmatpush.bf16.msra.mxu0 %v192
  %272 = vmatmul.bf16.gmra.mxu0 %v223
  %v273 = vpop.f32.mrf.mxu0
  %v274 = vadd.f32 %v261, %v273
  %v275 = vpop.f32.mrf.mxu0
  %276 = vdwg.mxu0
  %277 = vmatpush.bf16.msra.mxu0 %v190
  %278 = vmatpush.bf16.msra.mxu0 %v187
  %279 = vmatpush.bf16.msra.mxu0 %v184
  %280 = vmatpush.bf16.msra.mxu0 %v181
  %281 = vmatpush.bf16.msra.mxu0 %v178
  %282 = vmatpush.bf16.msra.mxu0 %v175
  %283 = vmatpush.bf16.msra.mxu0 %v172
  %284 = vmatpush.bf16.msra.mxu0 %v169
  %285 = vmatmul.bf16.gmra.mxu0 %v39
  %v286 = vpop.f32.mrf.mxu0
  %v287 = vadd.f32 0.0, %v286
  %v288 = vpop.f32.mrf.mxu0
  %289 = vdwg.mxu0
  %290 = vmatpush.bf16.msra.mxu0 0
  %291 = vmatpush.bf16.msra.mxu0 0
  %292 = vmatpush.bf16.msra.mxu0 0
  %293 = vmatpush.bf16.msra.mxu0 0
  %294 = vmatpush.bf16.msra.mxu0 0
  %295 = vmatpush.bf16.msra.mxu0 0
  %296 = vmatpush.bf16.msra.mxu0 0
  %297 = vmatpush.bf16.msra.mxu0 %v193
  %298 = vmatmul.bf16.gmra.mxu0 %v223
  %v299 = vpop.f32.mrf.mxu0
  %v300 = vadd.f32 %v287, %v299
  %v301 = vpop.f32.mrf.mxu0
  %302 = vdwg.mxu0
  %v303 = vpack.c.bf16 %v274, %v248
  %v304 = vpack.c.bf16 %v300, %v300
  %305 = vst [vmem:[%s4] sm:$0xff] %v303
  %306 = vst [vmem:[%s4 + $0x8] sm:$0xf] %v304
  // Predicated region
  $region18: #{_lambda_.33} parent=0 // pred_check
    _
  $region19: #{_lambda_.33} parent=0 // pred_check_branch
    %308 = sbr.rel (0) target = $region21
  $region20: #{_lambda_.33} parent=0 // pred_region
    _
  $region21: #{_lambda_.33} parent=0 // pred_fallthru
    _
  // Predicated region
  $region22: #{_lambda_.33} parent=0 // pred_check
    _
  $region23: #{_lambda_.33} parent=0 // pred_check_branch
    %310 = sbr.rel (0) target = $region25
  $region24: #{_lambda_.33} parent=0 // pred_region
    _
  $region25: #{_lambda_.33} parent=0 // pred_fallthru
    _

// kernel: _lambda_.38
$region0: #{_lambda_.38}
  #allocation0 [shape = 'u32[]', space=smem, size = 0x4, offset = 0x4, fixed_abs, tag = 'smem constant byte address 0x4 - core index']
  #allocation1 [shape = 'u32[72,128]{1,0:T(1,128)}', space=vmem, size = 0x9000, scoped, tag = 'internal scratch']
  %s0 = inlined_call_operand.vmem [shape: bf16[8,268], index: 0, kind: input, shape index: {}]
  %s1 = inlined_call_operand.vmem [shape: bf16[268,128], index: 1, kind: input, shape index: {}]
  %s2 = inlined_call_operand.vmem [shape: f32[1,268], index: 2, kind: input, shape index: {}]
  %s3 = inlined_call_operand.vmem [shape: f32[1,268], index: 3, kind: input, shape index: {}]
  %s4 = inlined_call_operand.vmem [shape: f32[1,128], index: 4, kind: input, shape index: {}]
  %s5 = inlined_call_operand.vmem [shape: f32[1,128], index: 5, kind: input, shape index: {}]
  %s6 = inlined_call_operand.vmem [shape: bf16[8,128], index: 6, kind: output, shape index: {}]
  %s7 = sld [smem:[#allocation0]]
  $region34: #{_lambda_.38} parent=0
    _
  %s9 = ssub.s32 1, %s7
  %s10 = scalar_select 0, %s9, %s7
  // Predicated region
  $region2: #{_lambda_.38} parent=0 // pred_check
    _
  $region3: #{_lambda_.38} parent=0 // pred_check_branch
    %12 = sbr.rel (0) target = $region5
  $region4: #{_lambda_.38} parent=0 // pred_region
    _
  $region5: #{_lambda_.38} parent=0 // pred_fallthru
    _
  // Predicated region
  $region6: #{_lambda_.38} parent=0 // pred_check
    _
  $region7: #{_lambda_.38} parent=0 // pred_check_branch
    %14 = sbr.rel (0) target = $region9
  $region8: #{_lambda_.38} parent=0 // pred_region
    _
  $region9: #{_lambda_.38} parent=0 // pred_fallthru
    _
  // Predicated region
  $region10: #{_lambda_.38} parent=0 // pred_check
    _
  $region11: #{_lambda_.38} parent=0 // pred_check_branch
    %16 = sbr.rel (0) target = $region13
  $region12: #{_lambda_.38} parent=0 // pred_region
    _
  $region13: #{_lambda_.38} parent=0 // pred_fallthru
    _
  // Predicated region
  $region14: #{_lambda_.38} parent=0 // pred_check
    _
  $region15: #{_lambda_.38} parent=0 // pred_check_branch
    %18 = sbr.rel (0) target = $region17
  $region16: #{_lambda_.38} parent=0 // pred_region
    _
  $region17: #{_lambda_.38} parent=0 // pred_fallthru
    _
  // Predicated region
  $region18: #{_lambda_.38} parent=0 // pred_check
    _
  $region19: #{_lambda_.38} parent=0 // pred_check_branch
    %20 = sbr.rel (0) target = $region21
  $region20: #{_lambda_.38} parent=0 // pred_region
    _
  $region21: #{_lambda_.38} parent=0 // pred_fallthru
    _
  // Predicated region
  $region22: #{_lambda_.38} parent=0 // pred_check
    _
  $region23: #{_lambda_.38} parent=0 // pred_check_branch
    %22 = sbr.rel (0) target = $region25
  $region24: #{_lambda_.38} parent=0 // pred_region
    _
  $region25: #{_lambda_.38} parent=0 // pred_fallthru
    _
  %v24 = vld [vmem:[%s0] sm:$0xff]
  %v25 = vld [vmem:[%s0 + $0x8] sm:$0xf]
  %v26 = vunpack.c.l.bf16 %v24
  %v27 = vunpack.c.h.bf16 %v24
  %v28 = vunpack.c.l.bf16 %v25
  %v29 = vld [vmem:[%s2] sm:$0x7]
  %v31 = vperm.slane %v29, 0
  %v32 = vperm.slane %v29, 1
  %v33 = vperm.slane %v29, 2
  %v37 = vmul.f32 %v26, %v31
  %v38 = vmul.f32 %v27, %v32
  %v39 = vmul.f32 %v28, %v33
  %v40 = vld [vmem:[%s3] sm:$0x7]
  %v42 = vperm.slane %v40, 0
  %v43 = vperm.slane %v40, 1
  %v44 = vperm.slane %v40, 2
  %v48 = vadd.f32 %v37, %v42
  %v49 = vadd.f32 %v38, %v43
  %v50 = vadd.f32 %v39, %v44
  %v51 = vmax.f32 %v48, 0.0
  %v52 = vmax.f32 %v49, 0.0
  %v53 = vmax.f32 %v50, 0.0
  %v54 = vpack.c.bf16 %v51, %v51
  %v55 = vpack.c.bf16 %v52, %v52
  %v56 = vpack.c.bf16 %v53, %v53
  %v57 = vld [vmem:[%s1] sm:$0xf]
  %v58 = vld [vmem:[%s1 + $0x4] sm:$0xf]
  %v59 = vld [vmem:[%s1 + $0x8] sm:$0xf]
  %v60 = vld [vmem:[%s1 + $0xc] sm:$0xf]
  %v61 = vld [vmem:[%s1 + $0x10] sm:$0xf]
  %v62 = vld [vmem:[%s1 + $0x14] sm:$0xf]
  %v63 = vld [vmem:[%s1 + $0x18] sm:$0xf]
  %v64 = vld [vmem:[%s1 + $0x1c] sm:$0xf]
  %v65 = vld [vmem:[%s1 + $0x20] sm:$0xf]
  %v66 = vld [vmem:[%s1 + $0x24] sm:$0xf]
  %v67 = vld [vmem:[%s1 + $0x28] sm:$0xf]
  %v68 = vld [vmem:[%s1 + $0x2c] sm:$0xf]
  %v69 = vld [vmem:[%s1 + $0x30] sm:$0xf]
  %v70 = vld [vmem:[%s1 + $0x34] sm:$0xf]
  %v71 = vld [vmem:[%s1 + $0x38] sm:$0xf]
  %v72 = vld [vmem:[%s1 + $0x3c] sm:$0xf]
  %v73 = vld [vmem:[%s1 + $0x40] sm:$0xf]
  %v74 = vld [vmem:[%s1 + $0x44] sm:$0xf]
  %v75 = vld [vmem:[%s1 + $0x48] sm:$0xf]
  %v76 = vld [vmem:[%s1 + $0x4c] sm:$0xf]
  %v77 = vld [vmem:[%s1 + $0x50] sm:$0xf]
  %v78 = vld [vmem:[%s1 + $0x54] sm:$0xf]
  %v79 = vld [vmem:[%s1 + $0x58] sm:$0xf]
  %v80 = vld [vmem:[%s1 + $0x5c] sm:$0xf]
  %v81 = vld [vmem:[%s1 + $0x60] sm:$0xf]
  %v82 = vld [vmem:[%s1 + $0x64] sm:$0xf]
  %v83 = vld [vmem:[%s1 + $0x68] sm:$0xf]
  %v84 = vld [vmem:[%s1 + $0x6c] sm:$0xf]
  %v85 = vld [vmem:[%s1 + $0x70] sm:$0xf]
  %v86 = vld [vmem:[%s1 + $0x74] sm:$0xf]
  %v87 = vld [vmem:[%s1 + $0x78] sm:$0xf]
  %v88 = vld [vmem:[%s1 + $0x7c] sm:$0xf]
  %v89 = vld [vmem:[%s1 + $0x80] sm:$0xf]
  %v90 = vld [vmem:[%s1 + $0x84] sm:$0x3]
  %v125 = vunpack.c.l.b16 %v57
  %v126 = vunpack.c.l.b16 %v58
  %v127 = vunpack.c.l.b16 %v59
  %v128 = vunpack.c.l.b16 %v60
  %v129 = vunpack.c.l.b16 %v61
  %v130 = vunpack.c.l.b16 %v62
  %v131 = vunpack.c.l.b16 %v63
  %v132 = vunpack.c.l.b16 %v64
  %v133 = vunpack.c.l.b16 %v65
  %v134 = vunpack.c.l.b16 %v66
  %v135 = vunpack.c.l.b16 %v67
  %v136 = vunpack.c.l.b16 %v68
  %v137 = vunpack.c.l.b16 %v69
  %v138 = vunpack.c.l.b16 %v70
  %v139 = vunpack.c.l.b16 %v71
  %v140 = vunpack.c.l.b16 %v72
  %v141 = vunpack.c.l.b16 %v73
  %v142 = vunpack.c.l.b16 %v74
  %v143 = vunpack.c.l.b16 %v75
  %v144 = vunpack.c.l.b16 %v76
  %v145 = vunpack.c.l.b16 %v77
  %v146 = vunpack.c.l.b16 %v78
  %v147 = vunpack.c.l.b16 %v79
  %v148 = vunpack.c.l.b16 %v80
  %v149 = vunpack.c.l.b16 %v81
  %v150 = vunpack.c.l.b16 %v82
  %v151 = vunpack.c.l.b16 %v83
  %v152 = vunpack.c.l.b16 %v84
  %v153 = vunpack.c.l.b16 %v85
  %v154 = vunpack.c.l.b16 %v86
  %v155 = vunpack.c.l.b16 %v87
  %v156 = vunpack.c.l.b16 %v88
  %v157 = vunpack.c.l.b16 %v89
  %v158 = vunpack.c.l.b16 %v90
  %v159 = vpack.c.b16 %v126, %v125
  %v160 = vpack.c.b16 %v128, %v127
  %v161 = vpack.c.b16 %v130, %v129
  %v162 = vpack.c.b16 %v132, %v131
  %v163 = vpack.c.b16 %v134, %v133
  %v164 = vpack.c.b16 %v136, %v135
  %v165 = vpack.c.b16 %v138, %v137
  %v166 = vpack.c.b16 %v140, %v139
  %v167 = vpack.c.b16 %v142, %v141
  %v168 = vpack.c.b16 %v144, %v143
  %v169 = vpack.c.b16 %v146, %v145
  %v170 = vpack.c.b16 %v148, %v147
  %v171 = vpack.c.b16 %v150, %v149
  %v172 = vpack.c.b16 %v152, %v151
  %v173 = vpack.c.b16 %v154, %v153
  %v174 = vpack.c.b16 %v156, %v155
  %v175 = vpack.c.b16 %v158, %v157
  %vm192 = vcmask 97280
  %v194 = vsel %vm192, %v56, 0
  %vm196 = vcmask 1045504
  %v198 = vsel %vm196, %v175, 0
  %200 = vmatpush.bf16.msra.mxu0 %v166
  %201 = vmatpush.bf16.msra.mxu0 %v165
  %202 = vmatpush.bf16.msra.mxu0 %v164
  %203 = vmatpush.bf16.msra.mxu0 %v163
  %204 = vmatpush.bf16.msra.mxu0 %v162
  %205 = vmatpush.bf16.msra.mxu0 %v161
  %206 = vmatpush.bf16.msra.mxu0 %v160
  %207 = vmatpush.bf16.msra.mxu0 %v159
  %208 = vmatmul.bf16.gmra.mxu0 %v54
  %v209 = vpop.f32.mrf.mxu0
  %v210 = vadd.f32 0.0, %v209
  %v211 = vpop.f32.mrf.mxu0
  %212 = vdwg.mxu0
  %213 = vmatpush.bf16.msra.mxu0 %v174
  %214 = vmatpush.bf16.msra.mxu0 %v173
  %215 = vmatpush.bf16.msra.mxu0 %v172
  %216 = vmatpush.bf16.msra.mxu0 %v171
  %217 = vmatpush.bf16.msra.mxu0 %v170
  %218 = vmatpush.bf16.msra.mxu0 %v169
  %219 = vmatpush.bf16.msra.mxu0 %v168
  %220 = vmatpush.bf16.msra.mxu0 %v167
  %221 = vmatmul.bf16.gmra.mxu0 %v55
  %v222 = vpop.f32.mrf.mxu0
  %v223 = vadd.f32 %v210, %v222
  %v224 = vpop.f32.mrf.mxu0
  %225 = vdwg.mxu0
  %226 = vmatpush.bf16.msra.mxu0 0
  %227 = vmatpush.bf16.msra.mxu0 0
  %228 = vmatpush.bf16.msra.mxu0 0
  %229 = vmatpush.bf16.msra.mxu0 0
  %230 = vmatpush.bf16.msra.mxu0 0
  %231 = vmatpush.bf16.msra.mxu0 0
  %232 = vmatpush.bf16.msra.mxu0 0
  %233 = vmatpush.bf16.msra.mxu0 %v198
  %234 = vmatmul.bf16.gmra.mxu0 %v194
  %v235 = vpop.f32.mrf.mxu0
  %v236 = vadd.f32 %v223, %v235
  %v237 = vpop.f32.mrf.mxu0
  %238 = vdwg.mxu0
  %v239 = vld [vmem:[%s4] sm:$0x1]
  %v241 = vperm.slane %v239, 0
  %v243 = vmul.f32 %v236, %v241
  %v244 = vld [vmem:[%s5] sm:$0x1]
  %v246 = vperm.slane %v244, 0
  %v248 = vadd.f32 %v243, %v246
  %v249 = vmax.f32 %v248, 0.0
  %v250 = vpack.c.bf16 %v249, %v249
  %251 = vst [vmem:[%s6] sm:$0xf] %v250
  // Predicated region
  $region26: #{_lambda_.38} parent=0 // pred_check
    _
  $region27: #{_lambda_.38} parent=0 // pred_check_branch
    %253 = sbr.rel (0) target = $region29
  $region28: #{_lambda_.38} parent=0 // pred_region
    _
  $region29: #{_lambda_.38} parent=0 // pred_fallthru
    _
  // Predicated region
  $region30: #{_lambda_.38} parent=0 // pred_check
    _
  $region31: #{_lambda_.38} parent=0 // pred_check_branch
    %255 = sbr.rel (0) target = $region33
  $region32: #{_lambda_.38} parent=0 // pred_region
    _
  $region33: #{_lambda_.38} parent=0 // pred_fallthru
    _

// kernel: _lambda_.39
$region0: #{_lambda_.39}
  #allocation0 [shape = 'u32[]', space=smem, size = 0x4, offset = 0x4, fixed_abs, tag = 'smem constant byte address 0x4 - core index']
  #allocation1 [shape = 'u32[72,128]{1,0:T(1,128)}', space=vmem, size = 0x9000, scoped, tag = 'internal scratch']
  %s0 = inlined_call_operand.vmem [shape: bf16[8,640], index: 0, kind: input, shape index: {}]
  %s1 = inlined_call_operand.vmem [shape: bf16[640,128], index: 1, kind: input, shape index: {}]
  %s2 = inlined_call_operand.vmem [shape: f32[1,128], index: 2, kind: input, shape index: {}]
  %s3 = inlined_call_operand.vmem [shape: f32[1,128], index: 3, kind: input, shape index: {}]
  %s4 = inlined_call_operand.vmem [shape: bf16[8,128], index: 4, kind: output, shape index: {}]
  %s5 = sld [smem:[#allocation0]]
  $region26: #{_lambda_.39} parent=0
    _
  %s7 = ssub.s32 1, %s5
  %s8 = scalar_select 0, %s7, %s5
  // Predicated region
  $region2: #{_lambda_.39} parent=0 // pred_check
    _
  $region3: #{_lambda_.39} parent=0 // pred_check_branch
    %10 = sbr.rel (0) target = $region5
  $region4: #{_lambda_.39} parent=0 // pred_region
    _
  $region5: #{_lambda_.39} parent=0 // pred_fallthru
    _
  // Predicated region
  $region6: #{_lambda_.39} parent=0 // pred_check
    _
  $region7: #{_lambda_.39} parent=0 // pred_check_branch
    %12 = sbr.rel (0) target = $region9
  $region8: #{_lambda_.39} parent=0 // pred_region
    _
  $region9: #{_lambda_.39} parent=0 // pred_fallthru
    _
  // Predicated region
  $region10: #{_lambda_.39} parent=0 // pred_check
    _
  $region11: #{_lambda_.39} parent=0 // pred_check_branch
    %14 = sbr.rel (0) target = $region13
  $region12: #{_lambda_.39} parent=0 // pred_region
    _
  $region13: #{_lambda_.39} parent=0 // pred_fallthru
    _
  // Predicated region
  $region14: #{_lambda_.39} parent=0 // pred_check
    _
  $region15: #{_lambda_.39} parent=0 // pred_check_branch
    %16 = sbr.rel (0) target = $region17
  $region16: #{_lambda_.39} parent=0 // pred_region
    _
  $region17: #{_lambda_.39} parent=0 // pred_fallthru
    _
  %v17 = vld [vmem:[%s0] sm:$0xff]
  %v18 = vld [vmem:[%s0 + $0x8] sm:$0xff]
  %v19 = vld [vmem:[%s0 + $0x10] sm:$0xf]
  %v20 = vld [vmem:[%s1] sm:$0xf]
  %v21 = vld [vmem:[%s1 + $0x4] sm:$0xf]
  %v22 = vld [vmem:[%s1 + $0x8] sm:$0xf]
  %v23 = vld [vmem:[%s1 + $0xc] sm:$0xf]
  %v24 = vld [vmem:[%s1 + $0x10] sm:$0xf]
  %v25 = vld [vmem:[%s1 + $0x14] sm:$0xf]
  %v26 = vld [vmem:[%s1 + $0x18] sm:$0xf]
  %v27 = vld [vmem:[%s1 + $0x1c] sm:$0xf]
  %v28 = vld [vmem:[%s1 + $0x20] sm:$0xf]
  %v29 = vld [vmem:[%s1 + $0x24] sm:$0xf]
  %v30 = vld [vmem:[%s1 + $0x28] sm:$0xf]
  %v31 = vld [vmem:[%s1 + $0x2c] sm:$0xf]
  %v32 = vld [vmem:[%s1 + $0x30] sm:$0xf]
  %v33 = vld [vmem:[%s1 + $0x34] sm:$0xf]
  %v34 = vld [vmem:[%s1 + $0x38] sm:$0xf]
  %v35 = vld [vmem:[%s1 + $0x3c] sm:$0xf]
  %v36 = vld [vmem:[%s1 + $0x40] sm:$0xf]
  %v37 = vld [vmem:[%s1 + $0x44] sm:$0xf]
  %v38 = vld [vmem:[%s1 + $0x48] sm:$0xf]
  %v39 = vld [vmem:[%s1 + $0x4c] sm:$0xf]
  %v40 = vld [vmem:[%s1 + $0x50] sm:$0xf]
  %v41 = vld [vmem:[%s1 + $0x54] sm:$0xf]
  %v42 = vld [vmem:[%s1 + $0x58] sm:$0xf]
  %v43 = vld [vmem:[%s1 + $0x5c] sm:$0xf]
  %v44 = vld [vmem:[%s1 + $0x60] sm:$0xf]
  %v45 = vld [vmem:[%s1 + $0x64] sm:$0xf]
  %v46 = vld [vmem:[%s1 + $0x68] sm:$0xf]
  %v47 = vld [vmem:[%s1 + $0x6c] sm:$0xf]
  %v48 = vld [vmem:[%s1 + $0x70] sm:$0xf]
  %v49 = vld [vmem:[%s1 + $0x74] sm:$0xf]
  %v50 = vld [vmem:[%s1 + $0x78] sm:$0xf]
  %v51 = vld [vmem:[%s1 + $0x7c] sm:$0xf]
  %v52 = vld [vmem:[%s1 + $0x80] sm:$0xf]
  %v53 = vld [vmem:[%s1 + $0x84] sm:$0xf]
  %v54 = vld [vmem:[%s1 + $0x88] sm:$0xf]
  %v55 = vld [vmem:[%s1 + $0x8c] sm:$0xf]
  %v56 = vld [vmem:[%s1 + $0x90] sm:$0xf]
  %v57 = vld [vmem:[%s1 + $0x94] sm:$0xf]
  %v58 = vld [vmem:[%s1 + $0x98] sm:$0xf]
  %v59 = vld [vmem:[%s1 + $0x9c] sm:$0xf]
  %v60 = vld [vmem:[%s1 + $0xa0] sm:$0xf]
  %v61 = vld [vmem:[%s1 + $0xa4] sm:$0xf]
  %v62 = vld [vmem:[%s1 + $0xa8] sm:$0xf]
  %v63 = vld [vmem:[%s1 + $0xac] sm:$0xf]
  %v64 = vld [vmem:[%s1 + $0xb0] sm:$0xf]
  %v65 = vld [vmem:[%s1 + $0xb4] sm:$0xf]
  %v66 = vld [vmem:[%s1 + $0xb8] sm:$0xf]
  %v67 = vld [vmem:[%s1 + $0xbc] sm:$0xf]
  %v68 = vld [vmem:[%s1 + $0xc0] sm:$0xf]
  %v69 = vld [vmem:[%s1 + $0xc4] sm:$0xf]
  %v70 = vld [vmem:[%s1 + $0xc8] sm:$0xf]
  %v71 = vld [vmem:[%s1 + $0xcc] sm:$0xf]
  %v72 = vld [vmem:[%s1 + $0xd0] sm:$0xf]
  %v73 = vld [vmem:[%s1 + $0xd4] sm:$0xf]
  %v74 = vld [vmem:[%s1 + $0xd8] sm:$0xf]
  %v75 = vld [vmem:[%s1 + $0xdc] sm:$0xf]
  %v76 = vld [vmem:[%s1 + $0xe0] sm:$0xf]
  %v77 = vld [vmem:[%s1 + $0xe4] sm:$0xf]
  %v78 = vld [vmem:[%s1 + $0xe8] sm:$0xf]
  %v79 = vld [vmem:[%s1 + $0xec] sm:$0xf]
  %v80 = vld [vmem:[%s1 + $0xf0] sm:$0xf]
  %v81 = vld [vmem:[%s1 + $0xf4] sm:$0xf]
  %v82 = vld [vmem:[%s1 + $0xf8] sm:$0xf]
  %v83 = vld [vmem:[%s1 + $0xfc] sm:$0xf]
  %v84 = vld [vmem:[%s1 + $0x100] sm:$0xf]
  %v85 = vld [vmem:[%s1 + $0x104] sm:$0xf]
  %v86 = vld [vmem:[%s1 + $0x108] sm:$0xf]
  %v87 = vld [vmem:[%s1 + $0x10c] sm:$0xf]
  %v88 = vld [vmem:[%s1 + $0x110] sm:$0xf]
  %v89 = vld [vmem:[%s1 + $0x114] sm:$0xf]
  %v90 = vld [vmem:[%s1 + $0x118] sm:$0xf]
  %v91 = vld [vmem:[%s1 + $0x11c] sm:$0xf]
  %v92 = vld [vmem:[%s1 + $0x120] sm:$0xf]
  %v93 = vld [vmem:[%s1 + $0x124] sm:$0xf]
  %v94 = vld [vmem:[%s1 + $0x128] sm:$0xf]
  %v95 = vld [vmem:[%s1 + $0x12c] sm:$0xf]
  %v96 = vld [vmem:[%s1 + $0x130] sm:$0xf]
  %v97 = vld [vmem:[%s1 + $0x134] sm:$0xf]
  %v98 = vld [vmem:[%s1 + $0x138] sm:$0xf]
  %v99 = vld [vmem:[%s1 + $0x13c] sm:$0xf]
  %v103 = vunpack.c.l.b16 %v17
  %v104 = vunpack.c.h.b16 %v17
  %v105 = vunpack.c.l.b16 %v18
  %v106 = vunpack.c.h.b16 %v18
  %v107 = vunpack.c.l.b16 %v19
  %v108 = vpack.c.b16 %v103, %v103
  %v109 = vpack.c.b16 %v104, %v104
  %v110 = vpack.c.b16 %v105, %v105
  %v111 = vpack.c.b16 %v106, %v106
  %v112 = vpack.c.b16 %v107, %v107
  %v198 = vunpack.c.l.b16 %v20
  %v199 = vunpack.c.l.b16 %v21
  %v200 = vunpack.c.l.b16 %v22
  %v201 = vunpack.c.l.b16 %v23
  %v202 = vunpack.c.l.b16 %v24
  %v203 = vunpack.c.l.b16 %v25
  %v204 = vunpack.c.l.b16 %v26
  %v205 = vunpack.c.l.b16 %v27
  %v206 = vunpack.c.l.b16 %v28
  %v207 = vunpack.c.l.b16 %v29
  %v208 = vunpack.c.l.b16 %v30
  %v209 = vunpack.c.l.b16 %v31
  %v210 = vunpack.c.l.b16 %v32
  %v211 = vunpack.c.l.b16 %v33
  %v212 = vunpack.c.l.b16 %v34
  %v213 = vunpack.c.l.b16 %v35
  %v214 = vunpack.c.l.b16 %v36
  %v215 = vunpack.c.l.b16 %v37
  %v216 = vunpack.c.l.b16 %v38
  %v217 = vunpack.c.l.b16 %v39
  %v218 = vunpack.c.l.b16 %v40
  %v219 = vunpack.c.l.b16 %v41
  %v220 = vunpack.c.l.b16 %v42
  %v221 = vunpack.c.l.b16 %v43
  %v222 = vunpack.c.l.b16 %v44
  %v223 = vunpack.c.l.b16 %v45
  %v224 = vunpack.c.l.b16 %v46
  %v225 = vunpack.c.l.b16 %v47
  %v226 = vunpack.c.l.b16 %v48
  %v227 = vunpack.c.l.b16 %v49
  %v228 = vunpack.c.l.b16 %v50
  %v229 = vunpack.c.l.b16 %v51
  %v230 = vunpack.c.l.b16 %v52
  %v231 = vunpack.c.l.b16 %v53
  %v232 = vunpack.c.l.b16 %v54
  %v233 = vunpack.c.l.b16 %v55
  %v234 = vunpack.c.l.b16 %v56
  %v235 = vunpack.c.l.b16 %v57
  %v236 = vunpack.c.l.b16 %v58
  %v237 = vunpack.c.l.b16 %v59
  %v238 = vunpack.c.l.b16 %v60
  %v239 = vunpack.c.l.b16 %v61
  %v240 = vunpack.c.l.b16 %v62
  %v241 = vunpack.c.l.b16 %v63
  %v242 = vunpack.c.l.b16 %v64
  %v243 = vunpack.c.l.b16 %v65
  %v244 = vunpack.c.l.b16 %v66
  %v245 = vunpack.c.l.b16 %v67
  %v246 = vunpack.c.l.b16 %v68
  %v247 = vunpack.c.l.b16 %v69
  %v248 = vunpack.c.l.b16 %v70
  %v249 = vunpack.c.l.b16 %v71
  %v250 = vunpack.c.l.b16 %v72
  %v251 = vunpack.c.l.b16 %v73
  %v252 = vunpack.c.l.b16 %v74
  %v253 = vunpack.c.l.b16 %v75
  %v254 = vunpack.c.l.b16 %v76
  %v255 = vunpack.c.l.b16 %v77
  %v256 = vunpack.c.l.b16 %v78
  %v257 = vunpack.c.l.b16 %v79
  %v258 = vunpack.c.l.b16 %v80
  %v259 = vunpack.c.l.b16 %v81
  %v260 = vunpack.c.l.b16 %v82
  %v261 = vunpack.c.l.b16 %v83
  %v262 = vunpack.c.l.b16 %v84
  %v263 = vunpack.c.l.b16 %v85
  %v264 = vunpack.c.l.b16 %v86
  %v265 = vunpack.c.l.b16 %v87
  %v266 = vunpack.c.l.b16 %v88
  %v267 = vunpack.c.l.b16 %v89
  %v268 = vunpack.c.l.b16 %v90
  %v269 = vunpack.c.l.b16 %v91
  %v270 = vunpack.c.l.b16 %v92
  %v271 = vunpack.c.l.b16 %v93
  %v272 = vunpack.c.l.b16 %v94
  %v273 = vunpack.c.l.b16 %v95
  %v274 = vunpack.c.l.b16 %v96
  %v275 = vunpack.c.l.b16 %v97
  %v276 = vunpack.c.l.b16 %v98
  %v277 = vunpack.c.l.b16 %v99
  %v278 = vpack.c.b16 %v199, %v198
  %v279 = vpack.c.b16 %v201, %v200
  %v280 = vpack.c.b16 %v203, %v202
  %v281 = vpack.c.b16 %v205, %v204
  %v282 = vpack.c.b16 %v207, %v206
  %v283 = vpack.c.b16 %v209, %v208
  %v284 = vpack.c.b16 %v211, %v210
  %v285 = vpack.c.b16 %v213, %v212
  %v286 = vpack.c.b16 %v215, %v214
  %v287 = vpack.c.b16 %v217, %v216
  %v288 = vpack.c.b16 %v219, %v218
  %v289 = vpack.c.b16 %v221, %v220
  %v290 = vpack.c.b16 %v223, %v222
  %v291 = vpack.c.b16 %v225, %v224
  %v292 = vpack.c.b16 %v227, %v226
  %v293 = vpack.c.b16 %v229, %v228
  %v294 = vpack.c.b16 %v231, %v230
  %v295 = vpack.c.b16 %v233, %v232
  %v296 = vpack.c.b16 %v235, %v234
  %v297 = vpack.c.b16 %v237, %v236
  %v298 = vpack.c.b16 %v239, %v238
  %v299 = vpack.c.b16 %v241, %v240
  %v300 = vpack.c.b16 %v243, %v242
  %v301 = vpack.c.b16 %v245, %v244
  %v302 = vpack.c.b16 %v247, %v246
  %v303 = vpack.c.b16 %v249, %v248
  %v304 = vpack.c.b16 %v251, %v250
  %v305 = vpack.c.b16 %v253, %v252
  %v306 = vpack.c.b16 %v255, %v254
  %v307 = vpack.c.b16 %v257, %v256
  %v308 = vpack.c.b16 %v259, %v258
  %v309 = vpack.c.b16 %v261, %v260
  %v310 = vpack.c.b16 %v263, %v262
  %v311 = vpack.c.b16 %v265, %v264
  %v312 = vpack.c.b16 %v267, %v266
  %v313 = vpack.c.b16 %v269, %v268
  %v314 = vpack.c.b16 %v271, %v270
  %v315 = vpack.c.b16 %v273, %v272
  %v316 = vpack.c.b16 %v275, %v274
  %v317 = vpack.c.b16 %v277, %v276
  %358 = vmatpush.bf16.msra.mxu0 %v285
  %359 = vmatpush.bf16.msra.mxu0 %v284
  %360 = vmatpush.bf16.msra.mxu0 %v283
  %361 = vmatpush.bf16.msra.mxu0 %v282
  %362 = vmatpush.bf16.msra.mxu0 %v281
  %363 = vmatpush.bf16.msra.mxu0 %v280
  %364 = vmatpush.bf16.msra.mxu0 %v279
  %365 = vmatpush.bf16.msra.mxu0 %v278
  %366 = vmatmul.bf16.gmra.mxu0 %v108
  %v367 = vpop.f32.mrf.mxu0
  %v368 = vadd.f32 0.0, %v367
  %v369 = vpop.f32.mrf.mxu0
  %370 = vdwg.mxu0
  %371 = vmatpush.bf16.msra.mxu0 %v293
  %372 = vmatpush.bf16.msra.mxu0 %v292
  %373 = vmatpush.bf16.msra.mxu0 %v291
  %374 = vmatpush.bf16.msra.mxu0 %v290
  %375 = vmatpush.bf16.msra.mxu0 %v289
  %376 = vmatpush.bf16.msra.mxu0 %v288
  %377 = vmatpush.bf16.msra.mxu0 %v287
  %378 = vmatpush.bf16.msra.mxu0 %v286
  %379 = vmatmul.bf16.gmra.mxu0 %v109
  %v380 = vpop.f32.mrf.mxu0
  %v381 = vadd.f32 %v368, %v380
  %v382 = vpop.f32.mrf.mxu0
  %383 = vdwg.mxu0
  %384 = vmatpush.bf16.msra.mxu0 %v301
  %385 = vmatpush.bf16.msra.mxu0 %v300
  %386 = vmatpush.bf16.msra.mxu0 %v299
  %387 = vmatpush.bf16.msra.mxu0 %v298
  %388 = vmatpush.bf16.msra.mxu0 %v297
  %389 = vmatpush.bf16.msra.mxu0 %v296
  %390 = vmatpush.bf16.msra.mxu0 %v295
  %391 = vmatpush.bf16.msra.mxu0 %v294
  %392 = vmatmul.bf16.gmra.mxu0 %v110
  %v393 = vpop.f32.mrf.mxu0
  %v394 = vadd.f32 %v381, %v393
  %v395 = vpop.f32.mrf.mxu0
  %396 = vdwg.mxu0
  %397 = vmatpush.bf16.msra.mxu0 %v309
  %398 = vmatpush.bf16.msra.mxu0 %v308
  %399 = vmatpush.bf16.msra.mxu0 %v307
  %400 = vmatpush.bf16.msra.mxu0 %v306
  %401 = vmatpush.bf16.msra.mxu0 %v305
  %402 = vmatpush.bf16.msra.mxu0 %v304
  %403 = vmatpush.bf16.msra.mxu0 %v303
  %404 = vmatpush.bf16.msra.mxu0 %v302
  %405 = vmatmul.bf16.gmra.mxu0 %v111
  %v406 = vpop.f32.mrf.mxu0
  %v407 = vadd.f32 %v394, %v406
  %v408 = vpop.f32.mrf.mxu0
  %409 = vdwg.mxu0
  %410 = vmatpush.bf16.msra.mxu0 %v317
  %411 = vmatpush.bf16.msra.mxu0 %v316
  %412 = vmatpush.bf16.msra.mxu0 %v315
  %413 = vmatpush.bf16.msra.mxu0 %v314
  %414 = vmatpush.bf16.msra.mxu0 %v313
  %415 = vmatpush.bf16.msra.mxu0 %v312
  %416 = vmatpush.bf16.msra.mxu0 %v311
  %417 = vmatpush.bf16.msra.mxu0 %v310
  %418 = vmatmul.bf16.gmra.mxu0 %v112
  %v419 = vpop.f32.mrf.mxu0
  %v420 = vadd.f32 %v407, %v419
  %v421 = vpop.f32.mrf.mxu0
  %422 = vdwg.mxu0
  %v423 = vld [vmem:[%s2] sm:$0x1]
  %v425 = vperm.slane %v423, 0
  %v427 = vmul.f32 %v420, %v425
  %v428 = vld [vmem:[%s3] sm:$0x1]
  %v430 = vperm.slane %v428, 0
  %v432 = vadd.f32 %v427, %v430
  %v433 = vmax.f32 %v432, 0.0
  %v434 = vpack.c.bf16 %v433, %v433
  %435 = vst [vmem:[%s4] sm:$0xf] %v434
  // Predicated region
  $region18: #{_lambda_.39} parent=0 // pred_check
    _
  $region19: #{_lambda_.39} parent=0 // pred_check_branch
    %437 = sbr.rel (0) target = $region21
  $region20: #{_lambda_.39} parent=0 // pred_region
    _
  $region21: #{_lambda_.39} parent=0 // pred_fallthru
    _
  // Predicated region
  $region22: #{_lambda_.39} parent=0 // pred_check
    _
  $region23: #{_lambda_.39} parent=0 // pred_check_branch
    %439 = sbr.rel (0) target = $region25
  $region24: #{_lambda_.39} parent=0 // pred_region
    _
  $region25: #{_lambda_.39} parent=0 // pred_fallthru
    _

// kernel: _lambda_.40
$region0: #{_lambda_.40}
  #allocation0 [shape = 'u32[]', space=smem, size = 0x4, offset = 0x4, fixed_abs, tag = 'smem constant byte address 0x4 - core index']
  #allocation1 [shape = 'u32[72,128]{1,0:T(1,128)}', space=vmem, size = 0x9000, scoped, tag = 'internal scratch']
  %s0 = inlined_call_operand.vmem [shape: bf16[8,64], index: 0, kind: input, shape index: {}]
  %s1 = inlined_call_operand.vmem [shape: bf16[64,640], index: 1, kind: input, shape index: {}]
  %s2 = inlined_call_operand.vmem [shape: bf16[8,640], index: 2, kind: output, shape index: {}]
  %s3 = sld [smem:[#allocation0]]
  $region18: #{_lambda_.40} parent=0
    _
  %s5 = ssub.s32 1, %s3
  %s6 = scalar_select 0, %s5, %s3
  // Predicated region
  $region2: #{_lambda_.40} parent=0 // pred_check
    _
  $region3: #{_lambda_.40} parent=0 // pred_check_branch
    %8 = sbr.rel (0) target = $region5
  $region4: #{_lambda_.40} parent=0 // pred_region
    _
  $region5: #{_lambda_.40} parent=0 // pred_fallthru
    _
  // Predicated region
  $region6: #{_lambda_.40} parent=0 // pred_check
    _
  $region7: #{_lambda_.40} parent=0 // pred_check_branch
    %10 = sbr.rel (0) target = $region9
  $region8: #{_lambda_.40} parent=0 // pred_region
    _
  $region9: #{_lambda_.40} parent=0 // pred_fallthru
    _
  %v12 = vld [vmem:[%s0] sm:$0xf]
  %v13 = vld [vmem:[%s1] sm:$0xff]
  %v14 = vld [vmem:[%s1 + $0x8] sm:$0xff]
  %v15 = vld [vmem:[%s1 + $0x10] sm:$0xf]
  %v16 = vld [vmem:[%s1 + $0x14] sm:$0xff]
  %v17 = vld [vmem:[%s1 + $0x1c] sm:$0xff]
  %v18 = vld [vmem:[%s1 + $0x24] sm:$0xf]
  %v19 = vld [vmem:[%s1 + $0x28] sm:$0xff]
  %v20 = vld [vmem:[%s1 + $0x30] sm:$0xff]
  %v21 = vld [vmem:[%s1 + $0x38] sm:$0xf]
  %v22 = vld [vmem:[%s1 + $0x3c] sm:$0xff]
  %v23 = vld [vmem:[%s1 + $0x44] sm:$0xff]
  %v24 = vld [vmem:[%s1 + $0x4c] sm:$0xf]
  %v25 = vld [vmem:[%s1 + $0x50] sm:$0xff]
  %v26 = vld [vmem:[%s1 + $0x58] sm:$0xff]
  %v27 = vld [vmem:[%s1 + $0x60] sm:$0xf]
  %v28 = vld [vmem:[%s1 + $0x64] sm:$0xff]
  %v29 = vld [vmem:[%s1 + $0x6c] sm:$0xff]
  %v30 = vld [vmem:[%s1 + $0x74] sm:$0xf]
  %v31 = vld [vmem:[%s1 + $0x78] sm:$0xff]
  %v32 = vld [vmem:[%s1 + $0x80] sm:$0xff]
  %v33 = vld [vmem:[%s1 + $0x88] sm:$0xf]
  %v34 = vld [vmem:[%s1 + $0x8c] sm:$0xff]
  %v35 = vld [vmem:[%s1 + $0x94] sm:$0xff]
  %v36 = vld [vmem:[%s1 + $0x9c] sm:$0xf]
  %v61 = vunpack.c.l.b16 %v13
  %v62 = vunpack.c.h.b16 %v13
  %v63 = vunpack.c.l.b16 %v14
  %v64 = vunpack.c.h.b16 %v14
  %v65 = vunpack.c.l.b16 %v15
  %v66 = vunpack.c.l.b16 %v16
  %v67 = vunpack.c.h.b16 %v16
  %v68 = vunpack.c.l.b16 %v17
  %v69 = vunpack.c.h.b16 %v17
  %v70 = vunpack.c.l.b16 %v18
  %v71 = vunpack.c.l.b16 %v19
  %v72 = vunpack.c.h.b16 %v19
  %v73 = vunpack.c.l.b16 %v20
  %v74 = vunpack.c.h.b16 %v20
  %v75 = vunpack.c.l.b16 %v21
  %v76 = vunpack.c.l.b16 %v22
  %v77 = vunpack.c.h.b16 %v22
  %v78 = vunpack.c.l.b16 %v23
  %v79 = vunpack.c.h.b16 %v23
  %v80 = vunpack.c.l.b16 %v24
  %v81 = vunpack.c.l.b16 %v25
  %v82 = vunpack.c.h.b16 %v25
  %v83 = vunpack.c.l.b16 %v26
  %v84 = vunpack.c.h.b16 %v26
  %v85 = vunpack.c.l.b16 %v27
  %v86 = vunpack.c.l.b16 %v28
  %v87 = vunpack.c.h.b16 %v28
  %v88 = vunpack.c.l.b16 %v29
  %v89 = vunpack.c.h.b16 %v29
  %v90 = vunpack.c.l.b16 %v30
  %v91 = vunpack.c.l.b16 %v31
  %v92 = vunpack.c.h.b16 %v31
  %v93 = vunpack.c.l.b16 %v32
  %v94 = vunpack.c.h.b16 %v32
  %v95 = vunpack.c.l.b16 %v33
  %v96 = vunpack.c.l.b16 %v34
  %v97 = vunpack.c.h.b16 %v34
  %v98 = vunpack.c.l.b16 %v35
  %v99 = vunpack.c.h.b16 %v35
  %v100 = vunpack.c.l.b16 %v36
  %v101 = vpack.c.b16 %v66, %v61
  %v102 = vpack.c.b16 %v67, %v62
  %v103 = vpack.c.b16 %v68, %v63
  %v104 = vpack.c.b16 %v69, %v64
  %v105 = vpack.c.b16 %v70, %v65
  %v106 = vpack.c.b16 %v76, %v71
  %v107 = vpack.c.b16 %v77, %v72
  %v108 = vpack.c.b16 %v78, %v73
  %v109 = vpack.c.b16 %v79, %v74
  %v110 = vpack.c.b16 %v80, %v75
  %v111 = vpack.c.b16 %v86, %v81
  %v112 = vpack.c.b16 %v87, %v82
  %v113 = vpack.c.b16 %v88, %v83
  %v114 = vpack.c.b16 %v89, %v84
  %v115 = vpack.c.b16 %v90, %v85
  %v116 = vpack.c.b16 %v96, %v91
  %v117 = vpack.c.b16 %v97, %v92
  %v118 = vpack.c.b16 %v98, %v93
  %v119 = vpack.c.b16 %v99, %v94
  %v120 = vpack.c.b16 %v100, %v95
  %vm141 = vcmask 523264
  %v143 = vsel %vm141, %v12, 0
  %145 = vmatpush.bf16.msra.mxu0 0
  %146 = vmatpush.bf16.msra.mxu0 0
  %147 = vmatpush.bf16.msra.mxu0 0
  %148 = vmatpush.bf16.msra.mxu0 0
  %149 = vmatpush.bf16.msra.mxu0 %v116
  %150 = vmatpush.bf16.msra.mxu0 %v111
  %151 = vmatpush.bf16.msra.mxu0 %v106
  %152 = vmatpush.bf16.msra.mxu0 %v101
  %153 = vmatmul.bf16.gmra.mxu0 %v143
  %v154 = vpop.f32.mrf.mxu0
  %v155 = vadd.f32 0.0, %v154
  %v156 = vpop.f32.mrf.mxu0
  %157 = vdwg.mxu0
  %158 = vmatpush.bf16.msra.mxu0 0
  %159 = vmatpush.bf16.msra.mxu0 0
  %160 = vmatpush.bf16.msra.mxu0 0
  %161 = vmatpush.bf16.msra.mxu0 0
  %162 = vmatpush.bf16.msra.mxu0 %v117
  %163 = vmatpush.bf16.msra.mxu0 %v112
  %164 = vmatpush.bf16.msra.mxu0 %v107
  %165 = vmatpush.bf16.msra.mxu0 %v102
  %166 = vmatmul.bf16.gmra.mxu0 %v143
  %v167 = vpop.f32.mrf.mxu0
  %v168 = vadd.f32 0.0, %v167
  %v169 = vpop.f32.mrf.mxu0
  %170 = vdwg.mxu0
  %171 = vmatpush.bf16.msra.mxu0 0
  %172 = vmatpush.bf16.msra.mxu0 0
  %173 = vmatpush.bf16.msra.mxu0 0
  %174 = vmatpush.bf16.msra.mxu0 0
  %175 = vmatpush.bf16.msra.mxu0 %v118
  %176 = vmatpush.bf16.msra.mxu0 %v113
  %177 = vmatpush.bf16.msra.mxu0 %v108
  %178 = vmatpush.bf16.msra.mxu0 %v103
  %179 = vmatmul.bf16.gmra.mxu0 %v143
  %v180 = vpop.f32.mrf.mxu0
  %v181 = vadd.f32 0.0, %v180
  %v182 = vpop.f32.mrf.mxu0
  %183 = vdwg.mxu0
  %184 = vmatpush.bf16.msra.mxu0 0
  %185 = vmatpush.bf16.msra.mxu0 0
  %186 = vmatpush.bf16.msra.mxu0 0
  %187 = vmatpush.bf16.msra.mxu0 0
  %188 = vmatpush.bf16.msra.mxu0 %v119
  %189 = vmatpush.bf16.msra.mxu0 %v114
  %190 = vmatpush.bf16.msra.mxu0 %v109
  %191 = vmatpush.bf16.msra.mxu0 %v104
  %192 = vmatmul.bf16.gmra.mxu0 %v143
  %v193 = vpop.f32.mrf.mxu0
  %v194 = vadd.f32 0.0, %v193
  %v195 = vpop.f32.mrf.mxu0
  %196 = vdwg.mxu0
  %197 = vmatpush.bf16.msra.mxu0 0
  %198 = vmatpush.bf16.msra.mxu0 0
  %199 = vmatpush.bf16.msra.mxu0 0
  %200 = vmatpush.bf16.msra.mxu0 0
  %201 = vmatpush.bf16.msra.mxu0 %v120
  %202 = vmatpush.bf16.msra.mxu0 %v115
  %203 = vmatpush.bf16.msra.mxu0 %v110
  %204 = vmatpush.bf16.msra.mxu0 %v105
  %205 = vmatmul.bf16.gmra.mxu0 %v143
  %v206 = vpop.f32.mrf.mxu0
  %v207 = vadd.f32 0.0, %v206
  %v208 = vpop.f32.mrf.mxu0
  %209 = vdwg.mxu0
  %v210 = vpack.c.bf16 %v168, %v155
  %v211 = vpack.c.bf16 %v194, %v181
  %v212 = vpack.c.bf16 %v207, %v207
  %213 = vst [vmem:[%s2] sm:$0xff] %v210
  %214 = vst [vmem:[%s2 + $0x8] sm:$0xff] %v211
  %215 = vst [vmem:[%s2 + $0x10] sm:$0xf] %v212
  // Predicated region
  $region10: #{_lambda_.40} parent=0 // pred_check
    _
  $region11: #{_lambda_.40} parent=0 // pred_check_branch
    %217 = sbr.rel (0) target = $region13
  $region12: #{_lambda_.40} parent=0 // pred_region
    _
  $region13: #{_lambda_.40} parent=0 // pred_fallthru
    _
  // Predicated region
  $region14: #{_lambda_.40} parent=0 // pred_check
    _
  $region15: #{_lambda_.40} parent=0 // pred_check_branch
    %219 = sbr.rel (0) target = $region17
  $region16: #{_lambda_.40} parent=0 // pred_region
    _
  $region17: #{_lambda_.40} parent=0 // pred_fallthru
    _

// kernel: _lambda_.37
$region0: #{_lambda_.37}
  #allocation0 [shape = 'u32[]', space=smem, size = 0x4, offset = 0x4, fixed_abs, tag = 'smem constant byte address 0x4 - core index']
  #allocation1 [shape = 'u32[72,128]{1,0:T(1,128)}', space=vmem, size = 0x9000, scoped, tag = 'internal scratch']
  %s0 = inlined_call_operand.vmem [shape: bf16[8,268], index: 0, kind: input, shape index: {}]
  %s1 = inlined_call_operand.vmem [shape: bf16[268,640], index: 1, kind: input, shape index: {}]
  %s2 = inlined_call_operand.vmem [shape: f32[1,268], index: 2, kind: input, shape index: {}]
  %s3 = inlined_call_operand.vmem [shape: f32[1,268], index: 3, kind: input, shape index: {}]
  %s4 = inlined_call_operand.vmem [shape: bf16[8,640], index: 4, kind: output, shape index: {}]
  %s5 = sld [smem:[#allocation0]]
  $region26: #{_lambda_.37} parent=0
    _
  %s7 = ssub.s32 1, %s5
  %s8 = scalar_select 0, %s7, %s5
  // Predicated region
  $region2: #{_lambda_.37} parent=0 // pred_check
    _
  $region3: #{_lambda_.37} parent=0 // pred_check_branch
    %10 = sbr.rel (0) target = $region5
  $region4: #{_lambda_.37} parent=0 // pred_region
    _
  $region5: #{_lambda_.37} parent=0 // pred_fallthru
    _
  // Predicated region
  $region6: #{_lambda_.37} parent=0 // pred_check
    _
  $region7: #{_lambda_.37} parent=0 // pred_check_branch
    %12 = sbr.rel (0) target = $region9
  $region8: #{_lambda_.37} parent=0 // pred_region
    _
  $region9: #{_lambda_.37} parent=0 // pred_fallthru
    _
  // Predicated region
  $region10: #{_lambda_.37} parent=0 // pred_check
    _
  $region11: #{_lambda_.37} parent=0 // pred_check_branch
    %14 = sbr.rel (0) target = $region13
  $region12: #{_lambda_.37} parent=0 // pred_region
    _
  $region13: #{_lambda_.37} parent=0 // pred_fallthru
    _
  // Predicated region
  $region14: #{_lambda_.37} parent=0 // pred_check
    _
  $region15: #{_lambda_.37} parent=0 // pred_check_branch
    %16 = sbr.rel (0) target = $region17
  $region16: #{_lambda_.37} parent=0 // pred_region
    _
  $region17: #{_lambda_.37} parent=0 // pred_fallthru
    _
  %v18 = vld [vmem:[%s0] sm:$0xff]
  %v19 = vld [vmem:[%s0 + $0x8] sm:$0xf]
  %v20 = vunpack.c.l.bf16 %v18
  %v21 = vunpack.c.h.bf16 %v18
  %v22 = vunpack.c.l.bf16 %v19
  %v23 = vld [vmem:[%s2] sm:$0x7]
  %v25 = vperm.slane %v23, 0
  %v26 = vperm.slane %v23, 1
  %v27 = vperm.slane %v23, 2
  %v31 = vmul.f32 %v20, %v25
  %v32 = vmul.f32 %v21, %v26
  %v33 = vmul.f32 %v22, %v27
  %v34 = vld [vmem:[%s3] sm:$0x7]
  %v36 = vperm.slane %v34, 0
  %v37 = vperm.slane %v34, 1
  %v38 = vperm.slane %v34, 2
  %v42 = vadd.f32 %v31, %v36
  %v43 = vadd.f32 %v32, %v37
  %v44 = vadd.f32 %v33, %v38
  %v45 = vmax.f32 %v42, 0.0
  %v46 = vmax.f32 %v43, 0.0
  %v47 = vmax.f32 %v44, 0.0
  %v48 = vpack.c.bf16 %v45, %v45
  %v49 = vpack.c.bf16 %v46, %v46
  %v50 = vpack.c.bf16 %v47, %v47
  %v51 = vld [vmem:[%s1] sm:$0xff]
  %v52 = vld [vmem:[%s1 + $0x8] sm:$0xff]
  %v53 = vld [vmem:[%s1 + $0x10] sm:$0xf]
  %v54 = vld [vmem:[%s1 + $0x14] sm:$0xff]
  %v55 = vld [vmem:[%s1 + $0x1c] sm:$0xff]
  %v56 = vld [vmem:[%s1 + $0x24] sm:$0xf]
  %v57 = vld [vmem:[%s1 + $0x28] sm:$0xff]
  %v58 = vld [vmem:[%s1 + $0x30] sm:$0xff]
  %v59 = vld [vmem:[%s1 + $0x38] sm:$0xf]
  %v60 = vld [vmem:[%s1 + $0x3c] sm:$0xff]
  %v61 = vld [vmem:[%s1 + $0x44] sm:$0xff]
  %v62 = vld [vmem:[%s1 + $0x4c] sm:$0xf]
  %v63 = vld [vmem:[%s1 + $0x50] sm:$0xff]
  %v64 = vld [vmem:[%s1 + $0x58] sm:$0xff]
  %v65 = vld [vmem:[%s1 + $0x60] sm:$0xf]
  %v66 = vld [vmem:[%s1 + $0x64] sm:$0xff]
  %v67 = vld [vmem:[%s1 + $0x6c] sm:$0xff]
  %v68 = vld [vmem:[%s1 + $0x74] sm:$0xf]
  %v69 = vld [vmem:[%s1 + $0x78] sm:$0xff]
  %v70 = vld [vmem:[%s1 + $0x80] sm:$0xff]
  %v71 = vld [vmem:[%s1 + $0x88] sm:$0xf]
  %v72 = vld [vmem:[%s1 + $0x8c] sm:$0xff]
  %v73 = vld [vmem:[%s1 + $0x94] sm:$0xff]
  %v74 = vld [vmem:[%s1 + $0x9c] sm:$0xf]
  %v75 = vld [vmem:[%s1 + $0xa0] sm:$0xff]
  %v76 = vld [vmem:[%s1 + $0xa8] sm:$0xff]
  %v77 = vld [vmem:[%s1 + $0xb0] sm:$0xf]
  %v78 = vld [vmem:[%s1 + $0xb4] sm:$0xff]
  %v79 = vld [vmem:[%s1 + $0xbc] sm:$0xff]
  %v80 = vld [vmem:[%s1 + $0xc4] sm:$0xf]
  %v81 = vld [vmem:[%s1 + $0xc8] sm:$0xff]
  %v82 = vld [vmem:[%s1 + $0xd0] sm:$0xff]
  %v83 = vld [vmem:[%s1 + $0xd8] sm:$0xf]
  %v84 = vld [vmem:[%s1 + $0xdc] sm:$0xff]
  %v85 = vld [vmem:[%s1 + $0xe4] sm:$0xff]
  %v86 = vld [vmem:[%s1 + $0xec] sm:$0xf]
  %v87 = vld [vmem:[%s1 + $0xf0] sm:$0xff]
  %v88 = vld [vmem:[%s1 + $0xf8] sm:$0xff]
  %v89 = vld [vmem:[%s1 + $0x100] sm:$0xf]
  %v90 = vld [vmem:[%s1 + $0x104] sm:$0xff]
  %v91 = vld [vmem:[%s1 + $0x10c] sm:$0xff]
  %v92 = vld [vmem:[%s1 + $0x114] sm:$0xf]
  %v93 = vld [vmem:[%s1 + $0x118] sm:$0xff]
  %v94 = vld [vmem:[%s1 + $0x120] sm:$0xff]
  %v95 = vld [vmem:[%s1 + $0x128] sm:$0xf]
  %v96 = vld [vmem:[%s1 + $0x12c] sm:$0xff]
  %v97 = vld [vmem:[%s1 + $0x134] sm:$0xff]
  %v98 = vld [vmem:[%s1 + $0x13c] sm:$0xf]
  %v99 = vld [vmem:[%s1 + $0x140] sm:$0xff]
  %v100 = vld [vmem:[%s1 + $0x148] sm:$0xff]
  %v101 = vld [vmem:[%s1 + $0x150] sm:$0xf]
  %v102 = vld [vmem:[%s1 + $0x154] sm:$0xff]
  %v103 = vld [vmem:[%s1 + $0x15c] sm:$0xff]
  %v104 = vld [vmem:[%s1 + $0x164] sm:$0xf]
  %v105 = vld [vmem:[%s1 + $0x168] sm:$0xff]
  %v106 = vld [vmem:[%s1 + $0x170] sm:$0xff]
  %v107 = vld [vmem:[%s1 + $0x178] sm:$0xf]
  %v108 = vld [vmem:[%s1 + $0x17c] sm:$0xff]
  %v109 = vld [vmem:[%s1 + $0x184] sm:$0xff]
  %v110 = vld [vmem:[%s1 + $0x18c] sm:$0xf]
  %v111 = vld [vmem:[%s1 + $0x190] sm:$0xff]
  %v112 = vld [vmem:[%s1 + $0x198] sm:$0xff]
  %v113 = vld [vmem:[%s1 + $0x1a0] sm:$0xf]
  %v114 = vld [vmem:[%s1 + $0x1a4] sm:$0xff]
  %v115 = vld [vmem:[%s1 + $0x1ac] sm:$0xff]
  %v116 = vld [vmem:[%s1 + $0x1b4] sm:$0xf]
  %v117 = vld [vmem:[%s1 + $0x1b8] sm:$0xff]
  %v118 = vld [vmem:[%s1 + $0x1c0] sm:$0xff]
  %v119 = vld [vmem:[%s1 + $0x1c8] sm:$0xf]
  %v120 = vld [vmem:[%s1 + $0x1cc] sm:$0xff]
  %v121 = vld [vmem:[%s1 + $0x1d4] sm:$0xff]
  %v122 = vld [vmem:[%s1 + $0x1dc] sm:$0xf]
  %v123 = vld [vmem:[%s1 + $0x1e0] sm:$0xff]
  %v124 = vld [vmem:[%s1 + $0x1e8] sm:$0xff]
  %v125 = vld [vmem:[%s1 + $0x1f0] sm:$0xf]
  %v126 = vld [vmem:[%s1 + $0x1f4] sm:$0xff]
  %v127 = vld [vmem:[%s1 + $0x1fc] sm:$0xff]
  %v128 = vld [vmem:[%s1 + $0x204] sm:$0xf]
  %v129 = vld [vmem:[%s1 + $0x208] sm:$0xff]
  %v130 = vld [vmem:[%s1 + $0x210] sm:$0xff]
  %v131 = vld [vmem:[%s1 + $0x218] sm:$0xf]
  %v132 = vld [vmem:[%s1 + $0x21c] sm:$0xff]
  %v133 = vld [vmem:[%s1 + $0x224] sm:$0xff]
  %v134 = vld [vmem:[%s1 + $0x22c] sm:$0xf]
  %v135 = vld [vmem:[%s1 + $0x230] sm:$0xff]
  %v136 = vld [vmem:[%s1 + $0x238] sm:$0xff]
  %v137 = vld [vmem:[%s1 + $0x240] sm:$0xf]
  %v138 = vld [vmem:[%s1 + $0x244] sm:$0xff]
  %v139 = vld [vmem:[%s1 + $0x24c] sm:$0xff]
  %v140 = vld [vmem:[%s1 + $0x254] sm:$0xf]
  %v141 = vld [vmem:[%s1 + $0x258] sm:$0xff]
  %v142 = vld [vmem:[%s1 + $0x260] sm:$0xff]
  %v143 = vld [vmem:[%s1 + $0x268] sm:$0xf]
  %v144 = vld [vmem:[%s1 + $0x26c] sm:$0xff]
  %v145 = vld [vmem:[%s1 + $0x274] sm:$0xff]
  %v146 = vld [vmem:[%s1 + $0x27c] sm:$0xf]
  %v147 = vld [vmem:[%s1 + $0x280] sm:$0xff]
  %v148 = vld [vmem:[%s1 + $0x288] sm:$0xff]
  %v149 = vld [vmem:[%s1 + $0x290] sm:$0xf]
  %v150 = vld [vmem:[%s1 + $0x294] sm:$0x33]
  %v151 = vld [vmem:[%s1 + $0x29c] sm:$0x33]
  %v152 = vld [vmem:[%s1 + $0x2a4] sm:$0x3]
  %v255 = vunpack.c.l.b16 %v51
  %v256 = vunpack.c.h.b16 %v51
  %v257 = vunpack.c.l.b16 %v52
  %v258 = vunpack.c.h.b16 %v52
  %v259 = vunpack.c.l.b16 %v53
  %v260 = vunpack.c.l.b16 %v54
  %v261 = vunpack.c.h.b16 %v54
  %v262 = vunpack.c.l.b16 %v55
  %v263 = vunpack.c.h.b16 %v55
  %v264 = vunpack.c.l.b16 %v56
  %v265 = vunpack.c.l.b16 %v57
  %v266 = vunpack.c.h.b16 %v57
  %v267 = vunpack.c.l.b16 %v58
  %v268 = vunpack.c.h.b16 %v58
  %v269 = vunpack.c.l.b16 %v59
  %v270 = vunpack.c.l.b16 %v60
  %v271 = vunpack.c.h.b16 %v60
  %v272 = vunpack.c.l.b16 %v61
  %v273 = vunpack.c.h.b16 %v61
  %v274 = vunpack.c.l.b16 %v62
  %v275 = vunpack.c.l.b16 %v63
  %v276 = vunpack.c.h.b16 %v63
  %v277 = vunpack.c.l.b16 %v64
  %v278 = vunpack.c.h.b16 %v64
  %v279 = vunpack.c.l.b16 %v65
  %v280 = vunpack.c.l.b16 %v66
  %v281 = vunpack.c.h.b16 %v66
  %v282 = vunpack.c.l.b16 %v67
  %v283 = vunpack.c.h.b16 %v67
  %v284 = vunpack.c.l.b16 %v68
  %v285 = vunpack.c.l.b16 %v69
  %v286 = vunpack.c.h.b16 %v69
  %v287 = vunpack.c.l.b16 %v70
  %v288 = vunpack.c.h.b16 %v70
  %v289 = vunpack.c.l.b16 %v71
  %v290 = vunpack.c.l.b16 %v72
  %v291 = vunpack.c.h.b16 %v72
  %v292 = vunpack.c.l.b16 %v73
  %v293 = vunpack.c.h.b16 %v73
  %v294 = vunpack.c.l.b16 %v74
  %v295 = vunpack.c.l.b16 %v75
  %v296 = vunpack.c.h.b16 %v75
  %v297 = vunpack.c.l.b16 %v76
  %v298 = vunpack.c.h.b16 %v76
  %v299 = vunpack.c.l.b16 %v77
  %v300 = vunpack.c.l.b16 %v78
  %v301 = vunpack.c.h.b16 %v78
  %v302 = vunpack.c.l.b16 %v79
  %v303 = vunpack.c.h.b16 %v79
  %v304 = vunpack.c.l.b16 %v80
  %v305 = vunpack.c.l.b16 %v81
  %v306 = vunpack.c.h.b16 %v81
  %v307 = vunpack.c.l.b16 %v82
  %v308 = vunpack.c.h.b16 %v82
  %v309 = vunpack.c.l.b16 %v83
  %v310 = vunpack.c.l.b16 %v84
  %v311 = vunpack.c.h.b16 %v84
  %v312 = vunpack.c.l.b16 %v85
  %v313 = vunpack.c.h.b16 %v85
  %v314 = vunpack.c.l.b16 %v86
  %v315 = vunpack.c.l.b16 %v87
  %v316 = vunpack.c.h.b16 %v87
  %v317 = vunpack.c.l.b16 %v88
  %v318 = vunpack.c.h.b16 %v88
  %v319 = vunpack.c.l.b16 %v89
  %v320 = vunpack.c.l.b16 %v90
  %v321 = vunpack.c.h.b16 %v90
  %v322 = vunpack.c.l.b16 %v91
  %v323 = vunpack.c.h.b16 %v91
  %v324 = vunpack.c.l.b16 %v92
  %v325 = vunpack.c.l.b16 %v93
  %v326 = vunpack.c.h.b16 %v93
  %v327 = vunpack.c.l.b16 %v94
  %v328 = vunpack.c.h.b16 %v94
  %v329 = vunpack.c.l.b16 %v95
  %v330 = vunpack.c.l.b16 %v96
  %v331 = vunpack.c.h.b16 %v96
  %v332 = vunpack.c.l.b16 %v97
  %v333 = vunpack.c.h.b16 %v97
  %v334 = vunpack.c.l.b16 %v98
  %v335 = vunpack.c.l.b16 %v99
  %v336 = vunpack.c.h.b16 %v99
  %v337 = vunpack.c.l.b16 %v100
  %v338 = vunpack.c.h.b16 %v100
  %v339 = vunpack.c.l.b16 %v101
  %v340 = vunpack.c.l.b16 %v102
  %v341 = vunpack.c.h.b16 %v102
  %v342 = vunpack.c.l.b16 %v103
  %v343 = vunpack.c.h.b16 %v103
  %v344 = vunpack.c.l.b16 %v104
  %v345 = vunpack.c.l.b16 %v105
  %v346 = vunpack.c.h.b16 %v105
  %v347 = vunpack.c.l.b16 %v106
  %v348 = vunpack.c.h.b16 %v106
  %v349 = vunpack.c.l.b16 %v107
  %v350 = vunpack.c.l.b16 %v108
  %v351 = vunpack.c.h.b16 %v108
  %v352 = vunpack.c.l.b16 %v109
  %v353 = vunpack.c.h.b16 %v109
  %v354 = vunpack.c.l.b16 %v110
  %v355 = vunpack.c.l.b16 %v111
  %v356 = vunpack.c.h.b16 %v111
  %v357 = vunpack.c.l.b16 %v112
  %v358 = vunpack.c.h.b16 %v112
  %v359 = vunpack.c.l.b16 %v113
  %v360 = vunpack.c.l.b16 %v114
  %v361 = vunpack.c.h.b16 %v114
  %v362 = vunpack.c.l.b16 %v115
  %v363 = vunpack.c.h.b16 %v115
  %v364 = vunpack.c.l.b16 %v116
  %v365 = vunpack.c.l.b16 %v117
  %v366 = vunpack.c.h.b16 %v117
  %v367 = vunpack.c.l.b16 %v118
  %v368 = vunpack.c.h.b16 %v118
  %v369 = vunpack.c.l.b16 %v119
  %v370 = vunpack.c.l.b16 %v120
  %v371 = vunpack.c.h.b16 %v120
  %v372 = vunpack.c.l.b16 %v121
  %v373 = vunpack.c.h.b16 %v121
  %v374 = vunpack.c.l.b16 %v122
  %v375 = vunpack.c.l.b16 %v123
  %v376 = vunpack.c.h.b16 %v123
  %v377 = vunpack.c.l.b16 %v124
  %v378 = vunpack.c.h.b16 %v124
  %v379 = vunpack.c.l.b16 %v125
  %v380 = vunpack.c.l.b16 %v126
  %v381 = vunpack.c.h.b16 %v126
  %v382 = vunpack.c.l.b16 %v127
  %v383 = vunpack.c.h.b16 %v127
  %v384 = vunpack.c.l.b16 %v128
  %v385 = vunpack.c.l.b16 %v129
  %v386 = vunpack.c.h.b16 %v129
  %v387 = vunpack.c.l.b16 %v130
  %v388 = vunpack.c.h.b16 %v130
  %v389 = vunpack.c.l.b16 %v131
  %v390 = vunpack.c.l.b16 %v132
  %v391 = vunpack.c.h.b16 %v132
  %v392 = vunpack.c.l.b16 %v133
  %v393 = vunpack.c.h.b16 %v133
  %v394 = vunpack.c.l.b16 %v134
  %v395 = vunpack.c.l.b16 %v135
  %v396 = vunpack.c.h.b16 %v135
  %v397 = vunpack.c.l.b16 %v136
  %v398 = vunpack.c.h.b16 %v136
  %v399 = vunpack.c.l.b16 %v137
  %v400 = vunpack.c.l.b16 %v138
  %v401 = vunpack.c.h.b16 %v138
  %v402 = vunpack.c.l.b16 %v139
  %v403 = vunpack.c.h.b16 %v139
  %v404 = vunpack.c.l.b16 %v140
  %v405 = vunpack.c.l.b16 %v141
  %v406 = vunpack.c.h.b16 %v141
  %v407 = vunpack.c.l.b16 %v142
  %v408 = vunpack.c.h.b16 %v142
  %v409 = vunpack.c.l.b16 %v143
  %v410 = vunpack.c.l.b16 %v144
  %v411 = vunpack.c.h.b16 %v144
  %v412 = vunpack.c.l.b16 %v145
  %v413 = vunpack.c.h.b16 %v145
  %v414 = vunpack.c.l.b16 %v146
  %v415 = vunpack.c.l.b16 %v147
  %v416 = vunpack.c.h.b16 %v147
  %v417 = vunpack.c.l.b16 %v148
  %v418 = vunpack.c.h.b16 %v148
  %v419 = vunpack.c.l.b16 %v149
  %v420 = vunpack.c.l.b16 %v150
  %v421 = vunpack.c.h.b16 %v150
  %v422 = vunpack.c.l.b16 %v151
  %v423 = vunpack.c.h.b16 %v151
  %v424 = vunpack.c.l.b16 %v152
  %v425 = vpack.c.b16 %v260, %v255
  %v426 = vpack.c.b16 %v261, %v256
  %v427 = vpack.c.b16 %v262, %v257
  %v428 = vpack.c.b16 %v263, %v258
  %v429 = vpack.c.b16 %v264, %v259
  %v430 = vpack.c.b16 %v270, %v265
  %v431 = vpack.c.b16 %v271, %v266
  %v432 = vpack.c.b16 %v272, %v267
  %v433 = vpack.c.b16 %v273, %v268
  %v434 = vpack.c.b16 %v274, %v269
  %v435 = vpack.c.b16 %v280, %v275
  %v436 = vpack.c.b16 %v281, %v276
  %v437 = vpack.c.b16 %v282, %v277
  %v438 = vpack.c.b16 %v283, %v278
  %v439 = vpack.c.b16 %v284, %v279
  %v440 = vpack.c.b16 %v290, %v285
  %v441 = vpack.c.b16 %v291, %v286
  %v442 = vpack.c.b16 %v292, %v287
  %v443 = vpack.c.b16 %v293, %v288
  %v444 = vpack.c.b16 %v294, %v289
  %v445 = vpack.c.b16 %v300, %v295
  %v446 = vpack.c.b16 %v301, %v296
  %v447 = vpack.c.b16 %v302, %v297
  %v448 = vpack.c.b16 %v303, %v298
  %v449 = vpack.c.b16 %v304, %v299
  %v450 = vpack.c.b16 %v310, %v305
  %v451 = vpack.c.b16 %v311, %v306
  %v452 = vpack.c.b16 %v312, %v307
  %v453 = vpack.c.b16 %v313, %v308
  %v454 = vpack.c.b16 %v314, %v309
  %v455 = vpack.c.b16 %v320, %v315
  %v456 = vpack.c.b16 %v321, %v316
  %v457 = vpack.c.b16 %v322, %v317
  %v458 = vpack.c.b16 %v323, %v318
  %v459 = vpack.c.b16 %v324, %v319
  %v460 = vpack.c.b16 %v330, %v325
  %v461 = vpack.c.b16 %v331, %v326
  %v462 = vpack.c.b16 %v332, %v327
  %v463 = vpack.c.b16 %v333, %v328
  %v464 = vpack.c.b16 %v334, %v329
  %v465 = vpack.c.b16 %v340, %v335
  %v466 = vpack.c.b16 %v341, %v336
  %v467 = vpack.c.b16 %v342, %v337
  %v468 = vpack.c.b16 %v343, %v338
  %v469 = vpack.c.b16 %v344, %v339
  %v470 = vpack.c.b16 %v350, %v345
  %v471 = vpack.c.b16 %v351, %v346
  %v472 = vpack.c.b16 %v352, %v347
  %v473 = vpack.c.b16 %v353, %v348
  %v474 = vpack.c.b16 %v354, %v349
  %v475 = vpack.c.b16 %v360, %v355
  %v476 = vpack.c.b16 %v361, %v356
  %v477 = vpack.c.b16 %v362, %v357
  %v478 = vpack.c.b16 %v363, %v358
  %v479 = vpack.c.b16 %v364, %v359
  %v480 = vpack.c.b16 %v370, %v365
  %v481 = vpack.c.b16 %v371, %v366
  %v482 = vpack.c.b16 %v372, %v367
  %v483 = vpack.c.b16 %v373, %v368
  %v484 = vpack.c.b16 %v374, %v369
  %v485 = vpack.c.b16 %v380, %v375
  %v486 = vpack.c.b16 %v381, %v376
  %v487 = vpack.c.b16 %v382, %v377
  %v488 = vpack.c.b16 %v383, %v378
  %v489 = vpack.c.b16 %v384, %v379
  %v490 = vpack.c.b16 %v390, %v385
  %v491 = vpack.c.b16 %v391, %v386
  %v492 = vpack.c.b16 %v392, %v387
  %v493 = vpack.c.b16 %v393, %v388
  %v494 = vpack.c.b16 %v394, %v389
  %v495 = vpack.c.b16 %v400, %v395
  %v496 = vpack.c.b16 %v401, %v396
  %v497 = vpack.c.b16 %v402, %v397
  %v498 = vpack.c.b16 %v403, %v398
  %v499 = vpack.c.b16 %v404, %v399
  %v500 = vpack.c.b16 %v410, %v405
  %v501 = vpack.c.b16 %v411, %v406
  %v502 = vpack.c.b16 %v412, %v407
  %v503 = vpack.c.b16 %v413, %v408
  %v504 = vpack.c.b16 %v414, %v409
  %v505 = vpack.c.b16 %v420, %v415
  %v506 = vpack.c.b16 %v421, %v416
  %v507 = vpack.c.b16 %v422, %v417
  %v508 = vpack.c.b16 %v423, %v418
  %v509 = vpack.c.b16 %v424, %v419
  %vm590 = vcmask 97280
  %v592 = vsel %vm590, %v50, 0
  %vm594 = vcmask 1045504
  %v596 = vsel %vm594, %v505, 0
  %v599 = vsel %vm594, %v506, 0
  %v602 = vsel %vm594, %v507, 0
  %v605 = vsel %vm594, %v508, 0
  %v608 = vsel %vm594, %v509, 0
  %610 = vmatpush.bf16.msra.mxu0 %v460
  %611 = vmatpush.bf16.msra.mxu0 %v455
  %612 = vmatpush.bf16.msra.mxu0 %v450
  %613 = vmatpush.bf16.msra.mxu0 %v445
  %614 = vmatpush.bf16.msra.mxu0 %v440
  %615 = vmatpush.bf16.msra.mxu0 %v435
  %616 = vmatpush.bf16.msra.mxu0 %v430
  %617 = vmatpush.bf16.msra.mxu0 %v425
  %618 = vmatmul.bf16.gmra.mxu0 %v48
  %v619 = vpop.f32.mrf.mxu0
  %v620 = vadd.f32 0.0, %v619
  %v621 = vpop.f32.mrf.mxu0
  %622 = vdwg.mxu0
  %623 = vmatpush.bf16.msra.mxu0 %v500
  %624 = vmatpush.bf16.msra.mxu0 %v495
  %625 = vmatpush.bf16.msra.mxu0 %v490
  %626 = vmatpush.bf16.msra.mxu0 %v485
  %627 = vmatpush.bf16.msra.mxu0 %v480
  %628 = vmatpush.bf16.msra.mxu0 %v475
  %629 = vmatpush.bf16.msra.mxu0 %v470
  %630 = vmatpush.bf16.msra.mxu0 %v465
  %631 = vmatmul.bf16.gmra.mxu0 %v49
  %v632 = vpop.f32.mrf.mxu0
  %v633 = vadd.f32 %v620, %v632
  %v634 = vpop.f32.mrf.mxu0
  %635 = vdwg.mxu0
  %636 = vmatpush.bf16.msra.mxu0 0
  %637 = vmatpush.bf16.msra.mxu0 0
  %638 = vmatpush.bf16.msra.mxu0 0
  %639 = vmatpush.bf16.msra.mxu0 0
  %640 = vmatpush.bf16.msra.mxu0 0
  %641 = vmatpush.bf16.msra.mxu0 0
  %642 = vmatpush.bf16.msra.mxu0 0
  %643 = vmatpush.bf16.msra.mxu0 %v596
  %644 = vmatmul.bf16.gmra.mxu0 %v592
  %v645 = vpop.f32.mrf.mxu0
  %v646 = vadd.f32 %v633, %v645
  %v647 = vpop.f32.mrf.mxu0
  %648 = vdwg.mxu0
  %649 = vmatpush.bf16.msra.mxu0 %v461
  %650 = vmatpush.bf16.msra.mxu0 %v456
  %651 = vmatpush.bf16.msra.mxu0 %v451
  %652 = vmatpush.bf16.msra.mxu0 %v446
  %653 = vmatpush.bf16.msra.mxu0 %v441
  %654 = vmatpush.bf16.msra.mxu0 %v436
  %655 = vmatpush.bf16.msra.mxu0 %v431
  %656 = vmatpush.bf16.msra.mxu0 %v426
  %657 = vmatmul.bf16.gmra.mxu0 %v48
  %v658 = vpop.f32.mrf.mxu0
  %v659 = vadd.f32 0.0, %v658
  %v660 = vpop.f32.mrf.mxu0
  %661 = vdwg.mxu0
  %662 = vmatpush.bf16.msra.mxu0 %v501
  %663 = vmatpush.bf16.msra.mxu0 %v496
  %664 = vmatpush.bf16.msra.mxu0 %v491
  %665 = vmatpush.bf16.msra.mxu0 %v486
  %666 = vmatpush.bf16.msra.mxu0 %v481
  %667 = vmatpush.bf16.msra.mxu0 %v476
  %668 = vmatpush.bf16.msra.mxu0 %v471
  %669 = vmatpush.bf16.msra.mxu0 %v466
  %670 = vmatmul.bf16.gmra.mxu0 %v49
  %v671 = vpop.f32.mrf.mxu0
  %v672 = vadd.f32 %v659, %v671
  %v673 = vpop.f32.mrf.mxu0
  %674 = vdwg.mxu0
  %675 = vmatpush.bf16.msra.mxu0 0
  %676 = vmatpush.bf16.msra.mxu0 0
  %677 = vmatpush.bf16.msra.mxu0 0
  %678 = vmatpush.bf16.msra.mxu0 0
  %679 = vmatpush.bf16.msra.mxu0 0
  %680 = vmatpush.bf16.msra.mxu0 0
  %681 = vmatpush.bf16.msra.mxu0 0
  %682 = vmatpush.bf16.msra.mxu0 %v599
  %683 = vmatmul.bf16.gmra.mxu0 %v592
  %v684 = vpop.f32.mrf.mxu0
  %v685 = vadd.f32 %v672, %v684
  %v686 = vpop.f32.mrf.mxu0
  %687 = vdwg.mxu0
  %688 = vmatpush.bf16.msra.mxu0 %v462
  %689 = vmatpush.bf16.msra.mxu0 %v457
  %690 = vmatpush.bf16.msra.mxu0 %v452
  %691 = vmatpush.bf16.msra.mxu0 %v447
  %692 = vmatpush.bf16.msra.mxu0 %v442
  %693 = vmatpush.bf16.msra.mxu0 %v437
  %694 = vmatpush.bf16.msra.mxu0 %v432
  %695 = vmatpush.bf16.msra.mxu0 %v427
  %696 = vmatmul.bf16.gmra.mxu0 %v48
  %v697 = vpop.f32.mrf.mxu0
  %v698 = vadd.f32 0.0, %v697
  %v699 = vpop.f32.mrf.mxu0
  %700 = vdwg.mxu0
  %701 = vmatpush.bf16.msra.mxu0 %v502
  %702 = vmatpush.bf16.msra.mxu0 %v497
  %703 = vmatpush.bf16.msra.mxu0 %v492
  %704 = vmatpush.bf16.msra.mxu0 %v487
  %705 = vmatpush.bf16.msra.mxu0 %v482
  %706 = vmatpush.bf16.msra.mxu0 %v477
  %707 = vmatpush.bf16.msra.mxu0 %v472
  %708 = vmatpush.bf16.msra.mxu0 %v467
  %709 = vmatmul.bf16.gmra.mxu0 %v49
  %v710 = vpop.f32.mrf.mxu0
  %v711 = vadd.f32 %v698, %v710
  %v712 = vpop.f32.mrf.mxu0
  %713 = vdwg.mxu0
  %714 = vmatpush.bf16.msra.mxu0 0
  %715 = vmatpush.bf16.msra.mxu0 0
  %716 = vmatpush.bf16.msra.mxu0 0
  %717 = vmatpush.bf16.msra.mxu0 0
  %718 = vmatpush.bf16.msra.mxu0 0
  %719 = vmatpush.bf16.msra.mxu0 0
  %720 = vmatpush.bf16.msra.mxu0 0
  %721 = vmatpush.bf16.msra.mxu0 %v602
  %722 = vmatmul.bf16.gmra.mxu0 %v592
  %v723 = vpop.f32.mrf.mxu0
  %v724 = vadd.f32 %v711, %v723
  %v725 = vpop.f32.mrf.mxu0
  %726 = vdwg.mxu0
  %727 = vmatpush.bf16.msra.mxu0 %v463
  %728 = vmatpush.bf16.msra.mxu0 %v458
  %729 = vmatpush.bf16.msra.mxu0 %v453
  %730 = vmatpush.bf16.msra.mxu0 %v448
  %731 = vmatpush.bf16.msra.mxu0 %v443
  %732 = vmatpush.bf16.msra.mxu0 %v438
  %733 = vmatpush.bf16.msra.mxu0 %v433
  %734 = vmatpush.bf16.msra.mxu0 %v428
  %735 = vmatmul.bf16.gmra.mxu0 %v48
  %v736 = vpop.f32.mrf.mxu0
  %v737 = vadd.f32 0.0, %v736
  %v738 = vpop.f32.mrf.mxu0
  %739 = vdwg.mxu0
  %740 = vmatpush.bf16.msra.mxu0 %v503
  %741 = vmatpush.bf16.msra.mxu0 %v498
  %742 = vmatpush.bf16.msra.mxu0 %v493
  %743 = vmatpush.bf16.msra.mxu0 %v488
  %744 = vmatpush.bf16.msra.mxu0 %v483
  %745 = vmatpush.bf16.msra.mxu0 %v478
  %746 = vmatpush.bf16.msra.mxu0 %v473
  %747 = vmatpush.bf16.msra.mxu0 %v468
  %748 = vmatmul.bf16.gmra.mxu0 %v49
  %v749 = vpop.f32.mrf.mxu0
  %v750 = vadd.f32 %v737, %v749
  %v751 = vpop.f32.mrf.mxu0
  %752 = vdwg.mxu0
  %753 = vmatpush.bf16.msra.mxu0 0
  %754 = vmatpush.bf16.msra.mxu0 0
  %755 = vmatpush.bf16.msra.mxu0 0
  %756 = vmatpush.bf16.msra.mxu0 0
  %757 = vmatpush.bf16.msra.mxu0 0
  %758 = vmatpush.bf16.msra.mxu0 0
  %759 = vmatpush.bf16.msra.mxu0 0
  %760 = vmatpush.bf16.msra.mxu0 %v605
  %761 = vmatmul.bf16.gmra.mxu0 %v592
  %v762 = vpop.f32.mrf.mxu0
  %v763 = vadd.f32 %v750, %v762
  %v764 = vpop.f32.mrf.mxu0
  %765 = vdwg.mxu0
  %766 = vmatpush.bf16.msra.mxu0 %v464
  %767 = vmatpush.bf16.msra.mxu0 %v459
  %768 = vmatpush.bf16.msra.mxu0 %v454
  %769 = vmatpush.bf16.msra.mxu0 %v449
  %770 = vmatpush.bf16.msra.mxu0 %v444
  %771 = vmatpush.bf16.msra.mxu0 %v439
  %772 = vmatpush.bf16.msra.mxu0 %v434
  %773 = vmatpush.bf16.msra.mxu0 %v429
  %774 = vmatmul.bf16.gmra.mxu0 %v48
  %v775 = vpop.f32.mrf.mxu0
  %v776 = vadd.f32 0.0, %v775
  %v777 = vpop.f32.mrf.mxu0
  %778 = vdwg.mxu0
  %779 = vmatpush.bf16.msra.mxu0 %v504
  %780 = vmatpush.bf16.msra.mxu0 %v499
  %781 = vmatpush.bf16.msra.mxu0 %v494
  %782 = vmatpush.bf16.msra.mxu0 %v489
  %783 = vmatpush.bf16.msra.mxu0 %v484
  %784 = vmatpush.bf16.msra.mxu0 %v479
  %785 = vmatpush.bf16.msra.mxu0 %v474
  %786 = vmatpush.bf16.msra.mxu0 %v469
  %787 = vmatmul.bf16.gmra.mxu0 %v49
  %v788 = vpop.f32.mrf.mxu0
  %v789 = vadd.f32 %v776, %v788
  %v790 = vpop.f32.mrf.mxu0
  %791 = vdwg.mxu0
  %792 = vmatpush.bf16.msra.mxu0 0
  %793 = vmatpush.bf16.msra.mxu0 0
  %794 = vmatpush.bf16.msra.mxu0 0
  %795 = vmatpush.bf16.msra.mxu0 0
  %796 = vmatpush.bf16.msra.mxu0 0
  %797 = vmatpush.bf16.msra.mxu0 0
  %798 = vmatpush.bf16.msra.mxu0 0
  %799 = vmatpush.bf16.msra.mxu0 %v608
  %800 = vmatmul.bf16.gmra.mxu0 %v592
  %v801 = vpop.f32.mrf.mxu0
  %v802 = vadd.f32 %v789, %v801
  %v803 = vpop.f32.mrf.mxu0
  %804 = vdwg.mxu0
  %v805 = vpack.c.bf16 %v685, %v646
  %v806 = vpack.c.bf16 %v763, %v724
  %v807 = vpack.c.bf16 %v802, %v802
  %808 = vst [vmem:[%s4] sm:$0xff] %v805
  %809 = vst [vmem:[%s4 + $0x8] sm:$0xff] %v806
  %810 = vst [vmem:[%s4 + $0x10] sm:$0xf] %v807
  // Predicated region
  $region18: #{_lambda_.37} parent=0 // pred_check
    _
  $region19: #{_lambda_.37} parent=0 // pred_check_branch
    %812 = sbr.rel (0) target = $region21
  $region20: #{_lambda_.37} parent=0 // pred_region
    _
  $region21: #{_lambda_.37} parent=0 // pred_fallthru
    _
  // Predicated region
  $region22: #{_lambda_.37} parent=0 // pred_check
    _
  $region23: #{_lambda_.37} parent=0 // pred_check_branch
    %814 = sbr.rel (0) target = $region25
  $region24: #{_lambda_.37} parent=0 // pred_region
    _
  $region25: #{_lambda_.37} parent=0 // pred_fallthru
    _

// kernel: _lambda_.41
$region0: #{_lambda_.41}
  #allocation0 [shape = 'u32[]', space=smem, size = 0x4, offset = 0x4, fixed_abs, tag = 'smem constant byte address 0x4 - core index']
  #allocation1 [shape = 'u32[72,128]{1,0:T(1,128)}', space=vmem, size = 0x9000, scoped, tag = 'internal scratch']
  %s0 = inlined_call_operand.vmem [shape: bf16[2,1,524], index: 0, kind: input, shape index: {}]
  %s1 = inlined_call_operand.vmem [shape: f32[1,1,524], index: 1, kind: input, shape index: {}]
  %s2 = inlined_call_operand.vmem [shape: f32[1,1,524], index: 2, kind: input, shape index: {}]
  %s3 = inlined_call_operand.vmem [shape: f32[524,10], index: 3, kind: input, shape index: {}]
  %s4 = inlined_call_operand.vmem [shape: f32[1,10], index: 4, kind: input, shape index: {}]
  %s5 = inlined_call_operand.hbm [shape: f32[2,10], index: 5, kind: output, shape index: {}]
  %s6 = sld [smem:[#allocation0]]
  $region30: #{_lambda_.41} parent=0
    _
  %s8 = ssub.s32 1, %s6
  %s9 = scalar_select 0, %s8, %s6
  $region1: #{_lambda_.41} parent=0
    #allocation2 [shape = 'u8[1024]{0}', space=vmem, size = 0x400, scoped, tag = 'output window, operand 0, single buffered']
    #allocation3 [shape = 's32[1]{0}', space=sflag, size = 0x4, scoped, tag = 'scoped memory for _lambda_.41']
    %10 = vsyncpa [#allocation3], 0
    // Predicated region
    $region2: #{_lambda_.41} parent=1 // pred_check
      _
    $region3: #{_lambda_.41} parent=1 // pred_check_branch
      %12 = sbr.rel (0) target = $region5
    $region4: #{_lambda_.41} parent=1 // pred_region
      _
    $region5: #{_lambda_.41} parent=1 // pred_fallthru
      _
    // Predicated region
    $region6: #{_lambda_.41} parent=1 // pred_check
      _
    $region7: #{_lambda_.41} parent=1 // pred_check_branch
      %14 = sbr.rel (0) target = $region9
    $region8: #{_lambda_.41} parent=1 // pred_region
      _
    $region9: #{_lambda_.41} parent=1 // pred_fallthru
      _
    // Predicated region
    $region10: #{_lambda_.41} parent=1 // pred_check
      _
    $region11: #{_lambda_.41} parent=1 // pred_check_branch
      %16 = sbr.rel (0) target = $region13
    $region12: #{_lambda_.41} parent=1 // pred_region
      _
    $region13: #{_lambda_.41} parent=1 // pred_fallthru
      _
    // Predicated region
    $region14: #{_lambda_.41} parent=1 // pred_check
      _
    $region15: #{_lambda_.41} parent=1 // pred_check_branch
      %18 = sbr.rel (0) target = $region17
    $region16: #{_lambda_.41} parent=1 // pred_region
      _
    $region17: #{_lambda_.41} parent=1 // pred_fallthru
      _
    // Predicated region
    $region18: #{_lambda_.41} parent=1 // pred_check
      _
    $region19: #{_lambda_.41} parent=1 // pred_check_branch
      %20 = sbr.rel (0) target = $region21
    $region20: #{_lambda_.41} parent=1 // pred_region
      _
    $region21: #{_lambda_.41} parent=1 // pred_fallthru
      _
    %v21 = vld [vmem:[%s0] sm:$0x1f]
    %v22 = vld [vmem:[%s0 + $0x5] sm:$0x1f]
    %v23 = vunpack.c.l.bf16 %v21
    %v24 = vunpack.c.h.bf16 %v21
    %v25 = vunpack.c.l.bf16 %v22
    %v26 = vunpack.c.h.bf16 %v22
    %v27 = vld [vmem:[%s1] sm:$0x1f]
    %v30 = vunpack.c.l.s4 857870592
    %v31 = vunpack.c.0.s8 %v30
    %v32 = vperm.slane %v27, %v31
    %v34 = vunpack.c.l.s4 2003195204
    %v35 = vunpack.c.0.s8 %v34
    %v36 = vperm.slane %v27, %v35
    %v39 = vmul.f32 %v23, %v32
    %v40 = vmul.f32 %v24, %v36
    %v41 = vmul.f32 %v25, %v32
    %v42 = vmul.f32 %v26, %v36
    %v43 = vld [vmem:[%s2] sm:$0x1f]
    %v46 = vunpack.c.l.s4 857870592
    %v47 = vunpack.c.0.s8 %v46
    %v48 = vperm.slane %v43, %v47
    %v50 = vunpack.c.l.s4 2003195204
    %v51 = vunpack.c.0.s8 %v50
    %v52 = vperm.slane %v43, %v51
    %v55 = vadd.f32 %v39, %v48
    %v56 = vadd.f32 %v40, %v52
    %v57 = vadd.f32 %v41, %v48
    %v58 = vadd.f32 %v42, %v52
    %v59 = vmax.f32 %v55, 0.0
    %v60 = vmax.f32 %v56, 0.0
    %v61 = vmax.f32 %v57, 0.0
    %v62 = vmax.f32 %v58, 0.0
    %v63 = vadd.f32 %v59, 0.0
    %v64 = vadd.f32 %v60, 0.0
    %v65 = vadd.f32 %v61, 0.0
    %v66 = vadd.f32 %v62, 0.0
    %v67 = vld [vmem:[%s3] sm:$0xff]
    %v68 = vld [vmem:[%s3 + $0x8] sm:$0xff]
    %v69 = vld [vmem:[%s3 + $0x10] sm:$0xff]
    %v70 = vld [vmem:[%s3 + $0x18] sm:$0xff]
    %v71 = vld [vmem:[%s3 + $0x20] sm:$0xff]
    %v72 = vld [vmem:[%s3 + $0x28] sm:$0xff]
    %v73 = vld [vmem:[%s3 + $0x30] sm:$0xff]
    %v74 = vld [vmem:[%s3 + $0x38] sm:$0xff]
    %v75 = vld [vmem:[%s3 + $0x40] sm:$0xff]
    %v76 = vld [vmem:[%s3 + $0x48] sm:$0xff]
    %v77 = vld [vmem:[%s3 + $0x50] sm:$0xff]
    %v78 = vld [vmem:[%s3 + $0x58] sm:$0xff]
    %v79 = vld [vmem:[%s3 + $0x60] sm:$0xff]
    %v80 = vld [vmem:[%s3 + $0x68] sm:$0xff]
    %v81 = vld [vmem:[%s3 + $0x70] sm:$0xff]
    %v82 = vld [vmem:[%s3 + $0x78] sm:$0xff]
    %v83 = vld [vmem:[%s3 + $0x80] sm:$0xff]
    %v84 = vld [vmem:[%s3 + $0x88] sm:$0xff]
    %v85 = vld [vmem:[%s3 + $0x90] sm:$0xff]
    %v86 = vld [vmem:[%s3 + $0x98] sm:$0xff]
    %v87 = vld [vmem:[%s3 + $0xa0] sm:$0xff]
    %v88 = vld [vmem:[%s3 + $0xa8] sm:$0xff]
    %v89 = vld [vmem:[%s3 + $0xb0] sm:$0xff]
    %v90 = vld [vmem:[%s3 + $0xb8] sm:$0xff]
    %v91 = vld [vmem:[%s3 + $0xc0] sm:$0xff]
    %v92 = vld [vmem:[%s3 + $0xc8] sm:$0xff]
    %v93 = vld [vmem:[%s3 + $0xd0] sm:$0xff]
    %v94 = vld [vmem:[%s3 + $0xd8] sm:$0xff]
    %v95 = vld [vmem:[%s3 + $0xe0] sm:$0xff]
    %v96 = vld [vmem:[%s3 + $0xe8] sm:$0xff]
    %v97 = vld [vmem:[%s3 + $0xf0] sm:$0xff]
    %v98 = vld [vmem:[%s3 + $0xf8] sm:$0xff]
    %v99 = vld [vmem:[%s3 + $0x100] sm:$0xff]
    %v100 = vld [vmem:[%s3 + $0x108] sm:$0xff]
    %v101 = vld [vmem:[%s3 + $0x110] sm:$0xff]
    %v102 = vld [vmem:[%s3 + $0x118] sm:$0xff]
    %v103 = vld [vmem:[%s3 + $0x120] sm:$0xff]
    %v104 = vld [vmem:[%s3 + $0x128] sm:$0xff]
    %v105 = vld [vmem:[%s3 + $0x130] sm:$0xff]
    %v106 = vld [vmem:[%s3 + $0x138] sm:$0xff]
    %v107 = vld [vmem:[%s3 + $0x140] sm:$0xff]
    %v108 = vld [vmem:[%s3 + $0x148] sm:$0xff]
    %v109 = vld [vmem:[%s3 + $0x150] sm:$0xff]
    %v110 = vld [vmem:[%s3 + $0x158] sm:$0xff]
    %v111 = vld [vmem:[%s3 + $0x160] sm:$0xff]
    %v112 = vld [vmem:[%s3 + $0x168] sm:$0xff]
    %v113 = vld [vmem:[%s3 + $0x170] sm:$0xff]
    %v114 = vld [vmem:[%s3 + $0x178] sm:$0xff]
    %v115 = vld [vmem:[%s3 + $0x180] sm:$0xff]
    %v116 = vld [vmem:[%s3 + $0x188] sm:$0xff]
    %v117 = vld [vmem:[%s3 + $0x190] sm:$0xff]
    %v118 = vld [vmem:[%s3 + $0x198] sm:$0xff]
    %v119 = vld [vmem:[%s3 + $0x1a0] sm:$0xff]
    %v120 = vld [vmem:[%s3 + $0x1a8] sm:$0xff]
    %v121 = vld [vmem:[%s3 + $0x1b0] sm:$0xff]
    %v122 = vld [vmem:[%s3 + $0x1b8] sm:$0xff]
    %v123 = vld [vmem:[%s3 + $0x1c0] sm:$0xff]
    %v124 = vld [vmem:[%s3 + $0x1c8] sm:$0xff]
    %v125 = vld [vmem:[%s3 + $0x1d0] sm:$0xff]
    %v126 = vld [vmem:[%s3 + $0x1d8] sm:$0xff]
    %v127 = vld [vmem:[%s3 + $0x1e0] sm:$0xff]
    %v128 = vld [vmem:[%s3 + $0x1e8] sm:$0xff]
    %v129 = vld [vmem:[%s3 + $0x1f0] sm:$0xff]
    %v130 = vld [vmem:[%s3 + $0x1f8] sm:$0xff]
    %v131 = vld [vmem:[%s3 + $0x200] sm:$0xff]
    %v132 = vld [vmem:[%s3 + $0x208] sm:$0xf]
    %v133 = vld [vmem:[%s4] sm:$0x1]
    %v135 = vperm.slane %v133, 0
    %v141 = vperm.slane %v63, 0
    %v142 = vperm.slane %v63, 2
    %v143 = vperm.slane %v63, 4
    %v144 = vperm.slane %v63, 6
    %v145 = vperm.slane %v64, 0
    %v146 = vperm.slane %v65, 0
    %v147 = vperm.slane %v65, 2
    %v148 = vperm.slane %v65, 4
    %v149 = vperm.slane %v65, 6
    %v150 = vperm.slane %v66, 0
    %vm151 = vcmask 1041409
    %v152 = vsel %vm151, %v146, %v141
    %v153 = vsel %vm151, %v147, %v142
    %v154 = vsel %vm151, %v148, %v143
    %v155 = vsel %vm151, %v149, %v144
    %v156 = vsel %vm151, %v150, %v145
    %vm161 = vcmask 97280
    %v162 = vsel %vm161, %v156, 0
    %vm164 = vcmask 1043456
    %v166 = vsel %vm164, %v132, 0
    %168 = vmatpush.msra.mxu0 %v82
    %169 = vmatpush.msra.mxu0 %v81
    %170 = vmatpush.msra.mxu0 %v80
    %171 = vmatpush.msra.mxu0 %v79
    %172 = vmatpush.msra.mxu0 %v78
    %173 = vmatpush.msra.mxu0 %v77
    %174 = vmatpush.msra.mxu0 %v76
    %175 = vmatpush.msra.mxu0 %v75
    %176 = vmatpush.msra.mxu0 %v74
    %177 = vmatpush.msra.mxu0 %v73
    %178 = vmatpush.msra.mxu0 %v72
    %179 = vmatpush.msra.mxu0 %v71
    %180 = vmatpush.msra.mxu0 %v70
    %181 = vmatpush.msra.mxu0 %v69
    %182 = vmatpush.msra.mxu0 %v68
    %183 = vmatpush.msra.mxu0 %v67
    %184 = vmatmul.f32.gmra.mxu0 %v152
    %v185 = vpop.f32.mrf.mxu0
    %v186 = vadd.f32 %v135, %v185
    %187 = vdwg.mxu0
    %188 = vmatpush.msra.mxu0 %v98
    %189 = vmatpush.msra.mxu0 %v97
    %190 = vmatpush.msra.mxu0 %v96
    %191 = vmatpush.msra.mxu0 %v95
    %192 = vmatpush.msra.mxu0 %v94
    %193 = vmatpush.msra.mxu0 %v93
    %194 = vmatpush.msra.mxu0 %v92
    %195 = vmatpush.msra.mxu0 %v91
    %196 = vmatpush.msra.mxu0 %v90
    %197 = vmatpush.msra.mxu0 %v89
    %198 = vmatpush.msra.mxu0 %v88
    %199 = vmatpush.msra.mxu0 %v87
    %200 = vmatpush.msra.mxu0 %v86
    %201 = vmatpush.msra.mxu0 %v85
    %202 = vmatpush.msra.mxu0 %v84
    %203 = vmatpush.msra.mxu0 %v83
    %204 = vmatmul.f32.gmra.mxu0 %v153
    %v205 = vpop.f32.mrf.mxu0
    %v206 = vadd.f32 %v186, %v205
    %207 = vdwg.mxu0
    %208 = vmatpush.msra.mxu0 %v114
    %209 = vmatpush.msra.mxu0 %v113
    %210 = vmatpush.msra.mxu0 %v112
    %211 = vmatpush.msra.mxu0 %v111
    %212 = vmatpush.msra.mxu0 %v110
    %213 = vmatpush.msra.mxu0 %v109
    %214 = vmatpush.msra.mxu0 %v108
    %215 = vmatpush.msra.mxu0 %v107
    %216 = vmatpush.msra.mxu0 %v106
    %217 = vmatpush.msra.mxu0 %v105
    %218 = vmatpush.msra.mxu0 %v104
    %219 = vmatpush.msra.mxu0 %v103
    %220 = vmatpush.msra.mxu0 %v102
    %221 = vmatpush.msra.mxu0 %v101
    %222 = vmatpush.msra.mxu0 %v100
    %223 = vmatpush.msra.mxu0 %v99
    %224 = vmatmul.f32.gmra.mxu0 %v154
    %v225 = vpop.f32.mrf.mxu0
    %v226 = vadd.f32 %v206, %v225
    %227 = vdwg.mxu0
    %228 = vmatpush.msra.mxu0 %v130
    %229 = vmatpush.msra.mxu0 %v129
    %230 = vmatpush.msra.mxu0 %v128
    %231 = vmatpush.msra.mxu0 %v127
    %232 = vmatpush.msra.mxu0 %v126
    %233 = vmatpush.msra.mxu0 %v125
    %234 = vmatpush.msra.mxu0 %v124
    %235 = vmatpush.msra.mxu0 %v123
    %236 = vmatpush.msra.mxu0 %v122
    %237 = vmatpush.msra.mxu0 %v121
    %238 = vmatpush.msra.mxu0 %v120
    %239 = vmatpush.msra.mxu0 %v119
    %240 = vmatpush.msra.mxu0 %v118
    %241 = vmatpush.msra.mxu0 %v117
    %242 = vmatpush.msra.mxu0 %v116
    %243 = vmatpush.msra.mxu0 %v115
    %244 = vmatmul.f32.gmra.mxu0 %v155
    %v245 = vpop.f32.mrf.mxu0
    %v246 = vadd.f32 %v226, %v245
    %247 = vdwg.mxu0
    %248 = vmatpush.msra.mxu0 0.0
    %249 = vmatpush.msra.mxu0 0.0
    %250 = vmatpush.msra.mxu0 0.0
    %251 = vmatpush.msra.mxu0 0.0
    %252 = vmatpush.msra.mxu0 0.0
    %253 = vmatpush.msra.mxu0 0.0
    %254 = vmatpush.msra.mxu0 0.0
    %255 = vmatpush.msra.mxu0 0.0
    %256 = vmatpush.msra.mxu0 0.0
    %257 = vmatpush.msra.mxu0 0.0
    %258 = vmatpush.msra.mxu0 0.0
    %259 = vmatpush.msra.mxu0 0.0
    %260 = vmatpush.msra.mxu0 0.0
    %261 = vmatpush.msra.mxu0 0.0
    %262 = vmatpush.msra.mxu0 %v166
    %263 = vmatpush.msra.mxu0 %v131
    %264 = vmatmul.f32.gmra.mxu0 %v162
    %v265 = vpop.f32.mrf.mxu0
    %v266 = vadd.f32 %v246, %v265
    %267 = vdwg.mxu0
    %vm268 = vcmask 74752
    %269 = vst.msk [vmem:[#allocation2] sm:$0x3] %vm268, %v266
    // Predicated region
    $region22: #{_lambda_.41} parent=1 // pred_check
      _
    $region23: #{_lambda_.41} parent=1 // pred_check_branch
      %271 = sbr.rel (0) target = $region25
    $region24: #{_lambda_.41} parent=1 // pred_region
      %273 = vsyncadd [#allocation3], 0
      %s275 = sshll.u32 [#allocation2], 4
      %s276 = int_to_ptr.vmem [resolvable:$true] %s275
      %s277 = sshll.u32 %s5, 4
      %s278 = int_to_ptr.hbm [resolvable:$true] %s277
      %280 = dma.vmem_to_hbm [thread:$0]  %s276, 32, %s278, [#allocation3]
    $region25: #{_lambda_.41} parent=1 // pred_fallthru
      _
    // Predicated region
    $region26: #{_lambda_.41} parent=1 // pred_check
      _
    $region27: #{_lambda_.41} parent=1 // pred_check_branch
      %282 = sbr.rel (0) target = $region29
    $region28: #{_lambda_.41} parent=1 // pred_region
      %284 = dma.done [#allocation3], 32
    $region29: #{_lambda_.41} parent=1 // pred_fallthru
      _
    %285 = vsyncpa [#allocation3], 1

</llo_original>
